<compile_context>
chip_gen: v6e
topology: v6e:2x2x1
jax: 0.10.0
libtpu: 0.0.40
codegen_flags: <defaults>
</compile_context>

<pallas_src>
import functools
import math

import jax
import jax.numpy as jnp
from jax.experimental import pallas as pl
from jax.experimental.pallas import tpu as pltpu


def _mha_kernel(xq_ref, xk_ref, xv_ref, wq_ref, wk_ref, wv_ref, wfc_ref,
                gamma_ref, beta_ref, out_ref, attn_ref, *, num_head, eps):
    f32 = jnp.float32
    bf16 = jnp.bfloat16

    Bt, Tq, E = xq_ref.shape
    _, Sk, _ = xk_ref.shape
    HD = wq_ref.shape[-1]
    H = num_head
    D = HD // H
    N = Bt * H

    xq = xq_ref[...]                                    # (Bt, Tq, E) f32 residual path
    xq2 = xq.reshape(Bt * Tq, E).astype(bf16)
    xk2 = xk_ref[...].reshape(Bt * Sk, E).astype(bf16)
    xv2 = xv_ref[...].reshape(Bt * Sk, E).astype(bf16)

    # Fused projections: one (Bt*S, E) @ (E, H*D) MXU matmul each, f32 accum.
    # The softmax scale 1/sqrt(E) is pre-folded into W_Q in the wrapper.
    q = jnp.dot(xq2, wq_ref[...], preferred_element_type=f32)    # (Bt*Tq, HD)
    k = jnp.dot(xk2, wk_ref[...], preferred_element_type=f32)    # (Bt*Sk, HD)
    v = jnp.dot(xv2, wv_ref[...], preferred_element_type=f32)    # (Bt*Sk, HD)

    # Head split with only supported relayouts: leading-dim reshape, batched
    # minor (0,2,1) transpose, sublane-aligned fold HD -> (H, D) (D % 8 == 0).
    def heads_dxS(x, S):                                # (Bt*S, HD) -> (Bt*H, D, S)
        xt = jnp.transpose(x.reshape(Bt, S, HD), (0, 2, 1))      # (Bt, HD, S)
        return xt.reshape(N, D, S)

    q_t = heads_dxS(q, Tq)                              # (N, D, Tq) f32
    k_t = heads_dxS(k, Sk)                              # (N, D, Sk) f32
    v_t = heads_dxS(v, Sk)                              # (N, D, Sk) f32
    q_h = jnp.transpose(q_t, (0, 2, 1)).astype(bf16)    # (N, Tq, D)
    v_h = jnp.transpose(v_t, (0, 2, 1)).astype(bf16)    # (N, Sk, D)
    k_b = k_t.astype(bf16)                              # (N, D, Sk)

    # Attention scores for every (batch, head) pair: canonical batched matmul.
    scores = jnp.einsum('nqd,ndk->nqk', q_h, k_b,
                        preferred_element_type=f32)     # (N, Tq, Sk)

    # Softmax in f32 (max-subtracted); denominator reciprocal on the EUP.
    m = jnp.max(scores, axis=-1, keepdims=True)
    e = jnp.exp(scores - m)
    denom = jnp.sum(e, axis=-1, keepdims=True)          # >= 1, approx rcp is safe
    attn = e * pl.reciprocal(denom, approx=True)        # (N, Tq, Sk) f32
    attn_ref[...] = attn                                # lane dim = Sk

    # Per-head context.
    ctx = jnp.einsum('nqk,nkd->nqd', attn.astype(bf16), v_h,
                     preferred_element_type=f32)        # (N, Tq, D)

    # Merge heads back to (Bt*Tq, H*D) so the output projection is a single
    # matmul with contraction depth H*D (no per-head sum).
    ctx_t = jnp.transpose(ctx, (0, 2, 1))               # (N, D, Tq)
    ctx_m = jnp.transpose(ctx_t.reshape(Bt, HD, Tq), (0, 2, 1))  # (Bt, Tq, HD)
    ctx_f = ctx_m.reshape(Bt * Tq, HD).astype(bf16)

    outp = jnp.dot(ctx_f, wfc_ref[...],
                   preferred_element_type=f32).reshape(Bt, Tq, E)

    # Residual + LayerNorm over the last dim (f32, biased variance).
    y = outp + xq
    mean = jnp.mean(y, axis=-1, keepdims=True)
    var = jnp.mean(jnp.square(y - mean), axis=-1, keepdims=True)
    normed = (y - mean) * jax.lax.rsqrt(var + eps)
    out_ref[...] = normed * gamma_ref[...] + beta_ref[...]


def _vmem_budget_bytes():
    """Generation-aware scoped-VMEM limit (~96 MiB on v5e/v6e, ~48 MiB on v7x)."""
    cap = 64 * 1024 * 1024
    try:
        info = pltpu.get_tpu_info()
        cap = int(getattr(info, "vmem_capacity_bytes", cap) or cap)
    except Exception:
        pass
    return min(cap * 3 // 4, 100 * 1024 * 1024)


def multi_head_attention(input_Q, input_K, input_V, Wq, Wk, Wv, Wfc, gamma, beta, *,
                         num_head, hidden_dim, batch_block=None, q_block=None):
    B, Sq, E = input_Q.shape
    _, Sk, _ = input_K.shape
    H, D = num_head, hidden_dim
    HD = H * D
    assert Wq.shape == (E, HD) and Wk.shape == (E, HD) and Wv.shape == (E, HD)
    assert Wfc.shape == (HD, E)
    assert D % 8 == 0, "per-head hidden_dim must be a multiple of 8 (sublane-aligned head split)"

    # ScaledDotProductAttention(input_dim) => scale = 1/sqrt(E); fold into W_Q.
    scale = 1.0 / math.sqrt(E)
    wq2 = (Wq * scale).astype(jnp.bfloat16)             # (E, HD)
    wk2 = Wk.astype(jnp.bfloat16)
    wv2 = Wv.astype(jnp.bfloat16)
    wfc2 = Wfc.astype(jnp.bfloat16)                     # (HD, E)
    gamma2 = gamma.reshape(1, E).astype(jnp.float32)
    beta2 = beta.reshape(1, E).astype(jnp.float32)

    vmem_limit = _vmem_budget_bytes()

    # q tiling bounds the per-step scores/attn working set for long sequences.
    if q_block is None:
        q_block = Sq
        for cand in (128, 256, 512, 64, 32, 16, 8):
            if Sq % cand == 0:
                q_block = cand
                break
    assert Sq % q_block == 0

    def step_bytes(bt):
        n = bt * H
        f4, b2 = 4, 2
        io = 2 * (bt * q_block * E * f4 + 2 * bt * Sk * E * f4       # inputs (2 buffers)
                  + bt * q_block * E * f4 + n * q_block * Sk * f4)   # outputs (2 buffers)
        w = 2 * (3 * E * HD + HD * E) * b2 + 4 * E * f4              # weights / LN params
        interm = (3 * bt * (q_block + 2 * Sk) * HD * f4              # q/k/v + relayouts
                  + 3 * n * q_block * Sk * f4                        # scores / exp / attn
                  + 2 * bt * q_block * (HD + E) * f4)                # ctx / out
        return io + w + interm

    if batch_block is None:
        budget = int(vmem_limit * 0.6)
        batch_block = 1
        for bt in range(1, B + 1):
            if B % bt != 0:
                continue
            if B >= 2 and B // bt < 2:
                continue  # keep >= 2 batch steps so both v7x TensorCores get work
            if step_bytes(bt) <= budget:
                batch_block = bt
    assert B % batch_block == 0

    grid = (B // batch_block, Sq // q_block)
    kernel = functools.partial(_mha_kernel, num_head=H, eps=1e-5)

    out_shapes = (
        jax.ShapeDtypeStruct((B, Sq, E), jnp.float32),            # LayerNorm(out + residual)
        jax.ShapeDtypeStruct((B * H, Sq, Sk), jnp.float32),       # attention weights (flat B*H)
    )

    out, attn_flat = pl.pallas_call(
        kernel,
        out_shape=out_shapes,
        grid=grid,
        in_specs=[
            pl.BlockSpec((batch_block, q_block, E), lambda b, q: (b, q, 0)),
            pl.BlockSpec((batch_block, Sk, E), lambda b, q: (b, 0, 0)),
            pl.BlockSpec((batch_block, Sk, E), lambda b, q: (b, 0, 0)),
            # Grid-invariant weights: constant index_map => fetched once, not per step.
            pl.BlockSpec((E, HD), lambda b, q: (0, 0)),
            pl.BlockSpec((E, HD), lambda b, q: (0, 0)),
            pl.BlockSpec((E, HD), lambda b, q: (0, 0)),
            pl.BlockSpec((HD, E), lambda b, q: (0, 0)),
            pl.BlockSpec((1, E), lambda b, q: (0, 0)),
            pl.BlockSpec((1, E), lambda b, q: (0, 0)),
        ],
        out_specs=(
            pl.BlockSpec((batch_block, q_block, E), lambda b, q: (b, q, 0)),
            pl.BlockSpec((batch_block * H, q_block, Sk), lambda b, q: (b, q, 0)),
        ),
        compiler_params=pltpu.CompilerParams(
            dimension_semantics=("parallel", "parallel"),
            vmem_limit_bytes=int(vmem_limit),
        ),
    )(input_Q, input_K, input_V, wq2, wk2, wv2, wfc2, gamma2, beta2)

    return out, attn_flat.reshape(B, H, Sq, Sk)


def _reference(input_Q, input_K, input_V, Wq, Wk, Wv, Wfc, gamma, beta,
               num_head, hidden_dim):
    B, Sq, E = input_Q.shape
    _, Sk, _ = input_K.shape
    H, D = num_head, hidden_dim
    Q = (input_Q @ Wq).reshape(B, Sq, H, D).transpose(0, 2, 1, 3)
    K = (input_K @ Wk).reshape(B, Sk, H, D).transpose(0, 2, 1, 3)
    V = (input_V @ Wv).reshape(B, Sk, H, D).transpose(0, 2, 1, 3)
    scores = jnp.einsum("bhqd,bhkd->bhqk", Q, K) / math.sqrt(E)
    attn = jax.nn.softmax(scores, axis=-1)
    ctx = jnp.einsum("bhqk,bhkd->bhqd", attn, V)
    ctx = ctx.transpose(0, 2, 1, 3).reshape(B, Sq, H * D)
    out = ctx @ Wfc + input_Q
    mean = out.mean(-1, keepdims=True)
    var = ((out - mean) ** 2).mean(-1, keepdims=True)
    normed = (out - mean) / jnp.sqrt(var + 1e-5) * gamma[0] + beta[0]
    return normed, attn


if __name__ == "__main__":
    # Small, deterministic configuration.  Sq=256 / Sk=128 exercises both the
    # batch grid axis and the q-tiling grid axis (grid = (2, 2)) while staying tiny.
    B, Sq, Sk = 4, 256, 128
    input_dim, hidden_dim, num_head = 32, 16, 4
    HD = num_head * hidden_dim

    key = jax.random.PRNGKey(0)
    k_q, k_k, k_v, k_wq, k_wk, k_wv, k_fc = jax.random.split(key, 7)

    input_Q = jax.random.normal(k_q, (B, Sq, input_dim), jnp.float32)
    input_K = jax.random.normal(k_k, (B, Sk, input_dim), jnp.float32)
    input_V = jax.random.normal(k_v, (B, Sk, input_dim), jnp.float32)

    # nn.Linear(in, out, bias=False) weights, stored transposed as (in, out).
    init_scale = 0.1
    Wq = init_scale * jax.random.normal(k_wq, (input_dim, HD), jnp.float32)
    Wk = init_scale * jax.random.normal(k_wk, (input_dim, HD), jnp.float32)
    Wv = init_scale * jax.random.normal(k_wv, (input_dim, HD), jnp.float32)
    Wfc = init_scale * jax.random.normal(k_fc, (HD, input_dim), jnp.float32)

    # LayerNorm default init: weight=1, bias=0.
    gamma = jnp.ones((1, input_dim), jnp.float32)
    beta = jnp.zeros((1, input_dim), jnp.float32)

    out, attn = multi_head_attention(
        input_Q, input_K, input_V, Wq, Wk, Wv, Wfc, gamma, beta,
        num_head=num_head, hidden_dim=hidden_dim)
    jax.block_until_ready((out, attn))

    assert out.shape == (B, Sq, input_dim)
    assert attn.shape == (B, num_head, Sq, Sk)

    # Sanity check against a pure-JAX f32 reference of the PyTorch forward.
    # Tolerances account for bf16 MXU inputs (f32 accumulation, f32 softmax/LN)
    # and the approx reciprocal in the softmax normalization.
    ref_out, ref_attn = _reference(input_Q, input_K, input_V, Wq, Wk, Wv, Wfc,
                                   gamma, beta, num_head, hidden_dim)
    assert jnp.allclose(out, ref_out, atol=5e-2, rtol=5e-2)
    assert jnp.allclose(attn, ref_attn, atol=2e-2)

    print("KERNEL_OK")
</pallas_src>

<mosaic_0001>
module attributes {stable_mosaic.version = 11 : i64} {
  func.func @_mha_kernel(%arg0: i32, %arg1: i32, %arg2: memref<2x128x32xf32, #tpu.memory_space<vmem>>, %arg3: memref<2x128x32xf32, #tpu.memory_space<vmem>>, %arg4: memref<2x128x32xf32, #tpu.memory_space<vmem>>, %arg5: memref<32x64xbf16, #tpu.memory_space<vmem>>, %arg6: memref<32x64xbf16, #tpu.memory_space<vmem>>, %arg7: memref<32x64xbf16, #tpu.memory_space<vmem>>, %arg8: memref<64x32xbf16, #tpu.memory_space<vmem>>, %arg9: memref<1x32xf32, #tpu.memory_space<vmem>>, %arg10: memref<1x32xf32, #tpu.memory_space<vmem>>, %arg11: memref<2x128x32xf32, #tpu.memory_space<vmem>>, %arg12: memref<8x128x128xf32, #tpu.memory_space<vmem>>) attributes {dimension_semantics = [#tpu.dimension_semantics<parallel>, #tpu.dimension_semantics<parallel>], iteration_bounds = array<i64: 2, 2>, scalar_prefetch = 0 : i64, scratch_operands = 0 : i64, tpu.core_type = #tpu.core_type<tc>, window_params = [{transform_indices = @transform_0, window_bounds = array<i64: 2, 128, 32>}, {transform_indices = @transform_1, window_bounds = array<i64: 2, 128, 32>}, {transform_indices = @transform_2, window_bounds = array<i64: 2, 128, 32>}, {pipeline_mode = #tpu.pipeline_mode<synchronous>, transform_indices = @transform_3, window_bounds = array<i64: 32, 64>}, {pipeline_mode = #tpu.pipeline_mode<synchronous>, transform_indices = @transform_4, window_bounds = array<i64: 32, 64>}, {pipeline_mode = #tpu.pipeline_mode<synchronous>, transform_indices = @transform_5, window_bounds = array<i64: 32, 64>}, {pipeline_mode = #tpu.pipeline_mode<synchronous>, transform_indices = @transform_6, window_bounds = array<i64: 64, 32>}, {pipeline_mode = #tpu.pipeline_mode<synchronous>, transform_indices = @transform_7, window_bounds = array<i64: 1, 32>}, {pipeline_mode = #tpu.pipeline_mode<synchronous>, transform_indices = @transform_8, window_bounds = array<i64: 1, 32>}, {transform_indices = @transform_9, window_bounds = array<i64: 2, 128, 32>}, {transform_indices = @transform_10, window_bounds = array<i64: 8, 128, 128>}]} {
    %c0 = arith.constant 0 : index
    %c0_0 = arith.constant 0 : index
    %c0_1 = arith.constant 0 : index
    %0 = vector.load %arg2[%c0, %c0_0, %c0_1] : memref<2x128x32xf32, #tpu.memory_space<vmem>>, vector<2x128x32xf32>
    %1 = vector.shape_cast %0 : vector<2x128x32xf32> to vector<256x32xf32>
    %2 = arith.truncf %1 : vector<256x32xf32> to vector<256x32xbf16>
    %c0_2 = arith.constant 0 : index
    %c0_3 = arith.constant 0 : index
    %c0_4 = arith.constant 0 : index
    %3 = vector.load %arg3[%c0_2, %c0_3, %c0_4] : memref<2x128x32xf32, #tpu.memory_space<vmem>>, vector<2x128x32xf32>
    %4 = vector.shape_cast %3 : vector<2x128x32xf32> to vector<256x32xf32>
    %5 = arith.truncf %4 : vector<256x32xf32> to vector<256x32xbf16>
    %c0_5 = arith.constant 0 : index
    %c0_6 = arith.constant 0 : index
    %c0_7 = arith.constant 0 : index
    %6 = vector.load %arg4[%c0_5, %c0_6, %c0_7] : memref<2x128x32xf32, #tpu.memory_space<vmem>>, vector<2x128x32xf32>
    %7 = vector.shape_cast %6 : vector<2x128x32xf32> to vector<256x32xf32>
    %8 = arith.truncf %7 : vector<256x32xf32> to vector<256x32xbf16>
    %c0_8 = arith.constant 0 : index
    %c0_9 = arith.constant 0 : index
    %9 = vector.load %arg5[%c0_8, %c0_9] : memref<32x64xbf16, #tpu.memory_space<vmem>>, vector<32x64xbf16>
    %cst = arith.constant dense<0.000000e+00> : vector<256x64xf32>
    %10 = tpu.matmul %2, %9, %cst {dimension_numbers = #tpu.dot_dimension_numbers<[1], [0], [0], [1], [0, 0, 1, 1], [], []>} : vector<256x32xbf16>, vector<32x64xbf16>, vector<256x64xf32> -> vector<256x64xf32>
    %c0_10 = arith.constant 0 : index
    %c0_11 = arith.constant 0 : index
    %11 = vector.load %arg6[%c0_10, %c0_11] : memref<32x64xbf16, #tpu.memory_space<vmem>>, vector<32x64xbf16>
    %cst_12 = arith.constant dense<0.000000e+00> : vector<256x64xf32>
    %12 = tpu.matmul %5, %11, %cst_12 {dimension_numbers = #tpu.dot_dimension_numbers<[1], [0], [0], [1], [0, 0, 1, 1], [], []>} : vector<256x32xbf16>, vector<32x64xbf16>, vector<256x64xf32> -> vector<256x64xf32>
    %c0_13 = arith.constant 0 : index
    %c0_14 = arith.constant 0 : index
    %13 = vector.load %arg7[%c0_13, %c0_14] : memref<32x64xbf16, #tpu.memory_space<vmem>>, vector<32x64xbf16>
    %cst_15 = arith.constant dense<0.000000e+00> : vector<256x64xf32>
    %14 = tpu.matmul %8, %13, %cst_15 {dimension_numbers = #tpu.dot_dimension_numbers<[1], [0], [0], [1], [0, 0, 1, 1], [], []>} : vector<256x32xbf16>, vector<32x64xbf16>, vector<256x64xf32> -> vector<256x64xf32>
    %15 = vector.shape_cast %10 : vector<256x64xf32> to vector<2x128x64xf32>
    %16 = tpu.transpose %15, [0, 2, 1] : vector<2x128x64xf32> -> vector<2x64x128xf32>
    %17 = vector.shape_cast %16 : vector<2x64x128xf32> to vector<8x16x128xf32>
    %18 = vector.shape_cast %12 : vector<256x64xf32> to vector<2x128x64xf32>
    %19 = tpu.transpose %18, [0, 2, 1] : vector<2x128x64xf32> -> vector<2x64x128xf32>
    %20 = vector.shape_cast %19 : vector<2x64x128xf32> to vector<8x16x128xf32>
    %21 = vector.shape_cast %14 : vector<256x64xf32> to vector<2x128x64xf32>
    %22 = tpu.transpose %21, [0, 2, 1] : vector<2x128x64xf32> -> vector<2x64x128xf32>
    %23 = vector.shape_cast %22 : vector<2x64x128xf32> to vector<8x16x128xf32>
    %24 = tpu.transpose %17, [0, 2, 1] : vector<8x16x128xf32> -> vector<8x128x16xf32>
    %25 = arith.truncf %24 : vector<8x128x16xf32> to vector<8x128x16xbf16>
    %26 = tpu.transpose %23, [0, 2, 1] : vector<8x16x128xf32> -> vector<8x128x16xf32>
    %27 = arith.truncf %26 : vector<8x128x16xf32> to vector<8x128x16xbf16>
    %28 = arith.truncf %20 : vector<8x16x128xf32> to vector<8x16x128xbf16>
    "tpu.trace_start"() <{level = 10 : i32, message = "nqd,ndk->nqk"}> : () -> ()
    %cst_16 = arith.constant dense<0.000000e+00> : vector<8x128x128xf32>
    %29 = tpu.matmul %25, %28, %cst_16 {dimension_numbers = #tpu.dot_dimension_numbers<[2], [1], [1], [2], [0, 0, 0, 1, 1, 2], [0], [0]>} : vector<8x128x16xbf16>, vector<8x16x128xbf16>, vector<8x128x128xf32> -> vector<8x128x128xf32>
    "tpu.trace_stop"() : () -> ()
    %cst_17 = arith.constant dense<0xFF800000> : vector<8x128xf32>
    %30 = vector.multi_reduction <maximumf>, %29, %cst_17 [2] : vector<8x128x128xf32> to vector<8x128xf32>
    %31 = vector.shape_cast %30 : vector<8x128xf32> to vector<8x128x1xf32>
    %32 = vector.broadcast %31 : vector<8x128x1xf32> to vector<8x128x128xf32>
    %33 = arith.subf %29, %32 : vector<8x128x128xf32>
    %34 = math.exp %33 : vector<8x128x128xf32>
    %cst_18 = arith.constant dense<0.000000e+00> : vector<8x128xf32>
    %35 = vector.multi_reduction <add>, %34, %cst_18 [2] : vector<8x128x128xf32> to vector<8x128xf32>
    %36 = vector.shape_cast %35 : vector<8x128xf32> to vector<8x128x1xf32>
    %37 = tpu.reciprocal %36 {approx = true} : vector<8x128x1xf32> -> vector<8x128x1xf32>
    %38 = vector.broadcast %37 : vector<8x128x1xf32> to vector<8x128x128xf32>
    %39 = arith.mulf %34, %38 : vector<8x128x128xf32>
    %c0_19 = arith.constant 0 : index
    %c0_20 = arith.constant 0 : index
    %c0_21 = arith.constant 0 : index
    %40 = vector.load %arg12[%c0_19, %c0_20, %c0_21] : memref<8x128x128xf32, #tpu.memory_space<vmem>>, vector<8x128x128xf32>
    tpu.vector_store %arg12[%c0_19, %c0_20, %c0_21], %39 {strides = array<i32>} : memref<8x128x128xf32, #tpu.memory_space<vmem>>, vector<8x128x128xf32>,
    %41 = arith.truncf %39 : vector<8x128x128xf32> to vector<8x128x128xbf16>
    "tpu.trace_start"() <{level = 10 : i32, message = "nqk,nkd->nqd"}> : () -> ()
    %cst_22 = arith.constant dense<0.000000e+00> : vector<8x128x16xf32>
    %42 = tpu.matmul %41, %27, %cst_22 {dimension_numbers = #tpu.dot_dimension_numbers<[2], [1], [1], [2], [0, 0, 0, 1, 1, 2], [0], [0]>} : vector<8x128x128xbf16>, vector<8x128x16xbf16>, vector<8x128x16xf32> -> vector<8x128x16xf32>
    "tpu.trace_stop"() : () -> ()
    %43 = tpu.transpose %42, [0, 2, 1] : vector<8x128x16xf32> -> vector<8x16x128xf32>
    %44 = vector.shape_cast %43 : vector<8x16x128xf32> to vector<2x64x128xf32>
    %45 = tpu.transpose %44, [0, 2, 1] : vector<2x64x128xf32> -> vector<2x128x64xf32>
    %46 = vector.shape_cast %45 : vector<2x128x64xf32> to vector<256x64xf32>
    %47 = arith.truncf %46 : vector<256x64xf32> to vector<256x64xbf16>
    %c0_23 = arith.constant 0 : index
    %c0_24 = arith.constant 0 : index
    %48 = vector.load %arg8[%c0_23, %c0_24] : memref<64x32xbf16, #tpu.memory_space<vmem>>, vector<64x32xbf16>
    %cst_25 = arith.constant dense<0.000000e+00> : vector<256x32xf32>
    %49 = tpu.matmul %47, %48, %cst_25 {dimension_numbers = #tpu.dot_dimension_numbers<[1], [0], [0], [1], [0, 0, 1, 1], [], []>} : vector<256x64xbf16>, vector<64x32xbf16>, vector<256x32xf32> -> vector<256x32xf32>
    %50 = vector.shape_cast %49 : vector<256x32xf32> to vector<2x128x32xf32>
    %51 = arith.addf %50, %0 : vector<2x128x32xf32>
    %cst_26 = arith.constant dense<0.000000e+00> : vector<2x128xf32>
    %52 = vector.multi_reduction <add>, %51, %cst_26 [2] : vector<2x128x32xf32> to vector<2x128xf32>
    %53 = vector.shape_cast %52 : vector<2x128xf32> to vector<2x128x1xf32>
    %cst_27 = arith.constant 3.200000e+01 : f32
    %54 = vector.broadcast %cst_27 : f32 to vector<2x128x1xf32>
    %55 = arith.divf %53, %54 : vector<2x128x1xf32>
    %56 = vector.broadcast %55 : vector<2x128x1xf32> to vector<2x128x32xf32>
    %57 = arith.subf %51, %56 : vector<2x128x32xf32>
    %58 = arith.mulf %57, %57 : vector<2x128x32xf32>
    %cst_28 = arith.constant dense<0.000000e+00> : vector<2x128xf32>
    %59 = vector.multi_reduction <add>, %58, %cst_28 [2] : vector<2x128x32xf32> to vector<2x128xf32>
    %60 = vector.shape_cast %59 : vector<2x128xf32> to vector<2x128x1xf32>
    %cst_29 = arith.constant 3.200000e+01 : f32
    %61 = vector.broadcast %cst_29 : f32 to vector<2x128x1xf32>
    %62 = arith.divf %60, %61 : vector<2x128x1xf32>
    %63 = vector.broadcast %55 : vector<2x128x1xf32> to vector<2x128x32xf32>
    %64 = arith.subf %51, %63 : vector<2x128x32xf32>
    %cst_30 = arith.constant 9.99999974E-6 : f32
    %65 = vector.broadcast %cst_30 : f32 to vector<2x128x1xf32>
    %66 = arith.addf %62, %65 : vector<2x128x1xf32>
    %67 = math.rsqrt %66 : vector<2x128x1xf32>
    %68 = vector.broadcast %67 : vector<2x128x1xf32> to vector<2x128x32xf32>
    %69 = arith.mulf %64, %68 : vector<2x128x32xf32>
    %c0_31 = arith.constant 0 : index
    %c0_32 = arith.constant 0 : index
    %70 = vector.load %arg9[%c0_31, %c0_32] : memref<1x32xf32, #tpu.memory_space<vmem>>, vector<1x32xf32>
    %71 = vector.shape_cast %70 : vector<1x32xf32> to vector<1x1x32xf32>
    %72 = vector.broadcast %71 : vector<1x1x32xf32> to vector<2x128x32xf32>
    %73 = arith.mulf %69, %72 : vector<2x128x32xf32>
    %c0_33 = arith.constant 0 : index
    %c0_34 = arith.constant 0 : index
    %74 = vector.load %arg10[%c0_33, %c0_34] : memref<1x32xf32, #tpu.memory_space<vmem>>, vector<1x32xf32>
    %75 = vector.shape_cast %74 : vector<1x32xf32> to vector<1x1x32xf32>
    %76 = vector.broadcast %75 : vector<1x1x32xf32> to vector<2x128x32xf32>
    %77 = arith.addf %73, %76 : vector<2x128x32xf32>
    %c0_35 = arith.constant 0 : index
    %c0_36 = arith.constant 0 : index
    %c0_37 = arith.constant 0 : index
    %78 = vector.load %arg11[%c0_35, %c0_36, %c0_37] : memref<2x128x32xf32, #tpu.memory_space<vmem>>, vector<2x128x32xf32>
    tpu.vector_store %arg11[%c0_35, %c0_36, %c0_37], %77 {strides = array<i32>} : memref<2x128x32xf32, #tpu.memory_space<vmem>>, vector<2x128x32xf32>,
    return
  }
  func.func @transform_0(%arg0: i32, %arg1: i32) -> (i32, i32, i32) {
    %c0_i32 = arith.constant 0 : i32
    %c0_i32_0 = arith.constant 0 : i32
    return %arg0, %arg1, %c0_i32 : i32, i32, i32
  }
  func.func @transform_1(%arg0: i32, %arg1: i32) -> (i32, i32, i32) {
    %c0_i32 = arith.constant 0 : i32
    %c0_i32_0 = arith.constant 0 : i32
    %c0_i32_1 = arith.constant 0 : i32
    return %arg0, %c0_i32, %c0_i32_0 : i32, i32, i32
  }
  func.func @transform_2(%arg0: i32, %arg1: i32) -> (i32, i32, i32) {
    %c0_i32 = arith.constant 0 : i32
    %c0_i32_0 = arith.constant 0 : i32
    %c0_i32_1 = arith.constant 0 : i32
    return %arg0, %c0_i32, %c0_i32_0 : i32, i32, i32
  }
  func.func @transform_3(%arg0: i32, %arg1: i32) -> (i32, i32) {
    %c0_i32 = arith.constant 0 : i32
    %c0_i32_0 = arith.constant 0 : i32
    %c0_i32_1 = arith.constant 0 : i32
    return %c0_i32, %c0_i32_0 : i32, i32
  }
  func.func @transform_4(%arg0: i32, %arg1: i32) -> (i32, i32) {
    %c0_i32 = arith.constant 0 : i32
    %c0_i32_0 = arith.constant 0 : i32
    %c0_i32_1 = arith.constant 0 : i32
    return %c0_i32, %c0_i32_0 : i32, i32
  }
  func.func @transform_5(%arg0: i32, %arg1: i32) -> (i32, i32) {
    %c0_i32 = arith.constant 0 : i32
    %c0_i32_0 = arith.constant 0 : i32
    %c0_i32_1 = arith.constant 0 : i32
    return %c0_i32, %c0_i32_0 : i32, i32
  }
  func.func @transform_6(%arg0: i32, %arg1: i32) -> (i32, i32) {
    %c0_i32 = arith.constant 0 : i32
    %c0_i32_0 = arith.constant 0 : i32
    %c0_i32_1 = arith.constant 0 : i32
    return %c0_i32, %c0_i32_0 : i32, i32
  }
  func.func @transform_7(%arg0: i32, %arg1: i32) -> (i32, i32) {
    %c0_i32 = arith.constant 0 : i32
    %c0_i32_0 = arith.constant 0 : i32
    %c0_i32_1 = arith.constant 0 : i32
    return %c0_i32, %c0_i32_0 : i32, i32
  }
  func.func @transform_8(%arg0: i32, %arg1: i32) -> (i32, i32) {
    %c0_i32 = arith.constant 0 : i32
    %c0_i32_0 = arith.constant 0 : i32
    %c0_i32_1 = arith.constant 0 : i32
    return %c0_i32, %c0_i32_0 : i32, i32
  }
  func.func @transform_9(%arg0: i32, %arg1: i32) -> (i32, i32, i32) {
    %c0_i32 = arith.constant 0 : i32
    %c0_i32_0 = arith.constant 0 : i32
    return %arg0, %arg1, %c0_i32 : i32, i32, i32
  }
  func.func @transform_10(%arg0: i32, %arg1: i32) -> (i32, i32, i32) {
    %c0_i32 = arith.constant 0 : i32
    %c0_i32_0 = arith.constant 0 : i32
    return %arg0, %arg1, %c0_i32 : i32, i32, i32
  }
}

</mosaic_0001>

<llo_original>
// kernel: tpu_custom_call.1
$region0: #{tpu_custom_call.1}
  #allocation0 [shape = 'u32[]', space=smem, size = 0x4, offset = 0x4, fixed_abs, tag = 'smem constant byte address 0x4 - core index']
  #allocation1 [shape = 'u32[144,128]{1,0:T(1,128)}', space=vmem, size = 0x12000, scoped, tag = 'internal scratch']
  #allocation14 [shape = 's32[]', space=sflag, size = 0x4, offset = 0, fixed_abs, tag = 'sflag constant byte address 0x0 - dummy sync flag']
  %s0 = inlined_call_operand.vmem [shape: f32[4,256,32], index: 0, kind: input, shape index: {}]
  %s1 = inlined_call_operand.vmem [shape: f32[4,128,32], index: 1, kind: input, shape index: {}]
  %s2 = inlined_call_operand.vmem [shape: f32[4,128,32], index: 2, kind: input, shape index: {}]
  %s3 = inlined_call_operand.hbm [shape: bf16[32,64], index: 3, kind: input, shape index: {}]
  %s4 = inlined_call_operand.hbm [shape: bf16[32,64], index: 4, kind: input, shape index: {}]
  %s5 = inlined_call_operand.hbm [shape: bf16[32,64], index: 5, kind: input, shape index: {}]
  %s6 = inlined_call_operand.vmem [shape: bf16[64,32], index: 6, kind: input, shape index: {}]
  %s7 = inlined_call_operand.hbm [shape: f32[1,32], index: 7, kind: input, shape index: {}]
  %s8 = inlined_call_operand.hbm [shape: f32[1,32], index: 8, kind: input, shape index: {}]
  %s9 = inlined_call_operand.vmem [shape: f32[4,256,32], index: 9, kind: output, shape index: {0}]
  %s10 = inlined_call_operand.hbm [shape: f32[16,256,128], index: 10, kind: output, shape index: {1}]
  %11 = xla_tuple %s9, %s10
  %s12 = sld [smem:[#allocation0]]
  $region169: #{tpu_custom_call.1} parent=0
    _
  %s14 = ssub.s32 1, %s12
  %s15 = scalar_select 0, %s14, %s12
  $region1: #{tpu_custom_call.1} parent=0
    #allocation2 [shape = 'u8[262144]{0}', space=vmem, size = 0x40000, scoped, tag = 'input window, operand 0']
    #allocation3 [shape = 'u8[8192]{0}', space=vmem, size = 0x2000, scoped, tag = 'input window, operand 3, single buffered']
    #allocation4 [shape = 's32[2]{0}', space=sflag, size = 0x8, scoped, tag = 'scoped memory for tpu_custom_call.1']
    #allocation5 [shape = 's32[2]{0}', space=sflag, size = 0x8, scoped, tag = 'scoped memory for tpu_custom_call.1']
    #allocation6 [shape = 'u8[8192]{0}', space=vmem, size = 0x2000, scoped, tag = 'input window, operand 4, single buffered']
    #allocation7 [shape = 's32[1]{0}', space=sflag, size = 0x4, scoped, tag = 'scoped memory for tpu_custom_call.1']
    #allocation8 [shape = 'u8[8192]{0}', space=vmem, size = 0x2000, scoped, tag = 'input window, operand 5, single buffered']
    #allocation9 [shape = 'u8[512]{0}', space=vmem, size = 0x400, scoped, tag = 'input window, operand 7, single buffered']
    #allocation10 [shape = 's32[1]{0}', space=sflag, size = 0x4, scoped, tag = 'scoped memory for tpu_custom_call.1']
    #allocation11 [shape = 'u8[512]{0}', space=vmem, size = 0x400, scoped, tag = 'input window, operand 8, single buffered']
    #allocation12 [shape = 'u8[262144]{0}', space=vmem, size = 0x40000, scoped, tag = 'output window, operand 0']
    #allocation13 [shape = 'u8[1048576]{0}', space=vmem, size = 0x100000, scoped, tag = 'output window, operand 1']
    %16 = vsyncpa [#allocation4], 0
    %17 = vsyncpa [#allocation7], 0
    %18 = vsyncpa [#allocation10], 0
    %19 = vsyncpa [#allocation5], 0
    %s20 = scalar_lea.sflag [#allocation5], 1
    %21 = vsyncpa %s20, 0
    loop: start=0, step=1, limit=6
    $region2: #{tpu_custom_call.1} parent=1 // loop_pre_header
      _
    $region3: #{tpu_custom_call.1} parent=1 // loop_header
      %s23 = sphi 0, %s27
      %p24 = scmp.ge.s32.totalorder %s23, 6
      %s30 = sphi 0, %s42
      %s31 = sphi 0, %s38
      %s32 = sphi 0, %s30
      %s33 = sphi 0, %s31
      %s34 = sphi 0, %s32
      %s35 = sphi 0, %s33
      %s47 = sphi 0, %s49
      %s50 = sphi 0, %s47
      %s51 = sphi 0, %s50
      %s67 = sphi 0, %s51
      %s73 = sphi 0, %s75
      %s76 = sphi 0, %s73
      %s77 = sphi 0, %s76
      %s93 = sphi 0, %s77
      %s99 = sphi 0, %s101
      %s102 = sphi 0, %s99
      %s103 = sphi 0, %s102
      %s119 = sphi 0, %s103
      %s123 = sphi 0, %s123
      %s125 = sphi 0, %s123
      %s126 = sphi 0, %s125
      %s140 = sphi 0, %s126
      %s144 = sphi 0, %s144
      %s146 = sphi 0, %s144
      %s147 = sphi 0, %s146
      %s161 = sphi 0, %s147
      %s165 = sphi 0, %s165
      %s167 = sphi 0, %s165
      %s168 = sphi 0, %s167
      %s182 = sphi 0, %s168
      %s186 = sphi 0, %s186
      %s188 = sphi 0, %s186
      %s189 = sphi 0, %s188
      %s203 = sphi 0, %s189
      %s207 = sphi 0, %s207
      %s209 = sphi 0, %s207
      %s210 = sphi 0, %s209
      %s224 = sphi 0, %s210
      %s228 = sphi 0, %s228
      %s230 = sphi 0, %s228
      %s231 = sphi 0, %s230
      %s245 = sphi 0, %s231
      %s253 = sphi 0, %s255
      %s256 = sphi 0, %s253
      %s257 = sphi 0, %s256
      %s273 = sphi 0, %s257
      %s281 = sphi 0, %s283
      %s284 = sphi 0, %s281
      %s285 = sphi 0, %s284
      %s301 = sphi 0, %s285
    $region4: #{tpu_custom_call.1} parent=1 // loop_header_branch
      %26 = sbr.rel (%p24) target = $region8
    $region5: #{tpu_custom_call.1} parent=1 // loop_body
      %s28 = ssub.s32 %s23, 1
      %s29 = ssub.s32 %s23, 2
      %s36 = sadd.s32 1, %s31
      %p37 = scmp.ge.s32.totalorder %s36, 2
      %s38 = scalar_select %p37, 0, %s36
      %s39 = sadd.s32 1, %s30
      %s40 = scalar_select %p37, %s39, %s30
      %p41 = scmp.ge.s32.totalorder %s40, 2
      %s42 = scalar_select %p41, 0, %s40
      %s43 = ssub.s32 %s30, %s42
      %s44 = ssub.s32 %s31, %s38
      %s45 = sor.u32 %s43, %s44
      %p46 = scmp.eq.s32.totalorder %s45, 0
      %s48 = sadd.s32 %s47, 1
      %s49 = scalar_select %p46, %s47, %s48
      %p52 = pneg %p46
      %p53 = scmp.eq.s32.totalorder %s23, 3
      %p54 = por %p52, %p53
      %p55 = scmp.ne.s32.totalorder %s47, %s50
      %p56 = scmp.eq.s32.totalorder %s23, 0
      %p57 = por %p55, %p56
      %p58 = scmp.ne.s32.totalorder %s47, %s50
      %p59 = scmp.eq.s32.totalorder %s28, 3
      %p60 = por %p58, %p59
      %p61 = scmp.ne.s32.totalorder %s50, %s51
      %p62 = scmp.eq.s32.totalorder %s28, 0
      %p63 = por %p61, %p62
      %p64 = scmp.ne.s32.totalorder %s50, %s51
      %p65 = scmp.eq.s32.totalorder %s29, 3
      %p66 = por %p64, %p65
      %p68 = scmp.ne.s32.totalorder %s51, %s67
      %p69 = scmp.eq.s32.totalorder %s29, 0
      %p70 = por %p68, %p69
      %s71 = ssub.s32 %s30, %s42
      %p72 = scmp.eq.s32.totalorder %s71, 0
      %s74 = sadd.s32 %s73, 1
      %s75 = scalar_select %p72, %s73, %s74
      %p78 = pneg %p72
      %p79 = scmp.eq.s32.totalorder %s23, 3
      %p80 = por %p78, %p79
      %p81 = scmp.ne.s32.totalorder %s73, %s76
      %p82 = scmp.eq.s32.totalorder %s23, 0
      %p83 = por %p81, %p82
      %p84 = scmp.ne.s32.totalorder %s73, %s76
      %p85 = scmp.eq.s32.totalorder %s28, 3
      %p86 = por %p84, %p85
      %p87 = scmp.ne.s32.totalorder %s76, %s77
      %p88 = scmp.eq.s32.totalorder %s28, 0
      %p89 = por %p87, %p88
      %p90 = scmp.ne.s32.totalorder %s76, %s77
      %p91 = scmp.eq.s32.totalorder %s29, 3
      %p92 = por %p90, %p91
      %p94 = scmp.ne.s32.totalorder %s77, %s93
      %p95 = scmp.eq.s32.totalorder %s29, 0
      %p96 = por %p94, %p95
      %s97 = ssub.s32 %s30, %s42
      %p98 = scmp.eq.s32.totalorder %s97, 0
      %s100 = sadd.s32 %s99, 1
      %s101 = scalar_select %p98, %s99, %s100
      %p104 = pneg %p98
      %p105 = scmp.eq.s32.totalorder %s23, 3
      %p106 = por %p104, %p105
      %p107 = scmp.ne.s32.totalorder %s99, %s102
      %p108 = scmp.eq.s32.totalorder %s23, 0
      %p109 = por %p107, %p108
      %p110 = scmp.ne.s32.totalorder %s99, %s102
      %p111 = scmp.eq.s32.totalorder %s28, 3
      %p112 = por %p110, %p111
      %p113 = scmp.ne.s32.totalorder %s102, %s103
      %p114 = scmp.eq.s32.totalorder %s28, 0
      %p115 = por %p113, %p114
      %p116 = scmp.ne.s32.totalorder %s102, %s103
      %p117 = scmp.eq.s32.totalorder %s29, 3
      %p118 = por %p116, %p117
      %p120 = scmp.ne.s32.totalorder %s103, %s119
      %p121 = scmp.eq.s32.totalorder %s29, 0
      %p122 = por %p120, %p121
      %s124 = sadd.s32 %s123, 1
      %p127 = scmp.eq.s32.totalorder %s23, 3
      %p128 = scmp.ne.s32.totalorder %s123, %s125
      %p129 = scmp.eq.s32.totalorder %s23, 0
      %p130 = por %p128, %p129
      %p131 = scmp.ne.s32.totalorder %s123, %s125
      %p132 = scmp.eq.s32.totalorder %s28, 3
      %p133 = por %p131, %p132
      %p134 = scmp.ne.s32.totalorder %s125, %s126
      %p135 = scmp.eq.s32.totalorder %s28, 0
      %p136 = por %p134, %p135
      %p137 = scmp.ne.s32.totalorder %s125, %s126
      %p138 = scmp.eq.s32.totalorder %s29, 3
      %p139 = por %p137, %p138
      %p141 = scmp.ne.s32.totalorder %s126, %s140
      %p142 = scmp.eq.s32.totalorder %s29, 0
      %p143 = por %p141, %p142
      %s145 = sadd.s32 %s144, 1
      %p148 = scmp.eq.s32.totalorder %s23, 3
      %p149 = scmp.ne.s32.totalorder %s144, %s146
      %p150 = scmp.eq.s32.totalorder %s23, 0
      %p151 = por %p149, %p150
      %p152 = scmp.ne.s32.totalorder %s144, %s146
      %p153 = scmp.eq.s32.totalorder %s28, 3
      %p154 = por %p152, %p153
      %p155 = scmp.ne.s32.totalorder %s146, %s147
      %p156 = scmp.eq.s32.totalorder %s28, 0
      %p157 = por %p155, %p156
      %p158 = scmp.ne.s32.totalorder %s146, %s147
      %p159 = scmp.eq.s32.totalorder %s29, 3
      %p160 = por %p158, %p159
      %p162 = scmp.ne.s32.totalorder %s147, %s161
      %p163 = scmp.eq.s32.totalorder %s29, 0
      %p164 = por %p162, %p163
      %s166 = sadd.s32 %s165, 1
      %p169 = scmp.eq.s32.totalorder %s23, 3
      %p170 = scmp.ne.s32.totalorder %s165, %s167
      %p171 = scmp.eq.s32.totalorder %s23, 0
      %p172 = por %p170, %p171
      %p173 = scmp.ne.s32.totalorder %s165, %s167
      %p174 = scmp.eq.s32.totalorder %s28, 3
      %p175 = por %p173, %p174
      %p176 = scmp.ne.s32.totalorder %s167, %s168
      %p177 = scmp.eq.s32.totalorder %s28, 0
      %p178 = por %p176, %p177
      %p179 = scmp.ne.s32.totalorder %s167, %s168
      %p180 = scmp.eq.s32.totalorder %s29, 3
      %p181 = por %p179, %p180
      %p183 = scmp.ne.s32.totalorder %s168, %s182
      %p184 = scmp.eq.s32.totalorder %s29, 0
      %p185 = por %p183, %p184
      %s187 = sadd.s32 %s186, 1
      %p190 = scmp.eq.s32.totalorder %s23, 3
      %p191 = scmp.ne.s32.totalorder %s186, %s188
      %p192 = scmp.eq.s32.totalorder %s23, 0
      %p193 = por %p191, %p192
      %p194 = scmp.ne.s32.totalorder %s186, %s188
      %p195 = scmp.eq.s32.totalorder %s28, 3
      %p196 = por %p194, %p195
      %p197 = scmp.ne.s32.totalorder %s188, %s189
      %p198 = scmp.eq.s32.totalorder %s28, 0
      %p199 = por %p197, %p198
      %p200 = scmp.ne.s32.totalorder %s188, %s189
      %p201 = scmp.eq.s32.totalorder %s29, 3
      %p202 = por %p200, %p201
      %p204 = scmp.ne.s32.totalorder %s189, %s203
      %p205 = scmp.eq.s32.totalorder %s29, 0
      %p206 = por %p204, %p205
      %s208 = sadd.s32 %s207, 1
      %p211 = scmp.eq.s32.totalorder %s23, 3
      %p212 = scmp.ne.s32.totalorder %s207, %s209
      %p213 = scmp.eq.s32.totalorder %s23, 0
      %p214 = por %p212, %p213
      %p215 = scmp.ne.s32.totalorder %s207, %s209
      %p216 = scmp.eq.s32.totalorder %s28, 3
      %p217 = por %p215, %p216
      %p218 = scmp.ne.s32.totalorder %s209, %s210
      %p219 = scmp.eq.s32.totalorder %s28, 0
      %p220 = por %p218, %p219
      %p221 = scmp.ne.s32.totalorder %s209, %s210
      %p222 = scmp.eq.s32.totalorder %s29, 3
      %p223 = por %p221, %p222
      %p225 = scmp.ne.s32.totalorder %s210, %s224
      %p226 = scmp.eq.s32.totalorder %s29, 0
      %p227 = por %p225, %p226
      %s229 = sadd.s32 %s228, 1
      %p232 = scmp.eq.s32.totalorder %s23, 3
      %p233 = scmp.ne.s32.totalorder %s228, %s230
      %p234 = scmp.eq.s32.totalorder %s23, 0
      %p235 = por %p233, %p234
      %p236 = scmp.ne.s32.totalorder %s228, %s230
      %p237 = scmp.eq.s32.totalorder %s28, 3
      %p238 = por %p236, %p237
      %p239 = scmp.ne.s32.totalorder %s230, %s231
      %p240 = scmp.eq.s32.totalorder %s28, 0
      %p241 = por %p239, %p240
      %p242 = scmp.ne.s32.totalorder %s230, %s231
      %p243 = scmp.eq.s32.totalorder %s29, 3
      %p244 = por %p242, %p243
      %p246 = scmp.ne.s32.totalorder %s231, %s245
      %p247 = scmp.eq.s32.totalorder %s29, 0
      %p248 = por %p246, %p247
      %s249 = ssub.s32 %s30, %s42
      %s250 = ssub.s32 %s31, %s38
      %s251 = sor.u32 %s249, %s250
      %p252 = scmp.eq.s32.totalorder %s251, 0
      %s254 = sadd.s32 %s253, 1
      %s255 = scalar_select %p252, %s253, %s254
      %p258 = pneg %p252
      %p259 = scmp.eq.s32.totalorder %s23, 3
      %p260 = por %p258, %p259
      %p261 = scmp.ne.s32.totalorder %s253, %s256
      %p262 = scmp.eq.s32.totalorder %s23, 0
      %p263 = por %p261, %p262
      %p264 = scmp.ne.s32.totalorder %s253, %s256
      %p265 = scmp.eq.s32.totalorder %s28, 3
      %p266 = por %p264, %p265
      %p267 = scmp.ne.s32.totalorder %s256, %s257
      %p268 = scmp.eq.s32.totalorder %s28, 0
      %p269 = por %p267, %p268
      %p270 = scmp.ne.s32.totalorder %s256, %s257
      %p271 = scmp.eq.s32.totalorder %s29, 3
      %p272 = por %p270, %p271
      %p274 = scmp.ne.s32.totalorder %s257, %s273
      %p275 = scmp.eq.s32.totalorder %s29, 0
      %p276 = por %p274, %p275
      %s277 = ssub.s32 %s30, %s42
      %s278 = ssub.s32 %s31, %s38
      %s279 = sor.u32 %s277, %s278
      %p280 = scmp.eq.s32.totalorder %s279, 0
      %s282 = sadd.s32 %s281, 1
      %s283 = scalar_select %p280, %s281, %s282
      %p286 = pneg %p280
      %p287 = scmp.eq.s32.totalorder %s23, 3
      %p288 = por %p286, %p287
      %p289 = scmp.ne.s32.totalorder %s281, %s284
      %p290 = scmp.eq.s32.totalorder %s23, 0
      %p291 = por %p289, %p290
      %p292 = scmp.ne.s32.totalorder %s281, %s284
      %p293 = scmp.eq.s32.totalorder %s28, 3
      %p294 = por %p292, %p293
      %p295 = scmp.ne.s32.totalorder %s284, %s285
      %p296 = scmp.eq.s32.totalorder %s28, 0
      %p297 = por %p295, %p296
      %p298 = scmp.ne.s32.totalorder %s284, %s285
      %p299 = scmp.eq.s32.totalorder %s29, 3
      %p300 = por %p298, %p299
      %p302 = scmp.ne.s32.totalorder %s285, %s301
      %p303 = scmp.eq.s32.totalorder %s29, 0
      %p304 = por %p302, %p303
      %p305 = scmp.le.s32.totalorder 1, %s23
      %p306 = scmp.lt.s32.totalorder %s23, 5
      %p307 = pnand %p305, %p306
      %p308 = pneg %p307
      // Predicated region
      $region9: #{tpu_custom_call.1} parent=5 // pred_check
        _
      $region10: #{tpu_custom_call.1} parent=5 // pred_check_branch
        %310 = sbr.rel (%p307) target = $region12
      $region11: #{tpu_custom_call.1} parent=5 // pred_region
        %s311 = ssub.s32 %s23, 1
        // Predicated region
        $region13: #{tpu_custom_call.1} parent=11 // pred_check
          %p312 = pneg %p136
        $region14: #{tpu_custom_call.1} parent=11 // pred_check_branch
          %314 = sbr.rel (%p312) target = $region16
        $region15: #{tpu_custom_call.1} parent=11 // pred_region
          %s316 = ssub.s32 256, 256
          %317 = vsyncadd [#allocation4], %s316
          %s318 = sshll.u32 [#allocation3], 4
          %s319 = int_to_ptr.vmem [resolvable:$true] %s318
          %324 = dma.hbm_to_vmem [thread:$0]  %s3, 256, %s319, [#allocation4], 64, 64, 4
        $region16: #{tpu_custom_call.1} parent=11 // pred_fallthru
          _
        // Predicated region
        $region17: #{tpu_custom_call.1} parent=11 // pred_check
          %p325 = pneg %p157
        $region18: #{tpu_custom_call.1} parent=11 // pred_check_branch
          %327 = sbr.rel (%p325) target = $region20
        $region19: #{tpu_custom_call.1} parent=11 // pred_region
          %s329 = ssub.s32 256, 256
          %330 = vsyncadd [#allocation7], %s329
          %s331 = sshll.u32 [#allocation6], 4
          %s332 = int_to_ptr.vmem [resolvable:$true] %s331
          %337 = dma.hbm_to_vmem [thread:$0]  %s4, 256, %s332, [#allocation7], 64, 64, 4
        $region20: #{tpu_custom_call.1} parent=11 // pred_fallthru
          _
        // Predicated region
        $region21: #{tpu_custom_call.1} parent=11 // pred_check
          %p338 = pneg %p178
        $region22: #{tpu_custom_call.1} parent=11 // pred_check_branch
          %340 = sbr.rel (%p338) target = $region24
        $region23: #{tpu_custom_call.1} parent=11 // pred_region
          %s342 = ssub.s32 256, 256
          %343 = vsyncadd [#allocation7], %s342
          %s344 = sshll.u32 [#allocation8], 4
          %s345 = int_to_ptr.vmem [resolvable:$true] %s344
          %350 = dma.hbm_to_vmem [thread:$0]  %s5, 256, %s345, [#allocation7], 64, 64, 4
        $region24: #{tpu_custom_call.1} parent=11 // pred_fallthru
          _
        // Predicated region
        $region25: #{tpu_custom_call.1} parent=11 // pred_check
          %p351 = pneg %p199
        $region26: #{tpu_custom_call.1} parent=11 // pred_check_branch
          %353 = sbr.rel (%p351) target = $region28
        $region27: #{tpu_custom_call.1} parent=11 // pred_region
          _
        $region28: #{tpu_custom_call.1} parent=11 // pred_fallthru
          _
        // Predicated region
        $region29: #{tpu_custom_call.1} parent=11 // pred_check
          %p354 = pneg %p220
        $region30: #{tpu_custom_call.1} parent=11 // pred_check_branch
          %356 = sbr.rel (%p354) target = $region32
        $region31: #{tpu_custom_call.1} parent=11 // pred_region
          %s358 = ssub.s32 16, 16
          %359 = vsyncadd [#allocation10], %s358
          %s361 = sshll.u32 [#allocation9], 4
          %s362 = int_to_ptr.vmem [resolvable:$true] %s361
          %364 = dma.hbm_to_vmem [thread:$0]  %s7, 16, %s362, [#allocation10]
        $region32: #{tpu_custom_call.1} parent=11 // pred_fallthru
          _
        // Predicated region
        $region33: #{tpu_custom_call.1} parent=11 // pred_check
          %p365 = pneg %p241
        $region34: #{tpu_custom_call.1} parent=11 // pred_check_branch
          %367 = sbr.rel (%p365) target = $region36
        $region35: #{tpu_custom_call.1} parent=11 // pred_region
          %s369 = ssub.s32 16, 16
          %370 = vsyncadd [#allocation10], %s369
          %s372 = sshll.u32 [#allocation11], 4
          %s373 = int_to_ptr.vmem [resolvable:$true] %s372
          %375 = dma.hbm_to_vmem [thread:$0]  %s8, 16, %s373, [#allocation10]
        $region36: #{tpu_custom_call.1} parent=11 // pred_fallthru
          _
      $region12: #{tpu_custom_call.1} parent=5 // pred_fallthru
        _
      %p376 = scmp.lt.s32.totalorder %s23, 4
      // Predicated region
      $region37: #{tpu_custom_call.1} parent=5 // pred_check
        %p377 = pneg %p376
      $region38: #{tpu_custom_call.1} parent=5 // pred_check_branch
        %379 = sbr.rel (%p377) target = $region40
      $region39: #{tpu_custom_call.1} parent=5 // pred_region
        // Predicated region
        $region41: #{tpu_custom_call.1} parent=39 // pred_check
          %p380 = pneg %p57
        $region42: #{tpu_custom_call.1} parent=39 // pred_check_branch
          %382 = sbr.rel (%p380) target = $region44
        $region43: #{tpu_custom_call.1} parent=39 // pred_region
          %s383 = sand.u32 %s47, 1
          %s384 = sand.u32 %s47, 1
          %s385 = smul.addr %s384, 256
          %s386 = scalar_lea.vmem [#allocation2], %s385
          %s387 = smul.u32 2, %s30
          %s388 = smul.u32 16, %s31
          %s389 = smul.addr %s387, 32
          %s390 = sadd.s32 %s388, %s389
          %s391 = smul.addr %s390, 8
          %s392 = scalar_lea.vmem %s0, %s391
          // Predicated region
          $region45: #{tpu_custom_call.1} parent=43 // pred_check
            _
          $region46: #{tpu_custom_call.1} parent=43 // pred_check_branch
            %394 = sbr.rel (0) target = $region48
          $region47: #{tpu_custom_call.1} parent=43 // pred_region
            // Predicated region
            $region49: #{tpu_custom_call.1} parent=47 // pred_check
              _
            $region50: #{tpu_custom_call.1} parent=47 // pred_check_branch
              %396 = sbr.rel (0) target = $region52
            $region51: #{tpu_custom_call.1} parent=47 // pred_region
              // Predicated region
              $region64: #{tpu_custom_call.1} parent=51 // pred_check
                _
              $region65: #{tpu_custom_call.1} parent=51 // pred_check_branch
                %474 = sbr.rel (0) target = $region67
              $region66: #{tpu_custom_call.1} parent=51 // pred_region
                loop: start=0, step=1, limit=1
                $region68: #{tpu_custom_call.1} parent=66 // loop_pre_header
                  _
                $region69: #{tpu_custom_call.1} parent=66 // loop_header
                  %s476 = sphi 0, %s480
                  %p477 = scmp.ge.s32.totalorder %s476, 1
                  %s481 = sphi %s392, %s392
                  %s482 = sphi %s386, %s386
                $region70: #{tpu_custom_call.1} parent=66 // loop_header_branch
                  %479 = sbr.rel (%p477) target = $region74
                $region71: #{tpu_custom_call.1} parent=66 // loop_body
                  %v483 = vld [vmem:[%s481] sm:$0xff]
                  %484 = vst [vmem:[%s482] sm:$0xff] %v483
                  %v485 = vld [vmem:[%s481 + $0x8] sm:$0xff]
                  %486 = vst [vmem:[%s482 + $0x8] sm:$0xff] %v485
                  %v487 = vld [vmem:[%s481 + $0x10] sm:$0xff]
                  %488 = vst [vmem:[%s482 + $0x10] sm:$0xff] %v487
                  %v489 = vld [vmem:[%s481 + $0x18] sm:$0xff]
                  %490 = vst [vmem:[%s482 + $0x18] sm:$0xff] %v489
                  %v491 = vld [vmem:[%s481 + $0x20] sm:$0xff]
                  %492 = vst [vmem:[%s482 + $0x20] sm:$0xff] %v491
                  %v493 = vld [vmem:[%s481 + $0x28] sm:$0xff]
                  %494 = vst [vmem:[%s482 + $0x28] sm:$0xff] %v493
                  %v495 = vld [vmem:[%s481 + $0x30] sm:$0xff]
                  %496 = vst [vmem:[%s482 + $0x30] sm:$0xff] %v495
                  %v497 = vld [vmem:[%s481 + $0x38] sm:$0xff]
                  %498 = vst [vmem:[%s482 + $0x38] sm:$0xff] %v497
                  %v499 = vld [vmem:[%s481 + $0x40] sm:$0xff]
                  %500 = vst [vmem:[%s482 + $0x40] sm:$0xff] %v499
                  %v501 = vld [vmem:[%s481 + $0x48] sm:$0xff]
                  %502 = vst [vmem:[%s482 + $0x48] sm:$0xff] %v501
                  %v503 = vld [vmem:[%s481 + $0x50] sm:$0xff]
                  %504 = vst [vmem:[%s482 + $0x50] sm:$0xff] %v503
                  %v505 = vld [vmem:[%s481 + $0x58] sm:$0xff]
                  %506 = vst [vmem:[%s482 + $0x58] sm:$0xff] %v505
                  %v507 = vld [vmem:[%s481 + $0x60] sm:$0xff]
                  %508 = vst [vmem:[%s482 + $0x60] sm:$0xff] %v507
                  %v509 = vld [vmem:[%s481 + $0x68] sm:$0xff]
                  %510 = vst [vmem:[%s482 + $0x68] sm:$0xff] %v509
                  %v511 = vld [vmem:[%s481 + $0x70] sm:$0xff]
                  %512 = vst [vmem:[%s482 + $0x70] sm:$0xff] %v511
                  %v513 = vld [vmem:[%s481 + $0x78] sm:$0xff]
                  %514 = vst [vmem:[%s482 + $0x78] sm:$0xff] %v513
                  %v515 = vld [vmem:[%s481 + $0x100] sm:$0xff]
                  %516 = vst [vmem:[%s482 + $0x80] sm:$0xff] %v515
                  %v517 = vld [vmem:[%s481 + $0x108] sm:$0xff]
                  %518 = vst [vmem:[%s482 + $0x88] sm:$0xff] %v517
                  %v519 = vld [vmem:[%s481 + $0x110] sm:$0xff]
                  %520 = vst [vmem:[%s482 + $0x90] sm:$0xff] %v519
                  %v521 = vld [vmem:[%s481 + $0x118] sm:$0xff]
                  %522 = vst [vmem:[%s482 + $0x98] sm:$0xff] %v521
                  %v523 = vld [vmem:[%s481 + $0x120] sm:$0xff]
                  %524 = vst [vmem:[%s482 + $0xa0] sm:$0xff] %v523
                  %v525 = vld [vmem:[%s481 + $0x128] sm:$0xff]
                  %526 = vst [vmem:[%s482 + $0xa8] sm:$0xff] %v525
                  %v527 = vld [vmem:[%s481 + $0x130] sm:$0xff]
                  %528 = vst [vmem:[%s482 + $0xb0] sm:$0xff] %v527
                  %v529 = vld [vmem:[%s481 + $0x138] sm:$0xff]
                  %530 = vst [vmem:[%s482 + $0xb8] sm:$0xff] %v529
                  %v531 = vld [vmem:[%s481 + $0x140] sm:$0xff]
                  %532 = vst [vmem:[%s482 + $0xc0] sm:$0xff] %v531
                  %v533 = vld [vmem:[%s481 + $0x148] sm:$0xff]
                  %534 = vst [vmem:[%s482 + $0xc8] sm:$0xff] %v533
                  %v535 = vld [vmem:[%s481 + $0x150] sm:$0xff]
                  %536 = vst [vmem:[%s482 + $0xd0] sm:$0xff] %v535
                  %v537 = vld [vmem:[%s481 + $0x158] sm:$0xff]
                  %538 = vst [vmem:[%s482 + $0xd8] sm:$0xff] %v537
                  %v539 = vld [vmem:[%s481 + $0x160] sm:$0xff]
                  %540 = vst [vmem:[%s482 + $0xe0] sm:$0xff] %v539
                  %v541 = vld [vmem:[%s481 + $0x168] sm:$0xff]
                  %542 = vst [vmem:[%s482 + $0xe8] sm:$0xff] %v541
                  %v543 = vld [vmem:[%s481 + $0x170] sm:$0xff]
                  %544 = vst [vmem:[%s482 + $0xf0] sm:$0xff] %v543
                  %v545 = vld [vmem:[%s481 + $0x178] sm:$0xff]
                  %546 = vst [vmem:[%s482 + $0xf8] sm:$0xff] %v545
                $region72: #{tpu_custom_call.1} parent=66 // loop_footer
                  %s480 = sadd.s32 1, %s476
                $region73: #{tpu_custom_call.1} parent=66 // loop_footer_branch
                  %475 = sbr.rel target = $region69
                $region74: #{tpu_custom_call.1} parent=66 // loop_exit
                  _
              $region67: #{tpu_custom_call.1} parent=51 // pred_fallthru
                _
              // Predicated region
              $region75: #{tpu_custom_call.1} parent=51 // pred_check
                _
              $region76: #{tpu_custom_call.1} parent=51 // pred_check_branch
                %548 = sbr.rel target = $region78
              $region77: #{tpu_custom_call.1} parent=51 // pred_region
                _
              $region78: #{tpu_custom_call.1} parent=51 // pred_fallthru
                _
            $region52: #{tpu_custom_call.1} parent=47 // pred_fallthru
              _
            // Predicated region
            $region53: #{tpu_custom_call.1} parent=47 // pred_check
              _
            $region54: #{tpu_custom_call.1} parent=47 // pred_check_branch
              %398 = sbr.rel target = $region56
            $region55: #{tpu_custom_call.1} parent=47 // pred_region
              %s400 = ssub.s32 256, 1
              loop: start=0, step=1, limit=1
              $region57: #{tpu_custom_call.1} parent=55 // loop_pre_header
                _
              $region58: #{tpu_custom_call.1} parent=55 // loop_header
                %s402 = sphi 0, %s406
                %p403 = scmp.ge.s32.totalorder %s402, 1
                %s407 = sphi %s392, %s392
                %s408 = sphi %s386, %s386
              $region59: #{tpu_custom_call.1} parent=55 // loop_header_branch
                %405 = sbr.rel (%p403) target = $region63
              $region60: #{tpu_custom_call.1} parent=55 // loop_body
                %v409 = vld [vmem:[%s407] sm:%s400]
                %410 = vst [vmem:[%s408] sm:%s400] %v409
                %v411 = vld [vmem:[%s407 + $0x8] sm:%s400]
                %412 = vst [vmem:[%s408 + $0x8] sm:%s400] %v411
                %v413 = vld [vmem:[%s407 + $0x10] sm:%s400]
                %414 = vst [vmem:[%s408 + $0x10] sm:%s400] %v413
                %v415 = vld [vmem:[%s407 + $0x18] sm:%s400]
                %416 = vst [vmem:[%s408 + $0x18] sm:%s400] %v415
                %v417 = vld [vmem:[%s407 + $0x20] sm:%s400]
                %418 = vst [vmem:[%s408 + $0x20] sm:%s400] %v417
                %v419 = vld [vmem:[%s407 + $0x28] sm:%s400]
                %420 = vst [vmem:[%s408 + $0x28] sm:%s400] %v419
                %v421 = vld [vmem:[%s407 + $0x30] sm:%s400]
                %422 = vst [vmem:[%s408 + $0x30] sm:%s400] %v421
                %v423 = vld [vmem:[%s407 + $0x38] sm:%s400]
                %424 = vst [vmem:[%s408 + $0x38] sm:%s400] %v423
                %v425 = vld [vmem:[%s407 + $0x40] sm:%s400]
                %426 = vst [vmem:[%s408 + $0x40] sm:%s400] %v425
                %v427 = vld [vmem:[%s407 + $0x48] sm:%s400]
                %428 = vst [vmem:[%s408 + $0x48] sm:%s400] %v427
                %v429 = vld [vmem:[%s407 + $0x50] sm:%s400]
                %430 = vst [vmem:[%s408 + $0x50] sm:%s400] %v429
                %v431 = vld [vmem:[%s407 + $0x58] sm:%s400]
                %432 = vst [vmem:[%s408 + $0x58] sm:%s400] %v431
                %v433 = vld [vmem:[%s407 + $0x60] sm:%s400]
                %434 = vst [vmem:[%s408 + $0x60] sm:%s400] %v433
                %v435 = vld [vmem:[%s407 + $0x68] sm:%s400]
                %436 = vst [vmem:[%s408 + $0x68] sm:%s400] %v435
                %v437 = vld [vmem:[%s407 + $0x70] sm:%s400]
                %438 = vst [vmem:[%s408 + $0x70] sm:%s400] %v437
                %v439 = vld [vmem:[%s407 + $0x78] sm:%s400]
                %440 = vst [vmem:[%s408 + $0x78] sm:%s400] %v439
                %v441 = vld [vmem:[%s407 + $0x100] sm:%s400]
                %442 = vst [vmem:[%s408 + $0x80] sm:%s400] %v441
                %v443 = vld [vmem:[%s407 + $0x108] sm:%s400]
                %444 = vst [vmem:[%s408 + $0x88] sm:%s400] %v443
                %v445 = vld [vmem:[%s407 + $0x110] sm:%s400]
                %446 = vst [vmem:[%s408 + $0x90] sm:%s400] %v445
                %v447 = vld [vmem:[%s407 + $0x118] sm:%s400]
                %448 = vst [vmem:[%s408 + $0x98] sm:%s400] %v447
                %v449 = vld [vmem:[%s407 + $0x120] sm:%s400]
                %450 = vst [vmem:[%s408 + $0xa0] sm:%s400] %v449
                %v451 = vld [vmem:[%s407 + $0x128] sm:%s400]
                %452 = vst [vmem:[%s408 + $0xa8] sm:%s400] %v451
                %v453 = vld [vmem:[%s407 + $0x130] sm:%s400]
                %454 = vst [vmem:[%s408 + $0xb0] sm:%s400] %v453
                %v455 = vld [vmem:[%s407 + $0x138] sm:%s400]
                %456 = vst [vmem:[%s408 + $0xb8] sm:%s400] %v455
                %v457 = vld [vmem:[%s407 + $0x140] sm:%s400]
                %458 = vst [vmem:[%s408 + $0xc0] sm:%s400] %v457
                %v459 = vld [vmem:[%s407 + $0x148] sm:%s400]
                %460 = vst [vmem:[%s408 + $0xc8] sm:%s400] %v459
                %v461 = vld [vmem:[%s407 + $0x150] sm:%s400]
                %462 = vst [vmem:[%s408 + $0xd0] sm:%s400] %v461
                %v463 = vld [vmem:[%s407 + $0x158] sm:%s400]
                %464 = vst [vmem:[%s408 + $0xd8] sm:%s400] %v463
                %v465 = vld [vmem:[%s407 + $0x160] sm:%s400]
                %466 = vst [vmem:[%s408 + $0xe0] sm:%s400] %v465
                %v467 = vld [vmem:[%s407 + $0x168] sm:%s400]
                %468 = vst [vmem:[%s408 + $0xe8] sm:%s400] %v467
                %v469 = vld [vmem:[%s407 + $0x170] sm:%s400]
                %470 = vst [vmem:[%s408 + $0xf0] sm:%s400] %v469
                %v471 = vld [vmem:[%s407 + $0x178] sm:%s400]
                %472 = vst [vmem:[%s408 + $0xf8] sm:%s400] %v471
              $region61: #{tpu_custom_call.1} parent=55 // loop_footer
                %s406 = sadd.s32 1, %s402
              $region62: #{tpu_custom_call.1} parent=55 // loop_footer_branch
                %401 = sbr.rel target = $region58
              $region63: #{tpu_custom_call.1} parent=55 // loop_exit
                _
            $region56: #{tpu_custom_call.1} parent=47 // pred_fallthru
              _
          $region48: #{tpu_custom_call.1} parent=43 // pred_fallthru
            _
          %549 = vnop
        $region44: #{tpu_custom_call.1} parent=39 // pred_fallthru
          _
        // Predicated region
        $region79: #{tpu_custom_call.1} parent=39 // pred_check
          %p550 = pneg %p83
        $region80: #{tpu_custom_call.1} parent=39 // pred_check_branch
          %552 = sbr.rel (%p550) target = $region82
        $region81: #{tpu_custom_call.1} parent=39 // pred_region
          %s553 = smul.u32 2, %s30
          %p554 = scmp.lt.s32.totalorder %s553, 3
          %s555 = scalar_select %p554, %s553, 3
          %s556 = smul.addr %s555, 16
          %s557 = smul.addr %s556, 8
          %s558 = scalar_lea.vmem %s1, %s557
          %s559 = smul.u32 2, %s30
        $region82: #{tpu_custom_call.1} parent=39 // pred_fallthru
          _
        // Predicated region
        $region83: #{tpu_custom_call.1} parent=39 // pred_check
          %p560 = pneg %p109
        $region84: #{tpu_custom_call.1} parent=39 // pred_check_branch
          %562 = sbr.rel (%p560) target = $region86
        $region85: #{tpu_custom_call.1} parent=39 // pred_region
          %s563 = smul.u32 2, %s30
          %p564 = scmp.lt.s32.totalorder %s563, 3
          %s565 = scalar_select %p564, %s563, 3
          %s566 = smul.addr %s565, 16
          %s567 = smul.addr %s566, 8
          %s568 = scalar_lea.vmem %s2, %s567
          %s569 = smul.u32 2, %s30
        $region86: #{tpu_custom_call.1} parent=39 // pred_fallthru
          _
      $region40: #{tpu_custom_call.1} parent=5 // pred_fallthru
        _
      %p570 = scmp.le.s32.totalorder 1, %s23
      %p571 = scmp.lt.s32.totalorder %s23, 5
      %p572 = pnand %p570, %p571
      %p573 = pneg %p572
      // Predicated region
      $region87: #{tpu_custom_call.1} parent=5 // pred_check
        _
      $region88: #{tpu_custom_call.1} parent=5 // pred_check_branch
        %575 = sbr.rel (%p572) target = $region90
      $region89: #{tpu_custom_call.1} parent=5 // pred_region
        %s576 = ssub.s32 %s23, 1
        %s577 = sand.u32 %s50, 1
        %s578 = sand.u32 %s50, 1
        %s579 = smul.addr %s578, 256
        %s580 = scalar_lea.vmem [#allocation2], %s579
        // Predicated region
        $region91: #{tpu_custom_call.1} parent=89 // pred_check
          %p581 = pneg %p63
        $region92: #{tpu_custom_call.1} parent=89 // pred_check_branch
          %583 = sbr.rel (%p581) target = $region94
        $region93: #{tpu_custom_call.1} parent=89 // pred_region
          _
        $region94: #{tpu_custom_call.1} parent=89 // pred_fallthru
          _
        // Predicated region
        $region95: #{tpu_custom_call.1} parent=89 // pred_check
          %p584 = pneg %p136
        $region96: #{tpu_custom_call.1} parent=89 // pred_check_branch
          %586 = sbr.rel (%p584) target = $region98
        $region97: #{tpu_custom_call.1} parent=89 // pred_region
          %587 = dma.done [#allocation4], 256
        $region98: #{tpu_custom_call.1} parent=89 // pred_fallthru
          _
        // Predicated region
        $region99: #{tpu_custom_call.1} parent=89 // pred_check
          %p588 = pneg %p157
        $region100: #{tpu_custom_call.1} parent=89 // pred_check_branch
          %590 = sbr.rel (%p588) target = $region102
        $region101: #{tpu_custom_call.1} parent=89 // pred_region
          %591 = dma.done [#allocation7], 256
        $region102: #{tpu_custom_call.1} parent=89 // pred_fallthru
          _
        // Predicated region
        $region103: #{tpu_custom_call.1} parent=89 // pred_check
          %p592 = pneg %p178
        $region104: #{tpu_custom_call.1} parent=89 // pred_check_branch
          %594 = sbr.rel (%p592) target = $region106
        $region105: #{tpu_custom_call.1} parent=89 // pred_region
          %595 = dma.done [#allocation7], 256
        $region106: #{tpu_custom_call.1} parent=89 // pred_fallthru
          _
        // Predicated region
        $region107: #{tpu_custom_call.1} parent=89 // pred_check
          %p596 = pneg %p220
        $region108: #{tpu_custom_call.1} parent=89 // pred_check_branch
          %598 = sbr.rel (%p596) target = $region110
        $region109: #{tpu_custom_call.1} parent=89 // pred_region
          %599 = dma.done [#allocation10], 16
        $region110: #{tpu_custom_call.1} parent=89 // pred_fallthru
          _
        // Predicated region
        $region111: #{tpu_custom_call.1} parent=89 // pred_check
          %p600 = pneg %p241
        $region112: #{tpu_custom_call.1} parent=89 // pred_check_branch
          %602 = sbr.rel (%p600) target = $region114
        $region113: #{tpu_custom_call.1} parent=89 // pred_region
          %603 = dma.done [#allocation10], 16
        $region114: #{tpu_custom_call.1} parent=89 // pred_fallthru
          _
        %s604 = sand.u32 %s50, 1
        %s605 = sand.u32 %s50, 1
        %s606 = smul.addr %s605, 256
        %s607 = scalar_lea.vmem [#allocation2], %s606
        %p608 = pneg %p63
        %p609 = pneg %p60
        %s610 = smul.u32 2, %s32
        %p611 = scmp.lt.s32.totalorder %s610, 3
        %s612 = scalar_select %p611, %s610, 3
        %s613 = smul.addr %s612, 16
        %s614 = smul.addr %s613, 8
        %s615 = scalar_lea.vmem %s1, %s614
        %p616 = pneg %p89
        %p617 = pneg %p86
        %s618 = smul.u32 2, %s32
        %p619 = scmp.lt.s32.totalorder %s618, 3
        %s620 = scalar_select %p619, %s618, 3
        %s621 = smul.addr %s620, 16
        %s622 = smul.addr %s621, 8
        %s623 = scalar_lea.vmem %s2, %s622
        %p624 = pneg %p115
        %p625 = pneg %p112
        %p626 = pneg %p136
        %p627 = pneg %p133
        %p628 = pneg %p157
        %p629 = pneg %p154
        %p630 = pneg %p178
        %p631 = pneg %p175
        %p632 = pneg %p199
        %p633 = pneg %p196
        %p634 = pneg %p220
        %p635 = pneg %p217
        %p636 = pneg %p241
        %p637 = pneg %p238
        %p638 = pneg %p269
        %p639 = pneg %p266
        %s640 = sand.u32 %s256, 1
        %s641 = sand.u32 %s256, 1
        %s642 = smul.addr %s641, 256
        %s643 = scalar_lea.vmem [#allocation12], %s642
        %p644 = pneg %p297
        %p645 = pneg %p294
        %s646 = sand.u32 %s284, 1
        %s647 = scalar_lea.sflag [#allocation5], %s646
        %s648 = sand.u32 %s284, 1
        %s649 = smul.addr %s648, 1024
        %s650 = scalar_lea.vmem [#allocation13], %s649
        %s651 = smul.u32 2, %s32
        %s652 = smul.u32 16, %s33
        %s653 = smul.u32 2, %s32
        %p654 = scmp.lt.s32.totalorder %s653, 3
        %s655 = scalar_select %p654, %s653, 3
        %s656 = smul.addr %s655, 16
        %s657 = smul.addr %s656, 8
        %s658 = scalar_lea.vmem %s1, %s657
        %s659 = smul.u32 2, %s32
        %s660 = smul.u32 2, %s32
        %p661 = scmp.lt.s32.totalorder %s660, 3
        %s662 = scalar_select %p661, %s660, 3
        %s663 = smul.addr %s662, 16
        %s664 = smul.addr %s663, 8
        %s665 = scalar_lea.vmem %s2, %s664
        %s666 = smul.u32 2, %s32
        %s667 = smul.u32 2, %s32
        %s668 = smul.u32 16, %s33
        %s669 = smul.u32 8, %s32
        %s670 = smul.u32 16, %s33
        %v672 = vld [vmem:[%s580] sm:$0xff]
        %v673 = vld [vmem:[%s580 + $0x8] sm:$0xff]
        %v674 = vld [vmem:[%s580 + $0x10] sm:$0xff]
        %v675 = vld [vmem:[%s580 + $0x18] sm:$0xff]
        %v676 = vld [vmem:[%s580 + $0x20] sm:$0xff]
        %v677 = vld [vmem:[%s580 + $0x28] sm:$0xff]
        %v678 = vld [vmem:[%s580 + $0x30] sm:$0xff]
        %v679 = vld [vmem:[%s580 + $0x38] sm:$0xff]
        %v680 = vld [vmem:[%s580 + $0x40] sm:$0xff]
        %v681 = vld [vmem:[%s580 + $0x48] sm:$0xff]
        %v682 = vld [vmem:[%s580 + $0x50] sm:$0xff]
        %v683 = vld [vmem:[%s580 + $0x58] sm:$0xff]
        %v684 = vld [vmem:[%s580 + $0x60] sm:$0xff]
        %v685 = vld [vmem:[%s580 + $0x68] sm:$0xff]
        %v686 = vld [vmem:[%s580 + $0x70] sm:$0xff]
        %v687 = vld [vmem:[%s580 + $0x78] sm:$0xff]
        %v688 = vld [vmem:[%s580 + $0x80] sm:$0xff]
        %v689 = vld [vmem:[%s580 + $0x88] sm:$0xff]
        %v690 = vld [vmem:[%s580 + $0x90] sm:$0xff]
        %v691 = vld [vmem:[%s580 + $0x98] sm:$0xff]
        %v692 = vld [vmem:[%s580 + $0xa0] sm:$0xff]
        %v693 = vld [vmem:[%s580 + $0xa8] sm:$0xff]
        %v694 = vld [vmem:[%s580 + $0xb0] sm:$0xff]
        %v695 = vld [vmem:[%s580 + $0xb8] sm:$0xff]
        %v696 = vld [vmem:[%s580 + $0xc0] sm:$0xff]
        %v697 = vld [vmem:[%s580 + $0xc8] sm:$0xff]
        %v698 = vld [vmem:[%s580 + $0xd0] sm:$0xff]
        %v699 = vld [vmem:[%s580 + $0xd8] sm:$0xff]
        %v700 = vld [vmem:[%s580 + $0xe0] sm:$0xff]
        %v701 = vld [vmem:[%s580 + $0xe8] sm:$0xff]
        %v702 = vld [vmem:[%s580 + $0xf0] sm:$0xff]
        %v703 = vld [vmem:[%s580 + $0xf8] sm:$0xff]
        %v704 = vpack.c.bf16 %v673, %v672
        %v705 = vpack.c.bf16 %v675, %v674
        %v706 = vpack.c.bf16 %v677, %v676
        %v707 = vpack.c.bf16 %v679, %v678
        %v708 = vpack.c.bf16 %v681, %v680
        %v709 = vpack.c.bf16 %v683, %v682
        %v710 = vpack.c.bf16 %v685, %v684
        %v711 = vpack.c.bf16 %v687, %v686
        %v712 = vpack.c.bf16 %v689, %v688
        %v713 = vpack.c.bf16 %v691, %v690
        %v714 = vpack.c.bf16 %v693, %v692
        %v715 = vpack.c.bf16 %v695, %v694
        %v716 = vpack.c.bf16 %v697, %v696
        %v717 = vpack.c.bf16 %v699, %v698
        %v718 = vpack.c.bf16 %v701, %v700
        %v719 = vpack.c.bf16 %v703, %v702
        %v720 = vld [vmem:[%s658] sm:$0xff]
        %v721 = vld [vmem:[%s658 + $0x8] sm:$0xff]
        %v722 = vld [vmem:[%s658 + $0x10] sm:$0xff]
        %v723 = vld [vmem:[%s658 + $0x18] sm:$0xff]
        %v724 = vld [vmem:[%s658 + $0x20] sm:$0xff]
        %v725 = vld [vmem:[%s658 + $0x28] sm:$0xff]
        %v726 = vld [vmem:[%s658 + $0x30] sm:$0xff]
        %v727 = vld [vmem:[%s658 + $0x38] sm:$0xff]
        %v728 = vld [vmem:[%s658 + $0x40] sm:$0xff]
        %v729 = vld [vmem:[%s658 + $0x48] sm:$0xff]
        %v730 = vld [vmem:[%s658 + $0x50] sm:$0xff]
        %v731 = vld [vmem:[%s658 + $0x58] sm:$0xff]
        %v732 = vld [vmem:[%s658 + $0x60] sm:$0xff]
        %v733 = vld [vmem:[%s658 + $0x68] sm:$0xff]
        %v734 = vld [vmem:[%s658 + $0x70] sm:$0xff]
        %v735 = vld [vmem:[%s658 + $0x78] sm:$0xff]
        %v736 = vld [vmem:[%s658 + $0x80] sm:$0xff]
        %v737 = vld [vmem:[%s658 + $0x88] sm:$0xff]
        %v738 = vld [vmem:[%s658 + $0x90] sm:$0xff]
        %v739 = vld [vmem:[%s658 + $0x98] sm:$0xff]
        %v740 = vld [vmem:[%s658 + $0xa0] sm:$0xff]
        %v741 = vld [vmem:[%s658 + $0xa8] sm:$0xff]
        %v742 = vld [vmem:[%s658 + $0xb0] sm:$0xff]
        %v743 = vld [vmem:[%s658 + $0xb8] sm:$0xff]
        %v744 = vld [vmem:[%s658 + $0xc0] sm:$0xff]
        %v745 = vld [vmem:[%s658 + $0xc8] sm:$0xff]
        %v746 = vld [vmem:[%s658 + $0xd0] sm:$0xff]
        %v747 = vld [vmem:[%s658 + $0xd8] sm:$0xff]
        %v748 = vld [vmem:[%s658 + $0xe0] sm:$0xff]
        %v749 = vld [vmem:[%s658 + $0xe8] sm:$0xff]
        %v750 = vld [vmem:[%s658 + $0xf0] sm:$0xff]
        %v751 = vld [vmem:[%s658 + $0xf8] sm:$0xff]
        %v752 = vpack.c.bf16 %v721, %v720
        %v753 = vpack.c.bf16 %v723, %v722
        %v754 = vpack.c.bf16 %v725, %v724
        %v755 = vpack.c.bf16 %v727, %v726
        %v756 = vpack.c.bf16 %v729, %v728
        %v757 = vpack.c.bf16 %v731, %v730
        %v758 = vpack.c.bf16 %v733, %v732
        %v759 = vpack.c.bf16 %v735, %v734
        %v760 = vpack.c.bf16 %v737, %v736
        %v761 = vpack.c.bf16 %v739, %v738
        %v762 = vpack.c.bf16 %v741, %v740
        %v763 = vpack.c.bf16 %v743, %v742
        %v764 = vpack.c.bf16 %v745, %v744
        %v765 = vpack.c.bf16 %v747, %v746
        %v766 = vpack.c.bf16 %v749, %v748
        %v767 = vpack.c.bf16 %v751, %v750
        %v768 = vld [vmem:[%s665] sm:$0xff]
        %v769 = vld [vmem:[%s665 + $0x8] sm:$0xff]
        %v770 = vld [vmem:[%s665 + $0x10] sm:$0xff]
        %v771 = vld [vmem:[%s665 + $0x18] sm:$0xff]
        %v772 = vld [vmem:[%s665 + $0x20] sm:$0xff]
        %v773 = vld [vmem:[%s665 + $0x28] sm:$0xff]
        %v774 = vld [vmem:[%s665 + $0x30] sm:$0xff]
        %v775 = vld [vmem:[%s665 + $0x38] sm:$0xff]
        %v776 = vld [vmem:[%s665 + $0x40] sm:$0xff]
        %v777 = vld [vmem:[%s665 + $0x48] sm:$0xff]
        %v778 = vld [vmem:[%s665 + $0x50] sm:$0xff]
        %v779 = vld [vmem:[%s665 + $0x58] sm:$0xff]
        %v780 = vld [vmem:[%s665 + $0x60] sm:$0xff]
        %v781 = vld [vmem:[%s665 + $0x68] sm:$0xff]
        %v782 = vld [vmem:[%s665 + $0x70] sm:$0xff]
        %v783 = vld [vmem:[%s665 + $0x78] sm:$0xff]
        %v784 = vld [vmem:[%s665 + $0x80] sm:$0xff]
        %v785 = vld [vmem:[%s665 + $0x88] sm:$0xff]
        %v786 = vld [vmem:[%s665 + $0x90] sm:$0xff]
        %v787 = vld [vmem:[%s665 + $0x98] sm:$0xff]
        %v788 = vld [vmem:[%s665 + $0xa0] sm:$0xff]
        %v789 = vld [vmem:[%s665 + $0xa8] sm:$0xff]
        %v790 = vld [vmem:[%s665 + $0xb0] sm:$0xff]
        %v791 = vld [vmem:[%s665 + $0xb8] sm:$0xff]
        %v792 = vld [vmem:[%s665 + $0xc0] sm:$0xff]
        %v793 = vld [vmem:[%s665 + $0xc8] sm:$0xff]
        %v794 = vld [vmem:[%s665 + $0xd0] sm:$0xff]
        %v795 = vld [vmem:[%s665 + $0xd8] sm:$0xff]
        %v796 = vld [vmem:[%s665 + $0xe0] sm:$0xff]
        %v797 = vld [vmem:[%s665 + $0xe8] sm:$0xff]
        %v798 = vld [vmem:[%s665 + $0xf0] sm:$0xff]
        %v799 = vld [vmem:[%s665 + $0xf8] sm:$0xff]
        %v800 = vpack.c.bf16 %v769, %v768
        %v801 = vpack.c.bf16 %v771, %v770
        %v802 = vpack.c.bf16 %v773, %v772
        %v803 = vpack.c.bf16 %v775, %v774
        %v804 = vpack.c.bf16 %v777, %v776
        %v805 = vpack.c.bf16 %v779, %v778
        %v806 = vpack.c.bf16 %v781, %v780
        %v807 = vpack.c.bf16 %v783, %v782
        %v808 = vpack.c.bf16 %v785, %v784
        %v809 = vpack.c.bf16 %v787, %v786
        %v810 = vpack.c.bf16 %v789, %v788
        %v811 = vpack.c.bf16 %v791, %v790
        %v812 = vpack.c.bf16 %v793, %v792
        %v813 = vpack.c.bf16 %v795, %v794
        %v814 = vpack.c.bf16 %v797, %v796
        %v815 = vpack.c.bf16 %v799, %v798
        %v816 = vld [vmem:[#allocation3] sm:$0xf]
        %v817 = vld [vmem:[#allocation3 + $0x4] sm:$0xf]
        %v818 = vld [vmem:[#allocation3 + $0x8] sm:$0xf]
        %v819 = vld [vmem:[#allocation3 + $0xc] sm:$0xf]
        %v824 = vunpack.c.l.b16 %v816
        %v825 = vunpack.c.l.b16 %v817
        %v826 = vunpack.c.l.b16 %v818
        %v827 = vunpack.c.l.b16 %v819
        %v828 = vpack.c.b16 %v825, %v824
        %v829 = vpack.c.b16 %v827, %v826
        %vm832 = vcmask 261120
        %v834 = vsel %vm832, %v704, 0
        %v837 = vsel %vm832, %v705, 0
        %v840 = vsel %vm832, %v706, 0
        %v843 = vsel %vm832, %v707, 0
        %v846 = vsel %vm832, %v708, 0
        %v849 = vsel %vm832, %v709, 0
        %v852 = vsel %vm832, %v710, 0
        %v855 = vsel %vm832, %v711, 0
        %v858 = vsel %vm832, %v712, 0
        %v861 = vsel %vm832, %v713, 0
        %v864 = vsel %vm832, %v714, 0
        %v867 = vsel %vm832, %v715, 0
        %v870 = vsel %vm832, %v716, 0
        %v873 = vsel %vm832, %v717, 0
        %v876 = vsel %vm832, %v718, 0
        %v879 = vsel %vm832, %v719, 0
        %881 = vmatprep.subr.bf16.mxu0 0
        %882 = vmatpush1.bf16.msra.mxu0 0
        %883 = vmatprep.subr.bf16.mxu0 0
        %884 = vmatpush1.bf16.msra.mxu0 0
        %885 = vmatprep.subr.bf16.mxu0 0
        %886 = vmatpush1.bf16.msra.mxu0 0
        %887 = vmatprep.subr.bf16.mxu0 0
        %888 = vmatpush1.bf16.msra.mxu0 0
        %889 = vmatprep.subr.bf16.mxu0 0
        %890 = vmatpush1.bf16.msra.mxu0 0
        %891 = vmatprep.subr.bf16.mxu0 0
        %892 = vmatpush1.bf16.msra.mxu0 0
        %893 = vmatprep.subr.bf16.mxu0 0
        %894 = vmatpush1.bf16.msra.mxu0 %v829
        %895 = vmatprep.subr.bf16.mxu0 0
        %896 = vmatpush1.bf16.msra.mxu0 %v828
        %897 = vmatprep.subr.bf16.mxu0 0
        %898 = vmatpush2.bf16.msra.mxu0 0
        %899 = vmatprep.subr.bf16.mxu0 0
        %900 = vmatpush2.bf16.msra.mxu0 0
        %901 = vmatprep.subr.bf16.mxu0 0
        %902 = vmatpush2.bf16.msra.mxu0 0
        %903 = vmatprep.subr.bf16.mxu0 0
        %904 = vmatpush2.bf16.msra.mxu0 0
        %905 = vmatprep.subr.bf16.mxu0 0
        %906 = vmatpush2.bf16.msra.mxu0 0
        %907 = vmatprep.subr.bf16.mxu0 0
        %908 = vmatpush2.bf16.msra.mxu0 0
        %909 = vmatprep.subr.bf16.mxu0 0
        %910 = vmatpush2.bf16.msra.mxu0 0
        %911 = vmatprep.subr.bf16.mxu0 0
        %912 = vmatpush2.bf16.msra.mxu0 0
        %913 = vmatprep.mubr.bf16.mxu0 0
        %914 = vmatmul.mubr.bf16.gmra.mxu0 %v834
        %v915 = vpop.f32.mrf.mxu0
        %v916 = vadd.f32 0.0, %v915
        %v917 = vpop.f32.mrf.mxu0
        %v918 = vpop.f32.mrf.mxu0
        %v919 = vadd.f32 0.0, %v918
        %v920 = vpop.f32.mrf.mxu0
        %921 = vmatprep.mubr.bf16.mxu0 0
        %922 = vmatmul.mubr.bf16.gmra.mxu0 %v837
        %v923 = vpop.f32.mrf.mxu0
        %v924 = vadd.f32 0.0, %v923
        %v925 = vpop.f32.mrf.mxu0
        %v926 = vpop.f32.mrf.mxu0
        %v927 = vadd.f32 0.0, %v926
        %v928 = vpop.f32.mrf.mxu0
        %929 = vmatprep.mubr.bf16.mxu0 0
        %930 = vmatmul.mubr.bf16.gmra.mxu0 %v840
        %v931 = vpop.f32.mrf.mxu0
        %v932 = vadd.f32 0.0, %v931
        %v933 = vpop.f32.mrf.mxu0
        %v934 = vpop.f32.mrf.mxu0
        %v935 = vadd.f32 0.0, %v934
        %v936 = vpop.f32.mrf.mxu0
        %937 = vmatprep.mubr.bf16.mxu0 0
        %938 = vmatmul.mubr.bf16.gmra.mxu0 %v843
        %v939 = vpop.f32.mrf.mxu0
        %v940 = vadd.f32 0.0, %v939
        %v941 = vpop.f32.mrf.mxu0
        %v942 = vpop.f32.mrf.mxu0
        %v943 = vadd.f32 0.0, %v942
        %v944 = vpop.f32.mrf.mxu0
        %945 = vmatprep.mubr.bf16.mxu0 0
        %946 = vmatmul.mubr.bf16.gmra.mxu0 %v846
        %v947 = vpop.f32.mrf.mxu0
        %v948 = vadd.f32 0.0, %v947
        %v949 = vpop.f32.mrf.mxu0
        %v950 = vpop.f32.mrf.mxu0
        %v951 = vadd.f32 0.0, %v950
        %v952 = vpop.f32.mrf.mxu0
        %953 = vmatprep.mubr.bf16.mxu0 0
        %954 = vmatmul.mubr.bf16.gmra.mxu0 %v849
        %v955 = vpop.f32.mrf.mxu0
        %v956 = vadd.f32 0.0, %v955
        %v957 = vpop.f32.mrf.mxu0
        %v958 = vpop.f32.mrf.mxu0
        %v959 = vadd.f32 0.0, %v958
        %v960 = vpop.f32.mrf.mxu0
        %961 = vmatprep.mubr.bf16.mxu0 0
        %962 = vmatmul.mubr.bf16.gmra.mxu0 %v852
        %v963 = vpop.f32.mrf.mxu0
        %v964 = vadd.f32 0.0, %v963
        %v965 = vpop.f32.mrf.mxu0
        %v966 = vpop.f32.mrf.mxu0
        %v967 = vadd.f32 0.0, %v966
        %v968 = vpop.f32.mrf.mxu0
        %969 = vmatprep.mubr.bf16.mxu0 0
        %970 = vmatmul.mubr.bf16.gmra.mxu0 %v855
        %v971 = vpop.f32.mrf.mxu0
        %v972 = vadd.f32 0.0, %v971
        %v973 = vpop.f32.mrf.mxu0
        %v974 = vpop.f32.mrf.mxu0
        %v975 = vadd.f32 0.0, %v974
        %v976 = vpop.f32.mrf.mxu0
        %977 = vmatprep.mubr.bf16.mxu0 0
        %978 = vmatmul.mubr.bf16.gmra.mxu0 %v858
        %v979 = vpop.f32.mrf.mxu0
        %v980 = vadd.f32 0.0, %v979
        %v981 = vpop.f32.mrf.mxu0
        %v982 = vpop.f32.mrf.mxu0
        %v983 = vadd.f32 0.0, %v982
        %v984 = vpop.f32.mrf.mxu0
        %985 = vmatprep.mubr.bf16.mxu0 0
        %986 = vmatmul.mubr.bf16.gmra.mxu0 %v861
        %v987 = vpop.f32.mrf.mxu0
        %v988 = vadd.f32 0.0, %v987
        %v989 = vpop.f32.mrf.mxu0
        %v990 = vpop.f32.mrf.mxu0
        %v991 = vadd.f32 0.0, %v990
        %v992 = vpop.f32.mrf.mxu0
        %993 = vmatprep.mubr.bf16.mxu0 0
        %994 = vmatmul.mubr.bf16.gmra.mxu0 %v864
        %v995 = vpop.f32.mrf.mxu0
        %v996 = vadd.f32 0.0, %v995
        %v997 = vpop.f32.mrf.mxu0
        %v998 = vpop.f32.mrf.mxu0
        %v999 = vadd.f32 0.0, %v998
        %v1000 = vpop.f32.mrf.mxu0
        %1001 = vmatprep.mubr.bf16.mxu0 0
        %1002 = vmatmul.mubr.bf16.gmra.mxu0 %v867
        %v1003 = vpop.f32.mrf.mxu0
        %v1004 = vadd.f32 0.0, %v1003
        %v1005 = vpop.f32.mrf.mxu0
        %v1006 = vpop.f32.mrf.mxu0
        %v1007 = vadd.f32 0.0, %v1006
        %v1008 = vpop.f32.mrf.mxu0
        %1009 = vmatprep.mubr.bf16.mxu0 0
        %1010 = vmatmul.mubr.bf16.gmra.mxu0 %v870
        %v1011 = vpop.f32.mrf.mxu0
        %v1012 = vadd.f32 0.0, %v1011
        %v1013 = vpop.f32.mrf.mxu0
        %v1014 = vpop.f32.mrf.mxu0
        %v1015 = vadd.f32 0.0, %v1014
        %v1016 = vpop.f32.mrf.mxu0
        %1017 = vmatprep.mubr.bf16.mxu0 0
        %1018 = vmatmul.mubr.bf16.gmra.mxu0 %v873
        %v1019 = vpop.f32.mrf.mxu0
        %v1020 = vadd.f32 0.0, %v1019
        %v1021 = vpop.f32.mrf.mxu0
        %v1022 = vpop.f32.mrf.mxu0
        %v1023 = vadd.f32 0.0, %v1022
        %v1024 = vpop.f32.mrf.mxu0
        %1025 = vmatprep.mubr.bf16.mxu0 0
        %1026 = vmatmul.mubr.bf16.gmra.mxu0 %v876
        %v1027 = vpop.f32.mrf.mxu0
        %v1028 = vadd.f32 0.0, %v1027
        %v1029 = vpop.f32.mrf.mxu0
        %v1030 = vpop.f32.mrf.mxu0
        %v1031 = vadd.f32 0.0, %v1030
        %v1032 = vpop.f32.mrf.mxu0
        %1033 = vmatprep.mubr.bf16.mxu0 0
        %1034 = vmatmul.mubr.bf16.gmra.mxu0 %v879
        %v1035 = vpop.f32.mrf.mxu0
        %v1036 = vadd.f32 0.0, %v1035
        %v1037 = vpop.f32.mrf.mxu0
        %v1038 = vpop.f32.mrf.mxu0
        %v1039 = vadd.f32 0.0, %v1038
        %v1040 = vpop.f32.mrf.mxu0
        %1041 = vdwg.mxu0
        %v1042 = vld [vmem:[#allocation6] sm:$0xf]
        %v1043 = vld [vmem:[#allocation6 + $0x4] sm:$0xf]
        %v1044 = vld [vmem:[#allocation6 + $0x8] sm:$0xf]
        %v1045 = vld [vmem:[#allocation6 + $0xc] sm:$0xf]
        %v1050 = vunpack.c.l.b16 %v1042
        %v1051 = vunpack.c.l.b16 %v1043
        %v1052 = vunpack.c.l.b16 %v1044
        %v1053 = vunpack.c.l.b16 %v1045
        %v1054 = vpack.c.b16 %v1051, %v1050
        %v1055 = vpack.c.b16 %v1053, %v1052
        %v1059 = vsel %vm832, %v752, 0
        %v1062 = vsel %vm832, %v753, 0
        %v1065 = vsel %vm832, %v754, 0
        %v1068 = vsel %vm832, %v755, 0
        %v1071 = vsel %vm832, %v756, 0
        %v1074 = vsel %vm832, %v757, 0
        %v1077 = vsel %vm832, %v758, 0
        %v1080 = vsel %vm832, %v759, 0
        %v1083 = vsel %vm832, %v760, 0
        %v1086 = vsel %vm832, %v761, 0
        %v1089 = vsel %vm832, %v762, 0
        %v1092 = vsel %vm832, %v763, 0
        %v1095 = vsel %vm832, %v764, 0
        %v1098 = vsel %vm832, %v765, 0
        %v1101 = vsel %vm832, %v766, 0
        %v1104 = vsel %vm832, %v767, 0
        %1106 = vmatprep.subr.bf16.mxu0 0
        %1107 = vmatpush1.bf16.msra.mxu0 0
        %1108 = vmatprep.subr.bf16.mxu0 0
        %1109 = vmatpush1.bf16.msra.mxu0 0
        %1110 = vmatprep.subr.bf16.mxu0 0
        %1111 = vmatpush1.bf16.msra.mxu0 0
        %1112 = vmatprep.subr.bf16.mxu0 0
        %1113 = vmatpush1.bf16.msra.mxu0 0
        %1114 = vmatprep.subr.bf16.mxu0 0
        %1115 = vmatpush1.bf16.msra.mxu0 0
        %1116 = vmatprep.subr.bf16.mxu0 0
        %1117 = vmatpush1.bf16.msra.mxu0 0
        %1118 = vmatprep.subr.bf16.mxu0 0
        %1119 = vmatpush1.bf16.msra.mxu0 %v1055
        %1120 = vmatprep.subr.bf16.mxu0 0
        %1121 = vmatpush1.bf16.msra.mxu0 %v1054
        %1122 = vmatprep.subr.bf16.mxu0 0
        %1123 = vmatpush2.bf16.msra.mxu0 0
        %1124 = vmatprep.subr.bf16.mxu0 0
        %1125 = vmatpush2.bf16.msra.mxu0 0
        %1126 = vmatprep.subr.bf16.mxu0 0
        %1127 = vmatpush2.bf16.msra.mxu0 0
        %1128 = vmatprep.subr.bf16.mxu0 0
        %1129 = vmatpush2.bf16.msra.mxu0 0
        %1130 = vmatprep.subr.bf16.mxu0 0
        %1131 = vmatpush2.bf16.msra.mxu0 0
        %1132 = vmatprep.subr.bf16.mxu0 0
        %1133 = vmatpush2.bf16.msra.mxu0 0
        %1134 = vmatprep.subr.bf16.mxu0 0
        %1135 = vmatpush2.bf16.msra.mxu0 0
        %1136 = vmatprep.subr.bf16.mxu0 0
        %1137 = vmatpush2.bf16.msra.mxu0 0
        %1138 = vmatprep.mubr.bf16.mxu0 0
        %1139 = vmatmul.mubr.bf16.gmra.mxu0 %v1059
        %v1140 = vpop.f32.mrf.mxu0
        %v1141 = vadd.f32 0.0, %v1140
        %v1142 = vpop.f32.mrf.mxu0
        %v1143 = vpop.f32.mrf.mxu0
        %v1144 = vadd.f32 0.0, %v1143
        %v1145 = vpop.f32.mrf.mxu0
        %1146 = vmatprep.mubr.bf16.mxu0 0
        %1147 = vmatmul.mubr.bf16.gmra.mxu0 %v1062
        %v1148 = vpop.f32.mrf.mxu0
        %v1149 = vadd.f32 0.0, %v1148
        %v1150 = vpop.f32.mrf.mxu0
        %v1151 = vpop.f32.mrf.mxu0
        %v1152 = vadd.f32 0.0, %v1151
        %v1153 = vpop.f32.mrf.mxu0
        %1154 = vmatprep.mubr.bf16.mxu0 0
        %1155 = vmatmul.mubr.bf16.gmra.mxu0 %v1065
        %v1156 = vpop.f32.mrf.mxu0
        %v1157 = vadd.f32 0.0, %v1156
        %v1158 = vpop.f32.mrf.mxu0
        %v1159 = vpop.f32.mrf.mxu0
        %v1160 = vadd.f32 0.0, %v1159
        %v1161 = vpop.f32.mrf.mxu0
        %1162 = vmatprep.mubr.bf16.mxu0 0
        %1163 = vmatmul.mubr.bf16.gmra.mxu0 %v1068
        %v1164 = vpop.f32.mrf.mxu0
        %v1165 = vadd.f32 0.0, %v1164
        %v1166 = vpop.f32.mrf.mxu0
        %v1167 = vpop.f32.mrf.mxu0
        %v1168 = vadd.f32 0.0, %v1167
        %v1169 = vpop.f32.mrf.mxu0
        %1170 = vmatprep.mubr.bf16.mxu0 0
        %1171 = vmatmul.mubr.bf16.gmra.mxu0 %v1071
        %v1172 = vpop.f32.mrf.mxu0
        %v1173 = vadd.f32 0.0, %v1172
        %v1174 = vpop.f32.mrf.mxu0
        %v1175 = vpop.f32.mrf.mxu0
        %v1176 = vadd.f32 0.0, %v1175
        %v1177 = vpop.f32.mrf.mxu0
        %1178 = vmatprep.mubr.bf16.mxu0 0
        %1179 = vmatmul.mubr.bf16.gmra.mxu0 %v1074
        %v1180 = vpop.f32.mrf.mxu0
        %v1181 = vadd.f32 0.0, %v1180
        %v1182 = vpop.f32.mrf.mxu0
        %v1183 = vpop.f32.mrf.mxu0
        %v1184 = vadd.f32 0.0, %v1183
        %v1185 = vpop.f32.mrf.mxu0
        %1186 = vmatprep.mubr.bf16.mxu0 0
        %1187 = vmatmul.mubr.bf16.gmra.mxu0 %v1077
        %v1188 = vpop.f32.mrf.mxu0
        %v1189 = vadd.f32 0.0, %v1188
        %v1190 = vpop.f32.mrf.mxu0
        %v1191 = vpop.f32.mrf.mxu0
        %v1192 = vadd.f32 0.0, %v1191
        %v1193 = vpop.f32.mrf.mxu0
        %1194 = vmatprep.mubr.bf16.mxu0 0
        %1195 = vmatmul.mubr.bf16.gmra.mxu0 %v1080
        %v1196 = vpop.f32.mrf.mxu0
        %v1197 = vadd.f32 0.0, %v1196
        %v1198 = vpop.f32.mrf.mxu0
        %v1199 = vpop.f32.mrf.mxu0
        %v1200 = vadd.f32 0.0, %v1199
        %v1201 = vpop.f32.mrf.mxu0
        %1202 = vmatprep.mubr.bf16.mxu0 0
        %1203 = vmatmul.mubr.bf16.gmra.mxu0 %v1083
        %v1204 = vpop.f32.mrf.mxu0
        %v1205 = vadd.f32 0.0, %v1204
        %v1206 = vpop.f32.mrf.mxu0
        %v1207 = vpop.f32.mrf.mxu0
        %v1208 = vadd.f32 0.0, %v1207
        %v1209 = vpop.f32.mrf.mxu0
        %1210 = vmatprep.mubr.bf16.mxu0 0
        %1211 = vmatmul.mubr.bf16.gmra.mxu0 %v1086
        %v1212 = vpop.f32.mrf.mxu0
        %v1213 = vadd.f32 0.0, %v1212
        %v1214 = vpop.f32.mrf.mxu0
        %v1215 = vpop.f32.mrf.mxu0
        %v1216 = vadd.f32 0.0, %v1215
        %v1217 = vpop.f32.mrf.mxu0
        %1218 = vmatprep.mubr.bf16.mxu0 0
        %1219 = vmatmul.mubr.bf16.gmra.mxu0 %v1089
        %v1220 = vpop.f32.mrf.mxu0
        %v1221 = vadd.f32 0.0, %v1220
        %v1222 = vpop.f32.mrf.mxu0
        %v1223 = vpop.f32.mrf.mxu0
        %v1224 = vadd.f32 0.0, %v1223
        %v1225 = vpop.f32.mrf.mxu0
        %1226 = vmatprep.mubr.bf16.mxu0 0
        %1227 = vmatmul.mubr.bf16.gmra.mxu0 %v1092
        %v1228 = vpop.f32.mrf.mxu0
        %v1229 = vadd.f32 0.0, %v1228
        %v1230 = vpop.f32.mrf.mxu0
        %v1231 = vpop.f32.mrf.mxu0
        %v1232 = vadd.f32 0.0, %v1231
        %v1233 = vpop.f32.mrf.mxu0
        %1234 = vmatprep.mubr.bf16.mxu0 0
        %1235 = vmatmul.mubr.bf16.gmra.mxu0 %v1095
        %v1236 = vpop.f32.mrf.mxu0
        %v1237 = vadd.f32 0.0, %v1236
        %v1238 = vpop.f32.mrf.mxu0
        %v1239 = vpop.f32.mrf.mxu0
        %v1240 = vadd.f32 0.0, %v1239
        %v1241 = vpop.f32.mrf.mxu0
        %1242 = vmatprep.mubr.bf16.mxu0 0
        %1243 = vmatmul.mubr.bf16.gmra.mxu0 %v1098
        %v1244 = vpop.f32.mrf.mxu0
        %v1245 = vadd.f32 0.0, %v1244
        %v1246 = vpop.f32.mrf.mxu0
        %v1247 = vpop.f32.mrf.mxu0
        %v1248 = vadd.f32 0.0, %v1247
        %v1249 = vpop.f32.mrf.mxu0
        %1250 = vmatprep.mubr.bf16.mxu0 0
        %1251 = vmatmul.mubr.bf16.gmra.mxu0 %v1101
        %v1252 = vpop.f32.mrf.mxu0
        %v1253 = vadd.f32 0.0, %v1252
        %v1254 = vpop.f32.mrf.mxu0
        %v1255 = vpop.f32.mrf.mxu0
        %v1256 = vadd.f32 0.0, %v1255
        %v1257 = vpop.f32.mrf.mxu0
        %1258 = vmatprep.mubr.bf16.mxu0 0
        %1259 = vmatmul.mubr.bf16.gmra.mxu0 %v1104
        %v1260 = vpop.f32.mrf.mxu0
        %v1261 = vadd.f32 0.0, %v1260
        %v1262 = vpop.f32.mrf.mxu0
        %v1263 = vpop.f32.mrf.mxu0
        %v1264 = vadd.f32 0.0, %v1263
        %v1265 = vpop.f32.mrf.mxu0
        %1266 = vdwg.mxu0
        %v1267 = vld [vmem:[#allocation8] sm:$0xf]
        %v1268 = vld [vmem:[#allocation8 + $0x4] sm:$0xf]
        %v1269 = vld [vmem:[#allocation8 + $0x8] sm:$0xf]
        %v1270 = vld [vmem:[#allocation8 + $0xc] sm:$0xf]
        %v1275 = vunpack.c.l.b16 %v1267
        %v1276 = vunpack.c.l.b16 %v1268
        %v1277 = vunpack.c.l.b16 %v1269
        %v1278 = vunpack.c.l.b16 %v1270
        %v1279 = vpack.c.b16 %v1276, %v1275
        %v1280 = vpack.c.b16 %v1278, %v1277
        %v1284 = vsel %vm832, %v800, 0
        %v1287 = vsel %vm832, %v801, 0
        %v1290 = vsel %vm832, %v802, 0
        %v1293 = vsel %vm832, %v803, 0
        %v1296 = vsel %vm832, %v804, 0
        %v1299 = vsel %vm832, %v805, 0
        %v1302 = vsel %vm832, %v806, 0
        %v1305 = vsel %vm832, %v807, 0
        %v1308 = vsel %vm832, %v808, 0
        %v1311 = vsel %vm832, %v809, 0
        %v1314 = vsel %vm832, %v810, 0
        %v1317 = vsel %vm832, %v811, 0
        %v1320 = vsel %vm832, %v812, 0
        %v1323 = vsel %vm832, %v813, 0
        %v1326 = vsel %vm832, %v814, 0
        %v1329 = vsel %vm832, %v815, 0
        %1331 = vmatprep.subr.bf16.mxu0 0
        %1332 = vmatpush1.bf16.msra.mxu0 0
        %1333 = vmatprep.subr.bf16.mxu0 0
        %1334 = vmatpush1.bf16.msra.mxu0 0
        %1335 = vmatprep.subr.bf16.mxu0 0
        %1336 = vmatpush1.bf16.msra.mxu0 0
        %1337 = vmatprep.subr.bf16.mxu0 0
        %1338 = vmatpush1.bf16.msra.mxu0 0
        %1339 = vmatprep.subr.bf16.mxu0 0
        %1340 = vmatpush1.bf16.msra.mxu0 0
        %1341 = vmatprep.subr.bf16.mxu0 0
        %1342 = vmatpush1.bf16.msra.mxu0 0
        %1343 = vmatprep.subr.bf16.mxu0 0
        %1344 = vmatpush1.bf16.msra.mxu0 %v1280
        %1345 = vmatprep.subr.bf16.mxu0 0
        %1346 = vmatpush1.bf16.msra.mxu0 %v1279
        %1347 = vmatprep.subr.bf16.mxu0 0
        %1348 = vmatpush2.bf16.msra.mxu0 0
        %1349 = vmatprep.subr.bf16.mxu0 0
        %1350 = vmatpush2.bf16.msra.mxu0 0
        %1351 = vmatprep.subr.bf16.mxu0 0
        %1352 = vmatpush2.bf16.msra.mxu0 0
        %1353 = vmatprep.subr.bf16.mxu0 0
        %1354 = vmatpush2.bf16.msra.mxu0 0
        %1355 = vmatprep.subr.bf16.mxu0 0
        %1356 = vmatpush2.bf16.msra.mxu0 0
        %1357 = vmatprep.subr.bf16.mxu0 0
        %1358 = vmatpush2.bf16.msra.mxu0 0
        %1359 = vmatprep.subr.bf16.mxu0 0
        %1360 = vmatpush2.bf16.msra.mxu0 0
        %1361 = vmatprep.subr.bf16.mxu0 0
        %1362 = vmatpush2.bf16.msra.mxu0 0
        %1363 = vmatprep.mubr.bf16.mxu0 0
        %1364 = vmatmul.mubr.bf16.gmra.mxu0 %v1284
        %v1365 = vpop.f32.mrf.mxu0
        %v1366 = vadd.f32 0.0, %v1365
        %v1367 = vpop.f32.mrf.mxu0
        %v1368 = vpop.f32.mrf.mxu0
        %v1369 = vadd.f32 0.0, %v1368
        %v1370 = vpop.f32.mrf.mxu0
        %1371 = vmatprep.mubr.bf16.mxu0 0
        %1372 = vmatmul.mubr.bf16.gmra.mxu0 %v1287
        %v1373 = vpop.f32.mrf.mxu0
        %v1374 = vadd.f32 0.0, %v1373
        %v1375 = vpop.f32.mrf.mxu0
        %v1376 = vpop.f32.mrf.mxu0
        %v1377 = vadd.f32 0.0, %v1376
        %v1378 = vpop.f32.mrf.mxu0
        %1379 = vmatprep.mubr.bf16.mxu0 0
        %1380 = vmatmul.mubr.bf16.gmra.mxu0 %v1290
        %v1381 = vpop.f32.mrf.mxu0
        %v1382 = vadd.f32 0.0, %v1381
        %v1383 = vpop.f32.mrf.mxu0
        %v1384 = vpop.f32.mrf.mxu0
        %v1385 = vadd.f32 0.0, %v1384
        %v1386 = vpop.f32.mrf.mxu0
        %1387 = vmatprep.mubr.bf16.mxu0 0
        %1388 = vmatmul.mubr.bf16.gmra.mxu0 %v1293
        %v1389 = vpop.f32.mrf.mxu0
        %v1390 = vadd.f32 0.0, %v1389
        %v1391 = vpop.f32.mrf.mxu0
        %v1392 = vpop.f32.mrf.mxu0
        %v1393 = vadd.f32 0.0, %v1392
        %v1394 = vpop.f32.mrf.mxu0
        %1395 = vmatprep.mubr.bf16.mxu0 0
        %1396 = vmatmul.mubr.bf16.gmra.mxu0 %v1296
        %v1397 = vpop.f32.mrf.mxu0
        %v1398 = vadd.f32 0.0, %v1397
        %v1399 = vpop.f32.mrf.mxu0
        %v1400 = vpop.f32.mrf.mxu0
        %v1401 = vadd.f32 0.0, %v1400
        %v1402 = vpop.f32.mrf.mxu0
        %1403 = vmatprep.mubr.bf16.mxu0 0
        %1404 = vmatmul.mubr.bf16.gmra.mxu0 %v1299
        %v1405 = vpop.f32.mrf.mxu0
        %v1406 = vadd.f32 0.0, %v1405
        %v1407 = vpop.f32.mrf.mxu0
        %v1408 = vpop.f32.mrf.mxu0
        %v1409 = vadd.f32 0.0, %v1408
        %v1410 = vpop.f32.mrf.mxu0
        %1411 = vmatprep.mubr.bf16.mxu0 0
        %1412 = vmatmul.mubr.bf16.gmra.mxu0 %v1302
        %v1413 = vpop.f32.mrf.mxu0
        %v1414 = vadd.f32 0.0, %v1413
        %v1415 = vpop.f32.mrf.mxu0
        %v1416 = vpop.f32.mrf.mxu0
        %v1417 = vadd.f32 0.0, %v1416
        %v1418 = vpop.f32.mrf.mxu0
        %1419 = vmatprep.mubr.bf16.mxu0 0
        %1420 = vmatmul.mubr.bf16.gmra.mxu0 %v1305
        %v1421 = vpop.f32.mrf.mxu0
        %v1422 = vadd.f32 0.0, %v1421
        %v1423 = vpop.f32.mrf.mxu0
        %v1424 = vpop.f32.mrf.mxu0
        %v1425 = vadd.f32 0.0, %v1424
        %v1426 = vpop.f32.mrf.mxu0
        %1427 = vmatprep.mubr.bf16.mxu0 0
        %1428 = vmatmul.mubr.bf16.gmra.mxu0 %v1308
        %v1429 = vpop.f32.mrf.mxu0
        %v1430 = vadd.f32 0.0, %v1429
        %v1431 = vpop.f32.mrf.mxu0
        %v1432 = vpop.f32.mrf.mxu0
        %v1433 = vadd.f32 0.0, %v1432
        %v1434 = vpop.f32.mrf.mxu0
        %1435 = vmatprep.mubr.bf16.mxu0 0
        %1436 = vmatmul.mubr.bf16.gmra.mxu0 %v1311
        %v1437 = vpop.f32.mrf.mxu0
        %v1438 = vadd.f32 0.0, %v1437
        %v1439 = vpop.f32.mrf.mxu0
        %v1440 = vpop.f32.mrf.mxu0
        %v1441 = vadd.f32 0.0, %v1440
        %v1442 = vpop.f32.mrf.mxu0
        %1443 = vmatprep.mubr.bf16.mxu0 0
        %1444 = vmatmul.mubr.bf16.gmra.mxu0 %v1314
        %v1445 = vpop.f32.mrf.mxu0
        %v1446 = vadd.f32 0.0, %v1445
        %v1447 = vpop.f32.mrf.mxu0
        %v1448 = vpop.f32.mrf.mxu0
        %v1449 = vadd.f32 0.0, %v1448
        %v1450 = vpop.f32.mrf.mxu0
        %1451 = vmatprep.mubr.bf16.mxu0 0
        %1452 = vmatmul.mubr.bf16.gmra.mxu0 %v1317
        %v1453 = vpop.f32.mrf.mxu0
        %v1454 = vadd.f32 0.0, %v1453
        %v1455 = vpop.f32.mrf.mxu0
        %v1456 = vpop.f32.mrf.mxu0
        %v1457 = vadd.f32 0.0, %v1456
        %v1458 = vpop.f32.mrf.mxu0
        %1459 = vmatprep.mubr.bf16.mxu0 0
        %1460 = vmatmul.mubr.bf16.gmra.mxu0 %v1320
        %v1461 = vpop.f32.mrf.mxu0
        %v1462 = vadd.f32 0.0, %v1461
        %v1463 = vpop.f32.mrf.mxu0
        %v1464 = vpop.f32.mrf.mxu0
        %v1465 = vadd.f32 0.0, %v1464
        %v1466 = vpop.f32.mrf.mxu0
        %1467 = vmatprep.mubr.bf16.mxu0 0
        %1468 = vmatmul.mubr.bf16.gmra.mxu0 %v1323
        %v1469 = vpop.f32.mrf.mxu0
        %v1470 = vadd.f32 0.0, %v1469
        %v1471 = vpop.f32.mrf.mxu0
        %v1472 = vpop.f32.mrf.mxu0
        %v1473 = vadd.f32 0.0, %v1472
        %v1474 = vpop.f32.mrf.mxu0
        %1475 = vmatprep.mubr.bf16.mxu0 0
        %1476 = vmatmul.mubr.bf16.gmra.mxu0 %v1326
        %v1477 = vpop.f32.mrf.mxu0
        %v1478 = vadd.f32 0.0, %v1477
        %v1479 = vpop.f32.mrf.mxu0
        %v1480 = vpop.f32.mrf.mxu0
        %v1481 = vadd.f32 0.0, %v1480
        %v1482 = vpop.f32.mrf.mxu0
        %1483 = vmatprep.mubr.bf16.mxu0 0
        %1484 = vmatmul.mubr.bf16.gmra.mxu0 %v1329
        %v1485 = vpop.f32.mrf.mxu0
        %v1486 = vadd.f32 0.0, %v1485
        %v1487 = vpop.f32.mrf.mxu0
        %v1488 = vpop.f32.mrf.mxu0
        %v1489 = vadd.f32 0.0, %v1488
        %v1490 = vpop.f32.mrf.mxu0
        %1491 = vdwg.mxu0
        %1492 = vxpose.xlu0.b32.start [1/16] %v916, 128
        %1493 = vxpose.xlu0.b32.cont [2/16] %v919, 128
        %1494 = vxpose.xlu0.b32.cont [3/16] %v924, 128
        %1495 = vxpose.xlu0.b32.cont [4/16] %v927, 128
        %1496 = vxpose.xlu0.b32.cont [5/16] %v932, 128
        %1497 = vxpose.xlu0.b32.cont [6/16] %v935, 128
        %1498 = vxpose.xlu0.b32.cont [7/16] %v940, 128
        %1499 = vxpose.xlu0.b32.cont [8/16] %v943, 128
        %1500 = vxpose.xlu0.b32.cont [9/16] %v948, 128
        %1501 = vxpose.xlu0.b32.cont [10/16] %v951, 128
        %1502 = vxpose.xlu0.b32.cont [11/16] %v956, 128
        %1503 = vxpose.xlu0.b32.cont [12/16] %v959, 128
        %1504 = vxpose.xlu0.b32.cont [13/16] %v964, 128
        %1505 = vxpose.xlu0.b32.cont [14/16] %v967, 128
        %1506 = vxpose.xlu0.b32.cont [15/16] %v972, 128
        %1507 = vxpose.xlu0.b32.end [16/16] %v975, 128
        %v1508 = vpop.trf.xlu0
        %v1509 = vpop.trf.xlu0
        %v1510 = vpop.trf.xlu0
        %v1511 = vpop.trf.xlu0
        %v1512 = vpop.trf.xlu0
        %v1513 = vpop.trf.xlu0
        %v1514 = vpop.trf.xlu0
        %v1515 = vpop.trf.xlu0
        %v1516 = vpop.trf.xlu0
        %v1517 = vpop.trf.xlu0
        %v1518 = vpop.trf.xlu0
        %v1519 = vpop.trf.xlu0
        %v1520 = vpop.trf.xlu0
        %v1521 = vpop.trf.xlu0
        %v1522 = vpop.trf.xlu0
        %v1523 = vpop.trf.xlu0
        %1524 = vxpose.xlu0.b32.start [1/16] %v980, 128
        %1525 = vxpose.xlu0.b32.cont [2/16] %v983, 128
        %1526 = vxpose.xlu0.b32.cont [3/16] %v988, 128
        %1527 = vxpose.xlu0.b32.cont [4/16] %v991, 128
        %1528 = vxpose.xlu0.b32.cont [5/16] %v996, 128
        %1529 = vxpose.xlu0.b32.cont [6/16] %v999, 128
        %1530 = vxpose.xlu0.b32.cont [7/16] %v1004, 128
        %1531 = vxpose.xlu0.b32.cont [8/16] %v1007, 128
        %1532 = vxpose.xlu0.b32.cont [9/16] %v1012, 128
        %1533 = vxpose.xlu0.b32.cont [10/16] %v1015, 128
        %1534 = vxpose.xlu0.b32.cont [11/16] %v1020, 128
        %1535 = vxpose.xlu0.b32.cont [12/16] %v1023, 128
        %1536 = vxpose.xlu0.b32.cont [13/16] %v1028, 128
        %1537 = vxpose.xlu0.b32.cont [14/16] %v1031, 128
        %1538 = vxpose.xlu0.b32.cont [15/16] %v1036, 128
        %1539 = vxpose.xlu0.b32.end [16/16] %v1039, 128
        %v1540 = vpop.trf.xlu0
        %v1541 = vpop.trf.xlu0
        %v1542 = vpop.trf.xlu0
        %v1543 = vpop.trf.xlu0
        %v1544 = vpop.trf.xlu0
        %v1545 = vpop.trf.xlu0
        %v1546 = vpop.trf.xlu0
        %v1547 = vpop.trf.xlu0
        %v1548 = vpop.trf.xlu0
        %v1549 = vpop.trf.xlu0
        %v1550 = vpop.trf.xlu0
        %v1551 = vpop.trf.xlu0
        %v1552 = vpop.trf.xlu0
        %v1553 = vpop.trf.xlu0
        %v1554 = vpop.trf.xlu0
        %v1555 = vpop.trf.xlu0
        %1556 = vxpose.xlu0.b32.start [1/16] %v1141, 128
        %1557 = vxpose.xlu0.b32.cont [2/16] %v1144, 128
        %1558 = vxpose.xlu0.b32.cont [3/16] %v1149, 128
        %1559 = vxpose.xlu0.b32.cont [4/16] %v1152, 128
        %1560 = vxpose.xlu0.b32.cont [5/16] %v1157, 128
        %1561 = vxpose.xlu0.b32.cont [6/16] %v1160, 128
        %1562 = vxpose.xlu0.b32.cont [7/16] %v1165, 128
        %1563 = vxpose.xlu0.b32.cont [8/16] %v1168, 128
        %1564 = vxpose.xlu0.b32.cont [9/16] %v1173, 128
        %1565 = vxpose.xlu0.b32.cont [10/16] %v1176, 128
        %1566 = vxpose.xlu0.b32.cont [11/16] %v1181, 128
        %1567 = vxpose.xlu0.b32.cont [12/16] %v1184, 128
        %1568 = vxpose.xlu0.b32.cont [13/16] %v1189, 128
        %1569 = vxpose.xlu0.b32.cont [14/16] %v1192, 128
        %1570 = vxpose.xlu0.b32.cont [15/16] %v1197, 128
        %1571 = vxpose.xlu0.b32.end [16/16] %v1200, 128
        %v1572 = vpop.trf.xlu0
        %v1573 = vpop.trf.xlu0
        %v1574 = vpop.trf.xlu0
        %v1575 = vpop.trf.xlu0
        %v1576 = vpop.trf.xlu0
        %v1577 = vpop.trf.xlu0
        %v1578 = vpop.trf.xlu0
        %v1579 = vpop.trf.xlu0
        %v1580 = vpop.trf.xlu0
        %v1581 = vpop.trf.xlu0
        %v1582 = vpop.trf.xlu0
        %v1583 = vpop.trf.xlu0
        %v1584 = vpop.trf.xlu0
        %v1585 = vpop.trf.xlu0
        %v1586 = vpop.trf.xlu0
        %v1587 = vpop.trf.xlu0
        %1588 = vxpose.xlu0.b32.start [1/16] %v1205, 128
        %1589 = vxpose.xlu0.b32.cont [2/16] %v1208, 128
        %1590 = vxpose.xlu0.b32.cont [3/16] %v1213, 128
        %1591 = vxpose.xlu0.b32.cont [4/16] %v1216, 128
        %1592 = vxpose.xlu0.b32.cont [5/16] %v1221, 128
        %1593 = vxpose.xlu0.b32.cont [6/16] %v1224, 128
        %1594 = vxpose.xlu0.b32.cont [7/16] %v1229, 128
        %1595 = vxpose.xlu0.b32.cont [8/16] %v1232, 128
        %1596 = vxpose.xlu0.b32.cont [9/16] %v1237, 128
        %1597 = vxpose.xlu0.b32.cont [10/16] %v1240, 128
        %1598 = vxpose.xlu0.b32.cont [11/16] %v1245, 128
        %1599 = vxpose.xlu0.b32.cont [12/16] %v1248, 128
        %1600 = vxpose.xlu0.b32.cont [13/16] %v1253, 128
        %1601 = vxpose.xlu0.b32.cont [14/16] %v1256, 128
        %1602 = vxpose.xlu0.b32.cont [15/16] %v1261, 128
        %1603 = vxpose.xlu0.b32.end [16/16] %v1264, 128
        %v1604 = vpop.trf.xlu0
        %v1605 = vpop.trf.xlu0
        %v1606 = vpop.trf.xlu0
        %v1607 = vpop.trf.xlu0
        %v1608 = vpop.trf.xlu0
        %v1609 = vpop.trf.xlu0
        %v1610 = vpop.trf.xlu0
        %v1611 = vpop.trf.xlu0
        %v1612 = vpop.trf.xlu0
        %v1613 = vpop.trf.xlu0
        %v1614 = vpop.trf.xlu0
        %v1615 = vpop.trf.xlu0
        %v1616 = vpop.trf.xlu0
        %v1617 = vpop.trf.xlu0
        %v1618 = vpop.trf.xlu0
        %v1619 = vpop.trf.xlu0
        %1620 = vxpose.xlu0.b32.start [1/16] %v1366, 128
        %1621 = vxpose.xlu0.b32.cont [2/16] %v1369, 128
        %1622 = vxpose.xlu0.b32.cont [3/16] %v1374, 128
        %1623 = vxpose.xlu0.b32.cont [4/16] %v1377, 128
        %1624 = vxpose.xlu0.b32.cont [5/16] %v1382, 128
        %1625 = vxpose.xlu0.b32.cont [6/16] %v1385, 128
        %1626 = vxpose.xlu0.b32.cont [7/16] %v1390, 128
        %1627 = vxpose.xlu0.b32.cont [8/16] %v1393, 128
        %1628 = vxpose.xlu0.b32.cont [9/16] %v1398, 128
        %1629 = vxpose.xlu0.b32.cont [10/16] %v1401, 128
        %1630 = vxpose.xlu0.b32.cont [11/16] %v1406, 128
        %1631 = vxpose.xlu0.b32.cont [12/16] %v1409, 128
        %1632 = vxpose.xlu0.b32.cont [13/16] %v1414, 128
        %1633 = vxpose.xlu0.b32.cont [14/16] %v1417, 128
        %1634 = vxpose.xlu0.b32.cont [15/16] %v1422, 128
        %1635 = vxpose.xlu0.b32.end [16/16] %v1425, 128
        %v1636 = vpop.trf.xlu0
        %v1637 = vpop.trf.xlu0
        %v1638 = vpop.trf.xlu0
        %v1639 = vpop.trf.xlu0
        %v1640 = vpop.trf.xlu0
        %v1641 = vpop.trf.xlu0
        %v1642 = vpop.trf.xlu0
        %v1643 = vpop.trf.xlu0
        %v1644 = vpop.trf.xlu0
        %v1645 = vpop.trf.xlu0
        %v1646 = vpop.trf.xlu0
        %v1647 = vpop.trf.xlu0
        %v1648 = vpop.trf.xlu0
        %v1649 = vpop.trf.xlu0
        %v1650 = vpop.trf.xlu0
        %v1651 = vpop.trf.xlu0
        %1652 = vxpose.xlu0.b32.start [1/16] %v1430, 128
        %1653 = vxpose.xlu0.b32.cont [2/16] %v1433, 128
        %1654 = vxpose.xlu0.b32.cont [3/16] %v1438, 128
        %1655 = vxpose.xlu0.b32.cont [4/16] %v1441, 128
        %1656 = vxpose.xlu0.b32.cont [5/16] %v1446, 128
        %1657 = vxpose.xlu0.b32.cont [6/16] %v1449, 128
        %1658 = vxpose.xlu0.b32.cont [7/16] %v1454, 128
        %1659 = vxpose.xlu0.b32.cont [8/16] %v1457, 128
        %1660 = vxpose.xlu0.b32.cont [9/16] %v1462, 128
        %1661 = vxpose.xlu0.b32.cont [10/16] %v1465, 128
        %1662 = vxpose.xlu0.b32.cont [11/16] %v1470, 128
        %1663 = vxpose.xlu0.b32.cont [12/16] %v1473, 128
        %1664 = vxpose.xlu0.b32.cont [13/16] %v1478, 128
        %1665 = vxpose.xlu0.b32.cont [14/16] %v1481, 128
        %1666 = vxpose.xlu0.b32.cont [15/16] %v1486, 128
        %1667 = vxpose.xlu0.b32.end [16/16] %v1489, 128
        %v1668 = vpop.trf.xlu0
        %v1669 = vpop.trf.xlu0
        %v1670 = vpop.trf.xlu0
        %v1671 = vpop.trf.xlu0
        %v1672 = vpop.trf.xlu0
        %v1673 = vpop.trf.xlu0
        %v1674 = vpop.trf.xlu0
        %v1675 = vpop.trf.xlu0
        %v1676 = vpop.trf.xlu0
        %v1677 = vpop.trf.xlu0
        %v1678 = vpop.trf.xlu0
        %v1679 = vpop.trf.xlu0
        %v1680 = vpop.trf.xlu0
        %v1681 = vpop.trf.xlu0
        %v1682 = vpop.trf.xlu0
        %v1683 = vpop.trf.xlu0
        %1684 = vxpose.xlu0.b32.start [1/16] %v1508, 128
        %1685 = vxpose.xlu0.b32.cont [2/16] %v1509, 128
        %1686 = vxpose.xlu0.b32.cont [3/16] 0.0, 128
        %1687 = vxpose.xlu0.b32.cont [4/16] 0.0, 128
        %1688 = vxpose.xlu0.b32.cont [5/16] 0.0, 128
        %1689 = vxpose.xlu0.b32.cont [6/16] 0.0, 128
        %1690 = vxpose.xlu0.b32.cont [7/16] 0.0, 128
        %1691 = vxpose.xlu0.b32.cont [8/16] 0.0, 128
        %1692 = vxpose.xlu0.b32.cont [9/16] 0.0, 128
        %1693 = vxpose.xlu0.b32.cont [10/16] 0.0, 128
        %1694 = vxpose.xlu0.b32.cont [11/16] 0.0, 128
        %1695 = vxpose.xlu0.b32.cont [12/16] 0.0, 128
        %1696 = vxpose.xlu0.b32.cont [13/16] 0.0, 128
        %1697 = vxpose.xlu0.b32.cont [14/16] 0.0, 128
        %1698 = vxpose.xlu0.b32.cont [15/16] 0.0, 128
        %1699 = vxpose.xlu0.b32.end [16/16] 0.0, 128
        %v1700 = vpop.trf.xlu0
        %v1701 = vpop.trf.xlu0
        %v1702 = vpop.trf.xlu0
        %v1703 = vpop.trf.xlu0
        %v1704 = vpop.trf.xlu0
        %v1705 = vpop.trf.xlu0
        %v1706 = vpop.trf.xlu0
        %v1707 = vpop.trf.xlu0
        %v1708 = vpop.trf.xlu0
        %v1709 = vpop.trf.xlu0
        %v1710 = vpop.trf.xlu0
        %v1711 = vpop.trf.xlu0
        %v1712 = vpop.trf.xlu0
        %v1713 = vpop.trf.xlu0
        %v1714 = vpop.trf.xlu0
        %v1715 = vpop.trf.xlu0
        %1716 = vxpose.xlu0.b32.start [1/16] %v1510, 128
        %1717 = vxpose.xlu0.b32.cont [2/16] %v1511, 128
        %1718 = vxpose.xlu0.b32.cont [3/16] 0.0, 128
        %1719 = vxpose.xlu0.b32.cont [4/16] 0.0, 128
        %1720 = vxpose.xlu0.b32.cont [5/16] 0.0, 128
        %1721 = vxpose.xlu0.b32.cont [6/16] 0.0, 128
        %1722 = vxpose.xlu0.b32.cont [7/16] 0.0, 128
        %1723 = vxpose.xlu0.b32.cont [8/16] 0.0, 128
        %1724 = vxpose.xlu0.b32.cont [9/16] 0.0, 128
        %1725 = vxpose.xlu0.b32.cont [10/16] 0.0, 128
        %1726 = vxpose.xlu0.b32.cont [11/16] 0.0, 128
        %1727 = vxpose.xlu0.b32.cont [12/16] 0.0, 128
        %1728 = vxpose.xlu0.b32.cont [13/16] 0.0, 128
        %1729 = vxpose.xlu0.b32.cont [14/16] 0.0, 128
        %1730 = vxpose.xlu0.b32.cont [15/16] 0.0, 128
        %1731 = vxpose.xlu0.b32.end [16/16] 0.0, 128
        %v1732 = vpop.trf.xlu0
        %v1733 = vpop.trf.xlu0
        %v1734 = vpop.trf.xlu0
        %v1735 = vpop.trf.xlu0
        %v1736 = vpop.trf.xlu0
        %v1737 = vpop.trf.xlu0
        %v1738 = vpop.trf.xlu0
        %v1739 = vpop.trf.xlu0
        %v1740 = vpop.trf.xlu0
        %v1741 = vpop.trf.xlu0
        %v1742 = vpop.trf.xlu0
        %v1743 = vpop.trf.xlu0
        %v1744 = vpop.trf.xlu0
        %v1745 = vpop.trf.xlu0
        %v1746 = vpop.trf.xlu0
        %v1747 = vpop.trf.xlu0
        %1748 = vxpose.xlu0.b32.start [1/16] %v1512, 128
        %1749 = vxpose.xlu0.b32.cont [2/16] %v1513, 128
        %1750 = vxpose.xlu0.b32.cont [3/16] 0.0, 128
        %1751 = vxpose.xlu0.b32.cont [4/16] 0.0, 128
        %1752 = vxpose.xlu0.b32.cont [5/16] 0.0, 128
        %1753 = vxpose.xlu0.b32.cont [6/16] 0.0, 128
        %1754 = vxpose.xlu0.b32.cont [7/16] 0.0, 128
        %1755 = vxpose.xlu0.b32.cont [8/16] 0.0, 128
        %1756 = vxpose.xlu0.b32.cont [9/16] 0.0, 128
        %1757 = vxpose.xlu0.b32.cont [10/16] 0.0, 128
        %1758 = vxpose.xlu0.b32.cont [11/16] 0.0, 128
        %1759 = vxpose.xlu0.b32.cont [12/16] 0.0, 128
        %1760 = vxpose.xlu0.b32.cont [13/16] 0.0, 128
        %1761 = vxpose.xlu0.b32.cont [14/16] 0.0, 128
        %1762 = vxpose.xlu0.b32.cont [15/16] 0.0, 128
        %1763 = vxpose.xlu0.b32.end [16/16] 0.0, 128
        %v1764 = vpop.trf.xlu0
        %v1765 = vpop.trf.xlu0
        %v1766 = vpop.trf.xlu0
        %v1767 = vpop.trf.xlu0
        %v1768 = vpop.trf.xlu0
        %v1769 = vpop.trf.xlu0
        %v1770 = vpop.trf.xlu0
        %v1771 = vpop.trf.xlu0
        %v1772 = vpop.trf.xlu0
        %v1773 = vpop.trf.xlu0
        %v1774 = vpop.trf.xlu0
        %v1775 = vpop.trf.xlu0
        %v1776 = vpop.trf.xlu0
        %v1777 = vpop.trf.xlu0
        %v1778 = vpop.trf.xlu0
        %v1779 = vpop.trf.xlu0
        %1780 = vxpose.xlu0.b32.start [1/16] %v1514, 128
        %1781 = vxpose.xlu0.b32.cont [2/16] %v1515, 128
        %1782 = vxpose.xlu0.b32.cont [3/16] 0.0, 128
        %1783 = vxpose.xlu0.b32.cont [4/16] 0.0, 128
        %1784 = vxpose.xlu0.b32.cont [5/16] 0.0, 128
        %1785 = vxpose.xlu0.b32.cont [6/16] 0.0, 128
        %1786 = vxpose.xlu0.b32.cont [7/16] 0.0, 128
        %1787 = vxpose.xlu0.b32.cont [8/16] 0.0, 128
        %1788 = vxpose.xlu0.b32.cont [9/16] 0.0, 128
        %1789 = vxpose.xlu0.b32.cont [10/16] 0.0, 128
        %1790 = vxpose.xlu0.b32.cont [11/16] 0.0, 128
        %1791 = vxpose.xlu0.b32.cont [12/16] 0.0, 128
        %1792 = vxpose.xlu0.b32.cont [13/16] 0.0, 128
        %1793 = vxpose.xlu0.b32.cont [14/16] 0.0, 128
        %1794 = vxpose.xlu0.b32.cont [15/16] 0.0, 128
        %1795 = vxpose.xlu0.b32.end [16/16] 0.0, 128
        %v1796 = vpop.trf.xlu0
        %v1797 = vpop.trf.xlu0
        %v1798 = vpop.trf.xlu0
        %v1799 = vpop.trf.xlu0
        %v1800 = vpop.trf.xlu0
        %v1801 = vpop.trf.xlu0
        %v1802 = vpop.trf.xlu0
        %v1803 = vpop.trf.xlu0
        %v1804 = vpop.trf.xlu0
        %v1805 = vpop.trf.xlu0
        %v1806 = vpop.trf.xlu0
        %v1807 = vpop.trf.xlu0
        %v1808 = vpop.trf.xlu0
        %v1809 = vpop.trf.xlu0
        %v1810 = vpop.trf.xlu0
        %v1811 = vpop.trf.xlu0
        %1812 = vxpose.xlu0.b32.start [1/16] %v1540, 128
        %1813 = vxpose.xlu0.b32.cont [2/16] %v1541, 128
        %1814 = vxpose.xlu0.b32.cont [3/16] 0.0, 128
        %1815 = vxpose.xlu0.b32.cont [4/16] 0.0, 128
        %1816 = vxpose.xlu0.b32.cont [5/16] 0.0, 128
        %1817 = vxpose.xlu0.b32.cont [6/16] 0.0, 128
        %1818 = vxpose.xlu0.b32.cont [7/16] 0.0, 128
        %1819 = vxpose.xlu0.b32.cont [8/16] 0.0, 128
        %1820 = vxpose.xlu0.b32.cont [9/16] 0.0, 128
        %1821 = vxpose.xlu0.b32.cont [10/16] 0.0, 128
        %1822 = vxpose.xlu0.b32.cont [11/16] 0.0, 128
        %1823 = vxpose.xlu0.b32.cont [12/16] 0.0, 128
        %1824 = vxpose.xlu0.b32.cont [13/16] 0.0, 128
        %1825 = vxpose.xlu0.b32.cont [14/16] 0.0, 128
        %1826 = vxpose.xlu0.b32.cont [15/16] 0.0, 128
        %1827 = vxpose.xlu0.b32.end [16/16] 0.0, 128
        %v1828 = vpop.trf.xlu0
        %v1829 = vpop.trf.xlu0
        %v1830 = vpop.trf.xlu0
        %v1831 = vpop.trf.xlu0
        %v1832 = vpop.trf.xlu0
        %v1833 = vpop.trf.xlu0
        %v1834 = vpop.trf.xlu0
        %v1835 = vpop.trf.xlu0
        %v1836 = vpop.trf.xlu0
        %v1837 = vpop.trf.xlu0
        %v1838 = vpop.trf.xlu0
        %v1839 = vpop.trf.xlu0
        %v1840 = vpop.trf.xlu0
        %v1841 = vpop.trf.xlu0
        %v1842 = vpop.trf.xlu0
        %v1843 = vpop.trf.xlu0
        %1844 = vxpose.xlu0.b32.start [1/16] %v1542, 128
        %1845 = vxpose.xlu0.b32.cont [2/16] %v1543, 128
        %1846 = vxpose.xlu0.b32.cont [3/16] 0.0, 128
        %1847 = vxpose.xlu0.b32.cont [4/16] 0.0, 128
        %1848 = vxpose.xlu0.b32.cont [5/16] 0.0, 128
        %1849 = vxpose.xlu0.b32.cont [6/16] 0.0, 128
        %1850 = vxpose.xlu0.b32.cont [7/16] 0.0, 128
        %1851 = vxpose.xlu0.b32.cont [8/16] 0.0, 128
        %1852 = vxpose.xlu0.b32.cont [9/16] 0.0, 128
        %1853 = vxpose.xlu0.b32.cont [10/16] 0.0, 128
        %1854 = vxpose.xlu0.b32.cont [11/16] 0.0, 128
        %1855 = vxpose.xlu0.b32.cont [12/16] 0.0, 128
        %1856 = vxpose.xlu0.b32.cont [13/16] 0.0, 128
        %1857 = vxpose.xlu0.b32.cont [14/16] 0.0, 128
        %1858 = vxpose.xlu0.b32.cont [15/16] 0.0, 128
        %1859 = vxpose.xlu0.b32.end [16/16] 0.0, 128
        %v1860 = vpop.trf.xlu0
        %v1861 = vpop.trf.xlu0
        %v1862 = vpop.trf.xlu0
        %v1863 = vpop.trf.xlu0
        %v1864 = vpop.trf.xlu0
        %v1865 = vpop.trf.xlu0
        %v1866 = vpop.trf.xlu0
        %v1867 = vpop.trf.xlu0
        %v1868 = vpop.trf.xlu0
        %v1869 = vpop.trf.xlu0
        %v1870 = vpop.trf.xlu0
        %v1871 = vpop.trf.xlu0
        %v1872 = vpop.trf.xlu0
        %v1873 = vpop.trf.xlu0
        %v1874 = vpop.trf.xlu0
        %v1875 = vpop.trf.xlu0
        %1876 = vxpose.xlu0.b32.start [1/16] %v1544, 128
        %1877 = vxpose.xlu0.b32.cont [2/16] %v1545, 128
        %1878 = vxpose.xlu0.b32.cont [3/16] 0.0, 128
        %1879 = vxpose.xlu0.b32.cont [4/16] 0.0, 128
        %1880 = vxpose.xlu0.b32.cont [5/16] 0.0, 128
        %1881 = vxpose.xlu0.b32.cont [6/16] 0.0, 128
        %1882 = vxpose.xlu0.b32.cont [7/16] 0.0, 128
        %1883 = vxpose.xlu0.b32.cont [8/16] 0.0, 128
        %1884 = vxpose.xlu0.b32.cont [9/16] 0.0, 128
        %1885 = vxpose.xlu0.b32.cont [10/16] 0.0, 128
        %1886 = vxpose.xlu0.b32.cont [11/16] 0.0, 128
        %1887 = vxpose.xlu0.b32.cont [12/16] 0.0, 128
        %1888 = vxpose.xlu0.b32.cont [13/16] 0.0, 128
        %1889 = vxpose.xlu0.b32.cont [14/16] 0.0, 128
        %1890 = vxpose.xlu0.b32.cont [15/16] 0.0, 128
        %1891 = vxpose.xlu0.b32.end [16/16] 0.0, 128
        %v1892 = vpop.trf.xlu0
        %v1893 = vpop.trf.xlu0
        %v1894 = vpop.trf.xlu0
        %v1895 = vpop.trf.xlu0
        %v1896 = vpop.trf.xlu0
        %v1897 = vpop.trf.xlu0
        %v1898 = vpop.trf.xlu0
        %v1899 = vpop.trf.xlu0
        %v1900 = vpop.trf.xlu0
        %v1901 = vpop.trf.xlu0
        %v1902 = vpop.trf.xlu0
        %v1903 = vpop.trf.xlu0
        %v1904 = vpop.trf.xlu0
        %v1905 = vpop.trf.xlu0
        %v1906 = vpop.trf.xlu0
        %v1907 = vpop.trf.xlu0
        %1908 = vxpose.xlu0.b32.start [1/16] %v1546, 128
        %1909 = vxpose.xlu0.b32.cont [2/16] %v1547, 128
        %1910 = vxpose.xlu0.b32.cont [3/16] 0.0, 128
        %1911 = vxpose.xlu0.b32.cont [4/16] 0.0, 128
        %1912 = vxpose.xlu0.b32.cont [5/16] 0.0, 128
        %1913 = vxpose.xlu0.b32.cont [6/16] 0.0, 128
        %1914 = vxpose.xlu0.b32.cont [7/16] 0.0, 128
        %1915 = vxpose.xlu0.b32.cont [8/16] 0.0, 128
        %1916 = vxpose.xlu0.b32.cont [9/16] 0.0, 128
        %1917 = vxpose.xlu0.b32.cont [10/16] 0.0, 128
        %1918 = vxpose.xlu0.b32.cont [11/16] 0.0, 128
        %1919 = vxpose.xlu0.b32.cont [12/16] 0.0, 128
        %1920 = vxpose.xlu0.b32.cont [13/16] 0.0, 128
        %1921 = vxpose.xlu0.b32.cont [14/16] 0.0, 128
        %1922 = vxpose.xlu0.b32.cont [15/16] 0.0, 128
        %1923 = vxpose.xlu0.b32.end [16/16] 0.0, 128
        %v1924 = vpop.trf.xlu0
        %v1925 = vpop.trf.xlu0
        %v1926 = vpop.trf.xlu0
        %v1927 = vpop.trf.xlu0
        %v1928 = vpop.trf.xlu0
        %v1929 = vpop.trf.xlu0
        %v1930 = vpop.trf.xlu0
        %v1931 = vpop.trf.xlu0
        %v1932 = vpop.trf.xlu0
        %v1933 = vpop.trf.xlu0
        %v1934 = vpop.trf.xlu0
        %v1935 = vpop.trf.xlu0
        %v1936 = vpop.trf.xlu0
        %v1937 = vpop.trf.xlu0
        %v1938 = vpop.trf.xlu0
        %v1939 = vpop.trf.xlu0
        %v1940 = vpack.c.bf16 %v1701, %v1700
        %v1941 = vpack.c.bf16 %v1703, %v1702
        %v1942 = vpack.c.bf16 %v1705, %v1704
        %v1943 = vpack.c.bf16 %v1707, %v1706
        %v1944 = vpack.c.bf16 %v1709, %v1708
        %v1945 = vpack.c.bf16 %v1711, %v1710
        %v1946 = vpack.c.bf16 %v1713, %v1712
        %v1947 = vpack.c.bf16 %v1715, %v1714
        %v1948 = vpack.c.bf16 %v1733, %v1732
        %v1949 = vpack.c.bf16 %v1735, %v1734
        %v1950 = vpack.c.bf16 %v1737, %v1736
        %v1951 = vpack.c.bf16 %v1739, %v1738
        %v1952 = vpack.c.bf16 %v1741, %v1740
        %v1953 = vpack.c.bf16 %v1743, %v1742
        %v1954 = vpack.c.bf16 %v1745, %v1744
        %v1955 = vpack.c.bf16 %v1747, %v1746
        %v1956 = vpack.c.bf16 %v1765, %v1764
        %v1957 = vpack.c.bf16 %v1767, %v1766
        %v1958 = vpack.c.bf16 %v1769, %v1768
        %v1959 = vpack.c.bf16 %v1771, %v1770
        %v1960 = vpack.c.bf16 %v1773, %v1772
        %v1961 = vpack.c.bf16 %v1775, %v1774
        %v1962 = vpack.c.bf16 %v1777, %v1776
        %v1963 = vpack.c.bf16 %v1779, %v1778
        %v1964 = vpack.c.bf16 %v1797, %v1796
        %v1965 = vpack.c.bf16 %v1799, %v1798
        %v1966 = vpack.c.bf16 %v1801, %v1800
        %v1967 = vpack.c.bf16 %v1803, %v1802
        %v1968 = vpack.c.bf16 %v1805, %v1804
        %v1969 = vpack.c.bf16 %v1807, %v1806
        %v1970 = vpack.c.bf16 %v1809, %v1808
        %v1971 = vpack.c.bf16 %v1811, %v1810
        %v1972 = vpack.c.bf16 %v1829, %v1828
        %v1973 = vpack.c.bf16 %v1831, %v1830
        %v1974 = vpack.c.bf16 %v1833, %v1832
        %v1975 = vpack.c.bf16 %v1835, %v1834
        %v1976 = vpack.c.bf16 %v1837, %v1836
        %v1977 = vpack.c.bf16 %v1839, %v1838
        %v1978 = vpack.c.bf16 %v1841, %v1840
        %v1979 = vpack.c.bf16 %v1843, %v1842
        %v1980 = vpack.c.bf16 %v1861, %v1860
        %v1981 = vpack.c.bf16 %v1863, %v1862
        %v1982 = vpack.c.bf16 %v1865, %v1864
        %v1983 = vpack.c.bf16 %v1867, %v1866
        %v1984 = vpack.c.bf16 %v1869, %v1868
        %v1985 = vpack.c.bf16 %v1871, %v1870
        %v1986 = vpack.c.bf16 %v1873, %v1872
        %v1987 = vpack.c.bf16 %v1875, %v1874
        %v1988 = vpack.c.bf16 %v1893, %v1892
        %v1989 = vpack.c.bf16 %v1895, %v1894
        %v1990 = vpack.c.bf16 %v1897, %v1896
        %v1991 = vpack.c.bf16 %v1899, %v1898
        %v1992 = vpack.c.bf16 %v1901, %v1900
        %v1993 = vpack.c.bf16 %v1903, %v1902
        %v1994 = vpack.c.bf16 %v1905, %v1904
        %v1995 = vpack.c.bf16 %v1907, %v1906
        %v1996 = vpack.c.bf16 %v1925, %v1924
        %v1997 = vpack.c.bf16 %v1927, %v1926
        %v1998 = vpack.c.bf16 %v1929, %v1928
        %v1999 = vpack.c.bf16 %v1931, %v1930
        %v2000 = vpack.c.bf16 %v1933, %v1932
        %v2001 = vpack.c.bf16 %v1935, %v1934
        %v2002 = vpack.c.bf16 %v1937, %v1936
        %v2003 = vpack.c.bf16 %v1939, %v1938
        %2004 = vxpose.xlu0.b32.start [1/16] %v1636, 128
        %2005 = vxpose.xlu0.b32.cont [2/16] %v1637, 128
        %2006 = vxpose.xlu0.b32.cont [3/16] 0.0, 128
        %2007 = vxpose.xlu0.b32.cont [4/16] 0.0, 128
        %2008 = vxpose.xlu0.b32.cont [5/16] 0.0, 128
        %2009 = vxpose.xlu0.b32.cont [6/16] 0.0, 128
        %2010 = vxpose.xlu0.b32.cont [7/16] 0.0, 128
        %2011 = vxpose.xlu0.b32.cont [8/16] 0.0, 128
        %2012 = vxpose.xlu0.b32.cont [9/16] 0.0, 128
        %2013 = vxpose.xlu0.b32.cont [10/16] 0.0, 128
        %2014 = vxpose.xlu0.b32.cont [11/16] 0.0, 128
        %2015 = vxpose.xlu0.b32.cont [12/16] 0.0, 128
        %2016 = vxpose.xlu0.b32.cont [13/16] 0.0, 128
        %2017 = vxpose.xlu0.b32.cont [14/16] 0.0, 128
        %2018 = vxpose.xlu0.b32.cont [15/16] 0.0, 128
        %2019 = vxpose.xlu0.b32.end [16/16] 0.0, 128
        %v2020 = vpop.trf.xlu0
        %v2021 = vpop.trf.xlu0
        %v2022 = vpop.trf.xlu0
        %v2023 = vpop.trf.xlu0
        %v2024 = vpop.trf.xlu0
        %v2025 = vpop.trf.xlu0
        %v2026 = vpop.trf.xlu0
        %v2027 = vpop.trf.xlu0
        %v2028 = vpop.trf.xlu0
        %v2029 = vpop.trf.xlu0
        %v2030 = vpop.trf.xlu0
        %v2031 = vpop.trf.xlu0
        %v2032 = vpop.trf.xlu0
        %v2033 = vpop.trf.xlu0
        %v2034 = vpop.trf.xlu0
        %v2035 = vpop.trf.xlu0
        %2036 = vxpose.xlu0.b32.start [1/16] %v1638, 128
        %2037 = vxpose.xlu0.b32.cont [2/16] %v1639, 128
        %2038 = vxpose.xlu0.b32.cont [3/16] 0.0, 128
        %2039 = vxpose.xlu0.b32.cont [4/16] 0.0, 128
        %2040 = vxpose.xlu0.b32.cont [5/16] 0.0, 128
        %2041 = vxpose.xlu0.b32.cont [6/16] 0.0, 128
        %2042 = vxpose.xlu0.b32.cont [7/16] 0.0, 128
        %2043 = vxpose.xlu0.b32.cont [8/16] 0.0, 128
        %2044 = vxpose.xlu0.b32.cont [9/16] 0.0, 128
        %2045 = vxpose.xlu0.b32.cont [10/16] 0.0, 128
        %2046 = vxpose.xlu0.b32.cont [11/16] 0.0, 128
        %2047 = vxpose.xlu0.b32.cont [12/16] 0.0, 128
        %2048 = vxpose.xlu0.b32.cont [13/16] 0.0, 128
        %2049 = vxpose.xlu0.b32.cont [14/16] 0.0, 128
        %2050 = vxpose.xlu0.b32.cont [15/16] 0.0, 128
        %2051 = vxpose.xlu0.b32.end [16/16] 0.0, 128
        %v2052 = vpop.trf.xlu0
        %v2053 = vpop.trf.xlu0
        %v2054 = vpop.trf.xlu0
        %v2055 = vpop.trf.xlu0
        %v2056 = vpop.trf.xlu0
        %v2057 = vpop.trf.xlu0
        %v2058 = vpop.trf.xlu0
        %v2059 = vpop.trf.xlu0
        %v2060 = vpop.trf.xlu0
        %v2061 = vpop.trf.xlu0
        %v2062 = vpop.trf.xlu0
        %v2063 = vpop.trf.xlu0
        %v2064 = vpop.trf.xlu0
        %v2065 = vpop.trf.xlu0
        %v2066 = vpop.trf.xlu0
        %v2067 = vpop.trf.xlu0
        %2068 = vxpose.xlu0.b32.start [1/16] %v1640, 128
        %2069 = vxpose.xlu0.b32.cont [2/16] %v1641, 128
        %2070 = vxpose.xlu0.b32.cont [3/16] 0.0, 128
        %2071 = vxpose.xlu0.b32.cont [4/16] 0.0, 128
        %2072 = vxpose.xlu0.b32.cont [5/16] 0.0, 128
        %2073 = vxpose.xlu0.b32.cont [6/16] 0.0, 128
        %2074 = vxpose.xlu0.b32.cont [7/16] 0.0, 128
        %2075 = vxpose.xlu0.b32.cont [8/16] 0.0, 128
        %2076 = vxpose.xlu0.b32.cont [9/16] 0.0, 128
        %2077 = vxpose.xlu0.b32.cont [10/16] 0.0, 128
        %2078 = vxpose.xlu0.b32.cont [11/16] 0.0, 128
        %2079 = vxpose.xlu0.b32.cont [12/16] 0.0, 128
        %2080 = vxpose.xlu0.b32.cont [13/16] 0.0, 128
        %2081 = vxpose.xlu0.b32.cont [14/16] 0.0, 128
        %2082 = vxpose.xlu0.b32.cont [15/16] 0.0, 128
        %2083 = vxpose.xlu0.b32.end [16/16] 0.0, 128
        %v2084 = vpop.trf.xlu0
        %v2085 = vpop.trf.xlu0
        %v2086 = vpop.trf.xlu0
        %v2087 = vpop.trf.xlu0
        %v2088 = vpop.trf.xlu0
        %v2089 = vpop.trf.xlu0
        %v2090 = vpop.trf.xlu0
        %v2091 = vpop.trf.xlu0
        %v2092 = vpop.trf.xlu0
        %v2093 = vpop.trf.xlu0
        %v2094 = vpop.trf.xlu0
        %v2095 = vpop.trf.xlu0
        %v2096 = vpop.trf.xlu0
        %v2097 = vpop.trf.xlu0
        %v2098 = vpop.trf.xlu0
        %v2099 = vpop.trf.xlu0
        %2100 = vxpose.xlu0.b32.start [1/16] %v1642, 128
        %2101 = vxpose.xlu0.b32.cont [2/16] %v1643, 128
        %2102 = vxpose.xlu0.b32.cont [3/16] 0.0, 128
        %2103 = vxpose.xlu0.b32.cont [4/16] 0.0, 128
        %2104 = vxpose.xlu0.b32.cont [5/16] 0.0, 128
        %2105 = vxpose.xlu0.b32.cont [6/16] 0.0, 128
        %2106 = vxpose.xlu0.b32.cont [7/16] 0.0, 128
        %2107 = vxpose.xlu0.b32.cont [8/16] 0.0, 128
        %2108 = vxpose.xlu0.b32.cont [9/16] 0.0, 128
        %2109 = vxpose.xlu0.b32.cont [10/16] 0.0, 128
        %2110 = vxpose.xlu0.b32.cont [11/16] 0.0, 128
        %2111 = vxpose.xlu0.b32.cont [12/16] 0.0, 128
        %2112 = vxpose.xlu0.b32.cont [13/16] 0.0, 128
        %2113 = vxpose.xlu0.b32.cont [14/16] 0.0, 128
        %2114 = vxpose.xlu0.b32.cont [15/16] 0.0, 128
        %2115 = vxpose.xlu0.b32.end [16/16] 0.0, 128
        %v2116 = vpop.trf.xlu0
        %v2117 = vpop.trf.xlu0
        %v2118 = vpop.trf.xlu0
        %v2119 = vpop.trf.xlu0
        %v2120 = vpop.trf.xlu0
        %v2121 = vpop.trf.xlu0
        %v2122 = vpop.trf.xlu0
        %v2123 = vpop.trf.xlu0
        %v2124 = vpop.trf.xlu0
        %v2125 = vpop.trf.xlu0
        %v2126 = vpop.trf.xlu0
        %v2127 = vpop.trf.xlu0
        %v2128 = vpop.trf.xlu0
        %v2129 = vpop.trf.xlu0
        %v2130 = vpop.trf.xlu0
        %v2131 = vpop.trf.xlu0
        %2132 = vxpose.xlu0.b32.start [1/16] %v1668, 128
        %2133 = vxpose.xlu0.b32.cont [2/16] %v1669, 128
        %2134 = vxpose.xlu0.b32.cont [3/16] 0.0, 128
        %2135 = vxpose.xlu0.b32.cont [4/16] 0.0, 128
        %2136 = vxpose.xlu0.b32.cont [5/16] 0.0, 128
        %2137 = vxpose.xlu0.b32.cont [6/16] 0.0, 128
        %2138 = vxpose.xlu0.b32.cont [7/16] 0.0, 128
        %2139 = vxpose.xlu0.b32.cont [8/16] 0.0, 128
        %2140 = vxpose.xlu0.b32.cont [9/16] 0.0, 128
        %2141 = vxpose.xlu0.b32.cont [10/16] 0.0, 128
        %2142 = vxpose.xlu0.b32.cont [11/16] 0.0, 128
        %2143 = vxpose.xlu0.b32.cont [12/16] 0.0, 128
        %2144 = vxpose.xlu0.b32.cont [13/16] 0.0, 128
        %2145 = vxpose.xlu0.b32.cont [14/16] 0.0, 128
        %2146 = vxpose.xlu0.b32.cont [15/16] 0.0, 128
        %2147 = vxpose.xlu0.b32.end [16/16] 0.0, 128
        %v2148 = vpop.trf.xlu0
        %v2149 = vpop.trf.xlu0
        %v2150 = vpop.trf.xlu0
        %v2151 = vpop.trf.xlu0
        %v2152 = vpop.trf.xlu0
        %v2153 = vpop.trf.xlu0
        %v2154 = vpop.trf.xlu0
        %v2155 = vpop.trf.xlu0
        %v2156 = vpop.trf.xlu0
        %v2157 = vpop.trf.xlu0
        %v2158 = vpop.trf.xlu0
        %v2159 = vpop.trf.xlu0
        %v2160 = vpop.trf.xlu0
        %v2161 = vpop.trf.xlu0
        %v2162 = vpop.trf.xlu0
        %v2163 = vpop.trf.xlu0
        %2164 = vxpose.xlu0.b32.start [1/16] %v1670, 128
        %2165 = vxpose.xlu0.b32.cont [2/16] %v1671, 128
        %2166 = vxpose.xlu0.b32.cont [3/16] 0.0, 128
        %2167 = vxpose.xlu0.b32.cont [4/16] 0.0, 128
        %2168 = vxpose.xlu0.b32.cont [5/16] 0.0, 128
        %2169 = vxpose.xlu0.b32.cont [6/16] 0.0, 128
        %2170 = vxpose.xlu0.b32.cont [7/16] 0.0, 128
        %2171 = vxpose.xlu0.b32.cont [8/16] 0.0, 128
        %2172 = vxpose.xlu0.b32.cont [9/16] 0.0, 128
        %2173 = vxpose.xlu0.b32.cont [10/16] 0.0, 128
        %2174 = vxpose.xlu0.b32.cont [11/16] 0.0, 128
        %2175 = vxpose.xlu0.b32.cont [12/16] 0.0, 128
        %2176 = vxpose.xlu0.b32.cont [13/16] 0.0, 128
        %2177 = vxpose.xlu0.b32.cont [14/16] 0.0, 128
        %2178 = vxpose.xlu0.b32.cont [15/16] 0.0, 128
        %2179 = vxpose.xlu0.b32.end [16/16] 0.0, 128
        %v2180 = vpop.trf.xlu0
        %v2181 = vpop.trf.xlu0
        %v2182 = vpop.trf.xlu0
        %v2183 = vpop.trf.xlu0
        %v2184 = vpop.trf.xlu0
        %v2185 = vpop.trf.xlu0
        %v2186 = vpop.trf.xlu0
        %v2187 = vpop.trf.xlu0
        %v2188 = vpop.trf.xlu0
        %v2189 = vpop.trf.xlu0
        %v2190 = vpop.trf.xlu0
        %v2191 = vpop.trf.xlu0
        %v2192 = vpop.trf.xlu0
        %v2193 = vpop.trf.xlu0
        %v2194 = vpop.trf.xlu0
        %v2195 = vpop.trf.xlu0
        %2196 = vxpose.xlu0.b32.start [1/16] %v1672, 128
        %2197 = vxpose.xlu0.b32.cont [2/16] %v1673, 128
        %2198 = vxpose.xlu0.b32.cont [3/16] 0.0, 128
        %2199 = vxpose.xlu0.b32.cont [4/16] 0.0, 128
        %2200 = vxpose.xlu0.b32.cont [5/16] 0.0, 128
        %2201 = vxpose.xlu0.b32.cont [6/16] 0.0, 128
        %2202 = vxpose.xlu0.b32.cont [7/16] 0.0, 128
        %2203 = vxpose.xlu0.b32.cont [8/16] 0.0, 128
        %2204 = vxpose.xlu0.b32.cont [9/16] 0.0, 128
        %2205 = vxpose.xlu0.b32.cont [10/16] 0.0, 128
        %2206 = vxpose.xlu0.b32.cont [11/16] 0.0, 128
        %2207 = vxpose.xlu0.b32.cont [12/16] 0.0, 128
        %2208 = vxpose.xlu0.b32.cont [13/16] 0.0, 128
        %2209 = vxpose.xlu0.b32.cont [14/16] 0.0, 128
        %2210 = vxpose.xlu0.b32.cont [15/16] 0.0, 128
        %2211 = vxpose.xlu0.b32.end [16/16] 0.0, 128
        %v2212 = vpop.trf.xlu0
        %v2213 = vpop.trf.xlu0
        %v2214 = vpop.trf.xlu0
        %v2215 = vpop.trf.xlu0
        %v2216 = vpop.trf.xlu0
        %v2217 = vpop.trf.xlu0
        %v2218 = vpop.trf.xlu0
        %v2219 = vpop.trf.xlu0
        %v2220 = vpop.trf.xlu0
        %v2221 = vpop.trf.xlu0
        %v2222 = vpop.trf.xlu0
        %v2223 = vpop.trf.xlu0
        %v2224 = vpop.trf.xlu0
        %v2225 = vpop.trf.xlu0
        %v2226 = vpop.trf.xlu0
        %v2227 = vpop.trf.xlu0
        %2228 = vxpose.xlu0.b32.start [1/16] %v1674, 128
        %2229 = vxpose.xlu0.b32.cont [2/16] %v1675, 128
        %2230 = vxpose.xlu0.b32.cont [3/16] 0.0, 128
        %2231 = vxpose.xlu0.b32.cont [4/16] 0.0, 128
        %2232 = vxpose.xlu0.b32.cont [5/16] 0.0, 128
        %2233 = vxpose.xlu0.b32.cont [6/16] 0.0, 128
        %2234 = vxpose.xlu0.b32.cont [7/16] 0.0, 128
        %2235 = vxpose.xlu0.b32.cont [8/16] 0.0, 128
        %2236 = vxpose.xlu0.b32.cont [9/16] 0.0, 128
        %2237 = vxpose.xlu0.b32.cont [10/16] 0.0, 128
        %2238 = vxpose.xlu0.b32.cont [11/16] 0.0, 128
        %2239 = vxpose.xlu0.b32.cont [12/16] 0.0, 128
        %2240 = vxpose.xlu0.b32.cont [13/16] 0.0, 128
        %2241 = vxpose.xlu0.b32.cont [14/16] 0.0, 128
        %2242 = vxpose.xlu0.b32.cont [15/16] 0.0, 128
        %2243 = vxpose.xlu0.b32.end [16/16] 0.0, 128
        %v2244 = vpop.trf.xlu0
        %v2245 = vpop.trf.xlu0
        %v2246 = vpop.trf.xlu0
        %v2247 = vpop.trf.xlu0
        %v2248 = vpop.trf.xlu0
        %v2249 = vpop.trf.xlu0
        %v2250 = vpop.trf.xlu0
        %v2251 = vpop.trf.xlu0
        %v2252 = vpop.trf.xlu0
        %v2253 = vpop.trf.xlu0
        %v2254 = vpop.trf.xlu0
        %v2255 = vpop.trf.xlu0
        %v2256 = vpop.trf.xlu0
        %v2257 = vpop.trf.xlu0
        %v2258 = vpop.trf.xlu0
        %v2259 = vpop.trf.xlu0
        %v2260 = vpack.c.bf16 %v2021, %v2020
        %v2261 = vpack.c.bf16 %v2023, %v2022
        %v2262 = vpack.c.bf16 %v2025, %v2024
        %v2263 = vpack.c.bf16 %v2027, %v2026
        %v2264 = vpack.c.bf16 %v2029, %v2028
        %v2265 = vpack.c.bf16 %v2031, %v2030
        %v2266 = vpack.c.bf16 %v2033, %v2032
        %v2267 = vpack.c.bf16 %v2035, %v2034
        %v2268 = vpack.c.bf16 %v2053, %v2052
        %v2269 = vpack.c.bf16 %v2055, %v2054
        %v2270 = vpack.c.bf16 %v2057, %v2056
        %v2271 = vpack.c.bf16 %v2059, %v2058
        %v2272 = vpack.c.bf16 %v2061, %v2060
        %v2273 = vpack.c.bf16 %v2063, %v2062
        %v2274 = vpack.c.bf16 %v2065, %v2064
        %v2275 = vpack.c.bf16 %v2067, %v2066
        %v2276 = vpack.c.bf16 %v2085, %v2084
        %v2277 = vpack.c.bf16 %v2087, %v2086
        %v2278 = vpack.c.bf16 %v2089, %v2088
        %v2279 = vpack.c.bf16 %v2091, %v2090
        %v2280 = vpack.c.bf16 %v2093, %v2092
        %v2281 = vpack.c.bf16 %v2095, %v2094
        %v2282 = vpack.c.bf16 %v2097, %v2096
        %v2283 = vpack.c.bf16 %v2099, %v2098
        %v2284 = vpack.c.bf16 %v2117, %v2116
        %v2285 = vpack.c.bf16 %v2119, %v2118
        %v2286 = vpack.c.bf16 %v2121, %v2120
        %v2287 = vpack.c.bf16 %v2123, %v2122
        %v2288 = vpack.c.bf16 %v2125, %v2124
        %v2289 = vpack.c.bf16 %v2127, %v2126
        %v2290 = vpack.c.bf16 %v2129, %v2128
        %v2291 = vpack.c.bf16 %v2131, %v2130
        %v2292 = vpack.c.bf16 %v2149, %v2148
        %v2293 = vpack.c.bf16 %v2151, %v2150
        %v2294 = vpack.c.bf16 %v2153, %v2152
        %v2295 = vpack.c.bf16 %v2155, %v2154
        %v2296 = vpack.c.bf16 %v2157, %v2156
        %v2297 = vpack.c.bf16 %v2159, %v2158
        %v2298 = vpack.c.bf16 %v2161, %v2160
        %v2299 = vpack.c.bf16 %v2163, %v2162
        %v2300 = vpack.c.bf16 %v2181, %v2180
        %v2301 = vpack.c.bf16 %v2183, %v2182
        %v2302 = vpack.c.bf16 %v2185, %v2184
        %v2303 = vpack.c.bf16 %v2187, %v2186
        %v2304 = vpack.c.bf16 %v2189, %v2188
        %v2305 = vpack.c.bf16 %v2191, %v2190
        %v2306 = vpack.c.bf16 %v2193, %v2192
        %v2307 = vpack.c.bf16 %v2195, %v2194
        %v2308 = vpack.c.bf16 %v2213, %v2212
        %v2309 = vpack.c.bf16 %v2215, %v2214
        %v2310 = vpack.c.bf16 %v2217, %v2216
        %v2311 = vpack.c.bf16 %v2219, %v2218
        %v2312 = vpack.c.bf16 %v2221, %v2220
        %v2313 = vpack.c.bf16 %v2223, %v2222
        %v2314 = vpack.c.bf16 %v2225, %v2224
        %v2315 = vpack.c.bf16 %v2227, %v2226
        %v2316 = vpack.c.bf16 %v2245, %v2244
        %v2317 = vpack.c.bf16 %v2247, %v2246
        %v2318 = vpack.c.bf16 %v2249, %v2248
        %v2319 = vpack.c.bf16 %v2251, %v2250
        %v2320 = vpack.c.bf16 %v2253, %v2252
        %v2321 = vpack.c.bf16 %v2255, %v2254
        %v2322 = vpack.c.bf16 %v2257, %v2256
        %v2323 = vpack.c.bf16 %v2259, %v2258
        %v2324 = vpack.c.bf16 %v1573, %v1572
        %v2325 = vpack.c.bf16 %v1575, %v1574
        %v2326 = vpack.c.bf16 %v1577, %v1576
        %v2327 = vpack.c.bf16 %v1579, %v1578
        %v2328 = vpack.c.bf16 %v1605, %v1604
        %v2329 = vpack.c.bf16 %v1607, %v1606
        %v2330 = vpack.c.bf16 %v1609, %v1608
        %v2331 = vpack.c.bf16 %v1611, %v1610
        %vm2332 = vcmask 130048
        %v2334 = vsel %vm2332, %v1940, 0
        %v2337 = vsel %vm2332, %v1941, 0
        %v2340 = vsel %vm2332, %v1942, 0
        %v2343 = vsel %vm2332, %v1943, 0
        %v2346 = vsel %vm2332, %v1944, 0
        %v2349 = vsel %vm2332, %v1945, 0
        %v2352 = vsel %vm2332, %v1946, 0
        %v2355 = vsel %vm2332, %v1947, 0
        %2357 = vmatprep.subr.bf16.mxu0 0
        %2358 = vmatpush1.bf16.msra.mxu0 0
        %2359 = vmatprep.subr.bf16.mxu0 0
        %2360 = vmatpush1.bf16.msra.mxu0 0
        %2361 = vmatprep.subr.bf16.mxu0 0
        %2362 = vmatpush1.bf16.msra.mxu0 0
        %2363 = vmatprep.subr.bf16.mxu0 0
        %2364 = vmatpush1.bf16.msra.mxu0 0
        %2365 = vmatprep.subr.bf16.mxu0 0
        %2366 = vmatpush1.bf16.msra.mxu0 0
        %2367 = vmatprep.subr.bf16.mxu0 0
        %2368 = vmatpush1.bf16.msra.mxu0 0
        %2369 = vmatprep.subr.bf16.mxu0 0
        %2370 = vmatpush1.bf16.msra.mxu0 0
        %2371 = vmatprep.subr.bf16.mxu0 0
        %2372 = vmatpush1.bf16.msra.mxu0 %v2324
        %2373 = vmatprep.subr.bf16.mxu0 0
        %2374 = vmatpush2.bf16.msra.mxu0 0
        %2375 = vmatprep.subr.bf16.mxu0 0
        %2376 = vmatpush2.bf16.msra.mxu0 0
        %2377 = vmatprep.subr.bf16.mxu0 0
        %2378 = vmatpush2.bf16.msra.mxu0 0
        %2379 = vmatprep.subr.bf16.mxu0 0
        %2380 = vmatpush2.bf16.msra.mxu0 0
        %2381 = vmatprep.subr.bf16.mxu0 0
        %2382 = vmatpush2.bf16.msra.mxu0 0
        %2383 = vmatprep.subr.bf16.mxu0 0
        %2384 = vmatpush2.bf16.msra.mxu0 0
        %2385 = vmatprep.subr.bf16.mxu0 0
        %2386 = vmatpush2.bf16.msra.mxu0 0
        %2387 = vmatprep.subr.bf16.mxu0 0
        %2388 = vmatpush2.bf16.msra.mxu0 0
        %2389 = vmatprep.mubr.bf16.mxu0 0
        %2390 = vmatmul.mubr.bf16.gmra.mxu0 %v2334
        %v2391 = vpop.f32.mrf.mxu0
        %v2392 = vadd.f32 0.0, %v2391
        %v2393 = vpop.f32.mrf.mxu0
        %v2394 = vpop.f32.mrf.mxu0
        %v2395 = vadd.f32 0.0, %v2394
        %v2396 = vpop.f32.mrf.mxu0
        %2397 = vmatprep.mubr.bf16.mxu0 0
        %2398 = vmatmul.mubr.bf16.gmra.mxu0 %v2337
        %v2399 = vpop.f32.mrf.mxu0
        %v2400 = vadd.f32 0.0, %v2399
        %v2401 = vpop.f32.mrf.mxu0
        %v2402 = vpop.f32.mrf.mxu0
        %v2403 = vadd.f32 0.0, %v2402
        %v2404 = vpop.f32.mrf.mxu0
        %2405 = vmatprep.mubr.bf16.mxu0 0
        %2406 = vmatmul.mubr.bf16.gmra.mxu0 %v2340
        %v2407 = vpop.f32.mrf.mxu0
        %v2408 = vadd.f32 0.0, %v2407
        %v2409 = vpop.f32.mrf.mxu0
        %v2410 = vpop.f32.mrf.mxu0
        %v2411 = vadd.f32 0.0, %v2410
        %v2412 = vpop.f32.mrf.mxu0
        %2413 = vmatprep.mubr.bf16.mxu0 0
        %2414 = vmatmul.mubr.bf16.gmra.mxu0 %v2343
        %v2415 = vpop.f32.mrf.mxu0
        %v2416 = vadd.f32 0.0, %v2415
        %v2417 = vpop.f32.mrf.mxu0
        %v2418 = vpop.f32.mrf.mxu0
        %v2419 = vadd.f32 0.0, %v2418
        %v2420 = vpop.f32.mrf.mxu0
        %2421 = vmatprep.mubr.bf16.mxu0 0
        %2422 = vmatmul.mubr.bf16.gmra.mxu0 %v2346
        %v2423 = vpop.f32.mrf.mxu0
        %v2424 = vadd.f32 0.0, %v2423
        %v2425 = vpop.f32.mrf.mxu0
        %v2426 = vpop.f32.mrf.mxu0
        %v2427 = vadd.f32 0.0, %v2426
        %v2428 = vpop.f32.mrf.mxu0
        %2429 = vmatprep.mubr.bf16.mxu0 0
        %2430 = vmatmul.mubr.bf16.gmra.mxu0 %v2349
        %v2431 = vpop.f32.mrf.mxu0
        %v2432 = vadd.f32 0.0, %v2431
        %v2433 = vpop.f32.mrf.mxu0
        %v2434 = vpop.f32.mrf.mxu0
        %v2435 = vadd.f32 0.0, %v2434
        %v2436 = vpop.f32.mrf.mxu0
        %2437 = vmatprep.mubr.bf16.mxu0 0
        %2438 = vmatmul.mubr.bf16.gmra.mxu0 %v2352
        %v2439 = vpop.f32.mrf.mxu0
        %v2440 = vadd.f32 0.0, %v2439
        %v2441 = vpop.f32.mrf.mxu0
        %v2442 = vpop.f32.mrf.mxu0
        %v2443 = vadd.f32 0.0, %v2442
        %v2444 = vpop.f32.mrf.mxu0
        %2445 = vmatprep.mubr.bf16.mxu0 0
        %2446 = vmatmul.mubr.bf16.gmra.mxu0 %v2355
        %v2447 = vpop.f32.mrf.mxu0
        %v2448 = vadd.f32 0.0, %v2447
        %v2449 = vpop.f32.mrf.mxu0
        %v2450 = vpop.f32.mrf.mxu0
        %v2451 = vadd.f32 0.0, %v2450
        %v2452 = vpop.f32.mrf.mxu0
        %2453 = vdwg.mxu0
        %v2455 = vsel %vm2332, %v1948, 0
        %v2458 = vsel %vm2332, %v1949, 0
        %v2461 = vsel %vm2332, %v1950, 0
        %v2464 = vsel %vm2332, %v1951, 0
        %v2467 = vsel %vm2332, %v1952, 0
        %v2470 = vsel %vm2332, %v1953, 0
        %v2473 = vsel %vm2332, %v1954, 0
        %v2476 = vsel %vm2332, %v1955, 0
        %2478 = vmatprep.subr.bf16.mxu0 0
        %2479 = vmatpush1.bf16.msra.mxu0 0
        %2480 = vmatprep.subr.bf16.mxu0 0
        %2481 = vmatpush1.bf16.msra.mxu0 0
        %2482 = vmatprep.subr.bf16.mxu0 0
        %2483 = vmatpush1.bf16.msra.mxu0 0
        %2484 = vmatprep.subr.bf16.mxu0 0
        %2485 = vmatpush1.bf16.msra.mxu0 0
        %2486 = vmatprep.subr.bf16.mxu0 0
        %2487 = vmatpush1.bf16.msra.mxu0 0
        %2488 = vmatprep.subr.bf16.mxu0 0
        %2489 = vmatpush1.bf16.msra.mxu0 0
        %2490 = vmatprep.subr.bf16.mxu0 0
        %2491 = vmatpush1.bf16.msra.mxu0 0
        %2492 = vmatprep.subr.bf16.mxu0 0
        %2493 = vmatpush1.bf16.msra.mxu0 %v2325
        %2494 = vmatprep.subr.bf16.mxu0 0
        %2495 = vmatpush2.bf16.msra.mxu0 0
        %2496 = vmatprep.subr.bf16.mxu0 0
        %2497 = vmatpush2.bf16.msra.mxu0 0
        %2498 = vmatprep.subr.bf16.mxu0 0
        %2499 = vmatpush2.bf16.msra.mxu0 0
        %2500 = vmatprep.subr.bf16.mxu0 0
        %2501 = vmatpush2.bf16.msra.mxu0 0
        %2502 = vmatprep.subr.bf16.mxu0 0
        %2503 = vmatpush2.bf16.msra.mxu0 0
        %2504 = vmatprep.subr.bf16.mxu0 0
        %2505 = vmatpush2.bf16.msra.mxu0 0
        %2506 = vmatprep.subr.bf16.mxu0 0
        %2507 = vmatpush2.bf16.msra.mxu0 0
        %2508 = vmatprep.subr.bf16.mxu0 0
        %2509 = vmatpush2.bf16.msra.mxu0 0
        %2510 = vmatprep.mubr.bf16.mxu0 0
        %2511 = vmatmul.mubr.bf16.gmra.mxu0 %v2455
        %v2512 = vpop.f32.mrf.mxu0
        %v2513 = vadd.f32 0.0, %v2512
        %v2514 = vpop.f32.mrf.mxu0
        %v2515 = vpop.f32.mrf.mxu0
        %v2516 = vadd.f32 0.0, %v2515
        %v2517 = vpop.f32.mrf.mxu0
        %2518 = vmatprep.mubr.bf16.mxu0 0
        %2519 = vmatmul.mubr.bf16.gmra.mxu0 %v2458
        %v2520 = vpop.f32.mrf.mxu0
        %v2521 = vadd.f32 0.0, %v2520
        %v2522 = vpop.f32.mrf.mxu0
        %v2523 = vpop.f32.mrf.mxu0
        %v2524 = vadd.f32 0.0, %v2523
        %v2525 = vpop.f32.mrf.mxu0
        %2526 = vmatprep.mubr.bf16.mxu0 0
        %2527 = vmatmul.mubr.bf16.gmra.mxu0 %v2461
        %v2528 = vpop.f32.mrf.mxu0
        %v2529 = vadd.f32 0.0, %v2528
        %v2530 = vpop.f32.mrf.mxu0
        %v2531 = vpop.f32.mrf.mxu0
        %v2532 = vadd.f32 0.0, %v2531
        %v2533 = vpop.f32.mrf.mxu0
        %2534 = vmatprep.mubr.bf16.mxu0 0
        %2535 = vmatmul.mubr.bf16.gmra.mxu0 %v2464
        %v2536 = vpop.f32.mrf.mxu0
        %v2537 = vadd.f32 0.0, %v2536
        %v2538 = vpop.f32.mrf.mxu0
        %v2539 = vpop.f32.mrf.mxu0
        %v2540 = vadd.f32 0.0, %v2539
        %v2541 = vpop.f32.mrf.mxu0
        %2542 = vmatprep.mubr.bf16.mxu0 0
        %2543 = vmatmul.mubr.bf16.gmra.mxu0 %v2467
        %v2544 = vpop.f32.mrf.mxu0
        %v2545 = vadd.f32 0.0, %v2544
        %v2546 = vpop.f32.mrf.mxu0
        %v2547 = vpop.f32.mrf.mxu0
        %v2548 = vadd.f32 0.0, %v2547
        %v2549 = vpop.f32.mrf.mxu0
        %2550 = vmatprep.mubr.bf16.mxu0 0
        %2551 = vmatmul.mubr.bf16.gmra.mxu0 %v2470
        %v2552 = vpop.f32.mrf.mxu0
        %v2553 = vadd.f32 0.0, %v2552
        %v2554 = vpop.f32.mrf.mxu0
        %v2555 = vpop.f32.mrf.mxu0
        %v2556 = vadd.f32 0.0, %v2555
        %v2557 = vpop.f32.mrf.mxu0
        %2558 = vmatprep.mubr.bf16.mxu0 0
        %2559 = vmatmul.mubr.bf16.gmra.mxu0 %v2473
        %v2560 = vpop.f32.mrf.mxu0
        %v2561 = vadd.f32 0.0, %v2560
        %v2562 = vpop.f32.mrf.mxu0
        %v2563 = vpop.f32.mrf.mxu0
        %v2564 = vadd.f32 0.0, %v2563
        %v2565 = vpop.f32.mrf.mxu0
        %2566 = vmatprep.mubr.bf16.mxu0 0
        %2567 = vmatmul.mubr.bf16.gmra.mxu0 %v2476
        %v2568 = vpop.f32.mrf.mxu0
        %v2569 = vadd.f32 0.0, %v2568
        %v2570 = vpop.f32.mrf.mxu0
        %v2571 = vpop.f32.mrf.mxu0
        %v2572 = vadd.f32 0.0, %v2571
        %v2573 = vpop.f32.mrf.mxu0
        %2574 = vdwg.mxu0
        %v2576 = vsel %vm2332, %v1956, 0
        %v2579 = vsel %vm2332, %v1957, 0
        %v2582 = vsel %vm2332, %v1958, 0
        %v2585 = vsel %vm2332, %v1959, 0
        %v2588 = vsel %vm2332, %v1960, 0
        %v2591 = vsel %vm2332, %v1961, 0
        %v2594 = vsel %vm2332, %v1962, 0
        %v2597 = vsel %vm2332, %v1963, 0
        %2599 = vmatprep.subr.bf16.mxu0 0
        %2600 = vmatpush1.bf16.msra.mxu0 0
        %2601 = vmatprep.subr.bf16.mxu0 0
        %2602 = vmatpush1.bf16.msra.mxu0 0
        %2603 = vmatprep.subr.bf16.mxu0 0
        %2604 = vmatpush1.bf16.msra.mxu0 0
        %2605 = vmatprep.subr.bf16.mxu0 0
        %2606 = vmatpush1.bf16.msra.mxu0 0
        %2607 = vmatprep.subr.bf16.mxu0 0
        %2608 = vmatpush1.bf16.msra.mxu0 0
        %2609 = vmatprep.subr.bf16.mxu0 0
        %2610 = vmatpush1.bf16.msra.mxu0 0
        %2611 = vmatprep.subr.bf16.mxu0 0
        %2612 = vmatpush1.bf16.msra.mxu0 0
        %2613 = vmatprep.subr.bf16.mxu0 0
        %2614 = vmatpush1.bf16.msra.mxu0 %v2326
        %2615 = vmatprep.subr.bf16.mxu0 0
        %2616 = vmatpush2.bf16.msra.mxu0 0
        %2617 = vmatprep.subr.bf16.mxu0 0
        %2618 = vmatpush2.bf16.msra.mxu0 0
        %2619 = vmatprep.subr.bf16.mxu0 0
        %2620 = vmatpush2.bf16.msra.mxu0 0
        %2621 = vmatprep.subr.bf16.mxu0 0
        %2622 = vmatpush2.bf16.msra.mxu0 0
        %2623 = vmatprep.subr.bf16.mxu0 0
        %2624 = vmatpush2.bf16.msra.mxu0 0
        %2625 = vmatprep.subr.bf16.mxu0 0
        %2626 = vmatpush2.bf16.msra.mxu0 0
        %2627 = vmatprep.subr.bf16.mxu0 0
        %2628 = vmatpush2.bf16.msra.mxu0 0
        %2629 = vmatprep.subr.bf16.mxu0 0
        %2630 = vmatpush2.bf16.msra.mxu0 0
        %2631 = vmatprep.mubr.bf16.mxu0 0
        %2632 = vmatmul.mubr.bf16.gmra.mxu0 %v2576
        %v2633 = vpop.f32.mrf.mxu0
        %v2634 = vadd.f32 0.0, %v2633
        %v2635 = vpop.f32.mrf.mxu0
        %v2636 = vpop.f32.mrf.mxu0
        %v2637 = vadd.f32 0.0, %v2636
        %v2638 = vpop.f32.mrf.mxu0
        %2639 = vmatprep.mubr.bf16.mxu0 0
        %2640 = vmatmul.mubr.bf16.gmra.mxu0 %v2579
        %v2641 = vpop.f32.mrf.mxu0
        %v2642 = vadd.f32 0.0, %v2641
        %v2643 = vpop.f32.mrf.mxu0
        %v2644 = vpop.f32.mrf.mxu0
        %v2645 = vadd.f32 0.0, %v2644
        %v2646 = vpop.f32.mrf.mxu0
        %2647 = vmatprep.mubr.bf16.mxu0 0
        %2648 = vmatmul.mubr.bf16.gmra.mxu0 %v2582
        %v2649 = vpop.f32.mrf.mxu0
        %v2650 = vadd.f32 0.0, %v2649
        %v2651 = vpop.f32.mrf.mxu0
        %v2652 = vpop.f32.mrf.mxu0
        %v2653 = vadd.f32 0.0, %v2652
        %v2654 = vpop.f32.mrf.mxu0
        %2655 = vmatprep.mubr.bf16.mxu0 0
        %2656 = vmatmul.mubr.bf16.gmra.mxu0 %v2585
        %v2657 = vpop.f32.mrf.mxu0
        %v2658 = vadd.f32 0.0, %v2657
        %v2659 = vpop.f32.mrf.mxu0
        %v2660 = vpop.f32.mrf.mxu0
        %v2661 = vadd.f32 0.0, %v2660
        %v2662 = vpop.f32.mrf.mxu0
        %2663 = vmatprep.mubr.bf16.mxu0 0
        %2664 = vmatmul.mubr.bf16.gmra.mxu0 %v2588
        %v2665 = vpop.f32.mrf.mxu0
        %v2666 = vadd.f32 0.0, %v2665
        %v2667 = vpop.f32.mrf.mxu0
        %v2668 = vpop.f32.mrf.mxu0
        %v2669 = vadd.f32 0.0, %v2668
        %v2670 = vpop.f32.mrf.mxu0
        %2671 = vmatprep.mubr.bf16.mxu0 0
        %2672 = vmatmul.mubr.bf16.gmra.mxu0 %v2591
        %v2673 = vpop.f32.mrf.mxu0
        %v2674 = vadd.f32 0.0, %v2673
        %v2675 = vpop.f32.mrf.mxu0
        %v2676 = vpop.f32.mrf.mxu0
        %v2677 = vadd.f32 0.0, %v2676
        %v2678 = vpop.f32.mrf.mxu0
        %2679 = vmatprep.mubr.bf16.mxu0 0
        %2680 = vmatmul.mubr.bf16.gmra.mxu0 %v2594
        %v2681 = vpop.f32.mrf.mxu0
        %v2682 = vadd.f32 0.0, %v2681
        %v2683 = vpop.f32.mrf.mxu0
        %v2684 = vpop.f32.mrf.mxu0
        %v2685 = vadd.f32 0.0, %v2684
        %v2686 = vpop.f32.mrf.mxu0
        %2687 = vmatprep.mubr.bf16.mxu0 0
        %2688 = vmatmul.mubr.bf16.gmra.mxu0 %v2597
        %v2689 = vpop.f32.mrf.mxu0
        %v2690 = vadd.f32 0.0, %v2689
        %v2691 = vpop.f32.mrf.mxu0
        %v2692 = vpop.f32.mrf.mxu0
        %v2693 = vadd.f32 0.0, %v2692
        %v2694 = vpop.f32.mrf.mxu0
        %2695 = vdwg.mxu0
        %v2697 = vsel %vm2332, %v1964, 0
        %v2700 = vsel %vm2332, %v1965, 0
        %v2703 = vsel %vm2332, %v1966, 0
        %v2706 = vsel %vm2332, %v1967, 0
        %v2709 = vsel %vm2332, %v1968, 0
        %v2712 = vsel %vm2332, %v1969, 0
        %v2715 = vsel %vm2332, %v1970, 0
        %v2718 = vsel %vm2332, %v1971, 0
        %2720 = vmatprep.subr.bf16.mxu0 0
        %2721 = vmatpush1.bf16.msra.mxu0 0
        %2722 = vmatprep.subr.bf16.mxu0 0
        %2723 = vmatpush1.bf16.msra.mxu0 0
        %2724 = vmatprep.subr.bf16.mxu0 0
        %2725 = vmatpush1.bf16.msra.mxu0 0
        %2726 = vmatprep.subr.bf16.mxu0 0
        %2727 = vmatpush1.bf16.msra.mxu0 0
        %2728 = vmatprep.subr.bf16.mxu0 0
        %2729 = vmatpush1.bf16.msra.mxu0 0
        %2730 = vmatprep.subr.bf16.mxu0 0
        %2731 = vmatpush1.bf16.msra.mxu0 0
        %2732 = vmatprep.subr.bf16.mxu0 0
        %2733 = vmatpush1.bf16.msra.mxu0 0
        %2734 = vmatprep.subr.bf16.mxu0 0
        %2735 = vmatpush1.bf16.msra.mxu0 %v2327
        %2736 = vmatprep.subr.bf16.mxu0 0
        %2737 = vmatpush2.bf16.msra.mxu0 0
        %2738 = vmatprep.subr.bf16.mxu0 0
        %2739 = vmatpush2.bf16.msra.mxu0 0
        %2740 = vmatprep.subr.bf16.mxu0 0
        %2741 = vmatpush2.bf16.msra.mxu0 0
        %2742 = vmatprep.subr.bf16.mxu0 0
        %2743 = vmatpush2.bf16.msra.mxu0 0
        %2744 = vmatprep.subr.bf16.mxu0 0
        %2745 = vmatpush2.bf16.msra.mxu0 0
        %2746 = vmatprep.subr.bf16.mxu0 0
        %2747 = vmatpush2.bf16.msra.mxu0 0
        %2748 = vmatprep.subr.bf16.mxu0 0
        %2749 = vmatpush2.bf16.msra.mxu0 0
        %2750 = vmatprep.subr.bf16.mxu0 0
        %2751 = vmatpush2.bf16.msra.mxu0 0
        %2752 = vmatprep.mubr.bf16.mxu0 0
        %2753 = vmatmul.mubr.bf16.gmra.mxu0 %v2697
        %v2754 = vpop.f32.mrf.mxu0
        %v2755 = vadd.f32 0.0, %v2754
        %v2756 = vpop.f32.mrf.mxu0
        %v2757 = vpop.f32.mrf.mxu0
        %v2758 = vadd.f32 0.0, %v2757
        %v2759 = vpop.f32.mrf.mxu0
        %2760 = vmatprep.mubr.bf16.mxu0 0
        %2761 = vmatmul.mubr.bf16.gmra.mxu0 %v2700
        %v2762 = vpop.f32.mrf.mxu0
        %v2763 = vadd.f32 0.0, %v2762
        %v2764 = vpop.f32.mrf.mxu0
        %v2765 = vpop.f32.mrf.mxu0
        %v2766 = vadd.f32 0.0, %v2765
        %v2767 = vpop.f32.mrf.mxu0
        %2768 = vmatprep.mubr.bf16.mxu0 0
        %2769 = vmatmul.mubr.bf16.gmra.mxu0 %v2703
        %v2770 = vpop.f32.mrf.mxu0
        %v2771 = vadd.f32 0.0, %v2770
        %v2772 = vpop.f32.mrf.mxu0
        %v2773 = vpop.f32.mrf.mxu0
        %v2774 = vadd.f32 0.0, %v2773
        %v2775 = vpop.f32.mrf.mxu0
        %2776 = vmatprep.mubr.bf16.mxu0 0
        %2777 = vmatmul.mubr.bf16.gmra.mxu0 %v2706
        %v2778 = vpop.f32.mrf.mxu0
        %v2779 = vadd.f32 0.0, %v2778
        %v2780 = vpop.f32.mrf.mxu0
        %v2781 = vpop.f32.mrf.mxu0
        %v2782 = vadd.f32 0.0, %v2781
        %v2783 = vpop.f32.mrf.mxu0
        %2784 = vmatprep.mubr.bf16.mxu0 0
        %2785 = vmatmul.mubr.bf16.gmra.mxu0 %v2709
        %v2786 = vpop.f32.mrf.mxu0
        %v2787 = vadd.f32 0.0, %v2786
        %v2788 = vpop.f32.mrf.mxu0
        %v2789 = vpop.f32.mrf.mxu0
        %v2790 = vadd.f32 0.0, %v2789
        %v2791 = vpop.f32.mrf.mxu0
        %2792 = vmatprep.mubr.bf16.mxu0 0
        %2793 = vmatmul.mubr.bf16.gmra.mxu0 %v2712
        %v2794 = vpop.f32.mrf.mxu0
        %v2795 = vadd.f32 0.0, %v2794
        %v2796 = vpop.f32.mrf.mxu0
        %v2797 = vpop.f32.mrf.mxu0
        %v2798 = vadd.f32 0.0, %v2797
        %v2799 = vpop.f32.mrf.mxu0
        %2800 = vmatprep.mubr.bf16.mxu0 0
        %2801 = vmatmul.mubr.bf16.gmra.mxu0 %v2715
        %v2802 = vpop.f32.mrf.mxu0
        %v2803 = vadd.f32 0.0, %v2802
        %v2804 = vpop.f32.mrf.mxu0
        %v2805 = vpop.f32.mrf.mxu0
        %v2806 = vadd.f32 0.0, %v2805
        %v2807 = vpop.f32.mrf.mxu0
        %2808 = vmatprep.mubr.bf16.mxu0 0
        %2809 = vmatmul.mubr.bf16.gmra.mxu0 %v2718
        %v2810 = vpop.f32.mrf.mxu0
        %v2811 = vadd.f32 0.0, %v2810
        %v2812 = vpop.f32.mrf.mxu0
        %v2813 = vpop.f32.mrf.mxu0
        %v2814 = vadd.f32 0.0, %v2813
        %v2815 = vpop.f32.mrf.mxu0
        %2816 = vdwg.mxu0
        %v2818 = vsel %vm2332, %v1972, 0
        %v2821 = vsel %vm2332, %v1973, 0
        %v2824 = vsel %vm2332, %v1974, 0
        %v2827 = vsel %vm2332, %v1975, 0
        %v2830 = vsel %vm2332, %v1976, 0
        %v2833 = vsel %vm2332, %v1977, 0
        %v2836 = vsel %vm2332, %v1978, 0
        %v2839 = vsel %vm2332, %v1979, 0
        %2841 = vmatprep.subr.bf16.mxu0 0
        %2842 = vmatpush1.bf16.msra.mxu0 0
        %2843 = vmatprep.subr.bf16.mxu0 0
        %2844 = vmatpush1.bf16.msra.mxu0 0
        %2845 = vmatprep.subr.bf16.mxu0 0
        %2846 = vmatpush1.bf16.msra.mxu0 0
        %2847 = vmatprep.subr.bf16.mxu0 0
        %2848 = vmatpush1.bf16.msra.mxu0 0
        %2849 = vmatprep.subr.bf16.mxu0 0
        %2850 = vmatpush1.bf16.msra.mxu0 0
        %2851 = vmatprep.subr.bf16.mxu0 0
        %2852 = vmatpush1.bf16.msra.mxu0 0
        %2853 = vmatprep.subr.bf16.mxu0 0
        %2854 = vmatpush1.bf16.msra.mxu0 0
        %2855 = vmatprep.subr.bf16.mxu0 0
        %2856 = vmatpush1.bf16.msra.mxu0 %v2328
        %2857 = vmatprep.subr.bf16.mxu0 0
        %2858 = vmatpush2.bf16.msra.mxu0 0
        %2859 = vmatprep.subr.bf16.mxu0 0
        %2860 = vmatpush2.bf16.msra.mxu0 0
        %2861 = vmatprep.subr.bf16.mxu0 0
        %2862 = vmatpush2.bf16.msra.mxu0 0
        %2863 = vmatprep.subr.bf16.mxu0 0
        %2864 = vmatpush2.bf16.msra.mxu0 0
        %2865 = vmatprep.subr.bf16.mxu0 0
        %2866 = vmatpush2.bf16.msra.mxu0 0
        %2867 = vmatprep.subr.bf16.mxu0 0
        %2868 = vmatpush2.bf16.msra.mxu0 0
        %2869 = vmatprep.subr.bf16.mxu0 0
        %2870 = vmatpush2.bf16.msra.mxu0 0
        %2871 = vmatprep.subr.bf16.mxu0 0
        %2872 = vmatpush2.bf16.msra.mxu0 0
        %2873 = vmatprep.mubr.bf16.mxu0 0
        %2874 = vmatmul.mubr.bf16.gmra.mxu0 %v2818
        %v2875 = vpop.f32.mrf.mxu0
        %v2876 = vadd.f32 0.0, %v2875
        %v2877 = vpop.f32.mrf.mxu0
        %v2878 = vpop.f32.mrf.mxu0
        %v2879 = vadd.f32 0.0, %v2878
        %v2880 = vpop.f32.mrf.mxu0
        %2881 = vmatprep.mubr.bf16.mxu0 0
        %2882 = vmatmul.mubr.bf16.gmra.mxu0 %v2821
        %v2883 = vpop.f32.mrf.mxu0
        %v2884 = vadd.f32 0.0, %v2883
        %v2885 = vpop.f32.mrf.mxu0
        %v2886 = vpop.f32.mrf.mxu0
        %v2887 = vadd.f32 0.0, %v2886
        %v2888 = vpop.f32.mrf.mxu0
        %2889 = vmatprep.mubr.bf16.mxu0 0
        %2890 = vmatmul.mubr.bf16.gmra.mxu0 %v2824
        %v2891 = vpop.f32.mrf.mxu0
        %v2892 = vadd.f32 0.0, %v2891
        %v2893 = vpop.f32.mrf.mxu0
        %v2894 = vpop.f32.mrf.mxu0
        %v2895 = vadd.f32 0.0, %v2894
        %v2896 = vpop.f32.mrf.mxu0
        %2897 = vmatprep.mubr.bf16.mxu0 0
        %2898 = vmatmul.mubr.bf16.gmra.mxu0 %v2827
        %v2899 = vpop.f32.mrf.mxu0
        %v2900 = vadd.f32 0.0, %v2899
        %v2901 = vpop.f32.mrf.mxu0
        %v2902 = vpop.f32.mrf.mxu0
        %v2903 = vadd.f32 0.0, %v2902
        %v2904 = vpop.f32.mrf.mxu0
        %2905 = vmatprep.mubr.bf16.mxu0 0
        %2906 = vmatmul.mubr.bf16.gmra.mxu0 %v2830
        %v2907 = vpop.f32.mrf.mxu0
        %v2908 = vadd.f32 0.0, %v2907
        %v2909 = vpop.f32.mrf.mxu0
        %v2910 = vpop.f32.mrf.mxu0
        %v2911 = vadd.f32 0.0, %v2910
        %v2912 = vpop.f32.mrf.mxu0
        %2913 = vmatprep.mubr.bf16.mxu0 0
        %2914 = vmatmul.mubr.bf16.gmra.mxu0 %v2833
        %v2915 = vpop.f32.mrf.mxu0
        %v2916 = vadd.f32 0.0, %v2915
        %v2917 = vpop.f32.mrf.mxu0
        %v2918 = vpop.f32.mrf.mxu0
        %v2919 = vadd.f32 0.0, %v2918
        %v2920 = vpop.f32.mrf.mxu0
        %2921 = vmatprep.mubr.bf16.mxu0 0
        %2922 = vmatmul.mubr.bf16.gmra.mxu0 %v2836
        %v2923 = vpop.f32.mrf.mxu0
        %v2924 = vadd.f32 0.0, %v2923
        %v2925 = vpop.f32.mrf.mxu0
        %v2926 = vpop.f32.mrf.mxu0
        %v2927 = vadd.f32 0.0, %v2926
        %v2928 = vpop.f32.mrf.mxu0
        %2929 = vmatprep.mubr.bf16.mxu0 0
        %2930 = vmatmul.mubr.bf16.gmra.mxu0 %v2839
        %v2931 = vpop.f32.mrf.mxu0
        %v2932 = vadd.f32 0.0, %v2931
        %v2933 = vpop.f32.mrf.mxu0
        %v2934 = vpop.f32.mrf.mxu0
        %v2935 = vadd.f32 0.0, %v2934
        %v2936 = vpop.f32.mrf.mxu0
        %2937 = vdwg.mxu0
        %v2939 = vsel %vm2332, %v1980, 0
        %v2942 = vsel %vm2332, %v1981, 0
        %v2945 = vsel %vm2332, %v1982, 0
        %v2948 = vsel %vm2332, %v1983, 0
        %v2951 = vsel %vm2332, %v1984, 0
        %v2954 = vsel %vm2332, %v1985, 0
        %v2957 = vsel %vm2332, %v1986, 0
        %v2960 = vsel %vm2332, %v1987, 0
        %2962 = vmatprep.subr.bf16.mxu0 0
        %2963 = vmatpush1.bf16.msra.mxu0 0
        %2964 = vmatprep.subr.bf16.mxu0 0
        %2965 = vmatpush1.bf16.msra.mxu0 0
        %2966 = vmatprep.subr.bf16.mxu0 0
        %2967 = vmatpush1.bf16.msra.mxu0 0
        %2968 = vmatprep.subr.bf16.mxu0 0
        %2969 = vmatpush1.bf16.msra.mxu0 0
        %2970 = vmatprep.subr.bf16.mxu0 0
        %2971 = vmatpush1.bf16.msra.mxu0 0
        %2972 = vmatprep.subr.bf16.mxu0 0
        %2973 = vmatpush1.bf16.msra.mxu0 0
        %2974 = vmatprep.subr.bf16.mxu0 0
        %2975 = vmatpush1.bf16.msra.mxu0 0
        %2976 = vmatprep.subr.bf16.mxu0 0
        %2977 = vmatpush1.bf16.msra.mxu0 %v2329
        %2978 = vmatprep.subr.bf16.mxu0 0
        %2979 = vmatpush2.bf16.msra.mxu0 0
        %2980 = vmatprep.subr.bf16.mxu0 0
        %2981 = vmatpush2.bf16.msra.mxu0 0
        %2982 = vmatprep.subr.bf16.mxu0 0
        %2983 = vmatpush2.bf16.msra.mxu0 0
        %2984 = vmatprep.subr.bf16.mxu0 0
        %2985 = vmatpush2.bf16.msra.mxu0 0
        %2986 = vmatprep.subr.bf16.mxu0 0
        %2987 = vmatpush2.bf16.msra.mxu0 0
        %2988 = vmatprep.subr.bf16.mxu0 0
        %2989 = vmatpush2.bf16.msra.mxu0 0
        %2990 = vmatprep.subr.bf16.mxu0 0
        %2991 = vmatpush2.bf16.msra.mxu0 0
        %2992 = vmatprep.subr.bf16.mxu0 0
        %2993 = vmatpush2.bf16.msra.mxu0 0
        %2994 = vmatprep.mubr.bf16.mxu0 0
        %2995 = vmatmul.mubr.bf16.gmra.mxu0 %v2939
        %v2996 = vpop.f32.mrf.mxu0
        %v2997 = vadd.f32 0.0, %v2996
        %v2998 = vpop.f32.mrf.mxu0
        %v2999 = vpop.f32.mrf.mxu0
        %v3000 = vadd.f32 0.0, %v2999
        %v3001 = vpop.f32.mrf.mxu0
        %3002 = vmatprep.mubr.bf16.mxu0 0
        %3003 = vmatmul.mubr.bf16.gmra.mxu0 %v2942
        %v3004 = vpop.f32.mrf.mxu0
        %v3005 = vadd.f32 0.0, %v3004
        %v3006 = vpop.f32.mrf.mxu0
        %v3007 = vpop.f32.mrf.mxu0
        %v3008 = vadd.f32 0.0, %v3007
        %v3009 = vpop.f32.mrf.mxu0
        %3010 = vmatprep.mubr.bf16.mxu0 0
        %3011 = vmatmul.mubr.bf16.gmra.mxu0 %v2945
        %v3012 = vpop.f32.mrf.mxu0
        %v3013 = vadd.f32 0.0, %v3012
        %v3014 = vpop.f32.mrf.mxu0
        %v3015 = vpop.f32.mrf.mxu0
        %v3016 = vadd.f32 0.0, %v3015
        %v3017 = vpop.f32.mrf.mxu0
        %3018 = vmatprep.mubr.bf16.mxu0 0
        %3019 = vmatmul.mubr.bf16.gmra.mxu0 %v2948
        %v3020 = vpop.f32.mrf.mxu0
        %v3021 = vadd.f32 0.0, %v3020
        %v3022 = vpop.f32.mrf.mxu0
        %v3023 = vpop.f32.mrf.mxu0
        %v3024 = vadd.f32 0.0, %v3023
        %v3025 = vpop.f32.mrf.mxu0
        %3026 = vmatprep.mubr.bf16.mxu0 0
        %3027 = vmatmul.mubr.bf16.gmra.mxu0 %v2951
        %v3028 = vpop.f32.mrf.mxu0
        %v3029 = vadd.f32 0.0, %v3028
        %v3030 = vpop.f32.mrf.mxu0
        %v3031 = vpop.f32.mrf.mxu0
        %v3032 = vadd.f32 0.0, %v3031
        %v3033 = vpop.f32.mrf.mxu0
        %3034 = vmatprep.mubr.bf16.mxu0 0
        %3035 = vmatmul.mubr.bf16.gmra.mxu0 %v2954
        %v3036 = vpop.f32.mrf.mxu0
        %v3037 = vadd.f32 0.0, %v3036
        %v3038 = vpop.f32.mrf.mxu0
        %v3039 = vpop.f32.mrf.mxu0
        %v3040 = vadd.f32 0.0, %v3039
        %v3041 = vpop.f32.mrf.mxu0
        %3042 = vmatprep.mubr.bf16.mxu0 0
        %3043 = vmatmul.mubr.bf16.gmra.mxu0 %v2957
        %v3044 = vpop.f32.mrf.mxu0
        %v3045 = vadd.f32 0.0, %v3044
        %v3046 = vpop.f32.mrf.mxu0
        %v3047 = vpop.f32.mrf.mxu0
        %v3048 = vadd.f32 0.0, %v3047
        %v3049 = vpop.f32.mrf.mxu0
        %3050 = vmatprep.mubr.bf16.mxu0 0
        %3051 = vmatmul.mubr.bf16.gmra.mxu0 %v2960
        %v3052 = vpop.f32.mrf.mxu0
        %v3053 = vadd.f32 0.0, %v3052
        %v3054 = vpop.f32.mrf.mxu0
        %v3055 = vpop.f32.mrf.mxu0
        %v3056 = vadd.f32 0.0, %v3055
        %v3057 = vpop.f32.mrf.mxu0
        %3058 = vdwg.mxu0
        %v3060 = vsel %vm2332, %v1988, 0
        %v3063 = vsel %vm2332, %v1989, 0
        %v3066 = vsel %vm2332, %v1990, 0
        %v3069 = vsel %vm2332, %v1991, 0
        %v3072 = vsel %vm2332, %v1992, 0
        %v3075 = vsel %vm2332, %v1993, 0
        %v3078 = vsel %vm2332, %v1994, 0
        %v3081 = vsel %vm2332, %v1995, 0
        %3083 = vmatprep.subr.bf16.mxu0 0
        %3084 = vmatpush1.bf16.msra.mxu0 0
        %3085 = vmatprep.subr.bf16.mxu0 0
        %3086 = vmatpush1.bf16.msra.mxu0 0
        %3087 = vmatprep.subr.bf16.mxu0 0
        %3088 = vmatpush1.bf16.msra.mxu0 0
        %3089 = vmatprep.subr.bf16.mxu0 0
        %3090 = vmatpush1.bf16.msra.mxu0 0
        %3091 = vmatprep.subr.bf16.mxu0 0
        %3092 = vmatpush1.bf16.msra.mxu0 0
        %3093 = vmatprep.subr.bf16.mxu0 0
        %3094 = vmatpush1.bf16.msra.mxu0 0
        %3095 = vmatprep.subr.bf16.mxu0 0
        %3096 = vmatpush1.bf16.msra.mxu0 0
        %3097 = vmatprep.subr.bf16.mxu0 0
        %3098 = vmatpush1.bf16.msra.mxu0 %v2330
        %3099 = vmatprep.subr.bf16.mxu0 0
        %3100 = vmatpush2.bf16.msra.mxu0 0
        %3101 = vmatprep.subr.bf16.mxu0 0
        %3102 = vmatpush2.bf16.msra.mxu0 0
        %3103 = vmatprep.subr.bf16.mxu0 0
        %3104 = vmatpush2.bf16.msra.mxu0 0
        %3105 = vmatprep.subr.bf16.mxu0 0
        %3106 = vmatpush2.bf16.msra.mxu0 0
        %3107 = vmatprep.subr.bf16.mxu0 0
        %3108 = vmatpush2.bf16.msra.mxu0 0
        %3109 = vmatprep.subr.bf16.mxu0 0
        %3110 = vmatpush2.bf16.msra.mxu0 0
        %3111 = vmatprep.subr.bf16.mxu0 0
        %3112 = vmatpush2.bf16.msra.mxu0 0
        %3113 = vmatprep.subr.bf16.mxu0 0
        %3114 = vmatpush2.bf16.msra.mxu0 0
        %3115 = vmatprep.mubr.bf16.mxu0 0
        %3116 = vmatmul.mubr.bf16.gmra.mxu0 %v3060
        %v3117 = vpop.f32.mrf.mxu0
        %v3118 = vadd.f32 0.0, %v3117
        %v3119 = vpop.f32.mrf.mxu0
        %v3120 = vpop.f32.mrf.mxu0
        %v3121 = vadd.f32 0.0, %v3120
        %v3122 = vpop.f32.mrf.mxu0
        %3123 = vmatprep.mubr.bf16.mxu0 0
        %3124 = vmatmul.mubr.bf16.gmra.mxu0 %v3063
        %v3125 = vpop.f32.mrf.mxu0
        %v3126 = vadd.f32 0.0, %v3125
        %v3127 = vpop.f32.mrf.mxu0
        %v3128 = vpop.f32.mrf.mxu0
        %v3129 = vadd.f32 0.0, %v3128
        %v3130 = vpop.f32.mrf.mxu0
        %3131 = vmatprep.mubr.bf16.mxu0 0
        %3132 = vmatmul.mubr.bf16.gmra.mxu0 %v3066
        %v3133 = vpop.f32.mrf.mxu0
        %v3134 = vadd.f32 0.0, %v3133
        %v3135 = vpop.f32.mrf.mxu0
        %v3136 = vpop.f32.mrf.mxu0
        %v3137 = vadd.f32 0.0, %v3136
        %v3138 = vpop.f32.mrf.mxu0
        %3139 = vmatprep.mubr.bf16.mxu0 0
        %3140 = vmatmul.mubr.bf16.gmra.mxu0 %v3069
        %v3141 = vpop.f32.mrf.mxu0
        %v3142 = vadd.f32 0.0, %v3141
        %v3143 = vpop.f32.mrf.mxu0
        %v3144 = vpop.f32.mrf.mxu0
        %v3145 = vadd.f32 0.0, %v3144
        %v3146 = vpop.f32.mrf.mxu0
        %3147 = vmatprep.mubr.bf16.mxu0 0
        %3148 = vmatmul.mubr.bf16.gmra.mxu0 %v3072
        %v3149 = vpop.f32.mrf.mxu0
        %v3150 = vadd.f32 0.0, %v3149
        %v3151 = vpop.f32.mrf.mxu0
        %v3152 = vpop.f32.mrf.mxu0
        %v3153 = vadd.f32 0.0, %v3152
        %v3154 = vpop.f32.mrf.mxu0
        %3155 = vmatprep.mubr.bf16.mxu0 0
        %3156 = vmatmul.mubr.bf16.gmra.mxu0 %v3075
        %v3157 = vpop.f32.mrf.mxu0
        %v3158 = vadd.f32 0.0, %v3157
        %v3159 = vpop.f32.mrf.mxu0
        %v3160 = vpop.f32.mrf.mxu0
        %v3161 = vadd.f32 0.0, %v3160
        %v3162 = vpop.f32.mrf.mxu0
        %3163 = vmatprep.mubr.bf16.mxu0 0
        %3164 = vmatmul.mubr.bf16.gmra.mxu0 %v3078
        %v3165 = vpop.f32.mrf.mxu0
        %v3166 = vadd.f32 0.0, %v3165
        %v3167 = vpop.f32.mrf.mxu0
        %v3168 = vpop.f32.mrf.mxu0
        %v3169 = vadd.f32 0.0, %v3168
        %v3170 = vpop.f32.mrf.mxu0
        %3171 = vmatprep.mubr.bf16.mxu0 0
        %3172 = vmatmul.mubr.bf16.gmra.mxu0 %v3081
        %v3173 = vpop.f32.mrf.mxu0
        %v3174 = vadd.f32 0.0, %v3173
        %v3175 = vpop.f32.mrf.mxu0
        %v3176 = vpop.f32.mrf.mxu0
        %v3177 = vadd.f32 0.0, %v3176
        %v3178 = vpop.f32.mrf.mxu0
        %3179 = vdwg.mxu0
        %v3181 = vsel %vm2332, %v1996, 0
        %v3184 = vsel %vm2332, %v1997, 0
        %v3187 = vsel %vm2332, %v1998, 0
        %v3190 = vsel %vm2332, %v1999, 0
        %v3193 = vsel %vm2332, %v2000, 0
        %v3196 = vsel %vm2332, %v2001, 0
        %v3199 = vsel %vm2332, %v2002, 0
        %v3202 = vsel %vm2332, %v2003, 0
        %3204 = vmatprep.subr.bf16.mxu0 0
        %3205 = vmatpush1.bf16.msra.mxu0 0
        %3206 = vmatprep.subr.bf16.mxu0 0
        %3207 = vmatpush1.bf16.msra.mxu0 0
        %3208 = vmatprep.subr.bf16.mxu0 0
        %3209 = vmatpush1.bf16.msra.mxu0 0
        %3210 = vmatprep.subr.bf16.mxu0 0
        %3211 = vmatpush1.bf16.msra.mxu0 0
        %3212 = vmatprep.subr.bf16.mxu0 0
        %3213 = vmatpush1.bf16.msra.mxu0 0
        %3214 = vmatprep.subr.bf16.mxu0 0
        %3215 = vmatpush1.bf16.msra.mxu0 0
        %3216 = vmatprep.subr.bf16.mxu0 0
        %3217 = vmatpush1.bf16.msra.mxu0 0
        %3218 = vmatprep.subr.bf16.mxu0 0
        %3219 = vmatpush1.bf16.msra.mxu0 %v2331
        %3220 = vmatprep.subr.bf16.mxu0 0
        %3221 = vmatpush2.bf16.msra.mxu0 0
        %3222 = vmatprep.subr.bf16.mxu0 0
        %3223 = vmatpush2.bf16.msra.mxu0 0
        %3224 = vmatprep.subr.bf16.mxu0 0
        %3225 = vmatpush2.bf16.msra.mxu0 0
        %3226 = vmatprep.subr.bf16.mxu0 0
        %3227 = vmatpush2.bf16.msra.mxu0 0
        %3228 = vmatprep.subr.bf16.mxu0 0
        %3229 = vmatpush2.bf16.msra.mxu0 0
        %3230 = vmatprep.subr.bf16.mxu0 0
        %3231 = vmatpush2.bf16.msra.mxu0 0
        %3232 = vmatprep.subr.bf16.mxu0 0
        %3233 = vmatpush2.bf16.msra.mxu0 0
        %3234 = vmatprep.subr.bf16.mxu0 0
        %3235 = vmatpush2.bf16.msra.mxu0 0
        %3236 = vmatprep.mubr.bf16.mxu0 0
        %3237 = vmatmul.mubr.bf16.gmra.mxu0 %v3181
        %v3238 = vpop.f32.mrf.mxu0
        %v3239 = vadd.f32 0.0, %v3238
        %v3240 = vpop.f32.mrf.mxu0
        %v3241 = vpop.f32.mrf.mxu0
        %v3242 = vadd.f32 0.0, %v3241
        %v3243 = vpop.f32.mrf.mxu0
        %3244 = vmatprep.mubr.bf16.mxu0 0
        %3245 = vmatmul.mubr.bf16.gmra.mxu0 %v3184
        %v3246 = vpop.f32.mrf.mxu0
        %v3247 = vadd.f32 0.0, %v3246
        %v3248 = vpop.f32.mrf.mxu0
        %v3249 = vpop.f32.mrf.mxu0
        %v3250 = vadd.f32 0.0, %v3249
        %v3251 = vpop.f32.mrf.mxu0
        %3252 = vmatprep.mubr.bf16.mxu0 0
        %3253 = vmatmul.mubr.bf16.gmra.mxu0 %v3187
        %v3254 = vpop.f32.mrf.mxu0
        %v3255 = vadd.f32 0.0, %v3254
        %v3256 = vpop.f32.mrf.mxu0
        %v3257 = vpop.f32.mrf.mxu0
        %v3258 = vadd.f32 0.0, %v3257
        %v3259 = vpop.f32.mrf.mxu0
        %3260 = vmatprep.mubr.bf16.mxu0 0
        %3261 = vmatmul.mubr.bf16.gmra.mxu0 %v3190
        %v3262 = vpop.f32.mrf.mxu0
        %v3263 = vadd.f32 0.0, %v3262
        %v3264 = vpop.f32.mrf.mxu0
        %v3265 = vpop.f32.mrf.mxu0
        %v3266 = vadd.f32 0.0, %v3265
        %v3267 = vpop.f32.mrf.mxu0
        %3268 = vmatprep.mubr.bf16.mxu0 0
        %3269 = vmatmul.mubr.bf16.gmra.mxu0 %v3193
        %v3270 = vpop.f32.mrf.mxu0
        %v3271 = vadd.f32 0.0, %v3270
        %v3272 = vpop.f32.mrf.mxu0
        %v3273 = vpop.f32.mrf.mxu0
        %v3274 = vadd.f32 0.0, %v3273
        %v3275 = vpop.f32.mrf.mxu0
        %3276 = vmatprep.mubr.bf16.mxu0 0
        %3277 = vmatmul.mubr.bf16.gmra.mxu0 %v3196
        %v3278 = vpop.f32.mrf.mxu0
        %v3279 = vadd.f32 0.0, %v3278
        %v3280 = vpop.f32.mrf.mxu0
        %v3281 = vpop.f32.mrf.mxu0
        %v3282 = vadd.f32 0.0, %v3281
        %v3283 = vpop.f32.mrf.mxu0
        %3284 = vmatprep.mubr.bf16.mxu0 0
        %3285 = vmatmul.mubr.bf16.gmra.mxu0 %v3199
        %v3286 = vpop.f32.mrf.mxu0
        %v3287 = vadd.f32 0.0, %v3286
        %v3288 = vpop.f32.mrf.mxu0
        %v3289 = vpop.f32.mrf.mxu0
        %v3290 = vadd.f32 0.0, %v3289
        %v3291 = vpop.f32.mrf.mxu0
        %3292 = vmatprep.mubr.bf16.mxu0 0
        %3293 = vmatmul.mubr.bf16.gmra.mxu0 %v3202
        %v3294 = vpop.f32.mrf.mxu0
        %v3295 = vadd.f32 0.0, %v3294
        %v3296 = vpop.f32.mrf.mxu0
        %v3297 = vpop.f32.mrf.mxu0
        %v3298 = vadd.f32 0.0, %v3297
        %v3299 = vpop.f32.mrf.mxu0
        %3300 = vdwg.mxu0
        %3301 = vmax.xlane.f32.xlu0 %v2392
        %v3302 = vpop.xlane.xlu0 %3301
        %3303 = vmax.xlane.f32.xlu0 %v2395
        %v3304 = vpop.xlane.xlu0 %3303
        %3305 = vmax.xlane.f32.xlu0 %v2400
        %v3306 = vpop.xlane.xlu0 %3305
        %3307 = vmax.xlane.f32.xlu0 %v2403
        %v3308 = vpop.xlane.xlu0 %3307
        %3309 = vmax.xlane.f32.xlu0 %v2408
        %v3310 = vpop.xlane.xlu0 %3309
        %3311 = vmax.xlane.f32.xlu0 %v2411
        %v3312 = vpop.xlane.xlu0 %3311
        %3313 = vmax.xlane.f32.xlu0 %v2416
        %v3314 = vpop.xlane.xlu0 %3313
        %3315 = vmax.xlane.f32.xlu0 %v2419
        %v3316 = vpop.xlane.xlu0 %3315
        %3317 = vmax.xlane.f32.xlu0 %v2424
        %v3318 = vpop.xlane.xlu0 %3317
        %3319 = vmax.xlane.f32.xlu0 %v2427
        %v3320 = vpop.xlane.xlu0 %3319
        %3321 = vmax.xlane.f32.xlu0 %v2432
        %v3322 = vpop.xlane.xlu0 %3321
        %3323 = vmax.xlane.f32.xlu0 %v2435
        %v3324 = vpop.xlane.xlu0 %3323
        %3325 = vmax.xlane.f32.xlu0 %v2440
        %v3326 = vpop.xlane.xlu0 %3325
        %3327 = vmax.xlane.f32.xlu0 %v2443
        %v3328 = vpop.xlane.xlu0 %3327
        %3329 = vmax.xlane.f32.xlu0 %v2448
        %v3330 = vpop.xlane.xlu0 %3329
        %3331 = vmax.xlane.f32.xlu0 %v2451
        %v3332 = vpop.xlane.xlu0 %3331
        %3333 = vmax.xlane.f32.xlu0 %v2513
        %v3334 = vpop.xlane.xlu0 %3333
        %3335 = vmax.xlane.f32.xlu0 %v2516
        %v3336 = vpop.xlane.xlu0 %3335
        %3337 = vmax.xlane.f32.xlu0 %v2521
        %v3338 = vpop.xlane.xlu0 %3337
        %3339 = vmax.xlane.f32.xlu0 %v2524
        %v3340 = vpop.xlane.xlu0 %3339
        %3341 = vmax.xlane.f32.xlu0 %v2529
        %v3342 = vpop.xlane.xlu0 %3341
        %3343 = vmax.xlane.f32.xlu0 %v2532
        %v3344 = vpop.xlane.xlu0 %3343
        %3345 = vmax.xlane.f32.xlu0 %v2537
        %v3346 = vpop.xlane.xlu0 %3345
        %3347 = vmax.xlane.f32.xlu0 %v2540
        %v3348 = vpop.xlane.xlu0 %3347
        %3349 = vmax.xlane.f32.xlu0 %v2545
        %v3350 = vpop.xlane.xlu0 %3349
        %3351 = vmax.xlane.f32.xlu0 %v2548
        %v3352 = vpop.xlane.xlu0 %3351
        %3353 = vmax.xlane.f32.xlu0 %v2553
        %v3354 = vpop.xlane.xlu0 %3353
        %3355 = vmax.xlane.f32.xlu0 %v2556
        %v3356 = vpop.xlane.xlu0 %3355
        %3357 = vmax.xlane.f32.xlu0 %v2561
        %v3358 = vpop.xlane.xlu0 %3357
        %3359 = vmax.xlane.f32.xlu0 %v2564
        %v3360 = vpop.xlane.xlu0 %3359
        %3361 = vmax.xlane.f32.xlu0 %v2569
        %v3362 = vpop.xlane.xlu0 %3361
        %3363 = vmax.xlane.f32.xlu0 %v2572
        %v3364 = vpop.xlane.xlu0 %3363
        %3365 = vmax.xlane.f32.xlu0 %v2634
        %v3366 = vpop.xlane.xlu0 %3365
        %3367 = vmax.xlane.f32.xlu0 %v2637
        %v3368 = vpop.xlane.xlu0 %3367
        %3369 = vmax.xlane.f32.xlu0 %v2642
        %v3370 = vpop.xlane.xlu0 %3369
        %3371 = vmax.xlane.f32.xlu0 %v2645
        %v3372 = vpop.xlane.xlu0 %3371
        %3373 = vmax.xlane.f32.xlu0 %v2650
        %v3374 = vpop.xlane.xlu0 %3373
        %3375 = vmax.xlane.f32.xlu0 %v2653
        %v3376 = vpop.xlane.xlu0 %3375
        %3377 = vmax.xlane.f32.xlu0 %v2658
        %v3378 = vpop.xlane.xlu0 %3377
        %3379 = vmax.xlane.f32.xlu0 %v2661
        %v3380 = vpop.xlane.xlu0 %3379
        %3381 = vmax.xlane.f32.xlu0 %v2666
        %v3382 = vpop.xlane.xlu0 %3381
        %3383 = vmax.xlane.f32.xlu0 %v2669
        %v3384 = vpop.xlane.xlu0 %3383
        %3385 = vmax.xlane.f32.xlu0 %v2674
        %v3386 = vpop.xlane.xlu0 %3385
        %3387 = vmax.xlane.f32.xlu0 %v2677
        %v3388 = vpop.xlane.xlu0 %3387
        %3389 = vmax.xlane.f32.xlu0 %v2682
        %v3390 = vpop.xlane.xlu0 %3389
        %3391 = vmax.xlane.f32.xlu0 %v2685
        %v3392 = vpop.xlane.xlu0 %3391
        %3393 = vmax.xlane.f32.xlu0 %v2690
        %v3394 = vpop.xlane.xlu0 %3393
        %3395 = vmax.xlane.f32.xlu0 %v2693
        %v3396 = vpop.xlane.xlu0 %3395
        %3397 = vmax.xlane.f32.xlu0 %v2755
        %v3398 = vpop.xlane.xlu0 %3397
        %3399 = vmax.xlane.f32.xlu0 %v2758
        %v3400 = vpop.xlane.xlu0 %3399
        %3401 = vmax.xlane.f32.xlu0 %v2763
        %v3402 = vpop.xlane.xlu0 %3401
        %3403 = vmax.xlane.f32.xlu0 %v2766
        %v3404 = vpop.xlane.xlu0 %3403
        %3405 = vmax.xlane.f32.xlu0 %v2771
        %v3406 = vpop.xlane.xlu0 %3405
        %3407 = vmax.xlane.f32.xlu0 %v2774
        %v3408 = vpop.xlane.xlu0 %3407
        %3409 = vmax.xlane.f32.xlu0 %v2779
        %v3410 = vpop.xlane.xlu0 %3409
        %3411 = vmax.xlane.f32.xlu0 %v2782
        %v3412 = vpop.xlane.xlu0 %3411
        %3413 = vmax.xlane.f32.xlu0 %v2787
        %v3414 = vpop.xlane.xlu0 %3413
        %3415 = vmax.xlane.f32.xlu0 %v2790
        %v3416 = vpop.xlane.xlu0 %3415
        %3417 = vmax.xlane.f32.xlu0 %v2795
        %v3418 = vpop.xlane.xlu0 %3417
        %3419 = vmax.xlane.f32.xlu0 %v2798
        %v3420 = vpop.xlane.xlu0 %3419
        %3421 = vmax.xlane.f32.xlu0 %v2803
        %v3422 = vpop.xlane.xlu0 %3421
        %3423 = vmax.xlane.f32.xlu0 %v2806
        %v3424 = vpop.xlane.xlu0 %3423
        %3425 = vmax.xlane.f32.xlu0 %v2811
        %v3426 = vpop.xlane.xlu0 %3425
        %3427 = vmax.xlane.f32.xlu0 %v2814
        %v3428 = vpop.xlane.xlu0 %3427
        %3429 = vmax.xlane.f32.xlu0 %v2876
        %v3430 = vpop.xlane.xlu0 %3429
        %3431 = vmax.xlane.f32.xlu0 %v2879
        %v3432 = vpop.xlane.xlu0 %3431
        %3433 = vmax.xlane.f32.xlu0 %v2884
        %v3434 = vpop.xlane.xlu0 %3433
        %3435 = vmax.xlane.f32.xlu0 %v2887
        %v3436 = vpop.xlane.xlu0 %3435
        %3437 = vmax.xlane.f32.xlu0 %v2892
        %v3438 = vpop.xlane.xlu0 %3437
        %3439 = vmax.xlane.f32.xlu0 %v2895
        %v3440 = vpop.xlane.xlu0 %3439
        %3441 = vmax.xlane.f32.xlu0 %v2900
        %v3442 = vpop.xlane.xlu0 %3441
        %3443 = vmax.xlane.f32.xlu0 %v2903
        %v3444 = vpop.xlane.xlu0 %3443
        %3445 = vmax.xlane.f32.xlu0 %v2908
        %v3446 = vpop.xlane.xlu0 %3445
        %3447 = vmax.xlane.f32.xlu0 %v2911
        %v3448 = vpop.xlane.xlu0 %3447
        %3449 = vmax.xlane.f32.xlu0 %v2916
        %v3450 = vpop.xlane.xlu0 %3449
        %3451 = vmax.xlane.f32.xlu0 %v2919
        %v3452 = vpop.xlane.xlu0 %3451
        %3453 = vmax.xlane.f32.xlu0 %v2924
        %v3454 = vpop.xlane.xlu0 %3453
        %3455 = vmax.xlane.f32.xlu0 %v2927
        %v3456 = vpop.xlane.xlu0 %3455
        %3457 = vmax.xlane.f32.xlu0 %v2932
        %v3458 = vpop.xlane.xlu0 %3457
        %3459 = vmax.xlane.f32.xlu0 %v2935
        %v3460 = vpop.xlane.xlu0 %3459
        %3461 = vmax.xlane.f32.xlu0 %v2997
        %v3462 = vpop.xlane.xlu0 %3461
        %3463 = vmax.xlane.f32.xlu0 %v3000
        %v3464 = vpop.xlane.xlu0 %3463
        %3465 = vmax.xlane.f32.xlu0 %v3005
        %v3466 = vpop.xlane.xlu0 %3465
        %3467 = vmax.xlane.f32.xlu0 %v3008
        %v3468 = vpop.xlane.xlu0 %3467
        %3469 = vmax.xlane.f32.xlu0 %v3013
        %v3470 = vpop.xlane.xlu0 %3469
        %3471 = vmax.xlane.f32.xlu0 %v3016
        %v3472 = vpop.xlane.xlu0 %3471
        %3473 = vmax.xlane.f32.xlu0 %v3021
        %v3474 = vpop.xlane.xlu0 %3473
        %3475 = vmax.xlane.f32.xlu0 %v3024
        %v3476 = vpop.xlane.xlu0 %3475
        %3477 = vmax.xlane.f32.xlu0 %v3029
        %v3478 = vpop.xlane.xlu0 %3477
        %3479 = vmax.xlane.f32.xlu0 %v3032
        %v3480 = vpop.xlane.xlu0 %3479
        %3481 = vmax.xlane.f32.xlu0 %v3037
        %v3482 = vpop.xlane.xlu0 %3481
        %3483 = vmax.xlane.f32.xlu0 %v3040
        %v3484 = vpop.xlane.xlu0 %3483
        %3485 = vmax.xlane.f32.xlu0 %v3045
        %v3486 = vpop.xlane.xlu0 %3485
        %3487 = vmax.xlane.f32.xlu0 %v3048
        %v3488 = vpop.xlane.xlu0 %3487
        %3489 = vmax.xlane.f32.xlu0 %v3053
        %v3490 = vpop.xlane.xlu0 %3489
        %3491 = vmax.xlane.f32.xlu0 %v3056
        %v3492 = vpop.xlane.xlu0 %3491
        %3493 = vmax.xlane.f32.xlu0 %v3118
        %v3494 = vpop.xlane.xlu0 %3493
        %3495 = vmax.xlane.f32.xlu0 %v3121
        %v3496 = vpop.xlane.xlu0 %3495
        %3497 = vmax.xlane.f32.xlu0 %v3126
        %v3498 = vpop.xlane.xlu0 %3497
        %3499 = vmax.xlane.f32.xlu0 %v3129
        %v3500 = vpop.xlane.xlu0 %3499
        %3501 = vmax.xlane.f32.xlu0 %v3134
        %v3502 = vpop.xlane.xlu0 %3501
        %3503 = vmax.xlane.f32.xlu0 %v3137
        %v3504 = vpop.xlane.xlu0 %3503
        %3505 = vmax.xlane.f32.xlu0 %v3142
        %v3506 = vpop.xlane.xlu0 %3505
        %3507 = vmax.xlane.f32.xlu0 %v3145
        %v3508 = vpop.xlane.xlu0 %3507
        %3509 = vmax.xlane.f32.xlu0 %v3150
        %v3510 = vpop.xlane.xlu0 %3509
        %3511 = vmax.xlane.f32.xlu0 %v3153
        %v3512 = vpop.xlane.xlu0 %3511
        %3513 = vmax.xlane.f32.xlu0 %v3158
        %v3514 = vpop.xlane.xlu0 %3513
        %3515 = vmax.xlane.f32.xlu0 %v3161
        %v3516 = vpop.xlane.xlu0 %3515
        %3517 = vmax.xlane.f32.xlu0 %v3166
        %v3518 = vpop.xlane.xlu0 %3517
        %3519 = vmax.xlane.f32.xlu0 %v3169
        %v3520 = vpop.xlane.xlu0 %3519
        %3521 = vmax.xlane.f32.xlu0 %v3174
        %v3522 = vpop.xlane.xlu0 %3521
        %3523 = vmax.xlane.f32.xlu0 %v3177
        %v3524 = vpop.xlane.xlu0 %3523
        %3525 = vmax.xlane.f32.xlu0 %v3239
        %v3526 = vpop.xlane.xlu0 %3525
        %3527 = vmax.xlane.f32.xlu0 %v3242
        %v3528 = vpop.xlane.xlu0 %3527
        %3529 = vmax.xlane.f32.xlu0 %v3247
        %v3530 = vpop.xlane.xlu0 %3529
        %3531 = vmax.xlane.f32.xlu0 %v3250
        %v3532 = vpop.xlane.xlu0 %3531
        %3533 = vmax.xlane.f32.xlu0 %v3255
        %v3534 = vpop.xlane.xlu0 %3533
        %3535 = vmax.xlane.f32.xlu0 %v3258
        %v3536 = vpop.xlane.xlu0 %3535
        %3537 = vmax.xlane.f32.xlu0 %v3263
        %v3538 = vpop.xlane.xlu0 %3537
        %3539 = vmax.xlane.f32.xlu0 %v3266
        %v3540 = vpop.xlane.xlu0 %3539
        %3541 = vmax.xlane.f32.xlu0 %v3271
        %v3542 = vpop.xlane.xlu0 %3541
        %3543 = vmax.xlane.f32.xlu0 %v3274
        %v3544 = vpop.xlane.xlu0 %3543
        %3545 = vmax.xlane.f32.xlu0 %v3279
        %v3546 = vpop.xlane.xlu0 %3545
        %3547 = vmax.xlane.f32.xlu0 %v3282
        %v3548 = vpop.xlane.xlu0 %3547
        %3549 = vmax.xlane.f32.xlu0 %v3287
        %v3550 = vpop.xlane.xlu0 %3549
        %3551 = vmax.xlane.f32.xlu0 %v3290
        %v3552 = vpop.xlane.xlu0 %3551
        %3553 = vmax.xlane.f32.xlu0 %v3295
        %v3554 = vpop.xlane.xlu0 %3553
        %3555 = vmax.xlane.f32.xlu0 %v3298
        %v3556 = vpop.xlane.xlu0 %3555
        %v3557 = vsub.f32 %v2392, %v3302
        %v3558 = vsub.f32 %v2395, %v3304
        %v3559 = vsub.f32 %v2400, %v3306
        %v3560 = vsub.f32 %v2403, %v3308
        %v3561 = vsub.f32 %v2408, %v3310
        %v3562 = vsub.f32 %v2411, %v3312
        %v3563 = vsub.f32 %v2416, %v3314
        %v3564 = vsub.f32 %v2419, %v3316
        %v3565 = vsub.f32 %v2424, %v3318
        %v3566 = vsub.f32 %v2427, %v3320
        %v3567 = vsub.f32 %v2432, %v3322
        %v3568 = vsub.f32 %v2435, %v3324
        %v3569 = vsub.f32 %v2440, %v3326
        %v3570 = vsub.f32 %v2443, %v3328
        %v3571 = vsub.f32 %v2448, %v3330
        %v3572 = vsub.f32 %v2451, %v3332
        %v3573 = vsub.f32 %v2513, %v3334
        %v3574 = vsub.f32 %v2516, %v3336
        %v3575 = vsub.f32 %v2521, %v3338
        %v3576 = vsub.f32 %v2524, %v3340
        %v3577 = vsub.f32 %v2529, %v3342
        %v3578 = vsub.f32 %v2532, %v3344
        %v3579 = vsub.f32 %v2537, %v3346
        %v3580 = vsub.f32 %v2540, %v3348
        %v3581 = vsub.f32 %v2545, %v3350
        %v3582 = vsub.f32 %v2548, %v3352
        %v3583 = vsub.f32 %v2553, %v3354
        %v3584 = vsub.f32 %v2556, %v3356
        %v3585 = vsub.f32 %v2561, %v3358
        %v3586 = vsub.f32 %v2564, %v3360
        %v3587 = vsub.f32 %v2569, %v3362
        %v3588 = vsub.f32 %v2572, %v3364
        %v3589 = vsub.f32 %v2634, %v3366
        %v3590 = vsub.f32 %v2637, %v3368
        %v3591 = vsub.f32 %v2642, %v3370
        %v3592 = vsub.f32 %v2645, %v3372
        %v3593 = vsub.f32 %v2650, %v3374
        %v3594 = vsub.f32 %v2653, %v3376
        %v3595 = vsub.f32 %v2658, %v3378
        %v3596 = vsub.f32 %v2661, %v3380
        %v3597 = vsub.f32 %v2666, %v3382
        %v3598 = vsub.f32 %v2669, %v3384
        %v3599 = vsub.f32 %v2674, %v3386
        %v3600 = vsub.f32 %v2677, %v3388
        %v3601 = vsub.f32 %v2682, %v3390
        %v3602 = vsub.f32 %v2685, %v3392
        %v3603 = vsub.f32 %v2690, %v3394
        %v3604 = vsub.f32 %v2693, %v3396
        %v3605 = vsub.f32 %v2755, %v3398
        %v3606 = vsub.f32 %v2758, %v3400
        %v3607 = vsub.f32 %v2763, %v3402
        %v3608 = vsub.f32 %v2766, %v3404
        %v3609 = vsub.f32 %v2771, %v3406
        %v3610 = vsub.f32 %v2774, %v3408
        %v3611 = vsub.f32 %v2779, %v3410
        %v3612 = vsub.f32 %v2782, %v3412
        %v3613 = vsub.f32 %v2787, %v3414
        %v3614 = vsub.f32 %v2790, %v3416
        %v3615 = vsub.f32 %v2795, %v3418
        %v3616 = vsub.f32 %v2798, %v3420
        %v3617 = vsub.f32 %v2803, %v3422
        %v3618 = vsub.f32 %v2806, %v3424
        %v3619 = vsub.f32 %v2811, %v3426
        %v3620 = vsub.f32 %v2814, %v3428
        %v3621 = vsub.f32 %v2876, %v3430
        %v3622 = vsub.f32 %v2879, %v3432
        %v3623 = vsub.f32 %v2884, %v3434
        %v3624 = vsub.f32 %v2887, %v3436
        %v3625 = vsub.f32 %v2892, %v3438
        %v3626 = vsub.f32 %v2895, %v3440
        %v3627 = vsub.f32 %v2900, %v3442
        %v3628 = vsub.f32 %v2903, %v3444
        %v3629 = vsub.f32 %v2908, %v3446
        %v3630 = vsub.f32 %v2911, %v3448
        %v3631 = vsub.f32 %v2916, %v3450
        %v3632 = vsub.f32 %v2919, %v3452
        %v3633 = vsub.f32 %v2924, %v3454
        %v3634 = vsub.f32 %v2927, %v3456
        %v3635 = vsub.f32 %v2932, %v3458
        %v3636 = vsub.f32 %v2935, %v3460
        %v3637 = vsub.f32 %v2997, %v3462
        %v3638 = vsub.f32 %v3000, %v3464
        %v3639 = vsub.f32 %v3005, %v3466
        %v3640 = vsub.f32 %v3008, %v3468
        %v3641 = vsub.f32 %v3013, %v3470
        %v3642 = vsub.f32 %v3016, %v3472
        %v3643 = vsub.f32 %v3021, %v3474
        %v3644 = vsub.f32 %v3024, %v3476
        %v3645 = vsub.f32 %v3029, %v3478
        %v3646 = vsub.f32 %v3032, %v3480
        %v3647 = vsub.f32 %v3037, %v3482
        %v3648 = vsub.f32 %v3040, %v3484
        %v3649 = vsub.f32 %v3045, %v3486
        %v3650 = vsub.f32 %v3048, %v3488
        %v3651 = vsub.f32 %v3053, %v3490
        %v3652 = vsub.f32 %v3056, %v3492
        %v3653 = vsub.f32 %v3118, %v3494
        %v3654 = vsub.f32 %v3121, %v3496
        %v3655 = vsub.f32 %v3126, %v3498
        %v3656 = vsub.f32 %v3129, %v3500
        %v3657 = vsub.f32 %v3134, %v3502
        %v3658 = vsub.f32 %v3137, %v3504
        %v3659 = vsub.f32 %v3142, %v3506
        %v3660 = vsub.f32 %v3145, %v3508
        %v3661 = vsub.f32 %v3150, %v3510
        %v3662 = vsub.f32 %v3153, %v3512
        %v3663 = vsub.f32 %v3158, %v3514
        %v3664 = vsub.f32 %v3161, %v3516
        %v3665 = vsub.f32 %v3166, %v3518
        %v3666 = vsub.f32 %v3169, %v3520
        %v3667 = vsub.f32 %v3174, %v3522
        %v3668 = vsub.f32 %v3177, %v3524
        %v3669 = vsub.f32 %v3239, %v3526
        %v3670 = vsub.f32 %v3242, %v3528
        %v3671 = vsub.f32 %v3247, %v3530
        %v3672 = vsub.f32 %v3250, %v3532
        %v3673 = vsub.f32 %v3255, %v3534
        %v3674 = vsub.f32 %v3258, %v3536
        %v3675 = vsub.f32 %v3263, %v3538
        %v3676 = vsub.f32 %v3266, %v3540
        %v3677 = vsub.f32 %v3271, %v3542
        %v3678 = vsub.f32 %v3274, %v3544
        %v3679 = vsub.f32 %v3279, %v3546
        %v3680 = vsub.f32 %v3282, %v3548
        %v3681 = vsub.f32 %v3287, %v3550
        %v3682 = vsub.f32 %v3290, %v3552
        %v3683 = vsub.f32 %v3295, %v3554
        %v3684 = vsub.f32 %v3298, %v3556
        %v3685 = vmul.f32 %v3557, 1.442695
        %v3686 = vpow.pop %v3685
        %v3687 = vmul.f32 %v3558, 1.442695
        %v3688 = vpow.pop %v3687
        %v3689 = vmul.f32 %v3559, 1.442695
        %v3690 = vpow.pop %v3689
        %v3691 = vmul.f32 %v3560, 1.442695
        %v3692 = vpow.pop %v3691
        %v3693 = vmul.f32 %v3561, 1.442695
        %v3694 = vpow.pop %v3693
        %v3695 = vmul.f32 %v3562, 1.442695
        %v3696 = vpow.pop %v3695
        %v3697 = vmul.f32 %v3563, 1.442695
        %v3698 = vpow.pop %v3697
        %v3699 = vmul.f32 %v3564, 1.442695
        %v3700 = vpow.pop %v3699
        %v3701 = vmul.f32 %v3565, 1.442695
        %v3702 = vpow.pop %v3701
        %v3703 = vmul.f32 %v3566, 1.442695
        %v3704 = vpow.pop %v3703
        %v3705 = vmul.f32 %v3567, 1.442695
        %v3706 = vpow.pop %v3705
        %v3707 = vmul.f32 %v3568, 1.442695
        %v3708 = vpow.pop %v3707
        %v3709 = vmul.f32 %v3569, 1.442695
        %v3710 = vpow.pop %v3709
        %v3711 = vmul.f32 %v3570, 1.442695
        %v3712 = vpow.pop %v3711
        %v3713 = vmul.f32 %v3571, 1.442695
        %v3714 = vpow.pop %v3713
        %v3715 = vmul.f32 %v3572, 1.442695
        %v3716 = vpow.pop %v3715
        %v3717 = vmul.f32 %v3573, 1.442695
        %v3718 = vpow.pop %v3717
        %v3719 = vmul.f32 %v3574, 1.442695
        %v3720 = vpow.pop %v3719
        %v3721 = vmul.f32 %v3575, 1.442695
        %v3722 = vpow.pop %v3721
        %v3723 = vmul.f32 %v3576, 1.442695
        %v3724 = vpow.pop %v3723
        %v3725 = vmul.f32 %v3577, 1.442695
        %v3726 = vpow.pop %v3725
        %v3727 = vmul.f32 %v3578, 1.442695
        %v3728 = vpow.pop %v3727
        %v3729 = vmul.f32 %v3579, 1.442695
        %v3730 = vpow.pop %v3729
        %v3731 = vmul.f32 %v3580, 1.442695
        %v3732 = vpow.pop %v3731
        %v3733 = vmul.f32 %v3581, 1.442695
        %v3734 = vpow.pop %v3733
        %v3735 = vmul.f32 %v3582, 1.442695
        %v3736 = vpow.pop %v3735
        %v3737 = vmul.f32 %v3583, 1.442695
        %v3738 = vpow.pop %v3737
        %v3739 = vmul.f32 %v3584, 1.442695
        %v3740 = vpow.pop %v3739
        %v3741 = vmul.f32 %v3585, 1.442695
        %v3742 = vpow.pop %v3741
        %v3743 = vmul.f32 %v3586, 1.442695
        %v3744 = vpow.pop %v3743
        %v3745 = vmul.f32 %v3587, 1.442695
        %v3746 = vpow.pop %v3745
        %v3747 = vmul.f32 %v3588, 1.442695
        %v3748 = vpow.pop %v3747
        %v3749 = vmul.f32 %v3589, 1.442695
        %v3750 = vpow.pop %v3749
        %v3751 = vmul.f32 %v3590, 1.442695
        %v3752 = vpow.pop %v3751
        %v3753 = vmul.f32 %v3591, 1.442695
        %v3754 = vpow.pop %v3753
        %v3755 = vmul.f32 %v3592, 1.442695
        %v3756 = vpow.pop %v3755
        %v3757 = vmul.f32 %v3593, 1.442695
        %v3758 = vpow.pop %v3757
        %v3759 = vmul.f32 %v3594, 1.442695
        %v3760 = vpow.pop %v3759
        %v3761 = vmul.f32 %v3595, 1.442695
        %v3762 = vpow.pop %v3761
        %v3763 = vmul.f32 %v3596, 1.442695
        %v3764 = vpow.pop %v3763
        %v3765 = vmul.f32 %v3597, 1.442695
        %v3766 = vpow.pop %v3765
        %v3767 = vmul.f32 %v3598, 1.442695
        %v3768 = vpow.pop %v3767
        %v3769 = vmul.f32 %v3599, 1.442695
        %v3770 = vpow.pop %v3769
        %v3771 = vmul.f32 %v3600, 1.442695
        %v3772 = vpow.pop %v3771
        %v3773 = vmul.f32 %v3601, 1.442695
        %v3774 = vpow.pop %v3773
        %v3775 = vmul.f32 %v3602, 1.442695
        %v3776 = vpow.pop %v3775
        %v3777 = vmul.f32 %v3603, 1.442695
        %v3778 = vpow.pop %v3777
        %v3779 = vmul.f32 %v3604, 1.442695
        %v3780 = vpow.pop %v3779
        %v3781 = vmul.f32 %v3605, 1.442695
        %v3782 = vpow.pop %v3781
        %v3783 = vmul.f32 %v3606, 1.442695
        %v3784 = vpow.pop %v3783
        %v3785 = vmul.f32 %v3607, 1.442695
        %v3786 = vpow.pop %v3785
        %v3787 = vmul.f32 %v3608, 1.442695
        %v3788 = vpow.pop %v3787
        %v3789 = vmul.f32 %v3609, 1.442695
        %v3790 = vpow.pop %v3789
        %v3791 = vmul.f32 %v3610, 1.442695
        %v3792 = vpow.pop %v3791
        %v3793 = vmul.f32 %v3611, 1.442695
        %v3794 = vpow.pop %v3793
        %v3795 = vmul.f32 %v3612, 1.442695
        %v3796 = vpow.pop %v3795
        %v3797 = vmul.f32 %v3613, 1.442695
        %v3798 = vpow.pop %v3797
        %v3799 = vmul.f32 %v3614, 1.442695
        %v3800 = vpow.pop %v3799
        %v3801 = vmul.f32 %v3615, 1.442695
        %v3802 = vpow.pop %v3801
        %v3803 = vmul.f32 %v3616, 1.442695
        %v3804 = vpow.pop %v3803
        %v3805 = vmul.f32 %v3617, 1.442695
        %v3806 = vpow.pop %v3805
        %v3807 = vmul.f32 %v3618, 1.442695
        %v3808 = vpow.pop %v3807
        %v3809 = vmul.f32 %v3619, 1.442695
        %v3810 = vpow.pop %v3809
        %v3811 = vmul.f32 %v3620, 1.442695
        %v3812 = vpow.pop %v3811
        %v3813 = vmul.f32 %v3621, 1.442695
        %v3814 = vpow.pop %v3813
        %v3815 = vmul.f32 %v3622, 1.442695
        %v3816 = vpow.pop %v3815
        %v3817 = vmul.f32 %v3623, 1.442695
        %v3818 = vpow.pop %v3817
        %v3819 = vmul.f32 %v3624, 1.442695
        %v3820 = vpow.pop %v3819
        %v3821 = vmul.f32 %v3625, 1.442695
        %v3822 = vpow.pop %v3821
        %v3823 = vmul.f32 %v3626, 1.442695
        %v3824 = vpow.pop %v3823
        %v3825 = vmul.f32 %v3627, 1.442695
        %v3826 = vpow.pop %v3825
        %v3827 = vmul.f32 %v3628, 1.442695
        %v3828 = vpow.pop %v3827
        %v3829 = vmul.f32 %v3629, 1.442695
        %v3830 = vpow.pop %v3829
        %v3831 = vmul.f32 %v3630, 1.442695
        %v3832 = vpow.pop %v3831
        %v3833 = vmul.f32 %v3631, 1.442695
        %v3834 = vpow.pop %v3833
        %v3835 = vmul.f32 %v3632, 1.442695
        %v3836 = vpow.pop %v3835
        %v3837 = vmul.f32 %v3633, 1.442695
        %v3838 = vpow.pop %v3837
        %v3839 = vmul.f32 %v3634, 1.442695
        %v3840 = vpow.pop %v3839
        %v3841 = vmul.f32 %v3635, 1.442695
        %v3842 = vpow.pop %v3841
        %v3843 = vmul.f32 %v3636, 1.442695
        %v3844 = vpow.pop %v3843
        %v3845 = vmul.f32 %v3637, 1.442695
        %v3846 = vpow.pop %v3845
        %v3847 = vmul.f32 %v3638, 1.442695
        %v3848 = vpow.pop %v3847
        %v3849 = vmul.f32 %v3639, 1.442695
        %v3850 = vpow.pop %v3849
        %v3851 = vmul.f32 %v3640, 1.442695
        %v3852 = vpow.pop %v3851
        %v3853 = vmul.f32 %v3641, 1.442695
        %v3854 = vpow.pop %v3853
        %v3855 = vmul.f32 %v3642, 1.442695
        %v3856 = vpow.pop %v3855
        %v3857 = vmul.f32 %v3643, 1.442695
        %v3858 = vpow.pop %v3857
        %v3859 = vmul.f32 %v3644, 1.442695
        %v3860 = vpow.pop %v3859
        %v3861 = vmul.f32 %v3645, 1.442695
        %v3862 = vpow.pop %v3861
        %v3863 = vmul.f32 %v3646, 1.442695
        %v3864 = vpow.pop %v3863
        %v3865 = vmul.f32 %v3647, 1.442695
        %v3866 = vpow.pop %v3865
        %v3867 = vmul.f32 %v3648, 1.442695
        %v3868 = vpow.pop %v3867
        %v3869 = vmul.f32 %v3649, 1.442695
        %v3870 = vpow.pop %v3869
        %v3871 = vmul.f32 %v3650, 1.442695
        %v3872 = vpow.pop %v3871
        %v3873 = vmul.f32 %v3651, 1.442695
        %v3874 = vpow.pop %v3873
        %v3875 = vmul.f32 %v3652, 1.442695
        %v3876 = vpow.pop %v3875
        %v3877 = vmul.f32 %v3653, 1.442695
        %v3878 = vpow.pop %v3877
        %v3879 = vmul.f32 %v3654, 1.442695
        %v3880 = vpow.pop %v3879
        %v3881 = vmul.f32 %v3655, 1.442695
        %v3882 = vpow.pop %v3881
        %v3883 = vmul.f32 %v3656, 1.442695
        %v3884 = vpow.pop %v3883
        %v3885 = vmul.f32 %v3657, 1.442695
        %v3886 = vpow.pop %v3885
        %v3887 = vmul.f32 %v3658, 1.442695
        %v3888 = vpow.pop %v3887
        %v3889 = vmul.f32 %v3659, 1.442695
        %v3890 = vpow.pop %v3889
        %v3891 = vmul.f32 %v3660, 1.442695
        %v3892 = vpow.pop %v3891
        %v3893 = vmul.f32 %v3661, 1.442695
        %v3894 = vpow.pop %v3893
        %v3895 = vmul.f32 %v3662, 1.442695
        %v3896 = vpow.pop %v3895
        %v3897 = vmul.f32 %v3663, 1.442695
        %v3898 = vpow.pop %v3897
        %v3899 = vmul.f32 %v3664, 1.442695
        %v3900 = vpow.pop %v3899
        %v3901 = vmul.f32 %v3665, 1.442695
        %v3902 = vpow.pop %v3901
        %v3903 = vmul.f32 %v3666, 1.442695
        %v3904 = vpow.pop %v3903
        %v3905 = vmul.f32 %v3667, 1.442695
        %v3906 = vpow.pop %v3905
        %v3907 = vmul.f32 %v3668, 1.442695
        %v3908 = vpow.pop %v3907
        %v3909 = vmul.f32 %v3669, 1.442695
        %v3910 = vpow.pop %v3909
        %v3911 = vmul.f32 %v3670, 1.442695
        %v3912 = vpow.pop %v3911
        %v3913 = vmul.f32 %v3671, 1.442695
        %v3914 = vpow.pop %v3913
        %v3915 = vmul.f32 %v3672, 1.442695
        %v3916 = vpow.pop %v3915
        %v3917 = vmul.f32 %v3673, 1.442695
        %v3918 = vpow.pop %v3917
        %v3919 = vmul.f32 %v3674, 1.442695
        %v3920 = vpow.pop %v3919
        %v3921 = vmul.f32 %v3675, 1.442695
        %v3922 = vpow.pop %v3921
        %v3923 = vmul.f32 %v3676, 1.442695
        %v3924 = vpow.pop %v3923
        %v3925 = vmul.f32 %v3677, 1.442695
        %v3926 = vpow.pop %v3925
        %v3927 = vmul.f32 %v3678, 1.442695
        %v3928 = vpow.pop %v3927
        %v3929 = vmul.f32 %v3679, 1.442695
        %v3930 = vpow.pop %v3929
        %v3931 = vmul.f32 %v3680, 1.442695
        %v3932 = vpow.pop %v3931
        %v3933 = vmul.f32 %v3681, 1.442695
        %v3934 = vpow.pop %v3933
        %v3935 = vmul.f32 %v3682, 1.442695
        %v3936 = vpow.pop %v3935
        %v3937 = vmul.f32 %v3683, 1.442695
        %v3938 = vpow.pop %v3937
        %v3939 = vmul.f32 %v3684, 1.442695
        %v3940 = vpow.pop %v3939
        %3941 = vadd.xlane.f32.xlu0 %v3686
        %v3942 = vpop.xlane.xlu0 %3941
        %3943 = vadd.xlane.f32.xlu0 %v3688
        %v3944 = vpop.xlane.xlu0 %3943
        %3945 = vadd.xlane.f32.xlu0 %v3690
        %v3946 = vpop.xlane.xlu0 %3945
        %3947 = vadd.xlane.f32.xlu0 %v3692
        %v3948 = vpop.xlane.xlu0 %3947
        %3949 = vadd.xlane.f32.xlu0 %v3694
        %v3950 = vpop.xlane.xlu0 %3949
        %3951 = vadd.xlane.f32.xlu0 %v3696
        %v3952 = vpop.xlane.xlu0 %3951
        %3953 = vadd.xlane.f32.xlu0 %v3698
        %v3954 = vpop.xlane.xlu0 %3953
        %3955 = vadd.xlane.f32.xlu0 %v3700
        %v3956 = vpop.xlane.xlu0 %3955
        %3957 = vadd.xlane.f32.xlu0 %v3702
        %v3958 = vpop.xlane.xlu0 %3957
        %3959 = vadd.xlane.f32.xlu0 %v3704
        %v3960 = vpop.xlane.xlu0 %3959
        %3961 = vadd.xlane.f32.xlu0 %v3706
        %v3962 = vpop.xlane.xlu0 %3961
        %3963 = vadd.xlane.f32.xlu0 %v3708
        %v3964 = vpop.xlane.xlu0 %3963
        %3965 = vadd.xlane.f32.xlu0 %v3710
        %v3966 = vpop.xlane.xlu0 %3965
        %3967 = vadd.xlane.f32.xlu0 %v3712
        %v3968 = vpop.xlane.xlu0 %3967
        %3969 = vadd.xlane.f32.xlu0 %v3714
        %v3970 = vpop.xlane.xlu0 %3969
        %3971 = vadd.xlane.f32.xlu0 %v3716
        %v3972 = vpop.xlane.xlu0 %3971
        %3973 = vadd.xlane.f32.xlu0 %v3718
        %v3974 = vpop.xlane.xlu0 %3973
        %3975 = vadd.xlane.f32.xlu0 %v3720
        %v3976 = vpop.xlane.xlu0 %3975
        %3977 = vadd.xlane.f32.xlu0 %v3722
        %v3978 = vpop.xlane.xlu0 %3977
        %3979 = vadd.xlane.f32.xlu0 %v3724
        %v3980 = vpop.xlane.xlu0 %3979
        %3981 = vadd.xlane.f32.xlu0 %v3726
        %v3982 = vpop.xlane.xlu0 %3981
        %3983 = vadd.xlane.f32.xlu0 %v3728
        %v3984 = vpop.xlane.xlu0 %3983
        %3985 = vadd.xlane.f32.xlu0 %v3730
        %v3986 = vpop.xlane.xlu0 %3985
        %3987 = vadd.xlane.f32.xlu0 %v3732
        %v3988 = vpop.xlane.xlu0 %3987
        %3989 = vadd.xlane.f32.xlu0 %v3734
        %v3990 = vpop.xlane.xlu0 %3989
        %3991 = vadd.xlane.f32.xlu0 %v3736
        %v3992 = vpop.xlane.xlu0 %3991
        %3993 = vadd.xlane.f32.xlu0 %v3738
        %v3994 = vpop.xlane.xlu0 %3993
        %3995 = vadd.xlane.f32.xlu0 %v3740
        %v3996 = vpop.xlane.xlu0 %3995
        %3997 = vadd.xlane.f32.xlu0 %v3742
        %v3998 = vpop.xlane.xlu0 %3997
        %3999 = vadd.xlane.f32.xlu0 %v3744
        %v4000 = vpop.xlane.xlu0 %3999
        %4001 = vadd.xlane.f32.xlu0 %v3746
        %v4002 = vpop.xlane.xlu0 %4001
        %4003 = vadd.xlane.f32.xlu0 %v3748
        %v4004 = vpop.xlane.xlu0 %4003
        %4005 = vadd.xlane.f32.xlu0 %v3750
        %v4006 = vpop.xlane.xlu0 %4005
        %4007 = vadd.xlane.f32.xlu0 %v3752
        %v4008 = vpop.xlane.xlu0 %4007
        %4009 = vadd.xlane.f32.xlu0 %v3754
        %v4010 = vpop.xlane.xlu0 %4009
        %4011 = vadd.xlane.f32.xlu0 %v3756
        %v4012 = vpop.xlane.xlu0 %4011
        %4013 = vadd.xlane.f32.xlu0 %v3758
        %v4014 = vpop.xlane.xlu0 %4013
        %4015 = vadd.xlane.f32.xlu0 %v3760
        %v4016 = vpop.xlane.xlu0 %4015
        %4017 = vadd.xlane.f32.xlu0 %v3762
        %v4018 = vpop.xlane.xlu0 %4017
        %4019 = vadd.xlane.f32.xlu0 %v3764
        %v4020 = vpop.xlane.xlu0 %4019
        %4021 = vadd.xlane.f32.xlu0 %v3766
        %v4022 = vpop.xlane.xlu0 %4021
        %4023 = vadd.xlane.f32.xlu0 %v3768
        %v4024 = vpop.xlane.xlu0 %4023
        %4025 = vadd.xlane.f32.xlu0 %v3770
        %v4026 = vpop.xlane.xlu0 %4025
        %4027 = vadd.xlane.f32.xlu0 %v3772
        %v4028 = vpop.xlane.xlu0 %4027
        %4029 = vadd.xlane.f32.xlu0 %v3774
        %v4030 = vpop.xlane.xlu0 %4029
        %4031 = vadd.xlane.f32.xlu0 %v3776
        %v4032 = vpop.xlane.xlu0 %4031
        %4033 = vadd.xlane.f32.xlu0 %v3778
        %v4034 = vpop.xlane.xlu0 %4033
        %4035 = vadd.xlane.f32.xlu0 %v3780
        %v4036 = vpop.xlane.xlu0 %4035
        %4037 = vadd.xlane.f32.xlu0 %v3782
        %v4038 = vpop.xlane.xlu0 %4037
        %4039 = vadd.xlane.f32.xlu0 %v3784
        %v4040 = vpop.xlane.xlu0 %4039
        %4041 = vadd.xlane.f32.xlu0 %v3786
        %v4042 = vpop.xlane.xlu0 %4041
        %4043 = vadd.xlane.f32.xlu0 %v3788
        %v4044 = vpop.xlane.xlu0 %4043
        %4045 = vadd.xlane.f32.xlu0 %v3790
        %v4046 = vpop.xlane.xlu0 %4045
        %4047 = vadd.xlane.f32.xlu0 %v3792
        %v4048 = vpop.xlane.xlu0 %4047
        %4049 = vadd.xlane.f32.xlu0 %v3794
        %v4050 = vpop.xlane.xlu0 %4049
        %4051 = vadd.xlane.f32.xlu0 %v3796
        %v4052 = vpop.xlane.xlu0 %4051
        %4053 = vadd.xlane.f32.xlu0 %v3798
        %v4054 = vpop.xlane.xlu0 %4053
        %4055 = vadd.xlane.f32.xlu0 %v3800
        %v4056 = vpop.xlane.xlu0 %4055
        %4057 = vadd.xlane.f32.xlu0 %v3802
        %v4058 = vpop.xlane.xlu0 %4057
        %4059 = vadd.xlane.f32.xlu0 %v3804
        %v4060 = vpop.xlane.xlu0 %4059
        %4061 = vadd.xlane.f32.xlu0 %v3806
        %v4062 = vpop.xlane.xlu0 %4061
        %4063 = vadd.xlane.f32.xlu0 %v3808
        %v4064 = vpop.xlane.xlu0 %4063
        %4065 = vadd.xlane.f32.xlu0 %v3810
        %v4066 = vpop.xlane.xlu0 %4065
        %4067 = vadd.xlane.f32.xlu0 %v3812
        %v4068 = vpop.xlane.xlu0 %4067
        %4069 = vadd.xlane.f32.xlu0 %v3814
        %v4070 = vpop.xlane.xlu0 %4069
        %4071 = vadd.xlane.f32.xlu0 %v3816
        %v4072 = vpop.xlane.xlu0 %4071
        %4073 = vadd.xlane.f32.xlu0 %v3818
        %v4074 = vpop.xlane.xlu0 %4073
        %4075 = vadd.xlane.f32.xlu0 %v3820
        %v4076 = vpop.xlane.xlu0 %4075
        %4077 = vadd.xlane.f32.xlu0 %v3822
        %v4078 = vpop.xlane.xlu0 %4077
        %4079 = vadd.xlane.f32.xlu0 %v3824
        %v4080 = vpop.xlane.xlu0 %4079
        %4081 = vadd.xlane.f32.xlu0 %v3826
        %v4082 = vpop.xlane.xlu0 %4081
        %4083 = vadd.xlane.f32.xlu0 %v3828
        %v4084 = vpop.xlane.xlu0 %4083
        %4085 = vadd.xlane.f32.xlu0 %v3830
        %v4086 = vpop.xlane.xlu0 %4085
        %4087 = vadd.xlane.f32.xlu0 %v3832
        %v4088 = vpop.xlane.xlu0 %4087
        %4089 = vadd.xlane.f32.xlu0 %v3834
        %v4090 = vpop.xlane.xlu0 %4089
        %4091 = vadd.xlane.f32.xlu0 %v3836
        %v4092 = vpop.xlane.xlu0 %4091
        %4093 = vadd.xlane.f32.xlu0 %v3838
        %v4094 = vpop.xlane.xlu0 %4093
        %4095 = vadd.xlane.f32.xlu0 %v3840
        %v4096 = vpop.xlane.xlu0 %4095
        %4097 = vadd.xlane.f32.xlu0 %v3842
        %v4098 = vpop.xlane.xlu0 %4097
        %4099 = vadd.xlane.f32.xlu0 %v3844
        %v4100 = vpop.xlane.xlu0 %4099
        %4101 = vadd.xlane.f32.xlu0 %v3846
        %v4102 = vpop.xlane.xlu0 %4101
        %4103 = vadd.xlane.f32.xlu0 %v3848
        %v4104 = vpop.xlane.xlu0 %4103
        %4105 = vadd.xlane.f32.xlu0 %v3850
        %v4106 = vpop.xlane.xlu0 %4105
        %4107 = vadd.xlane.f32.xlu0 %v3852
        %v4108 = vpop.xlane.xlu0 %4107
        %4109 = vadd.xlane.f32.xlu0 %v3854
        %v4110 = vpop.xlane.xlu0 %4109
        %4111 = vadd.xlane.f32.xlu0 %v3856
        %v4112 = vpop.xlane.xlu0 %4111
        %4113 = vadd.xlane.f32.xlu0 %v3858
        %v4114 = vpop.xlane.xlu0 %4113
        %4115 = vadd.xlane.f32.xlu0 %v3860
        %v4116 = vpop.xlane.xlu0 %4115
        %4117 = vadd.xlane.f32.xlu0 %v3862
        %v4118 = vpop.xlane.xlu0 %4117
        %4119 = vadd.xlane.f32.xlu0 %v3864
        %v4120 = vpop.xlane.xlu0 %4119
        %4121 = vadd.xlane.f32.xlu0 %v3866
        %v4122 = vpop.xlane.xlu0 %4121
        %4123 = vadd.xlane.f32.xlu0 %v3868
        %v4124 = vpop.xlane.xlu0 %4123
        %4125 = vadd.xlane.f32.xlu0 %v3870
        %v4126 = vpop.xlane.xlu0 %4125
        %4127 = vadd.xlane.f32.xlu0 %v3872
        %v4128 = vpop.xlane.xlu0 %4127
        %4129 = vadd.xlane.f32.xlu0 %v3874
        %v4130 = vpop.xlane.xlu0 %4129
        %4131 = vadd.xlane.f32.xlu0 %v3876
        %v4132 = vpop.xlane.xlu0 %4131
        %4133 = vadd.xlane.f32.xlu0 %v3878
        %v4134 = vpop.xlane.xlu0 %4133
        %4135 = vadd.xlane.f32.xlu0 %v3880
        %v4136 = vpop.xlane.xlu0 %4135
        %4137 = vadd.xlane.f32.xlu0 %v3882
        %v4138 = vpop.xlane.xlu0 %4137
        %4139 = vadd.xlane.f32.xlu0 %v3884
        %v4140 = vpop.xlane.xlu0 %4139
        %4141 = vadd.xlane.f32.xlu0 %v3886
        %v4142 = vpop.xlane.xlu0 %4141
        %4143 = vadd.xlane.f32.xlu0 %v3888
        %v4144 = vpop.xlane.xlu0 %4143
        %4145 = vadd.xlane.f32.xlu0 %v3890
        %v4146 = vpop.xlane.xlu0 %4145
        %4147 = vadd.xlane.f32.xlu0 %v3892
        %v4148 = vpop.xlane.xlu0 %4147
        %4149 = vadd.xlane.f32.xlu0 %v3894
        %v4150 = vpop.xlane.xlu0 %4149
        %4151 = vadd.xlane.f32.xlu0 %v3896
        %v4152 = vpop.xlane.xlu0 %4151
        %4153 = vadd.xlane.f32.xlu0 %v3898
        %v4154 = vpop.xlane.xlu0 %4153
        %4155 = vadd.xlane.f32.xlu0 %v3900
        %v4156 = vpop.xlane.xlu0 %4155
        %4157 = vadd.xlane.f32.xlu0 %v3902
        %v4158 = vpop.xlane.xlu0 %4157
        %4159 = vadd.xlane.f32.xlu0 %v3904
        %v4160 = vpop.xlane.xlu0 %4159
        %4161 = vadd.xlane.f32.xlu0 %v3906
        %v4162 = vpop.xlane.xlu0 %4161
        %4163 = vadd.xlane.f32.xlu0 %v3908
        %v4164 = vpop.xlane.xlu0 %4163
        %4165 = vadd.xlane.f32.xlu0 %v3910
        %v4166 = vpop.xlane.xlu0 %4165
        %4167 = vadd.xlane.f32.xlu0 %v3912
        %v4168 = vpop.xlane.xlu0 %4167
        %4169 = vadd.xlane.f32.xlu0 %v3914
        %v4170 = vpop.xlane.xlu0 %4169
        %4171 = vadd.xlane.f32.xlu0 %v3916
        %v4172 = vpop.xlane.xlu0 %4171
        %4173 = vadd.xlane.f32.xlu0 %v3918
        %v4174 = vpop.xlane.xlu0 %4173
        %4175 = vadd.xlane.f32.xlu0 %v3920
        %v4176 = vpop.xlane.xlu0 %4175
        %4177 = vadd.xlane.f32.xlu0 %v3922
        %v4178 = vpop.xlane.xlu0 %4177
        %4179 = vadd.xlane.f32.xlu0 %v3924
        %v4180 = vpop.xlane.xlu0 %4179
        %4181 = vadd.xlane.f32.xlu0 %v3926
        %v4182 = vpop.xlane.xlu0 %4181
        %4183 = vadd.xlane.f32.xlu0 %v3928
        %v4184 = vpop.xlane.xlu0 %4183
        %4185 = vadd.xlane.f32.xlu0 %v3930
        %v4186 = vpop.xlane.xlu0 %4185
        %4187 = vadd.xlane.f32.xlu0 %v3932
        %v4188 = vpop.xlane.xlu0 %4187
        %4189 = vadd.xlane.f32.xlu0 %v3934
        %v4190 = vpop.xlane.xlu0 %4189
        %4191 = vadd.xlane.f32.xlu0 %v3936
        %v4192 = vpop.xlane.xlu0 %4191
        %4193 = vadd.xlane.f32.xlu0 %v3938
        %v4194 = vpop.xlane.xlu0 %4193
        %4195 = vadd.xlane.f32.xlu0 %v3940
        %v4196 = vpop.xlane.xlu0 %4195
        %v4197 = vrcp.pop %v3942
        %v4198 = vrcp.pop %v3944
        %v4199 = vrcp.pop %v3946
        %v4200 = vrcp.pop %v3948
        %v4201 = vrcp.pop %v3950
        %v4202 = vrcp.pop %v3952
        %v4203 = vrcp.pop %v3954
        %v4204 = vrcp.pop %v3956
        %v4205 = vrcp.pop %v3958
        %v4206 = vrcp.pop %v3960
        %v4207 = vrcp.pop %v3962
        %v4208 = vrcp.pop %v3964
        %v4209 = vrcp.pop %v3966
        %v4210 = vrcp.pop %v3968
        %v4211 = vrcp.pop %v3970
        %v4212 = vrcp.pop %v3972
        %v4213 = vrcp.pop %v3974
        %v4214 = vrcp.pop %v3976
        %v4215 = vrcp.pop %v3978
        %v4216 = vrcp.pop %v3980
        %v4217 = vrcp.pop %v3982
        %v4218 = vrcp.pop %v3984
        %v4219 = vrcp.pop %v3986
        %v4220 = vrcp.pop %v3988
        %v4221 = vrcp.pop %v3990
        %v4222 = vrcp.pop %v3992
        %v4223 = vrcp.pop %v3994
        %v4224 = vrcp.pop %v3996
        %v4225 = vrcp.pop %v3998
        %v4226 = vrcp.pop %v4000
        %v4227 = vrcp.pop %v4002
        %v4228 = vrcp.pop %v4004
        %v4229 = vrcp.pop %v4006
        %v4230 = vrcp.pop %v4008
        %v4231 = vrcp.pop %v4010
        %v4232 = vrcp.pop %v4012
        %v4233 = vrcp.pop %v4014
        %v4234 = vrcp.pop %v4016
        %v4235 = vrcp.pop %v4018
        %v4236 = vrcp.pop %v4020
        %v4237 = vrcp.pop %v4022
        %v4238 = vrcp.pop %v4024
        %v4239 = vrcp.pop %v4026
        %v4240 = vrcp.pop %v4028
        %v4241 = vrcp.pop %v4030
        %v4242 = vrcp.pop %v4032
        %v4243 = vrcp.pop %v4034
        %v4244 = vrcp.pop %v4036
        %v4245 = vrcp.pop %v4038
        %v4246 = vrcp.pop %v4040
        %v4247 = vrcp.pop %v4042
        %v4248 = vrcp.pop %v4044
        %v4249 = vrcp.pop %v4046
        %v4250 = vrcp.pop %v4048
        %v4251 = vrcp.pop %v4050
        %v4252 = vrcp.pop %v4052
        %v4253 = vrcp.pop %v4054
        %v4254 = vrcp.pop %v4056
        %v4255 = vrcp.pop %v4058
        %v4256 = vrcp.pop %v4060
        %v4257 = vrcp.pop %v4062
        %v4258 = vrcp.pop %v4064
        %v4259 = vrcp.pop %v4066
        %v4260 = vrcp.pop %v4068
        %v4261 = vrcp.pop %v4070
        %v4262 = vrcp.pop %v4072
        %v4263 = vrcp.pop %v4074
        %v4264 = vrcp.pop %v4076
        %v4265 = vrcp.pop %v4078
        %v4266 = vrcp.pop %v4080
        %v4267 = vrcp.pop %v4082
        %v4268 = vrcp.pop %v4084
        %v4269 = vrcp.pop %v4086
        %v4270 = vrcp.pop %v4088
        %v4271 = vrcp.pop %v4090
        %v4272 = vrcp.pop %v4092
        %v4273 = vrcp.pop %v4094
        %v4274 = vrcp.pop %v4096
        %v4275 = vrcp.pop %v4098
        %v4276 = vrcp.pop %v4100
        %v4277 = vrcp.pop %v4102
        %v4278 = vrcp.pop %v4104
        %v4279 = vrcp.pop %v4106
        %v4280 = vrcp.pop %v4108
        %v4281 = vrcp.pop %v4110
        %v4282 = vrcp.pop %v4112
        %v4283 = vrcp.pop %v4114
        %v4284 = vrcp.pop %v4116
        %v4285 = vrcp.pop %v4118
        %v4286 = vrcp.pop %v4120
        %v4287 = vrcp.pop %v4122
        %v4288 = vrcp.pop %v4124
        %v4289 = vrcp.pop %v4126
        %v4290 = vrcp.pop %v4128
        %v4291 = vrcp.pop %v4130
        %v4292 = vrcp.pop %v4132
        %v4293 = vrcp.pop %v4134
        %v4294 = vrcp.pop %v4136
        %v4295 = vrcp.pop %v4138
        %v4296 = vrcp.pop %v4140
        %v4297 = vrcp.pop %v4142
        %v4298 = vrcp.pop %v4144
        %v4299 = vrcp.pop %v4146
        %v4300 = vrcp.pop %v4148
        %v4301 = vrcp.pop %v4150
        %v4302 = vrcp.pop %v4152
        %v4303 = vrcp.pop %v4154
        %v4304 = vrcp.pop %v4156
        %v4305 = vrcp.pop %v4158
        %v4306 = vrcp.pop %v4160
        %v4307 = vrcp.pop %v4162
        %v4308 = vrcp.pop %v4164
        %v4309 = vrcp.pop %v4166
        %v4310 = vrcp.pop %v4168
        %v4311 = vrcp.pop %v4170
        %v4312 = vrcp.pop %v4172
        %v4313 = vrcp.pop %v4174
        %v4314 = vrcp.pop %v4176
        %v4315 = vrcp.pop %v4178
        %v4316 = vrcp.pop %v4180
        %v4317 = vrcp.pop %v4182
        %v4318 = vrcp.pop %v4184
        %v4319 = vrcp.pop %v4186
        %v4320 = vrcp.pop %v4188
        %v4321 = vrcp.pop %v4190
        %v4322 = vrcp.pop %v4192
        %v4323 = vrcp.pop %v4194
        %v4324 = vrcp.pop %v4196
        %v4325 = vmul.f32 %v3686, %v4197
        %v4326 = vmul.f32 %v3688, %v4198
        %v4327 = vmul.f32 %v3690, %v4199
        %v4328 = vmul.f32 %v3692, %v4200
        %v4329 = vmul.f32 %v3694, %v4201
        %v4330 = vmul.f32 %v3696, %v4202
        %v4331 = vmul.f32 %v3698, %v4203
        %v4332 = vmul.f32 %v3700, %v4204
        %v4333 = vmul.f32 %v3702, %v4205
        %v4334 = vmul.f32 %v3704, %v4206
        %v4335 = vmul.f32 %v3706, %v4207
        %v4336 = vmul.f32 %v3708, %v4208
        %v4337 = vmul.f32 %v3710, %v4209
        %v4338 = vmul.f32 %v3712, %v4210
        %v4339 = vmul.f32 %v3714, %v4211
        %v4340 = vmul.f32 %v3716, %v4212
        %v4341 = vmul.f32 %v3718, %v4213
        %v4342 = vmul.f32 %v3720, %v4214
        %v4343 = vmul.f32 %v3722, %v4215
        %v4344 = vmul.f32 %v3724, %v4216
        %v4345 = vmul.f32 %v3726, %v4217
        %v4346 = vmul.f32 %v3728, %v4218
        %v4347 = vmul.f32 %v3730, %v4219
        %v4348 = vmul.f32 %v3732, %v4220
        %v4349 = vmul.f32 %v3734, %v4221
        %v4350 = vmul.f32 %v3736, %v4222
        %v4351 = vmul.f32 %v3738, %v4223
        %v4352 = vmul.f32 %v3740, %v4224
        %v4353 = vmul.f32 %v3742, %v4225
        %v4354 = vmul.f32 %v3744, %v4226
        %v4355 = vmul.f32 %v3746, %v4227
        %v4356 = vmul.f32 %v3748, %v4228
        %v4357 = vmul.f32 %v3750, %v4229
        %v4358 = vmul.f32 %v3752, %v4230
        %v4359 = vmul.f32 %v3754, %v4231
        %v4360 = vmul.f32 %v3756, %v4232
        %v4361 = vmul.f32 %v3758, %v4233
        %v4362 = vmul.f32 %v3760, %v4234
        %v4363 = vmul.f32 %v3762, %v4235
        %v4364 = vmul.f32 %v3764, %v4236
        %v4365 = vmul.f32 %v3766, %v4237
        %v4366 = vmul.f32 %v3768, %v4238
        %v4367 = vmul.f32 %v3770, %v4239
        %v4368 = vmul.f32 %v3772, %v4240
        %v4369 = vmul.f32 %v3774, %v4241
        %v4370 = vmul.f32 %v3776, %v4242
        %v4371 = vmul.f32 %v3778, %v4243
        %v4372 = vmul.f32 %v3780, %v4244
        %v4373 = vmul.f32 %v3782, %v4245
        %v4374 = vmul.f32 %v3784, %v4246
        %v4375 = vmul.f32 %v3786, %v4247
        %v4376 = vmul.f32 %v3788, %v4248
        %v4377 = vmul.f32 %v3790, %v4249
        %v4378 = vmul.f32 %v3792, %v4250
        %v4379 = vmul.f32 %v3794, %v4251
        %v4380 = vmul.f32 %v3796, %v4252
        %v4381 = vmul.f32 %v3798, %v4253
        %v4382 = vmul.f32 %v3800, %v4254
        %v4383 = vmul.f32 %v3802, %v4255
        %v4384 = vmul.f32 %v3804, %v4256
        %v4385 = vmul.f32 %v3806, %v4257
        %v4386 = vmul.f32 %v3808, %v4258
        %v4387 = vmul.f32 %v3810, %v4259
        %v4388 = vmul.f32 %v3812, %v4260
        %v4389 = vmul.f32 %v3814, %v4261
        %v4390 = vmul.f32 %v3816, %v4262
        %v4391 = vmul.f32 %v3818, %v4263
        %v4392 = vmul.f32 %v3820, %v4264
        %v4393 = vmul.f32 %v3822, %v4265
        %v4394 = vmul.f32 %v3824, %v4266
        %v4395 = vmul.f32 %v3826, %v4267
        %v4396 = vmul.f32 %v3828, %v4268
        %v4397 = vmul.f32 %v3830, %v4269
        %v4398 = vmul.f32 %v3832, %v4270
        %v4399 = vmul.f32 %v3834, %v4271
        %v4400 = vmul.f32 %v3836, %v4272
        %v4401 = vmul.f32 %v3838, %v4273
        %v4402 = vmul.f32 %v3840, %v4274
        %v4403 = vmul.f32 %v3842, %v4275
        %v4404 = vmul.f32 %v3844, %v4276
        %v4405 = vmul.f32 %v3846, %v4277
        %v4406 = vmul.f32 %v3848, %v4278
        %v4407 = vmul.f32 %v3850, %v4279
        %v4408 = vmul.f32 %v3852, %v4280
        %v4409 = vmul.f32 %v3854, %v4281
        %v4410 = vmul.f32 %v3856, %v4282
        %v4411 = vmul.f32 %v3858, %v4283
        %v4412 = vmul.f32 %v3860, %v4284
        %v4413 = vmul.f32 %v3862, %v4285
        %v4414 = vmul.f32 %v3864, %v4286
        %v4415 = vmul.f32 %v3866, %v4287
        %v4416 = vmul.f32 %v3868, %v4288
        %v4417 = vmul.f32 %v3870, %v4289
        %v4418 = vmul.f32 %v3872, %v4290
        %v4419 = vmul.f32 %v3874, %v4291
        %v4420 = vmul.f32 %v3876, %v4292
        %v4421 = vmul.f32 %v3878, %v4293
        %v4422 = vmul.f32 %v3880, %v4294
        %v4423 = vmul.f32 %v3882, %v4295
        %v4424 = vmul.f32 %v3884, %v4296
        %v4425 = vmul.f32 %v3886, %v4297
        %v4426 = vmul.f32 %v3888, %v4298
        %v4427 = vmul.f32 %v3890, %v4299
        %v4428 = vmul.f32 %v3892, %v4300
        %v4429 = vmul.f32 %v3894, %v4301
        %v4430 = vmul.f32 %v3896, %v4302
        %v4431 = vmul.f32 %v3898, %v4303
        %v4432 = vmul.f32 %v3900, %v4304
        %v4433 = vmul.f32 %v3902, %v4305
        %v4434 = vmul.f32 %v3904, %v4306
        %v4435 = vmul.f32 %v3906, %v4307
        %v4436 = vmul.f32 %v3908, %v4308
        %v4437 = vmul.f32 %v3910, %v4309
        %v4438 = vmul.f32 %v3912, %v4310
        %v4439 = vmul.f32 %v3914, %v4311
        %v4440 = vmul.f32 %v3916, %v4312
        %v4441 = vmul.f32 %v3918, %v4313
        %v4442 = vmul.f32 %v3920, %v4314
        %v4443 = vmul.f32 %v3922, %v4315
        %v4444 = vmul.f32 %v3924, %v4316
        %v4445 = vmul.f32 %v3926, %v4317
        %v4446 = vmul.f32 %v3928, %v4318
        %v4447 = vmul.f32 %v3930, %v4319
        %v4448 = vmul.f32 %v3932, %v4320
        %v4449 = vmul.f32 %v3934, %v4321
        %v4450 = vmul.f32 %v3936, %v4322
        %v4451 = vmul.f32 %v3938, %v4323
        %v4452 = vmul.f32 %v3940, %v4324
        %4453 = vst [vmem:[%s650] sm:$0xff] %v4325
        %4454 = vst [vmem:[%s650 + $0x8] sm:$0xff] %v4326
        %4455 = vst [vmem:[%s650 + $0x10] sm:$0xff] %v4327
        %4456 = vst [vmem:[%s650 + $0x18] sm:$0xff] %v4328
        %4457 = vst [vmem:[%s650 + $0x20] sm:$0xff] %v4329
        %4458 = vst [vmem:[%s650 + $0x28] sm:$0xff] %v4330
        %4459 = vst [vmem:[%s650 + $0x30] sm:$0xff] %v4331
        %4460 = vst [vmem:[%s650 + $0x38] sm:$0xff] %v4332
        %4461 = vst [vmem:[%s650 + $0x40] sm:$0xff] %v4333
        %4462 = vst [vmem:[%s650 + $0x48] sm:$0xff] %v4334
        %4463 = vst [vmem:[%s650 + $0x50] sm:$0xff] %v4335
        %4464 = vst [vmem:[%s650 + $0x58] sm:$0xff] %v4336
        %4465 = vst [vmem:[%s650 + $0x60] sm:$0xff] %v4337
        %4466 = vst [vmem:[%s650 + $0x68] sm:$0xff] %v4338
        %4467 = vst [vmem:[%s650 + $0x70] sm:$0xff] %v4339
        %4468 = vst [vmem:[%s650 + $0x78] sm:$0xff] %v4340
        %4469 = vst [vmem:[%s650 + $0x80] sm:$0xff] %v4341
        %4470 = vst [vmem:[%s650 + $0x88] sm:$0xff] %v4342
        %4471 = vst [vmem:[%s650 + $0x90] sm:$0xff] %v4343
        %4472 = vst [vmem:[%s650 + $0x98] sm:$0xff] %v4344
        %4473 = vst [vmem:[%s650 + $0xa0] sm:$0xff] %v4345
        %4474 = vst [vmem:[%s650 + $0xa8] sm:$0xff] %v4346
        %4475 = vst [vmem:[%s650 + $0xb0] sm:$0xff] %v4347
        %4476 = vst [vmem:[%s650 + $0xb8] sm:$0xff] %v4348
        %4477 = vst [vmem:[%s650 + $0xc0] sm:$0xff] %v4349
        %4478 = vst [vmem:[%s650 + $0xc8] sm:$0xff] %v4350
        %4479 = vst [vmem:[%s650 + $0xd0] sm:$0xff] %v4351
        %4480 = vst [vmem:[%s650 + $0xd8] sm:$0xff] %v4352
        %4481 = vst [vmem:[%s650 + $0xe0] sm:$0xff] %v4353
        %4482 = vst [vmem:[%s650 + $0xe8] sm:$0xff] %v4354
        %4483 = vst [vmem:[%s650 + $0xf0] sm:$0xff] %v4355
        %4484 = vst [vmem:[%s650 + $0xf8] sm:$0xff] %v4356
        %4485 = vst [vmem:[%s650 + $0x100] sm:$0xff] %v4357
        %4486 = vst [vmem:[%s650 + $0x108] sm:$0xff] %v4358
        %4487 = vst [vmem:[%s650 + $0x110] sm:$0xff] %v4359
        %4488 = vst [vmem:[%s650 + $0x118] sm:$0xff] %v4360
        %4489 = vst [vmem:[%s650 + $0x120] sm:$0xff] %v4361
        %4490 = vst [vmem:[%s650 + $0x128] sm:$0xff] %v4362
        %4491 = vst [vmem:[%s650 + $0x130] sm:$0xff] %v4363
        %4492 = vst [vmem:[%s650 + $0x138] sm:$0xff] %v4364
        %4493 = vst [vmem:[%s650 + $0x140] sm:$0xff] %v4365
        %4494 = vst [vmem:[%s650 + $0x148] sm:$0xff] %v4366
        %4495 = vst [vmem:[%s650 + $0x150] sm:$0xff] %v4367
        %4496 = vst [vmem:[%s650 + $0x158] sm:$0xff] %v4368
        %4497 = vst [vmem:[%s650 + $0x160] sm:$0xff] %v4369
        %4498 = vst [vmem:[%s650 + $0x168] sm:$0xff] %v4370
        %4499 = vst [vmem:[%s650 + $0x170] sm:$0xff] %v4371
        %4500 = vst [vmem:[%s650 + $0x178] sm:$0xff] %v4372
        %4501 = vst [vmem:[%s650 + $0x180] sm:$0xff] %v4373
        %4502 = vst [vmem:[%s650 + $0x188] sm:$0xff] %v4374
        %4503 = vst [vmem:[%s650 + $0x190] sm:$0xff] %v4375
        %4504 = vst [vmem:[%s650 + $0x198] sm:$0xff] %v4376
        %4505 = vst [vmem:[%s650 + $0x1a0] sm:$0xff] %v4377
        %4506 = vst [vmem:[%s650 + $0x1a8] sm:$0xff] %v4378
        %4507 = vst [vmem:[%s650 + $0x1b0] sm:$0xff] %v4379
        %4508 = vst [vmem:[%s650 + $0x1b8] sm:$0xff] %v4380
        %4509 = vst [vmem:[%s650 + $0x1c0] sm:$0xff] %v4381
        %4510 = vst [vmem:[%s650 + $0x1c8] sm:$0xff] %v4382
        %4511 = vst [vmem:[%s650 + $0x1d0] sm:$0xff] %v4383
        %4512 = vst [vmem:[%s650 + $0x1d8] sm:$0xff] %v4384
        %4513 = vst [vmem:[%s650 + $0x1e0] sm:$0xff] %v4385
        %4514 = vst [vmem:[%s650 + $0x1e8] sm:$0xff] %v4386
        %4515 = vst [vmem:[%s650 + $0x1f0] sm:$0xff] %v4387
        %4516 = vst [vmem:[%s650 + $0x1f8] sm:$0xff] %v4388
        %4517 = vst [vmem:[%s650 + $0x200] sm:$0xff] %v4389
        %4518 = vst [vmem:[%s650 + $0x208] sm:$0xff] %v4390
        %4519 = vst [vmem:[%s650 + $0x210] sm:$0xff] %v4391
        %4520 = vst [vmem:[%s650 + $0x218] sm:$0xff] %v4392
        %4521 = vst [vmem:[%s650 + $0x220] sm:$0xff] %v4393
        %4522 = vst [vmem:[%s650 + $0x228] sm:$0xff] %v4394
        %4523 = vst [vmem:[%s650 + $0x230] sm:$0xff] %v4395
        %4524 = vst [vmem:[%s650 + $0x238] sm:$0xff] %v4396
        %4525 = vst [vmem:[%s650 + $0x240] sm:$0xff] %v4397
        %4526 = vst [vmem:[%s650 + $0x248] sm:$0xff] %v4398
        %4527 = vst [vmem:[%s650 + $0x250] sm:$0xff] %v4399
        %4528 = vst [vmem:[%s650 + $0x258] sm:$0xff] %v4400
        %4529 = vst [vmem:[%s650 + $0x260] sm:$0xff] %v4401
        %4530 = vst [vmem:[%s650 + $0x268] sm:$0xff] %v4402
        %4531 = vst [vmem:[%s650 + $0x270] sm:$0xff] %v4403
        %4532 = vst [vmem:[%s650 + $0x278] sm:$0xff] %v4404
        %4533 = vst [vmem:[%s650 + $0x280] sm:$0xff] %v4405
        %4534 = vst [vmem:[%s650 + $0x288] sm:$0xff] %v4406
        %4535 = vst [vmem:[%s650 + $0x290] sm:$0xff] %v4407
        %4536 = vst [vmem:[%s650 + $0x298] sm:$0xff] %v4408
        %4537 = vst [vmem:[%s650 + $0x2a0] sm:$0xff] %v4409
        %4538 = vst [vmem:[%s650 + $0x2a8] sm:$0xff] %v4410
        %4539 = vst [vmem:[%s650 + $0x2b0] sm:$0xff] %v4411
        %4540 = vst [vmem:[%s650 + $0x2b8] sm:$0xff] %v4412
        %4541 = vst [vmem:[%s650 + $0x2c0] sm:$0xff] %v4413
        %4542 = vst [vmem:[%s650 + $0x2c8] sm:$0xff] %v4414
        %4543 = vst [vmem:[%s650 + $0x2d0] sm:$0xff] %v4415
        %4544 = vst [vmem:[%s650 + $0x2d8] sm:$0xff] %v4416
        %4545 = vst [vmem:[%s650 + $0x2e0] sm:$0xff] %v4417
        %4546 = vst [vmem:[%s650 + $0x2e8] sm:$0xff] %v4418
        %4547 = vst [vmem:[%s650 + $0x2f0] sm:$0xff] %v4419
        %4548 = vst [vmem:[%s650 + $0x2f8] sm:$0xff] %v4420
        %4549 = vst [vmem:[%s650 + $0x300] sm:$0xff] %v4421
        %4550 = vst [vmem:[%s650 + $0x308] sm:$0xff] %v4422
        %4551 = vst [vmem:[%s650 + $0x310] sm:$0xff] %v4423
        %4552 = vst [vmem:[%s650 + $0x318] sm:$0xff] %v4424
        %4553 = vst [vmem:[%s650 + $0x320] sm:$0xff] %v4425
        %4554 = vst [vmem:[%s650 + $0x328] sm:$0xff] %v4426
        %4555 = vst [vmem:[%s650 + $0x330] sm:$0xff] %v4427
        %4556 = vst [vmem:[%s650 + $0x338] sm:$0xff] %v4428
        %4557 = vst [vmem:[%s650 + $0x340] sm:$0xff] %v4429
        %4558 = vst [vmem:[%s650 + $0x348] sm:$0xff] %v4430
        %4559 = vst [vmem:[%s650 + $0x350] sm:$0xff] %v4431
        %4560 = vst [vmem:[%s650 + $0x358] sm:$0xff] %v4432
        %4561 = vst [vmem:[%s650 + $0x360] sm:$0xff] %v4433
        %4562 = vst [vmem:[%s650 + $0x368] sm:$0xff] %v4434
        %4563 = vst [vmem:[%s650 + $0x370] sm:$0xff] %v4435
        %4564 = vst [vmem:[%s650 + $0x378] sm:$0xff] %v4436
        %4565 = vst [vmem:[%s650 + $0x380] sm:$0xff] %v4437
        %4566 = vst [vmem:[%s650 + $0x388] sm:$0xff] %v4438
        %4567 = vst [vmem:[%s650 + $0x390] sm:$0xff] %v4439
        %4568 = vst [vmem:[%s650 + $0x398] sm:$0xff] %v4440
        %4569 = vst [vmem:[%s650 + $0x3a0] sm:$0xff] %v4441
        %4570 = vst [vmem:[%s650 + $0x3a8] sm:$0xff] %v4442
        %4571 = vst [vmem:[%s650 + $0x3b0] sm:$0xff] %v4443
        %4572 = vst [vmem:[%s650 + $0x3b8] sm:$0xff] %v4444
        %4573 = vst [vmem:[%s650 + $0x3c0] sm:$0xff] %v4445
        %4574 = vst [vmem:[%s650 + $0x3c8] sm:$0xff] %v4446
        %4575 = vst [vmem:[%s650 + $0x3d0] sm:$0xff] %v4447
        %4576 = vst [vmem:[%s650 + $0x3d8] sm:$0xff] %v4448
        %4577 = vst [vmem:[%s650 + $0x3e0] sm:$0xff] %v4449
        %4578 = vst [vmem:[%s650 + $0x3e8] sm:$0xff] %v4450
        %4579 = vst [vmem:[%s650 + $0x3f0] sm:$0xff] %v4451
        %4580 = vst [vmem:[%s650 + $0x3f8] sm:$0xff] %v4452
        %v4581 = vpack.c.bf16 %v4326, %v4325
        %v4582 = vpack.c.bf16 %v4328, %v4327
        %v4583 = vpack.c.bf16 %v4330, %v4329
        %v4584 = vpack.c.bf16 %v4332, %v4331
        %v4585 = vpack.c.bf16 %v4334, %v4333
        %v4586 = vpack.c.bf16 %v4336, %v4335
        %v4587 = vpack.c.bf16 %v4338, %v4337
        %v4588 = vpack.c.bf16 %v4340, %v4339
        %v4589 = vpack.c.bf16 %v4342, %v4341
        %v4590 = vpack.c.bf16 %v4344, %v4343
        %v4591 = vpack.c.bf16 %v4346, %v4345
        %v4592 = vpack.c.bf16 %v4348, %v4347
        %v4593 = vpack.c.bf16 %v4350, %v4349
        %v4594 = vpack.c.bf16 %v4352, %v4351
        %v4595 = vpack.c.bf16 %v4354, %v4353
        %v4596 = vpack.c.bf16 %v4356, %v4355
        %v4597 = vpack.c.bf16 %v4358, %v4357
        %v4598 = vpack.c.bf16 %v4360, %v4359
        %v4599 = vpack.c.bf16 %v4362, %v4361
        %v4600 = vpack.c.bf16 %v4364, %v4363
        %v4601 = vpack.c.bf16 %v4366, %v4365
        %v4602 = vpack.c.bf16 %v4368, %v4367
        %v4603 = vpack.c.bf16 %v4370, %v4369
        %v4604 = vpack.c.bf16 %v4372, %v4371
        %v4605 = vpack.c.bf16 %v4374, %v4373
        %v4606 = vpack.c.bf16 %v4376, %v4375
        %v4607 = vpack.c.bf16 %v4378, %v4377
        %v4608 = vpack.c.bf16 %v4380, %v4379
        %v4609 = vpack.c.bf16 %v4382, %v4381
        %v4610 = vpack.c.bf16 %v4384, %v4383
        %v4611 = vpack.c.bf16 %v4386, %v4385
        %v4612 = vpack.c.bf16 %v4388, %v4387
        %v4613 = vpack.c.bf16 %v4390, %v4389
        %v4614 = vpack.c.bf16 %v4392, %v4391
        %v4615 = vpack.c.bf16 %v4394, %v4393
        %v4616 = vpack.c.bf16 %v4396, %v4395
        %v4617 = vpack.c.bf16 %v4398, %v4397
        %v4618 = vpack.c.bf16 %v4400, %v4399
        %v4619 = vpack.c.bf16 %v4402, %v4401
        %v4620 = vpack.c.bf16 %v4404, %v4403
        %v4621 = vpack.c.bf16 %v4406, %v4405
        %v4622 = vpack.c.bf16 %v4408, %v4407
        %v4623 = vpack.c.bf16 %v4410, %v4409
        %v4624 = vpack.c.bf16 %v4412, %v4411
        %v4625 = vpack.c.bf16 %v4414, %v4413
        %v4626 = vpack.c.bf16 %v4416, %v4415
        %v4627 = vpack.c.bf16 %v4418, %v4417
        %v4628 = vpack.c.bf16 %v4420, %v4419
        %v4629 = vpack.c.bf16 %v4422, %v4421
        %v4630 = vpack.c.bf16 %v4424, %v4423
        %v4631 = vpack.c.bf16 %v4426, %v4425
        %v4632 = vpack.c.bf16 %v4428, %v4427
        %v4633 = vpack.c.bf16 %v4430, %v4429
        %v4634 = vpack.c.bf16 %v4432, %v4431
        %v4635 = vpack.c.bf16 %v4434, %v4433
        %v4636 = vpack.c.bf16 %v4436, %v4435
        %v4637 = vpack.c.bf16 %v4438, %v4437
        %v4638 = vpack.c.bf16 %v4440, %v4439
        %v4639 = vpack.c.bf16 %v4442, %v4441
        %v4640 = vpack.c.bf16 %v4444, %v4443
        %v4641 = vpack.c.bf16 %v4446, %v4445
        %v4642 = vpack.c.bf16 %v4448, %v4447
        %v4643 = vpack.c.bf16 %v4450, %v4449
        %v4644 = vpack.c.bf16 %v4452, %v4451
        %4645 = vmatprep.subr.bf16.mxu0 0
        %4646 = vmatpush1.bf16.msra.mxu0 %v2267
        %4647 = vmatprep.subr.bf16.mxu0 0
        %4648 = vmatpush1.bf16.msra.mxu0 %v2266
        %4649 = vmatprep.subr.bf16.mxu0 0
        %4650 = vmatpush1.bf16.msra.mxu0 %v2265
        %4651 = vmatprep.subr.bf16.mxu0 0
        %4652 = vmatpush1.bf16.msra.mxu0 %v2264
        %4653 = vmatprep.subr.bf16.mxu0 0
        %4654 = vmatpush1.bf16.msra.mxu0 %v2263
        %4655 = vmatprep.subr.bf16.mxu0 0
        %4656 = vmatpush1.bf16.msra.mxu0 %v2262
        %4657 = vmatprep.subr.bf16.mxu0 0
        %4658 = vmatpush1.bf16.msra.mxu0 %v2261
        %4659 = vmatprep.subr.bf16.mxu0 0
        %4660 = vmatpush1.bf16.msra.mxu0 %v2260
        %4661 = vmatprep.subr.bf16.mxu0 0
        %4662 = vmatpush2.bf16.msra.mxu0 0
        %4663 = vmatprep.subr.bf16.mxu0 0
        %4664 = vmatpush2.bf16.msra.mxu0 0
        %4665 = vmatprep.subr.bf16.mxu0 0
        %4666 = vmatpush2.bf16.msra.mxu0 0
        %4667 = vmatprep.subr.bf16.mxu0 0
        %4668 = vmatpush2.bf16.msra.mxu0 0
        %4669 = vmatprep.subr.bf16.mxu0 0
        %4670 = vmatpush2.bf16.msra.mxu0 0
        %4671 = vmatprep.subr.bf16.mxu0 0
        %4672 = vmatpush2.bf16.msra.mxu0 0
        %4673 = vmatprep.subr.bf16.mxu0 0
        %4674 = vmatpush2.bf16.msra.mxu0 0
        %4675 = vmatprep.subr.bf16.mxu0 0
        %4676 = vmatpush2.bf16.msra.mxu0 0
        %4677 = vmatprep.mubr.bf16.mxu0 0
        %4678 = vmatmul.mubr.bf16.gmra.mxu0 %v4581
        %v4679 = vpop.f32.mrf.mxu0
        %v4680 = vadd.f32 0.0, %v4679
        %v4681 = vpop.f32.mrf.mxu0
        %v4682 = vpop.f32.mrf.mxu0
        %v4683 = vadd.f32 0.0, %v4682
        %v4684 = vpop.f32.mrf.mxu0
        %4685 = vmatprep.mubr.bf16.mxu0 0
        %4686 = vmatmul.mubr.bf16.gmra.mxu0 %v4582
        %v4687 = vpop.f32.mrf.mxu0
        %v4688 = vadd.f32 0.0, %v4687
        %v4689 = vpop.f32.mrf.mxu0
        %v4690 = vpop.f32.mrf.mxu0
        %v4691 = vadd.f32 0.0, %v4690
        %v4692 = vpop.f32.mrf.mxu0
        %4693 = vmatprep.mubr.bf16.mxu0 0
        %4694 = vmatmul.mubr.bf16.gmra.mxu0 %v4583
        %v4695 = vpop.f32.mrf.mxu0
        %v4696 = vadd.f32 0.0, %v4695
        %v4697 = vpop.f32.mrf.mxu0
        %v4698 = vpop.f32.mrf.mxu0
        %v4699 = vadd.f32 0.0, %v4698
        %v4700 = vpop.f32.mrf.mxu0
        %4701 = vmatprep.mubr.bf16.mxu0 0
        %4702 = vmatmul.mubr.bf16.gmra.mxu0 %v4584
        %v4703 = vpop.f32.mrf.mxu0
        %v4704 = vadd.f32 0.0, %v4703
        %v4705 = vpop.f32.mrf.mxu0
        %v4706 = vpop.f32.mrf.mxu0
        %v4707 = vadd.f32 0.0, %v4706
        %v4708 = vpop.f32.mrf.mxu0
        %4709 = vmatprep.mubr.bf16.mxu0 0
        %4710 = vmatmul.mubr.bf16.gmra.mxu0 %v4585
        %v4711 = vpop.f32.mrf.mxu0
        %v4712 = vadd.f32 0.0, %v4711
        %v4713 = vpop.f32.mrf.mxu0
        %v4714 = vpop.f32.mrf.mxu0
        %v4715 = vadd.f32 0.0, %v4714
        %v4716 = vpop.f32.mrf.mxu0
        %4717 = vmatprep.mubr.bf16.mxu0 0
        %4718 = vmatmul.mubr.bf16.gmra.mxu0 %v4586
        %v4719 = vpop.f32.mrf.mxu0
        %v4720 = vadd.f32 0.0, %v4719
        %v4721 = vpop.f32.mrf.mxu0
        %v4722 = vpop.f32.mrf.mxu0
        %v4723 = vadd.f32 0.0, %v4722
        %v4724 = vpop.f32.mrf.mxu0
        %4725 = vmatprep.mubr.bf16.mxu0 0
        %4726 = vmatmul.mubr.bf16.gmra.mxu0 %v4587
        %v4727 = vpop.f32.mrf.mxu0
        %v4728 = vadd.f32 0.0, %v4727
        %v4729 = vpop.f32.mrf.mxu0
        %v4730 = vpop.f32.mrf.mxu0
        %v4731 = vadd.f32 0.0, %v4730
        %v4732 = vpop.f32.mrf.mxu0
        %4733 = vmatprep.mubr.bf16.mxu0 0
        %4734 = vmatmul.mubr.bf16.gmra.mxu0 %v4588
        %v4735 = vpop.f32.mrf.mxu0
        %v4736 = vadd.f32 0.0, %v4735
        %v4737 = vpop.f32.mrf.mxu0
        %v4738 = vpop.f32.mrf.mxu0
        %v4739 = vadd.f32 0.0, %v4738
        %v4740 = vpop.f32.mrf.mxu0
        %4741 = vdwg.mxu0
        %4742 = vmatprep.subr.bf16.mxu0 0
        %4743 = vmatpush1.bf16.msra.mxu0 %v2275
        %4744 = vmatprep.subr.bf16.mxu0 0
        %4745 = vmatpush1.bf16.msra.mxu0 %v2274
        %4746 = vmatprep.subr.bf16.mxu0 0
        %4747 = vmatpush1.bf16.msra.mxu0 %v2273
        %4748 = vmatprep.subr.bf16.mxu0 0
        %4749 = vmatpush1.bf16.msra.mxu0 %v2272
        %4750 = vmatprep.subr.bf16.mxu0 0
        %4751 = vmatpush1.bf16.msra.mxu0 %v2271
        %4752 = vmatprep.subr.bf16.mxu0 0
        %4753 = vmatpush1.bf16.msra.mxu0 %v2270
        %4754 = vmatprep.subr.bf16.mxu0 0
        %4755 = vmatpush1.bf16.msra.mxu0 %v2269
        %4756 = vmatprep.subr.bf16.mxu0 0
        %4757 = vmatpush1.bf16.msra.mxu0 %v2268
        %4758 = vmatprep.subr.bf16.mxu0 0
        %4759 = vmatpush2.bf16.msra.mxu0 0
        %4760 = vmatprep.subr.bf16.mxu0 0
        %4761 = vmatpush2.bf16.msra.mxu0 0
        %4762 = vmatprep.subr.bf16.mxu0 0
        %4763 = vmatpush2.bf16.msra.mxu0 0
        %4764 = vmatprep.subr.bf16.mxu0 0
        %4765 = vmatpush2.bf16.msra.mxu0 0
        %4766 = vmatprep.subr.bf16.mxu0 0
        %4767 = vmatpush2.bf16.msra.mxu0 0
        %4768 = vmatprep.subr.bf16.mxu0 0
        %4769 = vmatpush2.bf16.msra.mxu0 0
        %4770 = vmatprep.subr.bf16.mxu0 0
        %4771 = vmatpush2.bf16.msra.mxu0 0
        %4772 = vmatprep.subr.bf16.mxu0 0
        %4773 = vmatpush2.bf16.msra.mxu0 0
        %4774 = vmatprep.mubr.bf16.mxu0 0
        %4775 = vmatmul.mubr.bf16.gmra.mxu0 %v4589
        %v4776 = vpop.f32.mrf.mxu0
        %v4777 = vadd.f32 0.0, %v4776
        %v4778 = vpop.f32.mrf.mxu0
        %v4779 = vpop.f32.mrf.mxu0
        %v4780 = vadd.f32 0.0, %v4779
        %v4781 = vpop.f32.mrf.mxu0
        %4782 = vmatprep.mubr.bf16.mxu0 0
        %4783 = vmatmul.mubr.bf16.gmra.mxu0 %v4590
        %v4784 = vpop.f32.mrf.mxu0
        %v4785 = vadd.f32 0.0, %v4784
        %v4786 = vpop.f32.mrf.mxu0
        %v4787 = vpop.f32.mrf.mxu0
        %v4788 = vadd.f32 0.0, %v4787
        %v4789 = vpop.f32.mrf.mxu0
        %4790 = vmatprep.mubr.bf16.mxu0 0
        %4791 = vmatmul.mubr.bf16.gmra.mxu0 %v4591
        %v4792 = vpop.f32.mrf.mxu0
        %v4793 = vadd.f32 0.0, %v4792
        %v4794 = vpop.f32.mrf.mxu0
        %v4795 = vpop.f32.mrf.mxu0
        %v4796 = vadd.f32 0.0, %v4795
        %v4797 = vpop.f32.mrf.mxu0
        %4798 = vmatprep.mubr.bf16.mxu0 0
        %4799 = vmatmul.mubr.bf16.gmra.mxu0 %v4592
        %v4800 = vpop.f32.mrf.mxu0
        %v4801 = vadd.f32 0.0, %v4800
        %v4802 = vpop.f32.mrf.mxu0
        %v4803 = vpop.f32.mrf.mxu0
        %v4804 = vadd.f32 0.0, %v4803
        %v4805 = vpop.f32.mrf.mxu0
        %4806 = vmatprep.mubr.bf16.mxu0 0
        %4807 = vmatmul.mubr.bf16.gmra.mxu0 %v4593
        %v4808 = vpop.f32.mrf.mxu0
        %v4809 = vadd.f32 0.0, %v4808
        %v4810 = vpop.f32.mrf.mxu0
        %v4811 = vpop.f32.mrf.mxu0
        %v4812 = vadd.f32 0.0, %v4811
        %v4813 = vpop.f32.mrf.mxu0
        %4814 = vmatprep.mubr.bf16.mxu0 0
        %4815 = vmatmul.mubr.bf16.gmra.mxu0 %v4594
        %v4816 = vpop.f32.mrf.mxu0
        %v4817 = vadd.f32 0.0, %v4816
        %v4818 = vpop.f32.mrf.mxu0
        %v4819 = vpop.f32.mrf.mxu0
        %v4820 = vadd.f32 0.0, %v4819
        %v4821 = vpop.f32.mrf.mxu0
        %4822 = vmatprep.mubr.bf16.mxu0 0
        %4823 = vmatmul.mubr.bf16.gmra.mxu0 %v4595
        %v4824 = vpop.f32.mrf.mxu0
        %v4825 = vadd.f32 0.0, %v4824
        %v4826 = vpop.f32.mrf.mxu0
        %v4827 = vpop.f32.mrf.mxu0
        %v4828 = vadd.f32 0.0, %v4827
        %v4829 = vpop.f32.mrf.mxu0
        %4830 = vmatprep.mubr.bf16.mxu0 0
        %4831 = vmatmul.mubr.bf16.gmra.mxu0 %v4596
        %v4832 = vpop.f32.mrf.mxu0
        %v4833 = vadd.f32 0.0, %v4832
        %v4834 = vpop.f32.mrf.mxu0
        %v4835 = vpop.f32.mrf.mxu0
        %v4836 = vadd.f32 0.0, %v4835
        %v4837 = vpop.f32.mrf.mxu0
        %4838 = vdwg.mxu0
        %4839 = vmatprep.subr.bf16.mxu0 0
        %4840 = vmatpush1.bf16.msra.mxu0 %v2283
        %4841 = vmatprep.subr.bf16.mxu0 0
        %4842 = vmatpush1.bf16.msra.mxu0 %v2282
        %4843 = vmatprep.subr.bf16.mxu0 0
        %4844 = vmatpush1.bf16.msra.mxu0 %v2281
        %4845 = vmatprep.subr.bf16.mxu0 0
        %4846 = vmatpush1.bf16.msra.mxu0 %v2280
        %4847 = vmatprep.subr.bf16.mxu0 0
        %4848 = vmatpush1.bf16.msra.mxu0 %v2279
        %4849 = vmatprep.subr.bf16.mxu0 0
        %4850 = vmatpush1.bf16.msra.mxu0 %v2278
        %4851 = vmatprep.subr.bf16.mxu0 0
        %4852 = vmatpush1.bf16.msra.mxu0 %v2277
        %4853 = vmatprep.subr.bf16.mxu0 0
        %4854 = vmatpush1.bf16.msra.mxu0 %v2276
        %4855 = vmatprep.subr.bf16.mxu0 0
        %4856 = vmatpush2.bf16.msra.mxu0 0
        %4857 = vmatprep.subr.bf16.mxu0 0
        %4858 = vmatpush2.bf16.msra.mxu0 0
        %4859 = vmatprep.subr.bf16.mxu0 0
        %4860 = vmatpush2.bf16.msra.mxu0 0
        %4861 = vmatprep.subr.bf16.mxu0 0
        %4862 = vmatpush2.bf16.msra.mxu0 0
        %4863 = vmatprep.subr.bf16.mxu0 0
        %4864 = vmatpush2.bf16.msra.mxu0 0
        %4865 = vmatprep.subr.bf16.mxu0 0
        %4866 = vmatpush2.bf16.msra.mxu0 0
        %4867 = vmatprep.subr.bf16.mxu0 0
        %4868 = vmatpush2.bf16.msra.mxu0 0
        %4869 = vmatprep.subr.bf16.mxu0 0
        %4870 = vmatpush2.bf16.msra.mxu0 0
        %4871 = vmatprep.mubr.bf16.mxu0 0
        %4872 = vmatmul.mubr.bf16.gmra.mxu0 %v4597
        %v4873 = vpop.f32.mrf.mxu0
        %v4874 = vadd.f32 0.0, %v4873
        %v4875 = vpop.f32.mrf.mxu0
        %v4876 = vpop.f32.mrf.mxu0
        %v4877 = vadd.f32 0.0, %v4876
        %v4878 = vpop.f32.mrf.mxu0
        %4879 = vmatprep.mubr.bf16.mxu0 0
        %4880 = vmatmul.mubr.bf16.gmra.mxu0 %v4598
        %v4881 = vpop.f32.mrf.mxu0
        %v4882 = vadd.f32 0.0, %v4881
        %v4883 = vpop.f32.mrf.mxu0
        %v4884 = vpop.f32.mrf.mxu0
        %v4885 = vadd.f32 0.0, %v4884
        %v4886 = vpop.f32.mrf.mxu0
        %4887 = vmatprep.mubr.bf16.mxu0 0
        %4888 = vmatmul.mubr.bf16.gmra.mxu0 %v4599
        %v4889 = vpop.f32.mrf.mxu0
        %v4890 = vadd.f32 0.0, %v4889
        %v4891 = vpop.f32.mrf.mxu0
        %v4892 = vpop.f32.mrf.mxu0
        %v4893 = vadd.f32 0.0, %v4892
        %v4894 = vpop.f32.mrf.mxu0
        %4895 = vmatprep.mubr.bf16.mxu0 0
        %4896 = vmatmul.mubr.bf16.gmra.mxu0 %v4600
        %v4897 = vpop.f32.mrf.mxu0
        %v4898 = vadd.f32 0.0, %v4897
        %v4899 = vpop.f32.mrf.mxu0
        %v4900 = vpop.f32.mrf.mxu0
        %v4901 = vadd.f32 0.0, %v4900
        %v4902 = vpop.f32.mrf.mxu0
        %4903 = vmatprep.mubr.bf16.mxu0 0
        %4904 = vmatmul.mubr.bf16.gmra.mxu0 %v4601
        %v4905 = vpop.f32.mrf.mxu0
        %v4906 = vadd.f32 0.0, %v4905
        %v4907 = vpop.f32.mrf.mxu0
        %v4908 = vpop.f32.mrf.mxu0
        %v4909 = vadd.f32 0.0, %v4908
        %v4910 = vpop.f32.mrf.mxu0
        %4911 = vmatprep.mubr.bf16.mxu0 0
        %4912 = vmatmul.mubr.bf16.gmra.mxu0 %v4602
        %v4913 = vpop.f32.mrf.mxu0
        %v4914 = vadd.f32 0.0, %v4913
        %v4915 = vpop.f32.mrf.mxu0
        %v4916 = vpop.f32.mrf.mxu0
        %v4917 = vadd.f32 0.0, %v4916
        %v4918 = vpop.f32.mrf.mxu0
        %4919 = vmatprep.mubr.bf16.mxu0 0
        %4920 = vmatmul.mubr.bf16.gmra.mxu0 %v4603
        %v4921 = vpop.f32.mrf.mxu0
        %v4922 = vadd.f32 0.0, %v4921
        %v4923 = vpop.f32.mrf.mxu0
        %v4924 = vpop.f32.mrf.mxu0
        %v4925 = vadd.f32 0.0, %v4924
        %v4926 = vpop.f32.mrf.mxu0
        %4927 = vmatprep.mubr.bf16.mxu0 0
        %4928 = vmatmul.mubr.bf16.gmra.mxu0 %v4604
        %v4929 = vpop.f32.mrf.mxu0
        %v4930 = vadd.f32 0.0, %v4929
        %v4931 = vpop.f32.mrf.mxu0
        %v4932 = vpop.f32.mrf.mxu0
        %v4933 = vadd.f32 0.0, %v4932
        %v4934 = vpop.f32.mrf.mxu0
        %4935 = vdwg.mxu0
        %4936 = vmatprep.subr.bf16.mxu0 0
        %4937 = vmatpush1.bf16.msra.mxu0 %v2291
        %4938 = vmatprep.subr.bf16.mxu0 0
        %4939 = vmatpush1.bf16.msra.mxu0 %v2290
        %4940 = vmatprep.subr.bf16.mxu0 0
        %4941 = vmatpush1.bf16.msra.mxu0 %v2289
        %4942 = vmatprep.subr.bf16.mxu0 0
        %4943 = vmatpush1.bf16.msra.mxu0 %v2288
        %4944 = vmatprep.subr.bf16.mxu0 0
        %4945 = vmatpush1.bf16.msra.mxu0 %v2287
        %4946 = vmatprep.subr.bf16.mxu0 0
        %4947 = vmatpush1.bf16.msra.mxu0 %v2286
        %4948 = vmatprep.subr.bf16.mxu0 0
        %4949 = vmatpush1.bf16.msra.mxu0 %v2285
        %4950 = vmatprep.subr.bf16.mxu0 0
        %4951 = vmatpush1.bf16.msra.mxu0 %v2284
        %4952 = vmatprep.subr.bf16.mxu0 0
        %4953 = vmatpush2.bf16.msra.mxu0 0
        %4954 = vmatprep.subr.bf16.mxu0 0
        %4955 = vmatpush2.bf16.msra.mxu0 0
        %4956 = vmatprep.subr.bf16.mxu0 0
        %4957 = vmatpush2.bf16.msra.mxu0 0
        %4958 = vmatprep.subr.bf16.mxu0 0
        %4959 = vmatpush2.bf16.msra.mxu0 0
        %4960 = vmatprep.subr.bf16.mxu0 0
        %4961 = vmatpush2.bf16.msra.mxu0 0
        %4962 = vmatprep.subr.bf16.mxu0 0
        %4963 = vmatpush2.bf16.msra.mxu0 0
        %4964 = vmatprep.subr.bf16.mxu0 0
        %4965 = vmatpush2.bf16.msra.mxu0 0
        %4966 = vmatprep.subr.bf16.mxu0 0
        %4967 = vmatpush2.bf16.msra.mxu0 0
        %4968 = vmatprep.mubr.bf16.mxu0 0
        %4969 = vmatmul.mubr.bf16.gmra.mxu0 %v4605
        %v4970 = vpop.f32.mrf.mxu0
        %v4971 = vadd.f32 0.0, %v4970
        %v4972 = vpop.f32.mrf.mxu0
        %v4973 = vpop.f32.mrf.mxu0
        %v4974 = vadd.f32 0.0, %v4973
        %v4975 = vpop.f32.mrf.mxu0
        %4976 = vmatprep.mubr.bf16.mxu0 0
        %4977 = vmatmul.mubr.bf16.gmra.mxu0 %v4606
        %v4978 = vpop.f32.mrf.mxu0
        %v4979 = vadd.f32 0.0, %v4978
        %v4980 = vpop.f32.mrf.mxu0
        %v4981 = vpop.f32.mrf.mxu0
        %v4982 = vadd.f32 0.0, %v4981
        %v4983 = vpop.f32.mrf.mxu0
        %4984 = vmatprep.mubr.bf16.mxu0 0
        %4985 = vmatmul.mubr.bf16.gmra.mxu0 %v4607
        %v4986 = vpop.f32.mrf.mxu0
        %v4987 = vadd.f32 0.0, %v4986
        %v4988 = vpop.f32.mrf.mxu0
        %v4989 = vpop.f32.mrf.mxu0
        %v4990 = vadd.f32 0.0, %v4989
        %v4991 = vpop.f32.mrf.mxu0
        %4992 = vmatprep.mubr.bf16.mxu0 0
        %4993 = vmatmul.mubr.bf16.gmra.mxu0 %v4608
        %v4994 = vpop.f32.mrf.mxu0
        %v4995 = vadd.f32 0.0, %v4994
        %v4996 = vpop.f32.mrf.mxu0
        %v4997 = vpop.f32.mrf.mxu0
        %v4998 = vadd.f32 0.0, %v4997
        %v4999 = vpop.f32.mrf.mxu0
        %5000 = vmatprep.mubr.bf16.mxu0 0
        %5001 = vmatmul.mubr.bf16.gmra.mxu0 %v4609
        %v5002 = vpop.f32.mrf.mxu0
        %v5003 = vadd.f32 0.0, %v5002
        %v5004 = vpop.f32.mrf.mxu0
        %v5005 = vpop.f32.mrf.mxu0
        %v5006 = vadd.f32 0.0, %v5005
        %v5007 = vpop.f32.mrf.mxu0
        %5008 = vmatprep.mubr.bf16.mxu0 0
        %5009 = vmatmul.mubr.bf16.gmra.mxu0 %v4610
        %v5010 = vpop.f32.mrf.mxu0
        %v5011 = vadd.f32 0.0, %v5010
        %v5012 = vpop.f32.mrf.mxu0
        %v5013 = vpop.f32.mrf.mxu0
        %v5014 = vadd.f32 0.0, %v5013
        %v5015 = vpop.f32.mrf.mxu0
        %5016 = vmatprep.mubr.bf16.mxu0 0
        %5017 = vmatmul.mubr.bf16.gmra.mxu0 %v4611
        %v5018 = vpop.f32.mrf.mxu0
        %v5019 = vadd.f32 0.0, %v5018
        %v5020 = vpop.f32.mrf.mxu0
        %v5021 = vpop.f32.mrf.mxu0
        %v5022 = vadd.f32 0.0, %v5021
        %v5023 = vpop.f32.mrf.mxu0
        %5024 = vmatprep.mubr.bf16.mxu0 0
        %5025 = vmatmul.mubr.bf16.gmra.mxu0 %v4612
        %v5026 = vpop.f32.mrf.mxu0
        %v5027 = vadd.f32 0.0, %v5026
        %v5028 = vpop.f32.mrf.mxu0
        %v5029 = vpop.f32.mrf.mxu0
        %v5030 = vadd.f32 0.0, %v5029
        %v5031 = vpop.f32.mrf.mxu0
        %5032 = vdwg.mxu0
        %5033 = vmatprep.subr.bf16.mxu0 0
        %5034 = vmatpush1.bf16.msra.mxu0 %v2299
        %5035 = vmatprep.subr.bf16.mxu0 0
        %5036 = vmatpush1.bf16.msra.mxu0 %v2298
        %5037 = vmatprep.subr.bf16.mxu0 0
        %5038 = vmatpush1.bf16.msra.mxu0 %v2297
        %5039 = vmatprep.subr.bf16.mxu0 0
        %5040 = vmatpush1.bf16.msra.mxu0 %v2296
        %5041 = vmatprep.subr.bf16.mxu0 0
        %5042 = vmatpush1.bf16.msra.mxu0 %v2295
        %5043 = vmatprep.subr.bf16.mxu0 0
        %5044 = vmatpush1.bf16.msra.mxu0 %v2294
        %5045 = vmatprep.subr.bf16.mxu0 0
        %5046 = vmatpush1.bf16.msra.mxu0 %v2293
        %5047 = vmatprep.subr.bf16.mxu0 0
        %5048 = vmatpush1.bf16.msra.mxu0 %v2292
        %5049 = vmatprep.subr.bf16.mxu0 0
        %5050 = vmatpush2.bf16.msra.mxu0 0
        %5051 = vmatprep.subr.bf16.mxu0 0
        %5052 = vmatpush2.bf16.msra.mxu0 0
        %5053 = vmatprep.subr.bf16.mxu0 0
        %5054 = vmatpush2.bf16.msra.mxu0 0
        %5055 = vmatprep.subr.bf16.mxu0 0
        %5056 = vmatpush2.bf16.msra.mxu0 0
        %5057 = vmatprep.subr.bf16.mxu0 0
        %5058 = vmatpush2.bf16.msra.mxu0 0
        %5059 = vmatprep.subr.bf16.mxu0 0
        %5060 = vmatpush2.bf16.msra.mxu0 0
        %5061 = vmatprep.subr.bf16.mxu0 0
        %5062 = vmatpush2.bf16.msra.mxu0 0
        %5063 = vmatprep.subr.bf16.mxu0 0
        %5064 = vmatpush2.bf16.msra.mxu0 0
        %5065 = vmatprep.mubr.bf16.mxu0 0
        %5066 = vmatmul.mubr.bf16.gmra.mxu0 %v4613
        %v5067 = vpop.f32.mrf.mxu0
        %v5068 = vadd.f32 0.0, %v5067
        %v5069 = vpop.f32.mrf.mxu0
        %v5070 = vpop.f32.mrf.mxu0
        %v5071 = vadd.f32 0.0, %v5070
        %v5072 = vpop.f32.mrf.mxu0
        %5073 = vmatprep.mubr.bf16.mxu0 0
        %5074 = vmatmul.mubr.bf16.gmra.mxu0 %v4614
        %v5075 = vpop.f32.mrf.mxu0
        %v5076 = vadd.f32 0.0, %v5075
        %v5077 = vpop.f32.mrf.mxu0
        %v5078 = vpop.f32.mrf.mxu0
        %v5079 = vadd.f32 0.0, %v5078
        %v5080 = vpop.f32.mrf.mxu0
        %5081 = vmatprep.mubr.bf16.mxu0 0
        %5082 = vmatmul.mubr.bf16.gmra.mxu0 %v4615
        %v5083 = vpop.f32.mrf.mxu0
        %v5084 = vadd.f32 0.0, %v5083
        %v5085 = vpop.f32.mrf.mxu0
        %v5086 = vpop.f32.mrf.mxu0
        %v5087 = vadd.f32 0.0, %v5086
        %v5088 = vpop.f32.mrf.mxu0
        %5089 = vmatprep.mubr.bf16.mxu0 0
        %5090 = vmatmul.mubr.bf16.gmra.mxu0 %v4616
        %v5091 = vpop.f32.mrf.mxu0
        %v5092 = vadd.f32 0.0, %v5091
        %v5093 = vpop.f32.mrf.mxu0
        %v5094 = vpop.f32.mrf.mxu0
        %v5095 = vadd.f32 0.0, %v5094
        %v5096 = vpop.f32.mrf.mxu0
        %5097 = vmatprep.mubr.bf16.mxu0 0
        %5098 = vmatmul.mubr.bf16.gmra.mxu0 %v4617
        %v5099 = vpop.f32.mrf.mxu0
        %v5100 = vadd.f32 0.0, %v5099
        %v5101 = vpop.f32.mrf.mxu0
        %v5102 = vpop.f32.mrf.mxu0
        %v5103 = vadd.f32 0.0, %v5102
        %v5104 = vpop.f32.mrf.mxu0
        %5105 = vmatprep.mubr.bf16.mxu0 0
        %5106 = vmatmul.mubr.bf16.gmra.mxu0 %v4618
        %v5107 = vpop.f32.mrf.mxu0
        %v5108 = vadd.f32 0.0, %v5107
        %v5109 = vpop.f32.mrf.mxu0
        %v5110 = vpop.f32.mrf.mxu0
        %v5111 = vadd.f32 0.0, %v5110
        %v5112 = vpop.f32.mrf.mxu0
        %5113 = vmatprep.mubr.bf16.mxu0 0
        %5114 = vmatmul.mubr.bf16.gmra.mxu0 %v4619
        %v5115 = vpop.f32.mrf.mxu0
        %v5116 = vadd.f32 0.0, %v5115
        %v5117 = vpop.f32.mrf.mxu0
        %v5118 = vpop.f32.mrf.mxu0
        %v5119 = vadd.f32 0.0, %v5118
        %v5120 = vpop.f32.mrf.mxu0
        %5121 = vmatprep.mubr.bf16.mxu0 0
        %5122 = vmatmul.mubr.bf16.gmra.mxu0 %v4620
        %v5123 = vpop.f32.mrf.mxu0
        %v5124 = vadd.f32 0.0, %v5123
        %v5125 = vpop.f32.mrf.mxu0
        %v5126 = vpop.f32.mrf.mxu0
        %v5127 = vadd.f32 0.0, %v5126
        %v5128 = vpop.f32.mrf.mxu0
        %5129 = vdwg.mxu0
        %5130 = vmatprep.subr.bf16.mxu0 0
        %5131 = vmatpush1.bf16.msra.mxu0 %v2307
        %5132 = vmatprep.subr.bf16.mxu0 0
        %5133 = vmatpush1.bf16.msra.mxu0 %v2306
        %5134 = vmatprep.subr.bf16.mxu0 0
        %5135 = vmatpush1.bf16.msra.mxu0 %v2305
        %5136 = vmatprep.subr.bf16.mxu0 0
        %5137 = vmatpush1.bf16.msra.mxu0 %v2304
        %5138 = vmatprep.subr.bf16.mxu0 0
        %5139 = vmatpush1.bf16.msra.mxu0 %v2303
        %5140 = vmatprep.subr.bf16.mxu0 0
        %5141 = vmatpush1.bf16.msra.mxu0 %v2302
        %5142 = vmatprep.subr.bf16.mxu0 0
        %5143 = vmatpush1.bf16.msra.mxu0 %v2301
        %5144 = vmatprep.subr.bf16.mxu0 0
        %5145 = vmatpush1.bf16.msra.mxu0 %v2300
        %5146 = vmatprep.subr.bf16.mxu0 0
        %5147 = vmatpush2.bf16.msra.mxu0 0
        %5148 = vmatprep.subr.bf16.mxu0 0
        %5149 = vmatpush2.bf16.msra.mxu0 0
        %5150 = vmatprep.subr.bf16.mxu0 0
        %5151 = vmatpush2.bf16.msra.mxu0 0
        %5152 = vmatprep.subr.bf16.mxu0 0
        %5153 = vmatpush2.bf16.msra.mxu0 0
        %5154 = vmatprep.subr.bf16.mxu0 0
        %5155 = vmatpush2.bf16.msra.mxu0 0
        %5156 = vmatprep.subr.bf16.mxu0 0
        %5157 = vmatpush2.bf16.msra.mxu0 0
        %5158 = vmatprep.subr.bf16.mxu0 0
        %5159 = vmatpush2.bf16.msra.mxu0 0
        %5160 = vmatprep.subr.bf16.mxu0 0
        %5161 = vmatpush2.bf16.msra.mxu0 0
        %5162 = vmatprep.mubr.bf16.mxu0 0
        %5163 = vmatmul.mubr.bf16.gmra.mxu0 %v4621
        %v5164 = vpop.f32.mrf.mxu0
        %v5165 = vadd.f32 0.0, %v5164
        %v5166 = vpop.f32.mrf.mxu0
        %v5167 = vpop.f32.mrf.mxu0
        %v5168 = vadd.f32 0.0, %v5167
        %v5169 = vpop.f32.mrf.mxu0
        %5170 = vmatprep.mubr.bf16.mxu0 0
        %5171 = vmatmul.mubr.bf16.gmra.mxu0 %v4622
        %v5172 = vpop.f32.mrf.mxu0
        %v5173 = vadd.f32 0.0, %v5172
        %v5174 = vpop.f32.mrf.mxu0
        %v5175 = vpop.f32.mrf.mxu0
        %v5176 = vadd.f32 0.0, %v5175
        %v5177 = vpop.f32.mrf.mxu0
        %5178 = vmatprep.mubr.bf16.mxu0 0
        %5179 = vmatmul.mubr.bf16.gmra.mxu0 %v4623
        %v5180 = vpop.f32.mrf.mxu0
        %v5181 = vadd.f32 0.0, %v5180
        %v5182 = vpop.f32.mrf.mxu0
        %v5183 = vpop.f32.mrf.mxu0
        %v5184 = vadd.f32 0.0, %v5183
        %v5185 = vpop.f32.mrf.mxu0
        %5186 = vmatprep.mubr.bf16.mxu0 0
        %5187 = vmatmul.mubr.bf16.gmra.mxu0 %v4624
        %v5188 = vpop.f32.mrf.mxu0
        %v5189 = vadd.f32 0.0, %v5188
        %v5190 = vpop.f32.mrf.mxu0
        %v5191 = vpop.f32.mrf.mxu0
        %v5192 = vadd.f32 0.0, %v5191
        %v5193 = vpop.f32.mrf.mxu0
        %5194 = vmatprep.mubr.bf16.mxu0 0
        %5195 = vmatmul.mubr.bf16.gmra.mxu0 %v4625
        %v5196 = vpop.f32.mrf.mxu0
        %v5197 = vadd.f32 0.0, %v5196
        %v5198 = vpop.f32.mrf.mxu0
        %v5199 = vpop.f32.mrf.mxu0
        %v5200 = vadd.f32 0.0, %v5199
        %v5201 = vpop.f32.mrf.mxu0
        %5202 = vmatprep.mubr.bf16.mxu0 0
        %5203 = vmatmul.mubr.bf16.gmra.mxu0 %v4626
        %v5204 = vpop.f32.mrf.mxu0
        %v5205 = vadd.f32 0.0, %v5204
        %v5206 = vpop.f32.mrf.mxu0
        %v5207 = vpop.f32.mrf.mxu0
        %v5208 = vadd.f32 0.0, %v5207
        %v5209 = vpop.f32.mrf.mxu0
        %5210 = vmatprep.mubr.bf16.mxu0 0
        %5211 = vmatmul.mubr.bf16.gmra.mxu0 %v4627
        %v5212 = vpop.f32.mrf.mxu0
        %v5213 = vadd.f32 0.0, %v5212
        %v5214 = vpop.f32.mrf.mxu0
        %v5215 = vpop.f32.mrf.mxu0
        %v5216 = vadd.f32 0.0, %v5215
        %v5217 = vpop.f32.mrf.mxu0
        %5218 = vmatprep.mubr.bf16.mxu0 0
        %5219 = vmatmul.mubr.bf16.gmra.mxu0 %v4628
        %v5220 = vpop.f32.mrf.mxu0
        %v5221 = vadd.f32 0.0, %v5220
        %v5222 = vpop.f32.mrf.mxu0
        %v5223 = vpop.f32.mrf.mxu0
        %v5224 = vadd.f32 0.0, %v5223
        %v5225 = vpop.f32.mrf.mxu0
        %5226 = vdwg.mxu0
        %5227 = vmatprep.subr.bf16.mxu0 0
        %5228 = vmatpush1.bf16.msra.mxu0 %v2315
        %5229 = vmatprep.subr.bf16.mxu0 0
        %5230 = vmatpush1.bf16.msra.mxu0 %v2314
        %5231 = vmatprep.subr.bf16.mxu0 0
        %5232 = vmatpush1.bf16.msra.mxu0 %v2313
        %5233 = vmatprep.subr.bf16.mxu0 0
        %5234 = vmatpush1.bf16.msra.mxu0 %v2312
        %5235 = vmatprep.subr.bf16.mxu0 0
        %5236 = vmatpush1.bf16.msra.mxu0 %v2311
        %5237 = vmatprep.subr.bf16.mxu0 0
        %5238 = vmatpush1.bf16.msra.mxu0 %v2310
        %5239 = vmatprep.subr.bf16.mxu0 0
        %5240 = vmatpush1.bf16.msra.mxu0 %v2309
        %5241 = vmatprep.subr.bf16.mxu0 0
        %5242 = vmatpush1.bf16.msra.mxu0 %v2308
        %5243 = vmatprep.subr.bf16.mxu0 0
        %5244 = vmatpush2.bf16.msra.mxu0 0
        %5245 = vmatprep.subr.bf16.mxu0 0
        %5246 = vmatpush2.bf16.msra.mxu0 0
        %5247 = vmatprep.subr.bf16.mxu0 0
        %5248 = vmatpush2.bf16.msra.mxu0 0
        %5249 = vmatprep.subr.bf16.mxu0 0
        %5250 = vmatpush2.bf16.msra.mxu0 0
        %5251 = vmatprep.subr.bf16.mxu0 0
        %5252 = vmatpush2.bf16.msra.mxu0 0
        %5253 = vmatprep.subr.bf16.mxu0 0
        %5254 = vmatpush2.bf16.msra.mxu0 0
        %5255 = vmatprep.subr.bf16.mxu0 0
        %5256 = vmatpush2.bf16.msra.mxu0 0
        %5257 = vmatprep.subr.bf16.mxu0 0
        %5258 = vmatpush2.bf16.msra.mxu0 0
        %5259 = vmatprep.mubr.bf16.mxu0 0
        %5260 = vmatmul.mubr.bf16.gmra.mxu0 %v4629
        %v5261 = vpop.f32.mrf.mxu0
        %v5262 = vadd.f32 0.0, %v5261
        %v5263 = vpop.f32.mrf.mxu0
        %v5264 = vpop.f32.mrf.mxu0
        %v5265 = vadd.f32 0.0, %v5264
        %v5266 = vpop.f32.mrf.mxu0
        %5267 = vmatprep.mubr.bf16.mxu0 0
        %5268 = vmatmul.mubr.bf16.gmra.mxu0 %v4630
        %v5269 = vpop.f32.mrf.mxu0
        %v5270 = vadd.f32 0.0, %v5269
        %v5271 = vpop.f32.mrf.mxu0
        %v5272 = vpop.f32.mrf.mxu0
        %v5273 = vadd.f32 0.0, %v5272
        %v5274 = vpop.f32.mrf.mxu0
        %5275 = vmatprep.mubr.bf16.mxu0 0
        %5276 = vmatmul.mubr.bf16.gmra.mxu0 %v4631
        %v5277 = vpop.f32.mrf.mxu0
        %v5278 = vadd.f32 0.0, %v5277
        %v5279 = vpop.f32.mrf.mxu0
        %v5280 = vpop.f32.mrf.mxu0
        %v5281 = vadd.f32 0.0, %v5280
        %v5282 = vpop.f32.mrf.mxu0
        %5283 = vmatprep.mubr.bf16.mxu0 0
        %5284 = vmatmul.mubr.bf16.gmra.mxu0 %v4632
        %v5285 = vpop.f32.mrf.mxu0
        %v5286 = vadd.f32 0.0, %v5285
        %v5287 = vpop.f32.mrf.mxu0
        %v5288 = vpop.f32.mrf.mxu0
        %v5289 = vadd.f32 0.0, %v5288
        %v5290 = vpop.f32.mrf.mxu0
        %5291 = vmatprep.mubr.bf16.mxu0 0
        %5292 = vmatmul.mubr.bf16.gmra.mxu0 %v4633
        %v5293 = vpop.f32.mrf.mxu0
        %v5294 = vadd.f32 0.0, %v5293
        %v5295 = vpop.f32.mrf.mxu0
        %v5296 = vpop.f32.mrf.mxu0
        %v5297 = vadd.f32 0.0, %v5296
        %v5298 = vpop.f32.mrf.mxu0
        %5299 = vmatprep.mubr.bf16.mxu0 0
        %5300 = vmatmul.mubr.bf16.gmra.mxu0 %v4634
        %v5301 = vpop.f32.mrf.mxu0
        %v5302 = vadd.f32 0.0, %v5301
        %v5303 = vpop.f32.mrf.mxu0
        %v5304 = vpop.f32.mrf.mxu0
        %v5305 = vadd.f32 0.0, %v5304
        %v5306 = vpop.f32.mrf.mxu0
        %5307 = vmatprep.mubr.bf16.mxu0 0
        %5308 = vmatmul.mubr.bf16.gmra.mxu0 %v4635
        %v5309 = vpop.f32.mrf.mxu0
        %v5310 = vadd.f32 0.0, %v5309
        %v5311 = vpop.f32.mrf.mxu0
        %v5312 = vpop.f32.mrf.mxu0
        %v5313 = vadd.f32 0.0, %v5312
        %v5314 = vpop.f32.mrf.mxu0
        %5315 = vmatprep.mubr.bf16.mxu0 0
        %5316 = vmatmul.mubr.bf16.gmra.mxu0 %v4636
        %v5317 = vpop.f32.mrf.mxu0
        %v5318 = vadd.f32 0.0, %v5317
        %v5319 = vpop.f32.mrf.mxu0
        %v5320 = vpop.f32.mrf.mxu0
        %v5321 = vadd.f32 0.0, %v5320
        %v5322 = vpop.f32.mrf.mxu0
        %5323 = vdwg.mxu0
        %5324 = vmatprep.subr.bf16.mxu0 0
        %5325 = vmatpush1.bf16.msra.mxu0 %v2323
        %5326 = vmatprep.subr.bf16.mxu0 0
        %5327 = vmatpush1.bf16.msra.mxu0 %v2322
        %5328 = vmatprep.subr.bf16.mxu0 0
        %5329 = vmatpush1.bf16.msra.mxu0 %v2321
        %5330 = vmatprep.subr.bf16.mxu0 0
        %5331 = vmatpush1.bf16.msra.mxu0 %v2320
        %5332 = vmatprep.subr.bf16.mxu0 0
        %5333 = vmatpush1.bf16.msra.mxu0 %v2319
        %5334 = vmatprep.subr.bf16.mxu0 0
        %5335 = vmatpush1.bf16.msra.mxu0 %v2318
        %5336 = vmatprep.subr.bf16.mxu0 0
        %5337 = vmatpush1.bf16.msra.mxu0 %v2317
        %5338 = vmatprep.subr.bf16.mxu0 0
        %5339 = vmatpush1.bf16.msra.mxu0 %v2316
        %5340 = vmatprep.subr.bf16.mxu0 0
        %5341 = vmatpush2.bf16.msra.mxu0 0
        %5342 = vmatprep.subr.bf16.mxu0 0
        %5343 = vmatpush2.bf16.msra.mxu0 0
        %5344 = vmatprep.subr.bf16.mxu0 0
        %5345 = vmatpush2.bf16.msra.mxu0 0
        %5346 = vmatprep.subr.bf16.mxu0 0
        %5347 = vmatpush2.bf16.msra.mxu0 0
        %5348 = vmatprep.subr.bf16.mxu0 0
        %5349 = vmatpush2.bf16.msra.mxu0 0
        %5350 = vmatprep.subr.bf16.mxu0 0
        %5351 = vmatpush2.bf16.msra.mxu0 0
        %5352 = vmatprep.subr.bf16.mxu0 0
        %5353 = vmatpush2.bf16.msra.mxu0 0
        %5354 = vmatprep.subr.bf16.mxu0 0
        %5355 = vmatpush2.bf16.msra.mxu0 0
        %5356 = vmatprep.mubr.bf16.mxu0 0
        %5357 = vmatmul.mubr.bf16.gmra.mxu0 %v4637
        %v5358 = vpop.f32.mrf.mxu0
        %v5359 = vadd.f32 0.0, %v5358
        %v5360 = vpop.f32.mrf.mxu0
        %v5361 = vpop.f32.mrf.mxu0
        %v5362 = vadd.f32 0.0, %v5361
        %v5363 = vpop.f32.mrf.mxu0
        %5364 = vmatprep.mubr.bf16.mxu0 0
        %5365 = vmatmul.mubr.bf16.gmra.mxu0 %v4638
        %v5366 = vpop.f32.mrf.mxu0
        %v5367 = vadd.f32 0.0, %v5366
        %v5368 = vpop.f32.mrf.mxu0
        %v5369 = vpop.f32.mrf.mxu0
        %v5370 = vadd.f32 0.0, %v5369
        %v5371 = vpop.f32.mrf.mxu0
        %5372 = vmatprep.mubr.bf16.mxu0 0
        %5373 = vmatmul.mubr.bf16.gmra.mxu0 %v4639
        %v5374 = vpop.f32.mrf.mxu0
        %v5375 = vadd.f32 0.0, %v5374
        %v5376 = vpop.f32.mrf.mxu0
        %v5377 = vpop.f32.mrf.mxu0
        %v5378 = vadd.f32 0.0, %v5377
        %v5379 = vpop.f32.mrf.mxu0
        %5380 = vmatprep.mubr.bf16.mxu0 0
        %5381 = vmatmul.mubr.bf16.gmra.mxu0 %v4640
        %v5382 = vpop.f32.mrf.mxu0
        %v5383 = vadd.f32 0.0, %v5382
        %v5384 = vpop.f32.mrf.mxu0
        %v5385 = vpop.f32.mrf.mxu0
        %v5386 = vadd.f32 0.0, %v5385
        %v5387 = vpop.f32.mrf.mxu0
        %5388 = vmatprep.mubr.bf16.mxu0 0
        %5389 = vmatmul.mubr.bf16.gmra.mxu0 %v4641
        %v5390 = vpop.f32.mrf.mxu0
        %v5391 = vadd.f32 0.0, %v5390
        %v5392 = vpop.f32.mrf.mxu0
        %v5393 = vpop.f32.mrf.mxu0
        %v5394 = vadd.f32 0.0, %v5393
        %v5395 = vpop.f32.mrf.mxu0
        %5396 = vmatprep.mubr.bf16.mxu0 0
        %5397 = vmatmul.mubr.bf16.gmra.mxu0 %v4642
        %v5398 = vpop.f32.mrf.mxu0
        %v5399 = vadd.f32 0.0, %v5398
        %v5400 = vpop.f32.mrf.mxu0
        %v5401 = vpop.f32.mrf.mxu0
        %v5402 = vadd.f32 0.0, %v5401
        %v5403 = vpop.f32.mrf.mxu0
        %5404 = vmatprep.mubr.bf16.mxu0 0
        %5405 = vmatmul.mubr.bf16.gmra.mxu0 %v4643
        %v5406 = vpop.f32.mrf.mxu0
        %v5407 = vadd.f32 0.0, %v5406
        %v5408 = vpop.f32.mrf.mxu0
        %v5409 = vpop.f32.mrf.mxu0
        %v5410 = vadd.f32 0.0, %v5409
        %v5411 = vpop.f32.mrf.mxu0
        %5412 = vmatprep.mubr.bf16.mxu0 0
        %5413 = vmatmul.mubr.bf16.gmra.mxu0 %v4644
        %v5414 = vpop.f32.mrf.mxu0
        %v5415 = vadd.f32 0.0, %v5414
        %v5416 = vpop.f32.mrf.mxu0
        %v5417 = vpop.f32.mrf.mxu0
        %v5418 = vadd.f32 0.0, %v5417
        %v5419 = vpop.f32.mrf.mxu0
        %5420 = vdwg.mxu0
        %5421 = vxpose.xlu0.b32.start [1/16] %v4680, 128
        %5422 = vxpose.xlu0.b32.cont [2/16] %v4683, 128
        %5423 = vxpose.xlu0.b32.cont [3/16] %v4688, 128
        %5424 = vxpose.xlu0.b32.cont [4/16] %v4691, 128
        %5425 = vxpose.xlu0.b32.cont [5/16] %v4696, 128
        %5426 = vxpose.xlu0.b32.cont [6/16] %v4699, 128
        %5427 = vxpose.xlu0.b32.cont [7/16] %v4704, 128
        %5428 = vxpose.xlu0.b32.cont [8/16] %v4707, 128
        %5429 = vxpose.xlu0.b32.cont [9/16] %v4712, 128
        %5430 = vxpose.xlu0.b32.cont [10/16] %v4715, 128
        %5431 = vxpose.xlu0.b32.cont [11/16] %v4720, 128
        %5432 = vxpose.xlu0.b32.cont [12/16] %v4723, 128
        %5433 = vxpose.xlu0.b32.cont [13/16] %v4728, 128
        %5434 = vxpose.xlu0.b32.cont [14/16] %v4731, 128
        %5435 = vxpose.xlu0.b32.cont [15/16] %v4736, 128
        %5436 = vxpose.xlu0.b32.end [16/16] %v4739, 128
        %v5437 = vpop.trf.xlu0
        %v5438 = vpop.trf.xlu0
        %v5439 = vpop.trf.xlu0
        %v5440 = vpop.trf.xlu0
        %v5441 = vpop.trf.xlu0
        %v5442 = vpop.trf.xlu0
        %v5443 = vpop.trf.xlu0
        %v5444 = vpop.trf.xlu0
        %v5445 = vpop.trf.xlu0
        %v5446 = vpop.trf.xlu0
        %v5447 = vpop.trf.xlu0
        %v5448 = vpop.trf.xlu0
        %v5449 = vpop.trf.xlu0
        %v5450 = vpop.trf.xlu0
        %v5451 = vpop.trf.xlu0
        %v5452 = vpop.trf.xlu0
        %5453 = vxpose.xlu0.b32.start [1/16] %v4777, 128
        %5454 = vxpose.xlu0.b32.cont [2/16] %v4780, 128
        %5455 = vxpose.xlu0.b32.cont [3/16] %v4785, 128
        %5456 = vxpose.xlu0.b32.cont [4/16] %v4788, 128
        %5457 = vxpose.xlu0.b32.cont [5/16] %v4793, 128
        %5458 = vxpose.xlu0.b32.cont [6/16] %v4796, 128
        %5459 = vxpose.xlu0.b32.cont [7/16] %v4801, 128
        %5460 = vxpose.xlu0.b32.cont [8/16] %v4804, 128
        %5461 = vxpose.xlu0.b32.cont [9/16] %v4809, 128
        %5462 = vxpose.xlu0.b32.cont [10/16] %v4812, 128
        %5463 = vxpose.xlu0.b32.cont [11/16] %v4817, 128
        %5464 = vxpose.xlu0.b32.cont [12/16] %v4820, 128
        %5465 = vxpose.xlu0.b32.cont [13/16] %v4825, 128
        %5466 = vxpose.xlu0.b32.cont [14/16] %v4828, 128
        %5467 = vxpose.xlu0.b32.cont [15/16] %v4833, 128
        %5468 = vxpose.xlu0.b32.end [16/16] %v4836, 128
        %v5469 = vpop.trf.xlu0
        %v5470 = vpop.trf.xlu0
        %v5471 = vpop.trf.xlu0
        %v5472 = vpop.trf.xlu0
        %v5473 = vpop.trf.xlu0
        %v5474 = vpop.trf.xlu0
        %v5475 = vpop.trf.xlu0
        %v5476 = vpop.trf.xlu0
        %v5477 = vpop.trf.xlu0
        %v5478 = vpop.trf.xlu0
        %v5479 = vpop.trf.xlu0
        %v5480 = vpop.trf.xlu0
        %v5481 = vpop.trf.xlu0
        %v5482 = vpop.trf.xlu0
        %v5483 = vpop.trf.xlu0
        %v5484 = vpop.trf.xlu0
        %5485 = vxpose.xlu0.b32.start [1/16] %v4874, 128
        %5486 = vxpose.xlu0.b32.cont [2/16] %v4877, 128
        %5487 = vxpose.xlu0.b32.cont [3/16] %v4882, 128
        %5488 = vxpose.xlu0.b32.cont [4/16] %v4885, 128
        %5489 = vxpose.xlu0.b32.cont [5/16] %v4890, 128
        %5490 = vxpose.xlu0.b32.cont [6/16] %v4893, 128
        %5491 = vxpose.xlu0.b32.cont [7/16] %v4898, 128
        %5492 = vxpose.xlu0.b32.cont [8/16] %v4901, 128
        %5493 = vxpose.xlu0.b32.cont [9/16] %v4906, 128
        %5494 = vxpose.xlu0.b32.cont [10/16] %v4909, 128
        %5495 = vxpose.xlu0.b32.cont [11/16] %v4914, 128
        %5496 = vxpose.xlu0.b32.cont [12/16] %v4917, 128
        %5497 = vxpose.xlu0.b32.cont [13/16] %v4922, 128
        %5498 = vxpose.xlu0.b32.cont [14/16] %v4925, 128
        %5499 = vxpose.xlu0.b32.cont [15/16] %v4930, 128
        %5500 = vxpose.xlu0.b32.end [16/16] %v4933, 128
        %v5501 = vpop.trf.xlu0
        %v5502 = vpop.trf.xlu0
        %v5503 = vpop.trf.xlu0
        %v5504 = vpop.trf.xlu0
        %v5505 = vpop.trf.xlu0
        %v5506 = vpop.trf.xlu0
        %v5507 = vpop.trf.xlu0
        %v5508 = vpop.trf.xlu0
        %v5509 = vpop.trf.xlu0
        %v5510 = vpop.trf.xlu0
        %v5511 = vpop.trf.xlu0
        %v5512 = vpop.trf.xlu0
        %v5513 = vpop.trf.xlu0
        %v5514 = vpop.trf.xlu0
        %v5515 = vpop.trf.xlu0
        %v5516 = vpop.trf.xlu0
        %5517 = vxpose.xlu0.b32.start [1/16] %v4971, 128
        %5518 = vxpose.xlu0.b32.cont [2/16] %v4974, 128
        %5519 = vxpose.xlu0.b32.cont [3/16] %v4979, 128
        %5520 = vxpose.xlu0.b32.cont [4/16] %v4982, 128
        %5521 = vxpose.xlu0.b32.cont [5/16] %v4987, 128
        %5522 = vxpose.xlu0.b32.cont [6/16] %v4990, 128
        %5523 = vxpose.xlu0.b32.cont [7/16] %v4995, 128
        %5524 = vxpose.xlu0.b32.cont [8/16] %v4998, 128
        %5525 = vxpose.xlu0.b32.cont [9/16] %v5003, 128
        %5526 = vxpose.xlu0.b32.cont [10/16] %v5006, 128
        %5527 = vxpose.xlu0.b32.cont [11/16] %v5011, 128
        %5528 = vxpose.xlu0.b32.cont [12/16] %v5014, 128
        %5529 = vxpose.xlu0.b32.cont [13/16] %v5019, 128
        %5530 = vxpose.xlu0.b32.cont [14/16] %v5022, 128
        %5531 = vxpose.xlu0.b32.cont [15/16] %v5027, 128
        %5532 = vxpose.xlu0.b32.end [16/16] %v5030, 128
        %v5533 = vpop.trf.xlu0
        %v5534 = vpop.trf.xlu0
        %v5535 = vpop.trf.xlu0
        %v5536 = vpop.trf.xlu0
        %v5537 = vpop.trf.xlu0
        %v5538 = vpop.trf.xlu0
        %v5539 = vpop.trf.xlu0
        %v5540 = vpop.trf.xlu0
        %v5541 = vpop.trf.xlu0
        %v5542 = vpop.trf.xlu0
        %v5543 = vpop.trf.xlu0
        %v5544 = vpop.trf.xlu0
        %v5545 = vpop.trf.xlu0
        %v5546 = vpop.trf.xlu0
        %v5547 = vpop.trf.xlu0
        %v5548 = vpop.trf.xlu0
        %5549 = vxpose.xlu0.b32.start [1/16] %v5068, 128
        %5550 = vxpose.xlu0.b32.cont [2/16] %v5071, 128
        %5551 = vxpose.xlu0.b32.cont [3/16] %v5076, 128
        %5552 = vxpose.xlu0.b32.cont [4/16] %v5079, 128
        %5553 = vxpose.xlu0.b32.cont [5/16] %v5084, 128
        %5554 = vxpose.xlu0.b32.cont [6/16] %v5087, 128
        %5555 = vxpose.xlu0.b32.cont [7/16] %v5092, 128
        %5556 = vxpose.xlu0.b32.cont [8/16] %v5095, 128
        %5557 = vxpose.xlu0.b32.cont [9/16] %v5100, 128
        %5558 = vxpose.xlu0.b32.cont [10/16] %v5103, 128
        %5559 = vxpose.xlu0.b32.cont [11/16] %v5108, 128
        %5560 = vxpose.xlu0.b32.cont [12/16] %v5111, 128
        %5561 = vxpose.xlu0.b32.cont [13/16] %v5116, 128
        %5562 = vxpose.xlu0.b32.cont [14/16] %v5119, 128
        %5563 = vxpose.xlu0.b32.cont [15/16] %v5124, 128
        %5564 = vxpose.xlu0.b32.end [16/16] %v5127, 128
        %v5565 = vpop.trf.xlu0
        %v5566 = vpop.trf.xlu0
        %v5567 = vpop.trf.xlu0
        %v5568 = vpop.trf.xlu0
        %v5569 = vpop.trf.xlu0
        %v5570 = vpop.trf.xlu0
        %v5571 = vpop.trf.xlu0
        %v5572 = vpop.trf.xlu0
        %v5573 = vpop.trf.xlu0
        %v5574 = vpop.trf.xlu0
        %v5575 = vpop.trf.xlu0
        %v5576 = vpop.trf.xlu0
        %v5577 = vpop.trf.xlu0
        %v5578 = vpop.trf.xlu0
        %v5579 = vpop.trf.xlu0
        %v5580 = vpop.trf.xlu0
        %5581 = vxpose.xlu0.b32.start [1/16] %v5165, 128
        %5582 = vxpose.xlu0.b32.cont [2/16] %v5168, 128
        %5583 = vxpose.xlu0.b32.cont [3/16] %v5173, 128
        %5584 = vxpose.xlu0.b32.cont [4/16] %v5176, 128
        %5585 = vxpose.xlu0.b32.cont [5/16] %v5181, 128
        %5586 = vxpose.xlu0.b32.cont [6/16] %v5184, 128
        %5587 = vxpose.xlu0.b32.cont [7/16] %v5189, 128
        %5588 = vxpose.xlu0.b32.cont [8/16] %v5192, 128
        %5589 = vxpose.xlu0.b32.cont [9/16] %v5197, 128
        %5590 = vxpose.xlu0.b32.cont [10/16] %v5200, 128
        %5591 = vxpose.xlu0.b32.cont [11/16] %v5205, 128
        %5592 = vxpose.xlu0.b32.cont [12/16] %v5208, 128
        %5593 = vxpose.xlu0.b32.cont [13/16] %v5213, 128
        %5594 = vxpose.xlu0.b32.cont [14/16] %v5216, 128
        %5595 = vxpose.xlu0.b32.cont [15/16] %v5221, 128
        %5596 = vxpose.xlu0.b32.end [16/16] %v5224, 128
        %v5597 = vpop.trf.xlu0
        %v5598 = vpop.trf.xlu0
        %v5599 = vpop.trf.xlu0
        %v5600 = vpop.trf.xlu0
        %v5601 = vpop.trf.xlu0
        %v5602 = vpop.trf.xlu0
        %v5603 = vpop.trf.xlu0
        %v5604 = vpop.trf.xlu0
        %v5605 = vpop.trf.xlu0
        %v5606 = vpop.trf.xlu0
        %v5607 = vpop.trf.xlu0
        %v5608 = vpop.trf.xlu0
        %v5609 = vpop.trf.xlu0
        %v5610 = vpop.trf.xlu0
        %v5611 = vpop.trf.xlu0
        %v5612 = vpop.trf.xlu0
        %5613 = vxpose.xlu0.b32.start [1/16] %v5262, 128
        %5614 = vxpose.xlu0.b32.cont [2/16] %v5265, 128
        %5615 = vxpose.xlu0.b32.cont [3/16] %v5270, 128
        %5616 = vxpose.xlu0.b32.cont [4/16] %v5273, 128
        %5617 = vxpose.xlu0.b32.cont [5/16] %v5278, 128
        %5618 = vxpose.xlu0.b32.cont [6/16] %v5281, 128
        %5619 = vxpose.xlu0.b32.cont [7/16] %v5286, 128
        %5620 = vxpose.xlu0.b32.cont [8/16] %v5289, 128
        %5621 = vxpose.xlu0.b32.cont [9/16] %v5294, 128
        %5622 = vxpose.xlu0.b32.cont [10/16] %v5297, 128
        %5623 = vxpose.xlu0.b32.cont [11/16] %v5302, 128
        %5624 = vxpose.xlu0.b32.cont [12/16] %v5305, 128
        %5625 = vxpose.xlu0.b32.cont [13/16] %v5310, 128
        %5626 = vxpose.xlu0.b32.cont [14/16] %v5313, 128
        %5627 = vxpose.xlu0.b32.cont [15/16] %v5318, 128
        %5628 = vxpose.xlu0.b32.end [16/16] %v5321, 128
        %v5629 = vpop.trf.xlu0
        %v5630 = vpop.trf.xlu0
        %v5631 = vpop.trf.xlu0
        %v5632 = vpop.trf.xlu0
        %v5633 = vpop.trf.xlu0
        %v5634 = vpop.trf.xlu0
        %v5635 = vpop.trf.xlu0
        %v5636 = vpop.trf.xlu0
        %v5637 = vpop.trf.xlu0
        %v5638 = vpop.trf.xlu0
        %v5639 = vpop.trf.xlu0
        %v5640 = vpop.trf.xlu0
        %v5641 = vpop.trf.xlu0
        %v5642 = vpop.trf.xlu0
        %v5643 = vpop.trf.xlu0
        %v5644 = vpop.trf.xlu0
        %5645 = vxpose.xlu0.b32.start [1/16] %v5359, 128
        %5646 = vxpose.xlu0.b32.cont [2/16] %v5362, 128
        %5647 = vxpose.xlu0.b32.cont [3/16] %v5367, 128
        %5648 = vxpose.xlu0.b32.cont [4/16] %v5370, 128
        %5649 = vxpose.xlu0.b32.cont [5/16] %v5375, 128
        %5650 = vxpose.xlu0.b32.cont [6/16] %v5378, 128
        %5651 = vxpose.xlu0.b32.cont [7/16] %v5383, 128
        %5652 = vxpose.xlu0.b32.cont [8/16] %v5386, 128
        %5653 = vxpose.xlu0.b32.cont [9/16] %v5391, 128
        %5654 = vxpose.xlu0.b32.cont [10/16] %v5394, 128
        %5655 = vxpose.xlu0.b32.cont [11/16] %v5399, 128
        %5656 = vxpose.xlu0.b32.cont [12/16] %v5402, 128
        %5657 = vxpose.xlu0.b32.cont [13/16] %v5407, 128
        %5658 = vxpose.xlu0.b32.cont [14/16] %v5410, 128
        %5659 = vxpose.xlu0.b32.cont [15/16] %v5415, 128
        %5660 = vxpose.xlu0.b32.end [16/16] %v5418, 128
        %v5661 = vpop.trf.xlu0
        %v5662 = vpop.trf.xlu0
        %v5663 = vpop.trf.xlu0
        %v5664 = vpop.trf.xlu0
        %v5665 = vpop.trf.xlu0
        %v5666 = vpop.trf.xlu0
        %v5667 = vpop.trf.xlu0
        %v5668 = vpop.trf.xlu0
        %v5669 = vpop.trf.xlu0
        %v5670 = vpop.trf.xlu0
        %v5671 = vpop.trf.xlu0
        %v5672 = vpop.trf.xlu0
        %v5673 = vpop.trf.xlu0
        %v5674 = vpop.trf.xlu0
        %v5675 = vpop.trf.xlu0
        %v5676 = vpop.trf.xlu0
        %5677 = vxpose.xlu0.b32.start [1/16] %v5437, 128
        %5678 = vxpose.xlu0.b32.cont [2/16] %v5438, 128
        %5679 = vxpose.xlu0.b32.cont [3/16] %v5469, 128
        %5680 = vxpose.xlu0.b32.cont [4/16] %v5470, 128
        %5681 = vxpose.xlu0.b32.cont [5/16] %v5501, 128
        %5682 = vxpose.xlu0.b32.cont [6/16] %v5502, 128
        %5683 = vxpose.xlu0.b32.cont [7/16] %v5533, 128
        %5684 = vxpose.xlu0.b32.cont [8/16] %v5534, 128
        %5685 = vxpose.xlu0.b32.cont [9/16] 0.0, 128
        %5686 = vxpose.xlu0.b32.cont [10/16] 0.0, 128
        %5687 = vxpose.xlu0.b32.cont [11/16] 0.0, 128
        %5688 = vxpose.xlu0.b32.cont [12/16] 0.0, 128
        %5689 = vxpose.xlu0.b32.cont [13/16] 0.0, 128
        %5690 = vxpose.xlu0.b32.cont [14/16] 0.0, 128
        %5691 = vxpose.xlu0.b32.cont [15/16] 0.0, 128
        %5692 = vxpose.xlu0.b32.end [16/16] 0.0, 128
        %v5693 = vpop.trf.xlu0
        %v5694 = vpop.trf.xlu0
        %v5695 = vpop.trf.xlu0
        %v5696 = vpop.trf.xlu0
        %v5697 = vpop.trf.xlu0
        %v5698 = vpop.trf.xlu0
        %v5699 = vpop.trf.xlu0
        %v5700 = vpop.trf.xlu0
        %v5701 = vpop.trf.xlu0
        %v5702 = vpop.trf.xlu0
        %v5703 = vpop.trf.xlu0
        %v5704 = vpop.trf.xlu0
        %v5705 = vpop.trf.xlu0
        %v5706 = vpop.trf.xlu0
        %v5707 = vpop.trf.xlu0
        %v5708 = vpop.trf.xlu0
        %5709 = vxpose.xlu0.b32.start [1/16] %v5565, 128
        %5710 = vxpose.xlu0.b32.cont [2/16] %v5566, 128
        %5711 = vxpose.xlu0.b32.cont [3/16] %v5597, 128
        %5712 = vxpose.xlu0.b32.cont [4/16] %v5598, 128
        %5713 = vxpose.xlu0.b32.cont [5/16] %v5629, 128
        %5714 = vxpose.xlu0.b32.cont [6/16] %v5630, 128
        %5715 = vxpose.xlu0.b32.cont [7/16] %v5661, 128
        %5716 = vxpose.xlu0.b32.cont [8/16] %v5662, 128
        %5717 = vxpose.xlu0.b32.cont [9/16] 0.0, 128
        %5718 = vxpose.xlu0.b32.cont [10/16] 0.0, 128
        %5719 = vxpose.xlu0.b32.cont [11/16] 0.0, 128
        %5720 = vxpose.xlu0.b32.cont [12/16] 0.0, 128
        %5721 = vxpose.xlu0.b32.cont [13/16] 0.0, 128
        %5722 = vxpose.xlu0.b32.cont [14/16] 0.0, 128
        %5723 = vxpose.xlu0.b32.cont [15/16] 0.0, 128
        %5724 = vxpose.xlu0.b32.end [16/16] 0.0, 128
        %v5725 = vpop.trf.xlu0
        %v5726 = vpop.trf.xlu0
        %v5727 = vpop.trf.xlu0
        %v5728 = vpop.trf.xlu0
        %v5729 = vpop.trf.xlu0
        %v5730 = vpop.trf.xlu0
        %v5731 = vpop.trf.xlu0
        %v5732 = vpop.trf.xlu0
        %v5733 = vpop.trf.xlu0
        %v5734 = vpop.trf.xlu0
        %v5735 = vpop.trf.xlu0
        %v5736 = vpop.trf.xlu0
        %v5737 = vpop.trf.xlu0
        %v5738 = vpop.trf.xlu0
        %v5739 = vpop.trf.xlu0
        %v5740 = vpop.trf.xlu0
        %v5741 = vpack.c.bf16 %v5694, %v5693
        %v5742 = vpack.c.bf16 %v5696, %v5695
        %v5743 = vpack.c.bf16 %v5698, %v5697
        %v5744 = vpack.c.bf16 %v5700, %v5699
        %v5745 = vpack.c.bf16 %v5702, %v5701
        %v5746 = vpack.c.bf16 %v5704, %v5703
        %v5747 = vpack.c.bf16 %v5706, %v5705
        %v5748 = vpack.c.bf16 %v5708, %v5707
        %v5749 = vpack.c.bf16 %v5726, %v5725
        %v5750 = vpack.c.bf16 %v5728, %v5727
        %v5751 = vpack.c.bf16 %v5730, %v5729
        %v5752 = vpack.c.bf16 %v5732, %v5731
        %v5753 = vpack.c.bf16 %v5734, %v5733
        %v5754 = vpack.c.bf16 %v5736, %v5735
        %v5755 = vpack.c.bf16 %v5738, %v5737
        %v5756 = vpack.c.bf16 %v5740, %v5739
        %v5757 = vld [vmem:[%s6] sm:$0xf]
        %v5758 = vld [vmem:[%s6 + $0x4] sm:$0xf]
        %v5759 = vld [vmem:[%s6 + $0x8] sm:$0xf]
        %v5760 = vld [vmem:[%s6 + $0xc] sm:$0xf]
        %v5761 = vld [vmem:[%s6 + $0x10] sm:$0xf]
        %v5762 = vld [vmem:[%s6 + $0x14] sm:$0xf]
        %v5763 = vld [vmem:[%s6 + $0x18] sm:$0xf]
        %v5764 = vld [vmem:[%s6 + $0x1c] sm:$0xf]
        %v5773 = vunpack.c.l.b16 %v5757
        %v5774 = vunpack.c.l.b16 %v5758
        %v5775 = vunpack.c.l.b16 %v5759
        %v5776 = vunpack.c.l.b16 %v5760
        %v5777 = vunpack.c.l.b16 %v5761
        %v5778 = vunpack.c.l.b16 %v5762
        %v5779 = vunpack.c.l.b16 %v5763
        %v5780 = vunpack.c.l.b16 %v5764
        %v5781 = vpack.c.b16 %v5774, %v5773
        %v5782 = vpack.c.b16 %v5776, %v5775
        %v5783 = vpack.c.b16 %v5778, %v5777
        %v5784 = vpack.c.b16 %v5780, %v5779
        %vm5789 = vcmask 523264
        %v5791 = vsel %vm5789, %v5741, 0
        %v5794 = vsel %vm5789, %v5742, 0
        %v5797 = vsel %vm5789, %v5743, 0
        %v5800 = vsel %vm5789, %v5744, 0
        %v5803 = vsel %vm5789, %v5745, 0
        %v5806 = vsel %vm5789, %v5746, 0
        %v5809 = vsel %vm5789, %v5747, 0
        %v5812 = vsel %vm5789, %v5748, 0
        %v5815 = vsel %vm5789, %v5749, 0
        %v5818 = vsel %vm5789, %v5750, 0
        %v5821 = vsel %vm5789, %v5751, 0
        %v5824 = vsel %vm5789, %v5752, 0
        %v5827 = vsel %vm5789, %v5753, 0
        %v5830 = vsel %vm5789, %v5754, 0
        %v5833 = vsel %vm5789, %v5755, 0
        %v5836 = vsel %vm5789, %v5756, 0
        %5838 = vmatprep.subr.bf16.mxu0 0
        %5839 = vmatpush1.bf16.msra.mxu0 0
        %5840 = vmatprep.subr.bf16.mxu0 0
        %5841 = vmatpush1.bf16.msra.mxu0 0
        %5842 = vmatprep.subr.bf16.mxu0 0
        %5843 = vmatpush1.bf16.msra.mxu0 0
        %5844 = vmatprep.subr.bf16.mxu0 0
        %5845 = vmatpush1.bf16.msra.mxu0 0
        %5846 = vmatprep.subr.bf16.mxu0 0
        %5847 = vmatpush1.bf16.msra.mxu0 %v5784
        %5848 = vmatprep.subr.bf16.mxu0 0
        %5849 = vmatpush1.bf16.msra.mxu0 %v5783
        %5850 = vmatprep.subr.bf16.mxu0 0
        %5851 = vmatpush1.bf16.msra.mxu0 %v5782
        %5852 = vmatprep.subr.bf16.mxu0 0
        %5853 = vmatpush1.bf16.msra.mxu0 %v5781
        %5854 = vmatprep.subr.bf16.mxu0 0
        %5855 = vmatpush2.bf16.msra.mxu0 0
        %5856 = vmatprep.subr.bf16.mxu0 0
        %5857 = vmatpush2.bf16.msra.mxu0 0
        %5858 = vmatprep.subr.bf16.mxu0 0
        %5859 = vmatpush2.bf16.msra.mxu0 0
        %5860 = vmatprep.subr.bf16.mxu0 0
        %5861 = vmatpush2.bf16.msra.mxu0 0
        %5862 = vmatprep.subr.bf16.mxu0 0
        %5863 = vmatpush2.bf16.msra.mxu0 0
        %5864 = vmatprep.subr.bf16.mxu0 0
        %5865 = vmatpush2.bf16.msra.mxu0 0
        %5866 = vmatprep.subr.bf16.mxu0 0
        %5867 = vmatpush2.bf16.msra.mxu0 0
        %5868 = vmatprep.subr.bf16.mxu0 0
        %5869 = vmatpush2.bf16.msra.mxu0 0
        %5870 = vmatprep.mubr.bf16.mxu0 0
        %5871 = vmatmul.mubr.bf16.gmra.mxu0 %v5791
        %v5872 = vpop.f32.mrf.mxu0
        %v5873 = vadd.f32 0.0, %v5872
        %v5874 = vpop.f32.mrf.mxu0
        %v5875 = vpop.f32.mrf.mxu0
        %v5876 = vadd.f32 0.0, %v5875
        %v5877 = vpop.f32.mrf.mxu0
        %5878 = vmatprep.mubr.bf16.mxu0 0
        %5879 = vmatmul.mubr.bf16.gmra.mxu0 %v5794
        %v5880 = vpop.f32.mrf.mxu0
        %v5881 = vadd.f32 0.0, %v5880
        %v5882 = vpop.f32.mrf.mxu0
        %v5883 = vpop.f32.mrf.mxu0
        %v5884 = vadd.f32 0.0, %v5883
        %v5885 = vpop.f32.mrf.mxu0
        %5886 = vmatprep.mubr.bf16.mxu0 0
        %5887 = vmatmul.mubr.bf16.gmra.mxu0 %v5797
        %v5888 = vpop.f32.mrf.mxu0
        %v5889 = vadd.f32 0.0, %v5888
        %v5890 = vpop.f32.mrf.mxu0
        %v5891 = vpop.f32.mrf.mxu0
        %v5892 = vadd.f32 0.0, %v5891
        %v5893 = vpop.f32.mrf.mxu0
        %5894 = vmatprep.mubr.bf16.mxu0 0
        %5895 = vmatmul.mubr.bf16.gmra.mxu0 %v5800
        %v5896 = vpop.f32.mrf.mxu0
        %v5897 = vadd.f32 0.0, %v5896
        %v5898 = vpop.f32.mrf.mxu0
        %v5899 = vpop.f32.mrf.mxu0
        %v5900 = vadd.f32 0.0, %v5899
        %v5901 = vpop.f32.mrf.mxu0
        %5902 = vmatprep.mubr.bf16.mxu0 0
        %5903 = vmatmul.mubr.bf16.gmra.mxu0 %v5803
        %v5904 = vpop.f32.mrf.mxu0
        %v5905 = vadd.f32 0.0, %v5904
        %v5906 = vpop.f32.mrf.mxu0
        %v5907 = vpop.f32.mrf.mxu0
        %v5908 = vadd.f32 0.0, %v5907
        %v5909 = vpop.f32.mrf.mxu0
        %5910 = vmatprep.mubr.bf16.mxu0 0
        %5911 = vmatmul.mubr.bf16.gmra.mxu0 %v5806
        %v5912 = vpop.f32.mrf.mxu0
        %v5913 = vadd.f32 0.0, %v5912
        %v5914 = vpop.f32.mrf.mxu0
        %v5915 = vpop.f32.mrf.mxu0
        %v5916 = vadd.f32 0.0, %v5915
        %v5917 = vpop.f32.mrf.mxu0
        %5918 = vmatprep.mubr.bf16.mxu0 0
        %5919 = vmatmul.mubr.bf16.gmra.mxu0 %v5809
        %v5920 = vpop.f32.mrf.mxu0
        %v5921 = vadd.f32 0.0, %v5920
        %v5922 = vpop.f32.mrf.mxu0
        %v5923 = vpop.f32.mrf.mxu0
        %v5924 = vadd.f32 0.0, %v5923
        %v5925 = vpop.f32.mrf.mxu0
        %5926 = vmatprep.mubr.bf16.mxu0 0
        %5927 = vmatmul.mubr.bf16.gmra.mxu0 %v5812
        %v5928 = vpop.f32.mrf.mxu0
        %v5929 = vadd.f32 0.0, %v5928
        %v5930 = vpop.f32.mrf.mxu0
        %v5931 = vpop.f32.mrf.mxu0
        %v5932 = vadd.f32 0.0, %v5931
        %v5933 = vpop.f32.mrf.mxu0
        %5934 = vmatprep.mubr.bf16.mxu0 0
        %5935 = vmatmul.mubr.bf16.gmra.mxu0 %v5815
        %v5936 = vpop.f32.mrf.mxu0
        %v5937 = vadd.f32 0.0, %v5936
        %v5938 = vpop.f32.mrf.mxu0
        %v5939 = vpop.f32.mrf.mxu0
        %v5940 = vadd.f32 0.0, %v5939
        %v5941 = vpop.f32.mrf.mxu0
        %5942 = vmatprep.mubr.bf16.mxu0 0
        %5943 = vmatmul.mubr.bf16.gmra.mxu0 %v5818
        %v5944 = vpop.f32.mrf.mxu0
        %v5945 = vadd.f32 0.0, %v5944
        %v5946 = vpop.f32.mrf.mxu0
        %v5947 = vpop.f32.mrf.mxu0
        %v5948 = vadd.f32 0.0, %v5947
        %v5949 = vpop.f32.mrf.mxu0
        %5950 = vmatprep.mubr.bf16.mxu0 0
        %5951 = vmatmul.mubr.bf16.gmra.mxu0 %v5821
        %v5952 = vpop.f32.mrf.mxu0
        %v5953 = vadd.f32 0.0, %v5952
        %v5954 = vpop.f32.mrf.mxu0
        %v5955 = vpop.f32.mrf.mxu0
        %v5956 = vadd.f32 0.0, %v5955
        %v5957 = vpop.f32.mrf.mxu0
        %5958 = vmatprep.mubr.bf16.mxu0 0
        %5959 = vmatmul.mubr.bf16.gmra.mxu0 %v5824
        %v5960 = vpop.f32.mrf.mxu0
        %v5961 = vadd.f32 0.0, %v5960
        %v5962 = vpop.f32.mrf.mxu0
        %v5963 = vpop.f32.mrf.mxu0
        %v5964 = vadd.f32 0.0, %v5963
        %v5965 = vpop.f32.mrf.mxu0
        %5966 = vmatprep.mubr.bf16.mxu0 0
        %5967 = vmatmul.mubr.bf16.gmra.mxu0 %v5827
        %v5968 = vpop.f32.mrf.mxu0
        %v5969 = vadd.f32 0.0, %v5968
        %v5970 = vpop.f32.mrf.mxu0
        %v5971 = vpop.f32.mrf.mxu0
        %v5972 = vadd.f32 0.0, %v5971
        %v5973 = vpop.f32.mrf.mxu0
        %5974 = vmatprep.mubr.bf16.mxu0 0
        %5975 = vmatmul.mubr.bf16.gmra.mxu0 %v5830
        %v5976 = vpop.f32.mrf.mxu0
        %v5977 = vadd.f32 0.0, %v5976
        %v5978 = vpop.f32.mrf.mxu0
        %v5979 = vpop.f32.mrf.mxu0
        %v5980 = vadd.f32 0.0, %v5979
        %v5981 = vpop.f32.mrf.mxu0
        %5982 = vmatprep.mubr.bf16.mxu0 0
        %5983 = vmatmul.mubr.bf16.gmra.mxu0 %v5833
        %v5984 = vpop.f32.mrf.mxu0
        %v5985 = vadd.f32 0.0, %v5984
        %v5986 = vpop.f32.mrf.mxu0
        %v5987 = vpop.f32.mrf.mxu0
        %v5988 = vadd.f32 0.0, %v5987
        %v5989 = vpop.f32.mrf.mxu0
        %5990 = vmatprep.mubr.bf16.mxu0 0
        %5991 = vmatmul.mubr.bf16.gmra.mxu0 %v5836
        %v5992 = vpop.f32.mrf.mxu0
        %v5993 = vadd.f32 0.0, %v5992
        %v5994 = vpop.f32.mrf.mxu0
        %v5995 = vpop.f32.mrf.mxu0
        %v5996 = vadd.f32 0.0, %v5995
        %v5997 = vpop.f32.mrf.mxu0
        %5998 = vdwg.mxu0
        %v5999 = vadd.f32 %v5873, %v672
        %v6000 = vadd.f32 %v5876, %v673
        %v6001 = vadd.f32 %v5881, %v674
        %v6002 = vadd.f32 %v5884, %v675
        %v6003 = vadd.f32 %v5889, %v676
        %v6004 = vadd.f32 %v5892, %v677
        %v6005 = vadd.f32 %v5897, %v678
        %v6006 = vadd.f32 %v5900, %v679
        %v6007 = vadd.f32 %v5905, %v680
        %v6008 = vadd.f32 %v5908, %v681
        %v6009 = vadd.f32 %v5913, %v682
        %v6010 = vadd.f32 %v5916, %v683
        %v6011 = vadd.f32 %v5921, %v684
        %v6012 = vadd.f32 %v5924, %v685
        %v6013 = vadd.f32 %v5929, %v686
        %v6014 = vadd.f32 %v5932, %v687
        %v6015 = vadd.f32 %v5937, %v688
        %v6016 = vadd.f32 %v5940, %v689
        %v6017 = vadd.f32 %v5945, %v690
        %v6018 = vadd.f32 %v5948, %v691
        %v6019 = vadd.f32 %v5953, %v692
        %v6020 = vadd.f32 %v5956, %v693
        %v6021 = vadd.f32 %v5961, %v694
        %v6022 = vadd.f32 %v5964, %v695
        %v6023 = vadd.f32 %v5969, %v696
        %v6024 = vadd.f32 %v5972, %v697
        %v6025 = vadd.f32 %v5977, %v698
        %v6026 = vadd.f32 %v5980, %v699
        %v6027 = vadd.f32 %v5985, %v700
        %v6028 = vadd.f32 %v5988, %v701
        %v6029 = vadd.f32 %v5993, %v702
        %v6030 = vadd.f32 %v5996, %v703
        %v6031 = vsel %vm832, %v5999, 0.0
        %6032 = vadd.xlane.f32.xlu0 %v6031
        %v6033 = vpop.xlane.xlu0 %6032
        %v6034 = vsel %vm832, %v6000, 0.0
        %6035 = vadd.xlane.f32.xlu0 %v6034
        %v6036 = vpop.xlane.xlu0 %6035
        %v6037 = vsel %vm832, %v6001, 0.0
        %6038 = vadd.xlane.f32.xlu0 %v6037
        %v6039 = vpop.xlane.xlu0 %6038
        %v6040 = vsel %vm832, %v6002, 0.0
        %6041 = vadd.xlane.f32.xlu0 %v6040
        %v6042 = vpop.xlane.xlu0 %6041
        %v6043 = vsel %vm832, %v6003, 0.0
        %6044 = vadd.xlane.f32.xlu0 %v6043
        %v6045 = vpop.xlane.xlu0 %6044
        %v6046 = vsel %vm832, %v6004, 0.0
        %6047 = vadd.xlane.f32.xlu0 %v6046
        %v6048 = vpop.xlane.xlu0 %6047
        %v6049 = vsel %vm832, %v6005, 0.0
        %6050 = vadd.xlane.f32.xlu0 %v6049
        %v6051 = vpop.xlane.xlu0 %6050
        %v6052 = vsel %vm832, %v6006, 0.0
        %6053 = vadd.xlane.f32.xlu0 %v6052
        %v6054 = vpop.xlane.xlu0 %6053
        %v6055 = vsel %vm832, %v6007, 0.0
        %6056 = vadd.xlane.f32.xlu0 %v6055
        %v6057 = vpop.xlane.xlu0 %6056
        %v6058 = vsel %vm832, %v6008, 0.0
        %6059 = vadd.xlane.f32.xlu0 %v6058
        %v6060 = vpop.xlane.xlu0 %6059
        %v6061 = vsel %vm832, %v6009, 0.0
        %6062 = vadd.xlane.f32.xlu0 %v6061
        %v6063 = vpop.xlane.xlu0 %6062
        %v6064 = vsel %vm832, %v6010, 0.0
        %6065 = vadd.xlane.f32.xlu0 %v6064
        %v6066 = vpop.xlane.xlu0 %6065
        %v6067 = vsel %vm832, %v6011, 0.0
        %6068 = vadd.xlane.f32.xlu0 %v6067
        %v6069 = vpop.xlane.xlu0 %6068
        %v6070 = vsel %vm832, %v6012, 0.0
        %6071 = vadd.xlane.f32.xlu0 %v6070
        %v6072 = vpop.xlane.xlu0 %6071
        %v6073 = vsel %vm832, %v6013, 0.0
        %6074 = vadd.xlane.f32.xlu0 %v6073
        %v6075 = vpop.xlane.xlu0 %6074
        %v6076 = vsel %vm832, %v6014, 0.0
        %6077 = vadd.xlane.f32.xlu0 %v6076
        %v6078 = vpop.xlane.xlu0 %6077
        %v6079 = vsel %vm832, %v6015, 0.0
        %6080 = vadd.xlane.f32.xlu0 %v6079
        %v6081 = vpop.xlane.xlu0 %6080
        %v6082 = vsel %vm832, %v6016, 0.0
        %6083 = vadd.xlane.f32.xlu0 %v6082
        %v6084 = vpop.xlane.xlu0 %6083
        %v6085 = vsel %vm832, %v6017, 0.0
        %6086 = vadd.xlane.f32.xlu0 %v6085
        %v6087 = vpop.xlane.xlu0 %6086
        %v6088 = vsel %vm832, %v6018, 0.0
        %6089 = vadd.xlane.f32.xlu0 %v6088
        %v6090 = vpop.xlane.xlu0 %6089
        %v6091 = vsel %vm832, %v6019, 0.0
        %6092 = vadd.xlane.f32.xlu0 %v6091
        %v6093 = vpop.xlane.xlu0 %6092
        %v6094 = vsel %vm832, %v6020, 0.0
        %6095 = vadd.xlane.f32.xlu0 %v6094
        %v6096 = vpop.xlane.xlu0 %6095
        %v6097 = vsel %vm832, %v6021, 0.0
        %6098 = vadd.xlane.f32.xlu0 %v6097
        %v6099 = vpop.xlane.xlu0 %6098
        %v6100 = vsel %vm832, %v6022, 0.0
        %6101 = vadd.xlane.f32.xlu0 %v6100
        %v6102 = vpop.xlane.xlu0 %6101
        %v6103 = vsel %vm832, %v6023, 0.0
        %6104 = vadd.xlane.f32.xlu0 %v6103
        %v6105 = vpop.xlane.xlu0 %6104
        %v6106 = vsel %vm832, %v6024, 0.0
        %6107 = vadd.xlane.f32.xlu0 %v6106
        %v6108 = vpop.xlane.xlu0 %6107
        %v6109 = vsel %vm832, %v6025, 0.0
        %6110 = vadd.xlane.f32.xlu0 %v6109
        %v6111 = vpop.xlane.xlu0 %6110
        %v6112 = vsel %vm832, %v6026, 0.0
        %6113 = vadd.xlane.f32.xlu0 %v6112
        %v6114 = vpop.xlane.xlu0 %6113
        %v6115 = vsel %vm832, %v6027, 0.0
        %6116 = vadd.xlane.f32.xlu0 %v6115
        %v6117 = vpop.xlane.xlu0 %6116
        %v6118 = vsel %vm832, %v6028, 0.0
        %6119 = vadd.xlane.f32.xlu0 %v6118
        %v6120 = vpop.xlane.xlu0 %6119
        %v6121 = vsel %vm832, %v6029, 0.0
        %6122 = vadd.xlane.f32.xlu0 %v6121
        %v6123 = vpop.xlane.xlu0 %6122
        %v6124 = vsel %vm832, %v6030, 0.0
        %6125 = vadd.xlane.f32.xlu0 %v6124
        %v6126 = vpop.xlane.xlu0 %6125
        %v6127 = vrcp.pop 32.0
        %v6128 = vmul.f32 %v6033, %v6127
        %v6129 = vmul.f32 %v6036, %v6127
        %v6130 = vmul.f32 %v6039, %v6127
        %v6131 = vmul.f32 %v6042, %v6127
        %v6132 = vmul.f32 %v6045, %v6127
        %v6133 = vmul.f32 %v6048, %v6127
        %v6134 = vmul.f32 %v6051, %v6127
        %v6135 = vmul.f32 %v6054, %v6127
        %v6136 = vmul.f32 %v6057, %v6127
        %v6137 = vmul.f32 %v6060, %v6127
        %v6138 = vmul.f32 %v6063, %v6127
        %v6139 = vmul.f32 %v6066, %v6127
        %v6140 = vmul.f32 %v6069, %v6127
        %v6141 = vmul.f32 %v6072, %v6127
        %v6142 = vmul.f32 %v6075, %v6127
        %v6143 = vmul.f32 %v6078, %v6127
        %v6144 = vmul.f32 %v6081, %v6127
        %v6145 = vmul.f32 %v6084, %v6127
        %v6146 = vmul.f32 %v6087, %v6127
        %v6147 = vmul.f32 %v6090, %v6127
        %v6148 = vmul.f32 %v6093, %v6127
        %v6149 = vmul.f32 %v6096, %v6127
        %v6150 = vmul.f32 %v6099, %v6127
        %v6151 = vmul.f32 %v6102, %v6127
        %v6152 = vmul.f32 %v6105, %v6127
        %v6153 = vmul.f32 %v6108, %v6127
        %v6154 = vmul.f32 %v6111, %v6127
        %v6155 = vmul.f32 %v6114, %v6127
        %v6156 = vmul.f32 %v6117, %v6127
        %v6157 = vmul.f32 %v6120, %v6127
        %v6158 = vmul.f32 %v6123, %v6127
        %v6159 = vmul.f32 %v6126, %v6127
        %v6160 = vsub.f32 %v5999, %v6128
        %v6161 = vsub.f32 %v6000, %v6129
        %v6162 = vsub.f32 %v6001, %v6130
        %v6163 = vsub.f32 %v6002, %v6131
        %v6164 = vsub.f32 %v6003, %v6132
        %v6165 = vsub.f32 %v6004, %v6133
        %v6166 = vsub.f32 %v6005, %v6134
        %v6167 = vsub.f32 %v6006, %v6135
        %v6168 = vsub.f32 %v6007, %v6136
        %v6169 = vsub.f32 %v6008, %v6137
        %v6170 = vsub.f32 %v6009, %v6138
        %v6171 = vsub.f32 %v6010, %v6139
        %v6172 = vsub.f32 %v6011, %v6140
        %v6173 = vsub.f32 %v6012, %v6141
        %v6174 = vsub.f32 %v6013, %v6142
        %v6175 = vsub.f32 %v6014, %v6143
        %v6176 = vsub.f32 %v6015, %v6144
        %v6177 = vsub.f32 %v6016, %v6145
        %v6178 = vsub.f32 %v6017, %v6146
        %v6179 = vsub.f32 %v6018, %v6147
        %v6180 = vsub.f32 %v6019, %v6148
        %v6181 = vsub.f32 %v6020, %v6149
        %v6182 = vsub.f32 %v6021, %v6150
        %v6183 = vsub.f32 %v6022, %v6151
        %v6184 = vsub.f32 %v6023, %v6152
        %v6185 = vsub.f32 %v6024, %v6153
        %v6186 = vsub.f32 %v6025, %v6154
        %v6187 = vsub.f32 %v6026, %v6155
        %v6188 = vsub.f32 %v6027, %v6156
        %v6189 = vsub.f32 %v6028, %v6157
        %v6190 = vsub.f32 %v6029, %v6158
        %v6191 = vsub.f32 %v6030, %v6159
        %v6192 = vmul.f32 %v6160, %v6160
        %v6193 = vmul.f32 %v6161, %v6161
        %v6194 = vmul.f32 %v6162, %v6162
        %v6195 = vmul.f32 %v6163, %v6163
        %v6196 = vmul.f32 %v6164, %v6164
        %v6197 = vmul.f32 %v6165, %v6165
        %v6198 = vmul.f32 %v6166, %v6166
        %v6199 = vmul.f32 %v6167, %v6167
        %v6200 = vmul.f32 %v6168, %v6168
        %v6201 = vmul.f32 %v6169, %v6169
        %v6202 = vmul.f32 %v6170, %v6170
        %v6203 = vmul.f32 %v6171, %v6171
        %v6204 = vmul.f32 %v6172, %v6172
        %v6205 = vmul.f32 %v6173, %v6173
        %v6206 = vmul.f32 %v6174, %v6174
        %v6207 = vmul.f32 %v6175, %v6175
        %v6208 = vmul.f32 %v6176, %v6176
        %v6209 = vmul.f32 %v6177, %v6177
        %v6210 = vmul.f32 %v6178, %v6178
        %v6211 = vmul.f32 %v6179, %v6179
        %v6212 = vmul.f32 %v6180, %v6180
        %v6213 = vmul.f32 %v6181, %v6181
        %v6214 = vmul.f32 %v6182, %v6182
        %v6215 = vmul.f32 %v6183, %v6183
        %v6216 = vmul.f32 %v6184, %v6184
        %v6217 = vmul.f32 %v6185, %v6185
        %v6218 = vmul.f32 %v6186, %v6186
        %v6219 = vmul.f32 %v6187, %v6187
        %v6220 = vmul.f32 %v6188, %v6188
        %v6221 = vmul.f32 %v6189, %v6189
        %v6222 = vmul.f32 %v6190, %v6190
        %v6223 = vmul.f32 %v6191, %v6191
        %v6224 = vsel %vm832, %v6192, 0.0
        %6225 = vadd.xlane.f32.xlu0 %v6224
        %v6226 = vpop.xlane.xlu0 %6225
        %v6227 = vsel %vm832, %v6193, 0.0
        %6228 = vadd.xlane.f32.xlu0 %v6227
        %v6229 = vpop.xlane.xlu0 %6228
        %v6230 = vsel %vm832, %v6194, 0.0
        %6231 = vadd.xlane.f32.xlu0 %v6230
        %v6232 = vpop.xlane.xlu0 %6231
        %v6233 = vsel %vm832, %v6195, 0.0
        %6234 = vadd.xlane.f32.xlu0 %v6233
        %v6235 = vpop.xlane.xlu0 %6234
        %v6236 = vsel %vm832, %v6196, 0.0
        %6237 = vadd.xlane.f32.xlu0 %v6236
        %v6238 = vpop.xlane.xlu0 %6237
        %v6239 = vsel %vm832, %v6197, 0.0
        %6240 = vadd.xlane.f32.xlu0 %v6239
        %v6241 = vpop.xlane.xlu0 %6240
        %v6242 = vsel %vm832, %v6198, 0.0
        %6243 = vadd.xlane.f32.xlu0 %v6242
        %v6244 = vpop.xlane.xlu0 %6243
        %v6245 = vsel %vm832, %v6199, 0.0
        %6246 = vadd.xlane.f32.xlu0 %v6245
        %v6247 = vpop.xlane.xlu0 %6246
        %v6248 = vsel %vm832, %v6200, 0.0
        %6249 = vadd.xlane.f32.xlu0 %v6248
        %v6250 = vpop.xlane.xlu0 %6249
        %v6251 = vsel %vm832, %v6201, 0.0
        %6252 = vadd.xlane.f32.xlu0 %v6251
        %v6253 = vpop.xlane.xlu0 %6252
        %v6254 = vsel %vm832, %v6202, 0.0
        %6255 = vadd.xlane.f32.xlu0 %v6254
        %v6256 = vpop.xlane.xlu0 %6255
        %v6257 = vsel %vm832, %v6203, 0.0
        %6258 = vadd.xlane.f32.xlu0 %v6257
        %v6259 = vpop.xlane.xlu0 %6258
        %v6260 = vsel %vm832, %v6204, 0.0
        %6261 = vadd.xlane.f32.xlu0 %v6260
        %v6262 = vpop.xlane.xlu0 %6261
        %v6263 = vsel %vm832, %v6205, 0.0
        %6264 = vadd.xlane.f32.xlu0 %v6263
        %v6265 = vpop.xlane.xlu0 %6264
        %v6266 = vsel %vm832, %v6206, 0.0
        %6267 = vadd.xlane.f32.xlu0 %v6266
        %v6268 = vpop.xlane.xlu0 %6267
        %v6269 = vsel %vm832, %v6207, 0.0
        %6270 = vadd.xlane.f32.xlu0 %v6269
        %v6271 = vpop.xlane.xlu0 %6270
        %v6272 = vsel %vm832, %v6208, 0.0
        %6273 = vadd.xlane.f32.xlu0 %v6272
        %v6274 = vpop.xlane.xlu0 %6273
        %v6275 = vsel %vm832, %v6209, 0.0
        %6276 = vadd.xlane.f32.xlu0 %v6275
        %v6277 = vpop.xlane.xlu0 %6276
        %v6278 = vsel %vm832, %v6210, 0.0
        %6279 = vadd.xlane.f32.xlu0 %v6278
        %v6280 = vpop.xlane.xlu0 %6279
        %v6281 = vsel %vm832, %v6211, 0.0
        %6282 = vadd.xlane.f32.xlu0 %v6281
        %v6283 = vpop.xlane.xlu0 %6282
        %v6284 = vsel %vm832, %v6212, 0.0
        %6285 = vadd.xlane.f32.xlu0 %v6284
        %v6286 = vpop.xlane.xlu0 %6285
        %v6287 = vsel %vm832, %v6213, 0.0
        %6288 = vadd.xlane.f32.xlu0 %v6287
        %v6289 = vpop.xlane.xlu0 %6288
        %v6290 = vsel %vm832, %v6214, 0.0
        %6291 = vadd.xlane.f32.xlu0 %v6290
        %v6292 = vpop.xlane.xlu0 %6291
        %v6293 = vsel %vm832, %v6215, 0.0
        %6294 = vadd.xlane.f32.xlu0 %v6293
        %v6295 = vpop.xlane.xlu0 %6294
        %v6296 = vsel %vm832, %v6216, 0.0
        %6297 = vadd.xlane.f32.xlu0 %v6296
        %v6298 = vpop.xlane.xlu0 %6297
        %v6299 = vsel %vm832, %v6217, 0.0
        %6300 = vadd.xlane.f32.xlu0 %v6299
        %v6301 = vpop.xlane.xlu0 %6300
        %v6302 = vsel %vm832, %v6218, 0.0
        %6303 = vadd.xlane.f32.xlu0 %v6302
        %v6304 = vpop.xlane.xlu0 %6303
        %v6305 = vsel %vm832, %v6219, 0.0
        %6306 = vadd.xlane.f32.xlu0 %v6305
        %v6307 = vpop.xlane.xlu0 %6306
        %v6308 = vsel %vm832, %v6220, 0.0
        %6309 = vadd.xlane.f32.xlu0 %v6308
        %v6310 = vpop.xlane.xlu0 %6309
        %v6311 = vsel %vm832, %v6221, 0.0
        %6312 = vadd.xlane.f32.xlu0 %v6311
        %v6313 = vpop.xlane.xlu0 %6312
        %v6314 = vsel %vm832, %v6222, 0.0
        %6315 = vadd.xlane.f32.xlu0 %v6314
        %v6316 = vpop.xlane.xlu0 %6315
        %v6317 = vsel %vm832, %v6223, 0.0
        %6318 = vadd.xlane.f32.xlu0 %v6317
        %v6319 = vpop.xlane.xlu0 %6318
        %v6320 = vmul.f32 %v6226, %v6127
        %v6321 = vmul.f32 %v6229, %v6127
        %v6322 = vmul.f32 %v6232, %v6127
        %v6323 = vmul.f32 %v6235, %v6127
        %v6324 = vmul.f32 %v6238, %v6127
        %v6325 = vmul.f32 %v6241, %v6127
        %v6326 = vmul.f32 %v6244, %v6127
        %v6327 = vmul.f32 %v6247, %v6127
        %v6328 = vmul.f32 %v6250, %v6127
        %v6329 = vmul.f32 %v6253, %v6127
        %v6330 = vmul.f32 %v6256, %v6127
        %v6331 = vmul.f32 %v6259, %v6127
        %v6332 = vmul.f32 %v6262, %v6127
        %v6333 = vmul.f32 %v6265, %v6127
        %v6334 = vmul.f32 %v6268, %v6127
        %v6335 = vmul.f32 %v6271, %v6127
        %v6336 = vmul.f32 %v6274, %v6127
        %v6337 = vmul.f32 %v6277, %v6127
        %v6338 = vmul.f32 %v6280, %v6127
        %v6339 = vmul.f32 %v6283, %v6127
        %v6340 = vmul.f32 %v6286, %v6127
        %v6341 = vmul.f32 %v6289, %v6127
        %v6342 = vmul.f32 %v6292, %v6127
        %v6343 = vmul.f32 %v6295, %v6127
        %v6344 = vmul.f32 %v6298, %v6127
        %v6345 = vmul.f32 %v6301, %v6127
        %v6346 = vmul.f32 %v6304, %v6127
        %v6347 = vmul.f32 %v6307, %v6127
        %v6348 = vmul.f32 %v6310, %v6127
        %v6349 = vmul.f32 %v6313, %v6127
        %v6350 = vmul.f32 %v6316, %v6127
        %v6351 = vmul.f32 %v6319, %v6127
        %v6352 = vadd.f32 %v6320, 1e-05
        %v6353 = vadd.f32 %v6321, 1e-05
        %v6354 = vadd.f32 %v6322, 1e-05
        %v6355 = vadd.f32 %v6323, 1e-05
        %v6356 = vadd.f32 %v6324, 1e-05
        %v6357 = vadd.f32 %v6325, 1e-05
        %v6358 = vadd.f32 %v6326, 1e-05
        %v6359 = vadd.f32 %v6327, 1e-05
        %v6360 = vadd.f32 %v6328, 1e-05
        %v6361 = vadd.f32 %v6329, 1e-05
        %v6362 = vadd.f32 %v6330, 1e-05
        %v6363 = vadd.f32 %v6331, 1e-05
        %v6364 = vadd.f32 %v6332, 1e-05
        %v6365 = vadd.f32 %v6333, 1e-05
        %v6366 = vadd.f32 %v6334, 1e-05
        %v6367 = vadd.f32 %v6335, 1e-05
        %v6368 = vadd.f32 %v6336, 1e-05
        %v6369 = vadd.f32 %v6337, 1e-05
        %v6370 = vadd.f32 %v6338, 1e-05
        %v6371 = vadd.f32 %v6339, 1e-05
        %v6372 = vadd.f32 %v6340, 1e-05
        %v6373 = vadd.f32 %v6341, 1e-05
        %v6374 = vadd.f32 %v6342, 1e-05
        %v6375 = vadd.f32 %v6343, 1e-05
        %v6376 = vadd.f32 %v6344, 1e-05
        %v6377 = vadd.f32 %v6345, 1e-05
        %v6378 = vadd.f32 %v6346, 1e-05
        %v6379 = vadd.f32 %v6347, 1e-05
        %v6380 = vadd.f32 %v6348, 1e-05
        %v6381 = vadd.f32 %v6349, 1e-05
        %v6382 = vadd.f32 %v6350, 1e-05
        %v6383 = vadd.f32 %v6351, 1e-05
        %v6384 = vrsqrt.pop %v6352
        %v6385 = vrsqrt.pop %v6353
        %v6386 = vrsqrt.pop %v6354
        %v6387 = vrsqrt.pop %v6355
        %v6388 = vrsqrt.pop %v6356
        %v6389 = vrsqrt.pop %v6357
        %v6390 = vrsqrt.pop %v6358
        %v6391 = vrsqrt.pop %v6359
        %v6392 = vrsqrt.pop %v6360
        %v6393 = vrsqrt.pop %v6361
        %v6394 = vrsqrt.pop %v6362
        %v6395 = vrsqrt.pop %v6363
        %v6396 = vrsqrt.pop %v6364
        %v6397 = vrsqrt.pop %v6365
        %v6398 = vrsqrt.pop %v6366
        %v6399 = vrsqrt.pop %v6367
        %v6400 = vrsqrt.pop %v6368
        %v6401 = vrsqrt.pop %v6369
        %v6402 = vrsqrt.pop %v6370
        %v6403 = vrsqrt.pop %v6371
        %v6404 = vrsqrt.pop %v6372
        %v6405 = vrsqrt.pop %v6373
        %v6406 = vrsqrt.pop %v6374
        %v6407 = vrsqrt.pop %v6375
        %v6408 = vrsqrt.pop %v6376
        %v6409 = vrsqrt.pop %v6377
        %v6410 = vrsqrt.pop %v6378
        %v6411 = vrsqrt.pop %v6379
        %v6412 = vrsqrt.pop %v6380
        %v6413 = vrsqrt.pop %v6381
        %v6414 = vrsqrt.pop %v6382
        %v6415 = vrsqrt.pop %v6383
        %v6416 = vmul.f32 %v6160, %v6384
        %v6417 = vmul.f32 %v6161, %v6385
        %v6418 = vmul.f32 %v6162, %v6386
        %v6419 = vmul.f32 %v6163, %v6387
        %v6420 = vmul.f32 %v6164, %v6388
        %v6421 = vmul.f32 %v6165, %v6389
        %v6422 = vmul.f32 %v6166, %v6390
        %v6423 = vmul.f32 %v6167, %v6391
        %v6424 = vmul.f32 %v6168, %v6392
        %v6425 = vmul.f32 %v6169, %v6393
        %v6426 = vmul.f32 %v6170, %v6394
        %v6427 = vmul.f32 %v6171, %v6395
        %v6428 = vmul.f32 %v6172, %v6396
        %v6429 = vmul.f32 %v6173, %v6397
        %v6430 = vmul.f32 %v6174, %v6398
        %v6431 = vmul.f32 %v6175, %v6399
        %v6432 = vmul.f32 %v6176, %v6400
        %v6433 = vmul.f32 %v6177, %v6401
        %v6434 = vmul.f32 %v6178, %v6402
        %v6435 = vmul.f32 %v6179, %v6403
        %v6436 = vmul.f32 %v6180, %v6404
        %v6437 = vmul.f32 %v6181, %v6405
        %v6438 = vmul.f32 %v6182, %v6406
        %v6439 = vmul.f32 %v6183, %v6407
        %v6440 = vmul.f32 %v6184, %v6408
        %v6441 = vmul.f32 %v6185, %v6409
        %v6442 = vmul.f32 %v6186, %v6410
        %v6443 = vmul.f32 %v6187, %v6411
        %v6444 = vmul.f32 %v6188, %v6412
        %v6445 = vmul.f32 %v6189, %v6413
        %v6446 = vmul.f32 %v6190, %v6414
        %v6447 = vmul.f32 %v6191, %v6415
        %v6448 = vld [vmem:[#allocation9] sm:$0x1]
        %v6450 = vlaneseq
        %v6451 = vshrl.u32 %v6450, 7
        %v6452 = vsub.s32 0, %v6451
        %v6453 = vrot.slane %v6448, %v6452
        %v6455 = vmul.f32 %v6416, %v6453
        %v6456 = vmul.f32 %v6417, %v6453
        %v6457 = vmul.f32 %v6418, %v6453
        %v6458 = vmul.f32 %v6419, %v6453
        %v6459 = vmul.f32 %v6420, %v6453
        %v6460 = vmul.f32 %v6421, %v6453
        %v6461 = vmul.f32 %v6422, %v6453
        %v6462 = vmul.f32 %v6423, %v6453
        %v6463 = vmul.f32 %v6424, %v6453
        %v6464 = vmul.f32 %v6425, %v6453
        %v6465 = vmul.f32 %v6426, %v6453
        %v6466 = vmul.f32 %v6427, %v6453
        %v6467 = vmul.f32 %v6428, %v6453
        %v6468 = vmul.f32 %v6429, %v6453
        %v6469 = vmul.f32 %v6430, %v6453
        %v6470 = vmul.f32 %v6431, %v6453
        %v6471 = vmul.f32 %v6432, %v6453
        %v6472 = vmul.f32 %v6433, %v6453
        %v6473 = vmul.f32 %v6434, %v6453
        %v6474 = vmul.f32 %v6435, %v6453
        %v6475 = vmul.f32 %v6436, %v6453
        %v6476 = vmul.f32 %v6437, %v6453
        %v6477 = vmul.f32 %v6438, %v6453
        %v6478 = vmul.f32 %v6439, %v6453
        %v6479 = vmul.f32 %v6440, %v6453
        %v6480 = vmul.f32 %v6441, %v6453
        %v6481 = vmul.f32 %v6442, %v6453
        %v6482 = vmul.f32 %v6443, %v6453
        %v6483 = vmul.f32 %v6444, %v6453
        %v6484 = vmul.f32 %v6445, %v6453
        %v6485 = vmul.f32 %v6446, %v6453
        %v6486 = vmul.f32 %v6447, %v6453
        %v6487 = vld [vmem:[#allocation11] sm:$0x1]
        %v6489 = vlaneseq
        %v6490 = vshrl.u32 %v6489, 7
        %v6491 = vsub.s32 0, %v6490
        %v6492 = vrot.slane %v6487, %v6491
        %v6494 = vadd.f32 %v6455, %v6492
        %v6495 = vadd.f32 %v6456, %v6492
        %v6496 = vadd.f32 %v6457, %v6492
        %v6497 = vadd.f32 %v6458, %v6492
        %v6498 = vadd.f32 %v6459, %v6492
        %v6499 = vadd.f32 %v6460, %v6492
        %v6500 = vadd.f32 %v6461, %v6492
        %v6501 = vadd.f32 %v6462, %v6492
        %v6502 = vadd.f32 %v6463, %v6492
        %v6503 = vadd.f32 %v6464, %v6492
        %v6504 = vadd.f32 %v6465, %v6492
        %v6505 = vadd.f32 %v6466, %v6492
        %v6506 = vadd.f32 %v6467, %v6492
        %v6507 = vadd.f32 %v6468, %v6492
        %v6508 = vadd.f32 %v6469, %v6492
        %v6509 = vadd.f32 %v6470, %v6492
        %v6510 = vadd.f32 %v6471, %v6492
        %v6511 = vadd.f32 %v6472, %v6492
        %v6512 = vadd.f32 %v6473, %v6492
        %v6513 = vadd.f32 %v6474, %v6492
        %v6514 = vadd.f32 %v6475, %v6492
        %v6515 = vadd.f32 %v6476, %v6492
        %v6516 = vadd.f32 %v6477, %v6492
        %v6517 = vadd.f32 %v6478, %v6492
        %v6518 = vadd.f32 %v6479, %v6492
        %v6519 = vadd.f32 %v6480, %v6492
        %v6520 = vadd.f32 %v6481, %v6492
        %v6521 = vadd.f32 %v6482, %v6492
        %v6522 = vadd.f32 %v6483, %v6492
        %v6523 = vadd.f32 %v6484, %v6492
        %v6524 = vadd.f32 %v6485, %v6492
        %v6525 = vadd.f32 %v6486, %v6492
        %6526 = vst.msk [vmem:[%s643] sm:$0xff] %vm832, %v6494
        %6527 = vst.msk [vmem:[%s643 + $0x8] sm:$0xff] %vm832, %v6495
        %6528 = vst.msk [vmem:[%s643 + $0x10] sm:$0xff] %vm832, %v6496
        %6529 = vst.msk [vmem:[%s643 + $0x18] sm:$0xff] %vm832, %v6497
        %6530 = vst.msk [vmem:[%s643 + $0x20] sm:$0xff] %vm832, %v6498
        %6531 = vst.msk [vmem:[%s643 + $0x28] sm:$0xff] %vm832, %v6499
        %6532 = vst.msk [vmem:[%s643 + $0x30] sm:$0xff] %vm832, %v6500
        %6533 = vst.msk [vmem:[%s643 + $0x38] sm:$0xff] %vm832, %v6501
        %6534 = vst.msk [vmem:[%s643 + $0x40] sm:$0xff] %vm832, %v6502
        %6535 = vst.msk [vmem:[%s643 + $0x48] sm:$0xff] %vm832, %v6503
        %6536 = vst.msk [vmem:[%s643 + $0x50] sm:$0xff] %vm832, %v6504
        %6537 = vst.msk [vmem:[%s643 + $0x58] sm:$0xff] %vm832, %v6505
        %6538 = vst.msk [vmem:[%s643 + $0x60] sm:$0xff] %vm832, %v6506
        %6539 = vst.msk [vmem:[%s643 + $0x68] sm:$0xff] %vm832, %v6507
        %6540 = vst.msk [vmem:[%s643 + $0x70] sm:$0xff] %vm832, %v6508
        %6541 = vst.msk [vmem:[%s643 + $0x78] sm:$0xff] %vm832, %v6509
        %6542 = vst.msk [vmem:[%s643 + $0x80] sm:$0xff] %vm832, %v6510
        %6543 = vst.msk [vmem:[%s643 + $0x88] sm:$0xff] %vm832, %v6511
        %6544 = vst.msk [vmem:[%s643 + $0x90] sm:$0xff] %vm832, %v6512
        %6545 = vst.msk [vmem:[%s643 + $0x98] sm:$0xff] %vm832, %v6513
        %6546 = vst.msk [vmem:[%s643 + $0xa0] sm:$0xff] %vm832, %v6514
        %6547 = vst.msk [vmem:[%s643 + $0xa8] sm:$0xff] %vm832, %v6515
        %6548 = vst.msk [vmem:[%s643 + $0xb0] sm:$0xff] %vm832, %v6516
        %6549 = vst.msk [vmem:[%s643 + $0xb8] sm:$0xff] %vm832, %v6517
        %6550 = vst.msk [vmem:[%s643 + $0xc0] sm:$0xff] %vm832, %v6518
        %6551 = vst.msk [vmem:[%s643 + $0xc8] sm:$0xff] %vm832, %v6519
        %6552 = vst.msk [vmem:[%s643 + $0xd0] sm:$0xff] %vm832, %v6520
        %6553 = vst.msk [vmem:[%s643 + $0xd8] sm:$0xff] %vm832, %v6521
        %6554 = vst.msk [vmem:[%s643 + $0xe0] sm:$0xff] %vm832, %v6522
        %6555 = vst.msk [vmem:[%s643 + $0xe8] sm:$0xff] %vm832, %v6523
        %6556 = vst.msk [vmem:[%s643 + $0xf0] sm:$0xff] %vm832, %v6524
        %6557 = vst.msk [vmem:[%s643 + $0xf8] sm:$0xff] %vm832, %v6525
        %s6558 = sand.u32 %s256, 1
        %s6559 = sand.u32 %s256, 1
        %s6560 = smul.addr %s6559, 256
        %s6561 = scalar_lea.vmem [#allocation12], %s6560
        %s6562 = sand.u32 %s284, 1
        %s6563 = scalar_lea.sflag [#allocation5], %s6562
        %s6564 = sand.u32 %s284, 1
        %s6565 = smul.addr %s6564, 1024
        %s6566 = scalar_lea.vmem [#allocation13], %s6565
        // Predicated region
        $region115: #{tpu_custom_call.1} parent=89 // pred_check
          %p6567 = pneg %p266
        $region116: #{tpu_custom_call.1} parent=89 // pred_check_branch
          %6569 = sbr.rel (%p6567) target = $region118
        $region117: #{tpu_custom_call.1} parent=89 // pred_region
          %s6570 = smul.u32 2, %s32
          %s6571 = smul.u32 16, %s33
          %s6572 = smul.addr %s6570, 32
          %s6573 = sadd.s32 %s6571, %s6572
          %s6574 = smul.addr %s6573, 8
          %s6575 = scalar_lea.vmem %s9, %s6574
          // Predicated region
          $region119: #{tpu_custom_call.1} parent=117 // pred_check
            _
          $region120: #{tpu_custom_call.1} parent=117 // pred_check_branch
            %6577 = sbr.rel (0) target = $region122
          $region121: #{tpu_custom_call.1} parent=117 // pred_region
            // Predicated region
            $region123: #{tpu_custom_call.1} parent=121 // pred_check
              _
            $region124: #{tpu_custom_call.1} parent=121 // pred_check_branch
              %6579 = sbr.rel (0) target = $region126
            $region125: #{tpu_custom_call.1} parent=121 // pred_region
              // Predicated region
              $region138: #{tpu_custom_call.1} parent=125 // pred_check
                _
              $region139: #{tpu_custom_call.1} parent=125 // pred_check_branch
                %6657 = sbr.rel (0) target = $region141
              $region140: #{tpu_custom_call.1} parent=125 // pred_region
                loop: start=0, step=1, limit=1
                $region142: #{tpu_custom_call.1} parent=140 // loop_pre_header
                  _
                $region143: #{tpu_custom_call.1} parent=140 // loop_header
                  %s6659 = sphi 0, %s6663
                  %p6660 = scmp.ge.s32.totalorder %s6659, 1
                  %s6664 = sphi %s6561, %s6561
                  %s6665 = sphi %s6575, %s6575
                $region144: #{tpu_custom_call.1} parent=140 // loop_header_branch
                  %6662 = sbr.rel (%p6660) target = $region148
                $region145: #{tpu_custom_call.1} parent=140 // loop_body
                  %v6666 = vld [vmem:[%s6664] sm:$0xff]
                  %6667 = vst [vmem:[%s6665] sm:$0xff] %v6666
                  %v6668 = vld [vmem:[%s6664 + $0x8] sm:$0xff]
                  %6669 = vst [vmem:[%s6665 + $0x8] sm:$0xff] %v6668
                  %v6670 = vld [vmem:[%s6664 + $0x10] sm:$0xff]
                  %6671 = vst [vmem:[%s6665 + $0x10] sm:$0xff] %v6670
                  %v6672 = vld [vmem:[%s6664 + $0x18] sm:$0xff]
                  %6673 = vst [vmem:[%s6665 + $0x18] sm:$0xff] %v6672
                  %v6674 = vld [vmem:[%s6664 + $0x20] sm:$0xff]
                  %6675 = vst [vmem:[%s6665 + $0x20] sm:$0xff] %v6674
                  %v6676 = vld [vmem:[%s6664 + $0x28] sm:$0xff]
                  %6677 = vst [vmem:[%s6665 + $0x28] sm:$0xff] %v6676
                  %v6678 = vld [vmem:[%s6664 + $0x30] sm:$0xff]
                  %6679 = vst [vmem:[%s6665 + $0x30] sm:$0xff] %v6678
                  %v6680 = vld [vmem:[%s6664 + $0x38] sm:$0xff]
                  %6681 = vst [vmem:[%s6665 + $0x38] sm:$0xff] %v6680
                  %v6682 = vld [vmem:[%s6664 + $0x40] sm:$0xff]
                  %6683 = vst [vmem:[%s6665 + $0x40] sm:$0xff] %v6682
                  %v6684 = vld [vmem:[%s6664 + $0x48] sm:$0xff]
                  %6685 = vst [vmem:[%s6665 + $0x48] sm:$0xff] %v6684
                  %v6686 = vld [vmem:[%s6664 + $0x50] sm:$0xff]
                  %6687 = vst [vmem:[%s6665 + $0x50] sm:$0xff] %v6686
                  %v6688 = vld [vmem:[%s6664 + $0x58] sm:$0xff]
                  %6689 = vst [vmem:[%s6665 + $0x58] sm:$0xff] %v6688
                  %v6690 = vld [vmem:[%s6664 + $0x60] sm:$0xff]
                  %6691 = vst [vmem:[%s6665 + $0x60] sm:$0xff] %v6690
                  %v6692 = vld [vmem:[%s6664 + $0x68] sm:$0xff]
                  %6693 = vst [vmem:[%s6665 + $0x68] sm:$0xff] %v6692
                  %v6694 = vld [vmem:[%s6664 + $0x70] sm:$0xff]
                  %6695 = vst [vmem:[%s6665 + $0x70] sm:$0xff] %v6694
                  %v6696 = vld [vmem:[%s6664 + $0x78] sm:$0xff]
                  %6697 = vst [vmem:[%s6665 + $0x78] sm:$0xff] %v6696
                  %v6698 = vld [vmem:[%s6664 + $0x80] sm:$0xff]
                  %6699 = vst [vmem:[%s6665 + $0x100] sm:$0xff] %v6698
                  %v6700 = vld [vmem:[%s6664 + $0x88] sm:$0xff]
                  %6701 = vst [vmem:[%s6665 + $0x108] sm:$0xff] %v6700
                  %v6702 = vld [vmem:[%s6664 + $0x90] sm:$0xff]
                  %6703 = vst [vmem:[%s6665 + $0x110] sm:$0xff] %v6702
                  %v6704 = vld [vmem:[%s6664 + $0x98] sm:$0xff]
                  %6705 = vst [vmem:[%s6665 + $0x118] sm:$0xff] %v6704
                  %v6706 = vld [vmem:[%s6664 + $0xa0] sm:$0xff]
                  %6707 = vst [vmem:[%s6665 + $0x120] sm:$0xff] %v6706
                  %v6708 = vld [vmem:[%s6664 + $0xa8] sm:$0xff]
                  %6709 = vst [vmem:[%s6665 + $0x128] sm:$0xff] %v6708
                  %v6710 = vld [vmem:[%s6664 + $0xb0] sm:$0xff]
                  %6711 = vst [vmem:[%s6665 + $0x130] sm:$0xff] %v6710
                  %v6712 = vld [vmem:[%s6664 + $0xb8] sm:$0xff]
                  %6713 = vst [vmem:[%s6665 + $0x138] sm:$0xff] %v6712
                  %v6714 = vld [vmem:[%s6664 + $0xc0] sm:$0xff]
                  %6715 = vst [vmem:[%s6665 + $0x140] sm:$0xff] %v6714
                  %v6716 = vld [vmem:[%s6664 + $0xc8] sm:$0xff]
                  %6717 = vst [vmem:[%s6665 + $0x148] sm:$0xff] %v6716
                  %v6718 = vld [vmem:[%s6664 + $0xd0] sm:$0xff]
                  %6719 = vst [vmem:[%s6665 + $0x150] sm:$0xff] %v6718
                  %v6720 = vld [vmem:[%s6664 + $0xd8] sm:$0xff]
                  %6721 = vst [vmem:[%s6665 + $0x158] sm:$0xff] %v6720
                  %v6722 = vld [vmem:[%s6664 + $0xe0] sm:$0xff]
                  %6723 = vst [vmem:[%s6665 + $0x160] sm:$0xff] %v6722
                  %v6724 = vld [vmem:[%s6664 + $0xe8] sm:$0xff]
                  %6725 = vst [vmem:[%s6665 + $0x168] sm:$0xff] %v6724
                  %v6726 = vld [vmem:[%s6664 + $0xf0] sm:$0xff]
                  %6727 = vst [vmem:[%s6665 + $0x170] sm:$0xff] %v6726
                  %v6728 = vld [vmem:[%s6664 + $0xf8] sm:$0xff]
                  %6729 = vst [vmem:[%s6665 + $0x178] sm:$0xff] %v6728
                $region146: #{tpu_custom_call.1} parent=140 // loop_footer
                  %s6663 = sadd.s32 1, %s6659
                $region147: #{tpu_custom_call.1} parent=140 // loop_footer_branch
                  %6658 = sbr.rel target = $region143
                $region148: #{tpu_custom_call.1} parent=140 // loop_exit
                  _
              $region141: #{tpu_custom_call.1} parent=125 // pred_fallthru
                _
              // Predicated region
              $region149: #{tpu_custom_call.1} parent=125 // pred_check
                _
              $region150: #{tpu_custom_call.1} parent=125 // pred_check_branch
                %6731 = sbr.rel target = $region152
              $region151: #{tpu_custom_call.1} parent=125 // pred_region
                _
              $region152: #{tpu_custom_call.1} parent=125 // pred_fallthru
                _
            $region126: #{tpu_custom_call.1} parent=121 // pred_fallthru
              _
            // Predicated region
            $region127: #{tpu_custom_call.1} parent=121 // pred_check
              _
            $region128: #{tpu_custom_call.1} parent=121 // pred_check_branch
              %6581 = sbr.rel target = $region130
            $region129: #{tpu_custom_call.1} parent=121 // pred_region
              %s6583 = ssub.s32 256, 1
              loop: start=0, step=1, limit=1
              $region131: #{tpu_custom_call.1} parent=129 // loop_pre_header
                _
              $region132: #{tpu_custom_call.1} parent=129 // loop_header
                %s6585 = sphi 0, %s6589
                %p6586 = scmp.ge.s32.totalorder %s6585, 1
                %s6590 = sphi %s6561, %s6561
                %s6591 = sphi %s6575, %s6575
              $region133: #{tpu_custom_call.1} parent=129 // loop_header_branch
                %6588 = sbr.rel (%p6586) target = $region137
              $region134: #{tpu_custom_call.1} parent=129 // loop_body
                %v6592 = vld [vmem:[%s6590] sm:%s6583]
                %6593 = vst [vmem:[%s6591] sm:%s6583] %v6592
                %v6594 = vld [vmem:[%s6590 + $0x8] sm:%s6583]
                %6595 = vst [vmem:[%s6591 + $0x8] sm:%s6583] %v6594
                %v6596 = vld [vmem:[%s6590 + $0x10] sm:%s6583]
                %6597 = vst [vmem:[%s6591 + $0x10] sm:%s6583] %v6596
                %v6598 = vld [vmem:[%s6590 + $0x18] sm:%s6583]
                %6599 = vst [vmem:[%s6591 + $0x18] sm:%s6583] %v6598
                %v6600 = vld [vmem:[%s6590 + $0x20] sm:%s6583]
                %6601 = vst [vmem:[%s6591 + $0x20] sm:%s6583] %v6600
                %v6602 = vld [vmem:[%s6590 + $0x28] sm:%s6583]
                %6603 = vst [vmem:[%s6591 + $0x28] sm:%s6583] %v6602
                %v6604 = vld [vmem:[%s6590 + $0x30] sm:%s6583]
                %6605 = vst [vmem:[%s6591 + $0x30] sm:%s6583] %v6604
                %v6606 = vld [vmem:[%s6590 + $0x38] sm:%s6583]
                %6607 = vst [vmem:[%s6591 + $0x38] sm:%s6583] %v6606
                %v6608 = vld [vmem:[%s6590 + $0x40] sm:%s6583]
                %6609 = vst [vmem:[%s6591 + $0x40] sm:%s6583] %v6608
                %v6610 = vld [vmem:[%s6590 + $0x48] sm:%s6583]
                %6611 = vst [vmem:[%s6591 + $0x48] sm:%s6583] %v6610
                %v6612 = vld [vmem:[%s6590 + $0x50] sm:%s6583]
                %6613 = vst [vmem:[%s6591 + $0x50] sm:%s6583] %v6612
                %v6614 = vld [vmem:[%s6590 + $0x58] sm:%s6583]
                %6615 = vst [vmem:[%s6591 + $0x58] sm:%s6583] %v6614
                %v6616 = vld [vmem:[%s6590 + $0x60] sm:%s6583]
                %6617 = vst [vmem:[%s6591 + $0x60] sm:%s6583] %v6616
                %v6618 = vld [vmem:[%s6590 + $0x68] sm:%s6583]
                %6619 = vst [vmem:[%s6591 + $0x68] sm:%s6583] %v6618
                %v6620 = vld [vmem:[%s6590 + $0x70] sm:%s6583]
                %6621 = vst [vmem:[%s6591 + $0x70] sm:%s6583] %v6620
                %v6622 = vld [vmem:[%s6590 + $0x78] sm:%s6583]
                %6623 = vst [vmem:[%s6591 + $0x78] sm:%s6583] %v6622
                %v6624 = vld [vmem:[%s6590 + $0x80] sm:%s6583]
                %6625 = vst [vmem:[%s6591 + $0x100] sm:%s6583] %v6624
                %v6626 = vld [vmem:[%s6590 + $0x88] sm:%s6583]
                %6627 = vst [vmem:[%s6591 + $0x108] sm:%s6583] %v6626
                %v6628 = vld [vmem:[%s6590 + $0x90] sm:%s6583]
                %6629 = vst [vmem:[%s6591 + $0x110] sm:%s6583] %v6628
                %v6630 = vld [vmem:[%s6590 + $0x98] sm:%s6583]
                %6631 = vst [vmem:[%s6591 + $0x118] sm:%s6583] %v6630
                %v6632 = vld [vmem:[%s6590 + $0xa0] sm:%s6583]
                %6633 = vst [vmem:[%s6591 + $0x120] sm:%s6583] %v6632
                %v6634 = vld [vmem:[%s6590 + $0xa8] sm:%s6583]
                %6635 = vst [vmem:[%s6591 + $0x128] sm:%s6583] %v6634
                %v6636 = vld [vmem:[%s6590 + $0xb0] sm:%s6583]
                %6637 = vst [vmem:[%s6591 + $0x130] sm:%s6583] %v6636
                %v6638 = vld [vmem:[%s6590 + $0xb8] sm:%s6583]
                %6639 = vst [vmem:[%s6591 + $0x138] sm:%s6583] %v6638
                %v6640 = vld [vmem:[%s6590 + $0xc0] sm:%s6583]
                %6641 = vst [vmem:[%s6591 + $0x140] sm:%s6583] %v6640
                %v6642 = vld [vmem:[%s6590 + $0xc8] sm:%s6583]
                %6643 = vst [vmem:[%s6591 + $0x148] sm:%s6583] %v6642
                %v6644 = vld [vmem:[%s6590 + $0xd0] sm:%s6583]
                %6645 = vst [vmem:[%s6591 + $0x150] sm:%s6583] %v6644
                %v6646 = vld [vmem:[%s6590 + $0xd8] sm:%s6583]
                %6647 = vst [vmem:[%s6591 + $0x158] sm:%s6583] %v6646
                %v6648 = vld [vmem:[%s6590 + $0xe0] sm:%s6583]
                %6649 = vst [vmem:[%s6591 + $0x160] sm:%s6583] %v6648
                %v6650 = vld [vmem:[%s6590 + $0xe8] sm:%s6583]
                %6651 = vst [vmem:[%s6591 + $0x168] sm:%s6583] %v6650
                %v6652 = vld [vmem:[%s6590 + $0xf0] sm:%s6583]
                %6653 = vst [vmem:[%s6591 + $0x170] sm:%s6583] %v6652
                %v6654 = vld [vmem:[%s6590 + $0xf8] sm:%s6583]
                %6655 = vst [vmem:[%s6591 + $0x178] sm:%s6583] %v6654
              $region135: #{tpu_custom_call.1} parent=129 // loop_footer
                %s6589 = sadd.s32 1, %s6585
              $region136: #{tpu_custom_call.1} parent=129 // loop_footer_branch
                %6584 = sbr.rel target = $region132
              $region137: #{tpu_custom_call.1} parent=129 // loop_exit
                _
            $region130: #{tpu_custom_call.1} parent=121 // pred_fallthru
              _
          $region122: #{tpu_custom_call.1} parent=117 // pred_fallthru
            _
          %6732 = vnop
        $region118: #{tpu_custom_call.1} parent=89 // pred_fallthru
          _
        // Predicated region
        $region153: #{tpu_custom_call.1} parent=89 // pred_check
          %p6733 = pneg %p294
        $region154: #{tpu_custom_call.1} parent=89 // pred_check_branch
          %6735 = sbr.rel (%p6733) target = $region156
        $region155: #{tpu_custom_call.1} parent=89 // pred_region
          #allocation15 [shape = 'u32[6]{0}', space=smem, size = 0x18, scoped, tag = 'DMA stride descriptor']
          %s6736 = smul.u32 8, %s32
          %s6737 = smul.u32 16, %s33
          %s6739 = ssub.s32 16384, 16384
          %6740 = vsyncadd %s6563, %s6739
          %s6741 = smul.addr %s6736, 32
          %s6742 = sadd.s32 %s6737, %s6741
          %s6743 = smul.addr %s6742, 128
          %s6744 = scalar_lea.hbm %s10, %s6743
          %s6746 = sshll.u32 1, 14
          %s6747 = sxor.u32 4294967295, %s6746
          %s6750 = sshll.u32 7, 18
          %s6751 = sxor.u32 4294967295, %s6750
          %s6752 = sand.u32 0, %s6751
          %s6754 = sor.u32 %s6752, 0
          %s6755 = sshll.u32 %s6566, 4
          %s6756 = int_to_ptr.vmem [resolvable:$true] %s6755
          %6762 = sst [smem:[#allocation15]] 2048
          %s6763 = scalar_lea.smem [#allocation15], 1
          %6764 = sst [smem:[%s6763]] 4096
          %s6765 = scalar_lea.smem [#allocation15], 2
          %6766 = sst [smem:[%s6765]] 16
          %s6767 = scalar_lea.smem [#allocation15], 3
          %6768 = sst [smem:[%s6767]] 128
          %s6769 = scalar_lea.smem [#allocation15], 4
          %6770 = sst [smem:[%s6769]] 128
          %s6771 = scalar_lea.smem [#allocation15], 5
          %6772 = sst [smem:[%s6771]] 8
          %6774 = dma.general %s6756, 16384, %s6744, %s6563, 131072, [#allocation15], %s6754, 0
        $region156: #{tpu_custom_call.1} parent=89 // pred_fallthru
          _
      $region90: #{tpu_custom_call.1} parent=5 // pred_fallthru
        _
      %p6775 = scmp.le.s32.totalorder 2, %s23
      // Predicated region
      $region157: #{tpu_custom_call.1} parent=5 // pred_check
        %p6776 = pneg %p6775
      $region158: #{tpu_custom_call.1} parent=5 // pred_check_branch
        %6778 = sbr.rel (%p6776) target = $region160
      $region159: #{tpu_custom_call.1} parent=5 // pred_region
        %s6779 = ssub.s32 %s23, 2
        // Predicated region
        $region161: #{tpu_custom_call.1} parent=159 // pred_check
          %p6780 = pneg %p272
        $region162: #{tpu_custom_call.1} parent=159 // pred_check_branch
          %6782 = sbr.rel (%p6780) target = $region164
        $region163: #{tpu_custom_call.1} parent=159 // pred_region
          %s6783 = sand.u32 %s257, 1
          %s6784 = sand.u32 %s257, 1
          %s6785 = smul.addr %s6784, 256
          %s6786 = scalar_lea.vmem [#allocation12], %s6785
        $region164: #{tpu_custom_call.1} parent=159 // pred_fallthru
          _
        // Predicated region
        $region165: #{tpu_custom_call.1} parent=159 // pred_check
          %p6787 = pneg %p300
        $region166: #{tpu_custom_call.1} parent=159 // pred_check_branch
          %6789 = sbr.rel (%p6787) target = $region168
        $region167: #{tpu_custom_call.1} parent=159 // pred_region
          %s6790 = sand.u32 %s285, 1
          %s6791 = scalar_lea.sflag [#allocation5], %s6790
          %s6792 = sand.u32 %s285, 1
          %s6793 = smul.addr %s6792, 1024
          %s6794 = scalar_lea.vmem [#allocation13], %s6793
          %6795 = dma.done %s6791, 16384
        $region168: #{tpu_custom_call.1} parent=159 // pred_fallthru
          _
      $region160: #{tpu_custom_call.1} parent=5 // pred_fallthru
        _
    $region6: #{tpu_custom_call.1} parent=1 // loop_footer
      %s27 = sadd.s32 1, %s23
    $region7: #{tpu_custom_call.1} parent=1 // loop_footer_branch
      %22 = sbr.rel target = $region3
    $region8: #{tpu_custom_call.1} parent=1 // loop_exit
      _
    %6796 = vsyncpa [#allocation4], 1
    %s6797 = scalar_lea.sflag [#allocation4], 1
    %6798 = vsyncpa %s6797, 1
    %6799 = vsyncpa [#allocation7], 1
    %6800 = vsyncpa [#allocation10], 1
    %6801 = vsyncpa [#allocation5], 1
    %s6802 = scalar_lea.sflag [#allocation5], 1
    %6803 = vsyncpa %s6802, 1

</llo_original>
